<compile_context>
chip_gen: v7x
topology: tpu7x:2x2x1
jax: 0.10.0
libtpu: 0.0.40
codegen_flags: <defaults>
</compile_context>

<pallas_src>
import functools
import math

import jax
import jax.numpy as jnp
from jax import lax
from jax.experimental import pallas as pl
from jax.experimental.pallas import tpu as pltpu


# ----------------------------- shared helpers ------------------------------ #

def _gelu_tanh(x):
    c = math.sqrt(2.0 / math.pi)
    return 0.5 * x * (1.0 + jnp.tanh(c * (x + 0.044715 * x * x * x)))


def _layer_norm(v, g, b, eps=1e-5):
    mu = jnp.mean(v, axis=-1, keepdims=True)
    var = jnp.mean((v - mu) ** 2, axis=-1, keepdims=True)
    return (v - mu) * lax.rsqrt(var + eps) * g + b


def _mm(a, w):
    """bf16 x bf16 matmul with f32 accumulation on the MXU."""
    return jnp.dot(a.astype(jnp.bfloat16), w.astype(jnp.bfloat16),
                   preferred_element_type=jnp.float32)


# Row indices into the packed (15, D) vector operand.
_LN1G, _LN1B, _LN2G, _LN2B, _LN3G, _LN3B = 0, 1, 2, 3, 4, 5
_BQ1, _BK1, _BV1, _BO1 = 6, 7, 8, 9
_BQ2, _BK2, _BV2, _BO2 = 10, 11, 12, 13
_B2 = 14
_NUM_VEC = 15


def _row(vecs, i):
    return vecs[i:i + 1, :]          # (1, D), broadcasts over rows


# --------------------------------- kernel ---------------------------------- #

def _mha(q, k, v, *, num_heads, bt, sq, skv):
    """Multi-head attention over a block of `bt` sequences.

    q: (bt*sq, D), k/v: (bt*skv, D), f32. Returns concatenated per-head
    contexts (bt*sq, D) f32; the output projection is applied by the caller
    as one full-width matmul.
    """
    D = q.shape[-1]
    hd = D // num_heads
    q = q * (1.0 / math.sqrt(hd))                 # fold softmax scale into Q once
    heads = []
    for h in range(num_heads):                    # static unroll; heads are few
        lo = h * hd
        qh = q[:, lo:lo + hd].astype(jnp.bfloat16).reshape(bt, sq, hd)
        kh = k[:, lo:lo + hd].astype(jnp.bfloat16).reshape(bt, skv, hd)
        vh = v[:, lo:lo + hd].astype(jnp.bfloat16).reshape(bt, skv, hd)
        # batched over sequences; contracts hd directly -> no explicit K^T
        s = jnp.einsum("bqd,bkd->bqk", qh, kh,
                       preferred_element_type=jnp.float32)        # (bt,sq,skv)
        s = s - jnp.max(s, axis=-1, keepdims=True)
        p = jnp.exp(s)
        p = p * pl.reciprocal(jnp.sum(p, axis=-1, keepdims=True), approx=True)
        c = jnp.einsum("bqk,bkd->bqd", p.astype(jnp.bfloat16), vh,
                       preferred_element_type=jnp.float32)        # (bt,sq,hd)
        heads.append(c.reshape(bt * sq, hd))
    return jnp.concatenate(heads, axis=-1)                        # (bt*sq, D)


def decoder_layer_kernel(
    x_ref, kin_ref, vin_ref,
    vec_ref, b1_ref,
    wqkv1_ref, wo1_ref, wqkv2_ref, wo2_ref, w1_ref, w2_ref,
    o_ref,
    *, num_heads, bt, sq, skv,
):
    D = x_ref.shape[-1]
    vecs = vec_ref[...]                                  # (15, D) f32

    x = x_ref[...].reshape(bt * sq, D).astype(jnp.float32)   # (M, D)
    k_in = kin_ref[...].reshape(bt * skv, D)                  # bf16 memory K
    v_in = vin_ref[...].reshape(bt * skv, D)                  # bf16 memory V

    # ---- self-attention: x = LN1(x); x = x + SelfAttn(x, x, x) ----
    x = _layer_norm(x, _row(vecs, _LN1G), _row(vecs, _LN1B))
    qkv = _mm(x, wqkv1_ref[...])                              # fused Q|K|V (M, 3D)
    q = qkv[:, :D] + _row(vecs, _BQ1)
    k = qkv[:, D:2 * D] + _row(vecs, _BK1)
    v = qkv[:, 2 * D:] + _row(vecs, _BV1)
    ctx = _mha(q, k, v, num_heads=num_heads, bt=bt, sq=sq, skv=sq)
    x = x + (_mm(ctx, wo1_ref[...]) + _row(vecs, _BO1))       # residual from LN1 out

    # ---- cross-attention: x = LN2(x); x = x + CrossAttn(x, k_mem, v_mem) ----
    x = _layer_norm(x, _row(vecs, _LN2G), _row(vecs, _LN2B))
    q2 = _mm(x, wqkv2_ref[:, :D]) + _row(vecs, _BQ2)
    k2 = _mm(k_in, wqkv2_ref[:, D:2 * D]) + _row(vecs, _BK2)
    v2 = _mm(v_in, wqkv2_ref[:, 2 * D:]) + _row(vecs, _BV2)
    ctx2 = _mha(q2, k2, v2, num_heads=num_heads, bt=bt, sq=sq, skv=skv)
    x = x + (_mm(ctx2, wo2_ref[...]) + _row(vecs, _BO2))      # residual from LN2 out

    # ---- feed-forward: x = LN3(x); out = x + W2(GELU(W1 x + b1)) + b2 ----
    x = _layer_norm(x, _row(vecs, _LN3G), _row(vecs, _LN3B))
    h = _gelu_tanh(_mm(x, w1_ref[...]) + b1_ref[...])         # Dropout == identity
    h = _mm(h, w2_ref[...]) + _row(vecs, _B2)
    o_ref[...] = (x + h).reshape(bt, sq, D).astype(o_ref.dtype)


# -------------------------------- wrapper ----------------------------------- #

def pack_params(params):
    """One-time packing of per-module params into kernel operands (hoisted out
    of the forward path)."""
    w_qkv1 = jnp.concatenate([params["wq1"], params["wk1"], params["wv1"]], axis=1)
    w_qkv2 = jnp.concatenate([params["wq2"], params["wk2"], params["wv2"]], axis=1)
    vecs = jnp.concatenate([
        params["ln1_g"], params["ln1_b"],
        params["ln2_g"], params["ln2_b"],
        params["ln3_g"], params["ln3_b"],
        params["bq1"], params["bk1"], params["bv1"], params["bo1"],
        params["bq2"], params["bk2"], params["bv2"], params["bo2"],
        params["b2"],
    ], axis=0).astype(jnp.float32)                            # (15, D)
    return {
        "w_qkv1": w_qkv1, "wo1": params["wo1"],
        "w_qkv2": w_qkv2, "wo2": params["wo2"],
        "w1": params["w1"], "w2": params["w2"],
        "vecs": vecs, "b1": params["b1"].astype(jnp.float32),
    }


def _pick_block_b(B, Sq, target_m=256):
    """Largest divisor of B keeping M = block_b * Sq near the MXU-friendly target."""
    best = 1
    cap = max(target_m, Sq)
    for bt in range(1, B + 1):
        if B % bt == 0 and bt * Sq <= cap:
            best = bt
    return best


def transformer_decoder_layer(x, k, v, packed, *, num_heads, block_b=None):
    """x: (B, Sq, D); k, v: (B, Skv, D) cross-attention memory."""
    B, Sq, D = x.shape
    Skv = k.shape[1]
    dim_ff = packed["w1"].shape[1]

    bt = block_b if block_b is not None else _pick_block_b(B, Sq)
    assert B % bt == 0, "block_b must divide batch size"

    # bf16 activations at the boundary: halves per-step HBM<->VMEM traffic.
    x = x.astype(jnp.bfloat16)
    k = k.astype(jnp.bfloat16)
    v = v.astype(jnp.bfloat16)

    def wspec(shape):
        # Grid-invariant operand: same block every step -> single-buffer it
        # (double buffering gives no overlap, only doubles VMEM footprint).
        nd = len(shape)
        return pl.BlockSpec(shape, lambda b, _nd=nd: (0,) * _nd,
                            pipeline_mode=pl.Buffered(1))

    in_specs = [
        pl.BlockSpec((bt, Sq, D), lambda b: (b, 0, 0)),    # x block
        pl.BlockSpec((bt, Skv, D), lambda b: (b, 0, 0)),   # memory K block
        pl.BlockSpec((bt, Skv, D), lambda b: (b, 0, 0)),   # memory V block
        wspec((_NUM_VEC, D)),                              # packed LN params + biases
        wspec((1, dim_ff)),                                # b1
        wspec((D, 3 * D)),                                 # fused self Q|K|V weight
        wspec((D, D)),                                     # self output proj
        wspec((D, 3 * D)),                                 # fused cross Q|K|V weight
        wspec((D, D)),                                     # cross output proj
        wspec((D, dim_ff)),                                # W1
        wspec((dim_ff, D)),                                # W2
    ]

    kernel = functools.partial(decoder_layer_kernel,
                               num_heads=num_heads, bt=bt, sq=Sq, skv=Skv)

    return pl.pallas_call(
        kernel,
        out_shape=jax.ShapeDtypeStruct((B, Sq, D), jnp.float32),
        grid_spec=pltpu.PrefetchScalarGridSpec(
            num_scalar_prefetch=0,
            grid=(B // bt,),
            in_specs=in_specs,
            out_specs=pl.BlockSpec((bt, Sq, D), lambda b: (b, 0, 0)),
        ),
        compiler_params=pltpu.CompilerParams(
            dimension_semantics=("parallel",),
            # 48 MiB: headroom under v7x's 64 MiB physical VMEM, well below
            # v5e/v6e's 128 MiB.
            vmem_limit_bytes=48 * 1024 * 1024,
        ),
    )(
        x, k, v,
        packed["vecs"], packed["b1"],
        packed["w_qkv1"], packed["wo1"],
        packed["w_qkv2"], packed["wo2"],
        packed["w1"], packed["w2"],
    )


# ----------------------------- params / reference --------------------------- #

def init_params(key, dim_model, dim_ff):
    """Deterministic synthetic parameters. Linear weights stored (in, out), bf16."""
    ks = jax.random.split(key, 16)
    D, F = dim_model, dim_ff

    def xavier(k, fan_in, fan_out):
        limit = math.sqrt(6.0 / (fan_in + fan_out))
        w = jax.random.uniform(k, (fan_in, fan_out), jnp.float32, -limit, limit)
        return w.astype(jnp.bfloat16)            # weights stored bf16 (MXU-native)

    def bias(k, n, scale=0.01):
        return scale * jax.random.normal(k, (1, n), jnp.float32)

    return {
        # self-attention
        "wq1": xavier(ks[0], D, D), "bq1": bias(ks[8], D),
        "wk1": xavier(ks[1], D, D), "bk1": jnp.zeros((1, D), jnp.float32),
        "wv1": xavier(ks[2], D, D), "bv1": jnp.full((1, D), 0.02, jnp.float32),
        "wo1": xavier(ks[3], D, D), "bo1": bias(ks[9], D),
        # cross-attention
        "wq2": xavier(ks[4], D, D), "bq2": bias(ks[10], D),
        "wk2": xavier(ks[5], D, D), "bk2": jnp.zeros((1, D), jnp.float32),
        "wv2": xavier(ks[6], D, D), "bv2": jnp.full((1, D), 0.01, jnp.float32),
        "wo2": xavier(ks[7], D, D), "bo2": jnp.zeros((1, D), jnp.float32),
        # feed-forward
        "w1": xavier(ks[11], D, F), "b1": bias(ks[12], F),
        "w2": xavier(ks[13], F, D), "b2": jnp.zeros((1, D), jnp.float32),
        # layer norms
        "ln1_g": jnp.ones((1, D), jnp.float32), "ln1_b": jnp.zeros((1, D), jnp.float32),
        "ln2_g": jnp.ones((1, D), jnp.float32), "ln2_b": jnp.zeros((1, D), jnp.float32),
        "ln3_g": jnp.ones((1, D), jnp.float32), "ln3_b": jnp.zeros((1, D), jnp.float32),
    }


def _ref_mha(q, k, v, wq, bq, wk, bk, wv, bv, wo, bo, num_heads):
    B, Sq, D = q.shape
    Skv = k.shape[1]
    hd = D // num_heads
    qp = _mm(q, wq) + bq[0]
    kp = _mm(k, wk) + bk[0]
    vp = _mm(v, wv) + bv[0]
    qp = (qp * (1.0 / math.sqrt(hd))).reshape(B, Sq, num_heads, hd).transpose(0, 2, 1, 3)
    kp = kp.reshape(B, Skv, num_heads, hd).transpose(0, 2, 1, 3)
    vp = vp.reshape(B, Skv, num_heads, hd).transpose(0, 2, 1, 3)
    s = jnp.einsum("bhqd,bhkd->bhqk", qp.astype(jnp.bfloat16),
                   kp.astype(jnp.bfloat16), preferred_element_type=jnp.float32)
    p = jax.nn.softmax(s, axis=-1)
    a = jnp.einsum("bhqk,bhkd->bhqd", p.astype(jnp.bfloat16),
                   vp.astype(jnp.bfloat16), preferred_element_type=jnp.float32)
    a = a.transpose(0, 2, 1, 3).reshape(B, Sq, D)
    return _mm(a, wo) + bo[0]


def reference_forward(x, k, v, params, *, num_heads):
    """Pure-JAX reference mirroring the eval-mode decoder-layer semantics."""
    p = params
    x = _layer_norm(x, p["ln1_g"][0], p["ln1_b"][0])
    x = x + _ref_mha(x, x, x, p["wq1"], p["bq1"], p["wk1"], p["bk1"],
                     p["wv1"], p["bv1"], p["wo1"], p["bo1"], num_heads)
    x = _layer_norm(x, p["ln2_g"][0], p["ln2_b"][0])
    x = x + _ref_mha(x, k, v, p["wq2"], p["bq2"], p["wk2"], p["bk2"],
                     p["wv2"], p["bv2"], p["wo2"], p["bo2"], num_heads)
    x = _layer_norm(x, p["ln3_g"][0], p["ln3_b"][0])
    h = _gelu_tanh(_mm(x, p["w1"]) + p["b1"][0])
    h = _mm(h, p["w2"]) + p["b2"][0]
    return x + h


# ---------------------------------- main ------------------------------------ #

if __name__ == "__main__":
    # Small but lane-dense shapes (D, dim_ff multiples of 128).
    B, S_q, S_kv = 8, 8, 16
    D, num_heads, dim_ff = 128, 4, 256

    key = jax.random.PRNGKey(0)
    k_x, k_k, k_v, k_p = jax.random.split(key, 4)
    x = jax.random.normal(k_x, (B, S_q, D), jnp.float32)
    mem_k = jax.random.normal(k_k, (B, S_kv, D), jnp.float32)
    mem_v = jax.random.normal(k_v, (B, S_kv, D), jnp.float32)
    params = init_params(k_p, D, dim_ff)
    packed = pack_params(params)            # one-time packing (hoisted)

    # block_b=4 -> grid of 2 steps, M = 32 rows per matmul at these toy shapes.
    out = transformer_decoder_layer(x, mem_k, mem_v, packed,
                                    num_heads=num_heads, block_b=4)
    out = jax.block_until_ready(out)

    # Reference sees the same bf16-rounded activations the kernel DMAs in.
    xr = x.astype(jnp.bfloat16).astype(jnp.float32)
    kr = mem_k.astype(jnp.bfloat16).astype(jnp.float32)
    vr = mem_v.astype(jnp.bfloat16).astype(jnp.float32)
    ref = reference_forward(xr, kr, vr, params, num_heads=num_heads)

    assert out.shape == (B, S_q, D)
    # tolerance covers bf16 matmul inputs + EUP approximate reciprocal
    assert jnp.allclose(out, ref, atol=2e-2, rtol=2e-2), (
        float(jnp.max(jnp.abs(out - ref))))

    print("KERNEL_OK")
</pallas_src>

<mosaic_0001>
module attributes {stable_mosaic.version = 11 : i64} {
  func.func @decoder_layer_kernel(%arg0: i32, %arg1: memref<4x8x128xbf16, #tpu.memory_space<vmem>>, %arg2: memref<4x16x128xbf16, #tpu.memory_space<vmem>>, %arg3: memref<4x16x128xbf16, #tpu.memory_space<vmem>>, %arg4: memref<15x128xf32, #tpu.memory_space<vmem>>, %arg5: memref<1x256xf32, #tpu.memory_space<vmem>>, %arg6: memref<128x384xbf16, #tpu.memory_space<vmem>>, %arg7: memref<128x128xbf16, #tpu.memory_space<vmem>>, %arg8: memref<128x384xbf16, #tpu.memory_space<vmem>>, %arg9: memref<128x128xbf16, #tpu.memory_space<vmem>>, %arg10: memref<128x256xbf16, #tpu.memory_space<vmem>>, %arg11: memref<256x128xbf16, #tpu.memory_space<vmem>>, %arg12: memref<4x8x128xf32, #tpu.memory_space<vmem>>) attributes {dimension_semantics = [#tpu.dimension_semantics<parallel>], iteration_bounds = array<i64: 2>, scalar_prefetch = 0 : i64, scratch_operands = 0 : i64, tpu.core_type = #tpu.core_type<tc>, window_params = [{transform_indices = @transform_0, window_bounds = array<i64: 4, 8, 128>}, {transform_indices = @transform_1, window_bounds = array<i64: 4, 16, 128>}, {transform_indices = @transform_2, window_bounds = array<i64: 4, 16, 128>}, {pipeline_mode = #tpu.pipeline_mode<synchronous>, transform_indices = @transform_3, window_bounds = array<i64: 15, 128>}, {pipeline_mode = #tpu.pipeline_mode<synchronous>, transform_indices = @transform_4, window_bounds = array<i64: 1, 256>}, {pipeline_mode = #tpu.pipeline_mode<synchronous>, transform_indices = @transform_5, window_bounds = array<i64: 128, 384>}, {pipeline_mode = #tpu.pipeline_mode<synchronous>, transform_indices = @transform_6, window_bounds = array<i64: 128, 128>}, {pipeline_mode = #tpu.pipeline_mode<synchronous>, transform_indices = @transform_7, window_bounds = array<i64: 128, 384>}, {pipeline_mode = #tpu.pipeline_mode<synchronous>, transform_indices = @transform_8, window_bounds = array<i64: 128, 128>}, {pipeline_mode = #tpu.pipeline_mode<synchronous>, transform_indices = @transform_9, window_bounds = array<i64: 128, 256>}, {pipeline_mode = #tpu.pipeline_mode<synchronous>, transform_indices = @transform_10, window_bounds = array<i64: 256, 128>}, {transform_indices = @transform_11, window_bounds = array<i64: 4, 8, 128>}]} {
    %c0 = arith.constant 0 : index
    %c0_0 = arith.constant 0 : index
    %0 = vector.load %arg4[%c0, %c0_0] : memref<15x128xf32, #tpu.memory_space<vmem>>, vector<15x128xf32>
    %c0_1 = arith.constant 0 : index
    %c0_2 = arith.constant 0 : index
    %c0_3 = arith.constant 0 : index
    %1 = vector.load %arg1[%c0_1, %c0_2, %c0_3] : memref<4x8x128xbf16, #tpu.memory_space<vmem>>, vector<4x8x128xbf16>
    %2 = vector.shape_cast %1 : vector<4x8x128xbf16> to vector<32x128xbf16>
    %3 = arith.extf %2 : vector<32x128xbf16> to vector<32x128xf32>
    %c0_4 = arith.constant 0 : index
    %c0_5 = arith.constant 0 : index
    %c0_6 = arith.constant 0 : index
    %4 = vector.load %arg2[%c0_4, %c0_5, %c0_6] : memref<4x16x128xbf16, #tpu.memory_space<vmem>>, vector<4x16x128xbf16>
    %5 = vector.shape_cast %4 : vector<4x16x128xbf16> to vector<64x128xbf16>
    %c0_7 = arith.constant 0 : index
    %c0_8 = arith.constant 0 : index
    %c0_9 = arith.constant 0 : index
    %6 = vector.load %arg3[%c0_7, %c0_8, %c0_9] : memref<4x16x128xbf16, #tpu.memory_space<vmem>>, vector<4x16x128xbf16>
    %7 = vector.shape_cast %6 : vector<4x16x128xbf16> to vector<64x128xbf16>
    %8 = vector.extract_strided_slice %0 {offsets = [0, 0], sizes = [1, 128], strides = [1, 1]} : vector<15x128xf32> to vector<1x128xf32>
    %9 = vector.extract_strided_slice %0 {offsets = [1, 0], sizes = [1, 128], strides = [1, 1]} : vector<15x128xf32> to vector<1x128xf32>
    %cst = arith.constant dense<0.000000e+00> : vector<32xf32>
    %10 = vector.multi_reduction <add>, %3, %cst [1] : vector<32x128xf32> to vector<32xf32>
    %11 = vector.shape_cast %10 : vector<32xf32> to vector<32x1xf32>
    %cst_10 = arith.constant 1.280000e+02 : f32
    %12 = vector.broadcast %cst_10 : f32 to vector<32x1xf32>
    %13 = arith.divf %11, %12 : vector<32x1xf32>
    %14 = vector.broadcast %13 : vector<32x1xf32> to vector<32x128xf32>
    %15 = arith.subf %3, %14 : vector<32x128xf32>
    %16 = arith.mulf %15, %15 : vector<32x128xf32>
    %cst_11 = arith.constant dense<0.000000e+00> : vector<32xf32>
    %17 = vector.multi_reduction <add>, %16, %cst_11 [1] : vector<32x128xf32> to vector<32xf32>
    %18 = vector.shape_cast %17 : vector<32xf32> to vector<32x1xf32>
    %cst_12 = arith.constant 1.280000e+02 : f32
    %19 = vector.broadcast %cst_12 : f32 to vector<32x1xf32>
    %20 = arith.divf %18, %19 : vector<32x1xf32>
    %21 = vector.broadcast %13 : vector<32x1xf32> to vector<32x128xf32>
    %22 = arith.subf %3, %21 : vector<32x128xf32>
    %cst_13 = arith.constant 9.99999974E-6 : f32
    %23 = vector.broadcast %cst_13 : f32 to vector<32x1xf32>
    %24 = arith.addf %20, %23 : vector<32x1xf32>
    %25 = math.rsqrt %24 : vector<32x1xf32>
    %26 = vector.broadcast %25 : vector<32x1xf32> to vector<32x128xf32>
    %27 = arith.mulf %22, %26 : vector<32x128xf32>
    %28 = vector.broadcast %8 : vector<1x128xf32> to vector<32x128xf32>
    %29 = arith.mulf %27, %28 : vector<32x128xf32>
    %30 = vector.broadcast %9 : vector<1x128xf32> to vector<32x128xf32>
    %31 = arith.addf %29, %30 : vector<32x128xf32>
    %c0_14 = arith.constant 0 : index
    %c0_15 = arith.constant 0 : index
    %32 = vector.load %arg6[%c0_14, %c0_15] : memref<128x384xbf16, #tpu.memory_space<vmem>>, vector<128x384xbf16>
    %33 = arith.truncf %31 : vector<32x128xf32> to vector<32x128xbf16>
    %cst_16 = arith.constant dense<0.000000e+00> : vector<32x384xf32>
    %34 = tpu.matmul %33, %32, %cst_16 {dimension_numbers = #tpu.dot_dimension_numbers<[1], [0], [0], [1], [0, 0, 1, 1], [], []>} : vector<32x128xbf16>, vector<128x384xbf16>, vector<32x384xf32> -> vector<32x384xf32>
    %35 = vector.extract_strided_slice %34 {offsets = [0, 0], sizes = [32, 128], strides = [1, 1]} : vector<32x384xf32> to vector<32x128xf32>
    %36 = vector.extract_strided_slice %0 {offsets = [6, 0], sizes = [1, 128], strides = [1, 1]} : vector<15x128xf32> to vector<1x128xf32>
    %37 = vector.broadcast %36 : vector<1x128xf32> to vector<32x128xf32>
    %38 = arith.addf %35, %37 : vector<32x128xf32>
    %39 = vector.extract_strided_slice %34 {offsets = [0, 128], sizes = [32, 128], strides = [1, 1]} : vector<32x384xf32> to vector<32x128xf32>
    %40 = vector.extract_strided_slice %0 {offsets = [7, 0], sizes = [1, 128], strides = [1, 1]} : vector<15x128xf32> to vector<1x128xf32>
    %41 = vector.broadcast %40 : vector<1x128xf32> to vector<32x128xf32>
    %42 = arith.addf %39, %41 : vector<32x128xf32>
    %43 = vector.extract_strided_slice %34 {offsets = [0, 256], sizes = [32, 128], strides = [1, 1]} : vector<32x384xf32> to vector<32x128xf32>
    %44 = vector.extract_strided_slice %0 {offsets = [8, 0], sizes = [1, 128], strides = [1, 1]} : vector<15x128xf32> to vector<1x128xf32>
    %45 = vector.broadcast %44 : vector<1x128xf32> to vector<32x128xf32>
    %46 = arith.addf %43, %45 : vector<32x128xf32>
    %cst_17 = arith.constant 0.176776692 : f32
    %47 = vector.broadcast %cst_17 : f32 to vector<32x128xf32>
    %48 = arith.mulf %38, %47 : vector<32x128xf32>
    %49 = vector.extract_strided_slice %48 {offsets = [0, 0], sizes = [32, 32], strides = [1, 1]} : vector<32x128xf32> to vector<32x32xf32>
    %50 = arith.truncf %49 : vector<32x32xf32> to vector<32x32xbf16>
    %51 = vector.shape_cast %50 : vector<32x32xbf16> to vector<4x8x32xbf16>
    %52 = vector.extract_strided_slice %42 {offsets = [0, 0], sizes = [32, 32], strides = [1, 1]} : vector<32x128xf32> to vector<32x32xf32>
    %53 = arith.truncf %52 : vector<32x32xf32> to vector<32x32xbf16>
    %54 = vector.shape_cast %53 : vector<32x32xbf16> to vector<4x8x32xbf16>
    %55 = vector.extract_strided_slice %46 {offsets = [0, 0], sizes = [32, 32], strides = [1, 1]} : vector<32x128xf32> to vector<32x32xf32>
    %56 = arith.truncf %55 : vector<32x32xf32> to vector<32x32xbf16>
    %57 = vector.shape_cast %56 : vector<32x32xbf16> to vector<4x8x32xbf16>
    "tpu.trace_start"() <{level = 10 : i32, message = "bqd,bkd->bqk"}> : () -> ()
    %cst_18 = arith.constant dense<0.000000e+00> : vector<4x8x8xf32>
    %58 = tpu.matmul %51, %54, %cst_18 {dimension_numbers = #tpu.dot_dimension_numbers<[2], [2], [1], [1], [0, 0, 0, 1, 1, 1], [0], [0]>} : vector<4x8x32xbf16>, vector<4x8x32xbf16>, vector<4x8x8xf32> -> vector<4x8x8xf32>
    "tpu.trace_stop"() : () -> ()
    %cst_19 = arith.constant dense<0xFF800000> : vector<4x8xf32>
    %59 = vector.multi_reduction <maximumf>, %58, %cst_19 [2] : vector<4x8x8xf32> to vector<4x8xf32>
    %60 = vector.shape_cast %59 : vector<4x8xf32> to vector<4x8x1xf32>
    %61 = vector.broadcast %60 : vector<4x8x1xf32> to vector<4x8x8xf32>
    %62 = arith.subf %58, %61 : vector<4x8x8xf32>
    %63 = math.exp %62 : vector<4x8x8xf32>
    %cst_20 = arith.constant dense<0.000000e+00> : vector<4x8xf32>
    %64 = vector.multi_reduction <add>, %63, %cst_20 [2] : vector<4x8x8xf32> to vector<4x8xf32>
    %65 = vector.shape_cast %64 : vector<4x8xf32> to vector<4x8x1xf32>
    %66 = tpu.reciprocal %65 {approx = true} : vector<4x8x1xf32> -> vector<4x8x1xf32>
    %67 = vector.broadcast %66 : vector<4x8x1xf32> to vector<4x8x8xf32>
    %68 = arith.mulf %63, %67 : vector<4x8x8xf32>
    %69 = arith.truncf %68 : vector<4x8x8xf32> to vector<4x8x8xbf16>
    "tpu.trace_start"() <{level = 10 : i32, message = "bqk,bkd->bqd"}> : () -> ()
    %cst_21 = arith.constant dense<0.000000e+00> : vector<4x8x32xf32>
    %70 = tpu.matmul %69, %57, %cst_21 {dimension_numbers = #tpu.dot_dimension_numbers<[2], [1], [1], [2], [0, 0, 0, 1, 1, 2], [0], [0]>} : vector<4x8x8xbf16>, vector<4x8x32xbf16>, vector<4x8x32xf32> -> vector<4x8x32xf32>
    "tpu.trace_stop"() : () -> ()
    %71 = vector.shape_cast %70 : vector<4x8x32xf32> to vector<32x32xf32>
    %72 = vector.extract_strided_slice %48 {offsets = [0, 32], sizes = [32, 32], strides = [1, 1]} : vector<32x128xf32> to vector<32x32xf32>
    %73 = arith.truncf %72 : vector<32x32xf32> to vector<32x32xbf16>
    %74 = vector.shape_cast %73 : vector<32x32xbf16> to vector<4x8x32xbf16>
    %75 = vector.extract_strided_slice %42 {offsets = [0, 32], sizes = [32, 32], strides = [1, 1]} : vector<32x128xf32> to vector<32x32xf32>
    %76 = arith.truncf %75 : vector<32x32xf32> to vector<32x32xbf16>
    %77 = vector.shape_cast %76 : vector<32x32xbf16> to vector<4x8x32xbf16>
    %78 = vector.extract_strided_slice %46 {offsets = [0, 32], sizes = [32, 32], strides = [1, 1]} : vector<32x128xf32> to vector<32x32xf32>
    %79 = arith.truncf %78 : vector<32x32xf32> to vector<32x32xbf16>
    %80 = vector.shape_cast %79 : vector<32x32xbf16> to vector<4x8x32xbf16>
    "tpu.trace_start"() <{level = 10 : i32, message = "bqd,bkd->bqk"}> : () -> ()
    %cst_22 = arith.constant dense<0.000000e+00> : vector<4x8x8xf32>
    %81 = tpu.matmul %74, %77, %cst_22 {dimension_numbers = #tpu.dot_dimension_numbers<[2], [2], [1], [1], [0, 0, 0, 1, 1, 1], [0], [0]>} : vector<4x8x32xbf16>, vector<4x8x32xbf16>, vector<4x8x8xf32> -> vector<4x8x8xf32>
    "tpu.trace_stop"() : () -> ()
    %cst_23 = arith.constant dense<0xFF800000> : vector<4x8xf32>
    %82 = vector.multi_reduction <maximumf>, %81, %cst_23 [2] : vector<4x8x8xf32> to vector<4x8xf32>
    %83 = vector.shape_cast %82 : vector<4x8xf32> to vector<4x8x1xf32>
    %84 = vector.broadcast %83 : vector<4x8x1xf32> to vector<4x8x8xf32>
    %85 = arith.subf %81, %84 : vector<4x8x8xf32>
    %86 = math.exp %85 : vector<4x8x8xf32>
    %cst_24 = arith.constant dense<0.000000e+00> : vector<4x8xf32>
    %87 = vector.multi_reduction <add>, %86, %cst_24 [2] : vector<4x8x8xf32> to vector<4x8xf32>
    %88 = vector.shape_cast %87 : vector<4x8xf32> to vector<4x8x1xf32>
    %89 = tpu.reciprocal %88 {approx = true} : vector<4x8x1xf32> -> vector<4x8x1xf32>
    %90 = vector.broadcast %89 : vector<4x8x1xf32> to vector<4x8x8xf32>
    %91 = arith.mulf %86, %90 : vector<4x8x8xf32>
    %92 = arith.truncf %91 : vector<4x8x8xf32> to vector<4x8x8xbf16>
    "tpu.trace_start"() <{level = 10 : i32, message = "bqk,bkd->bqd"}> : () -> ()
    %cst_25 = arith.constant dense<0.000000e+00> : vector<4x8x32xf32>
    %93 = tpu.matmul %92, %80, %cst_25 {dimension_numbers = #tpu.dot_dimension_numbers<[2], [1], [1], [2], [0, 0, 0, 1, 1, 2], [0], [0]>} : vector<4x8x8xbf16>, vector<4x8x32xbf16>, vector<4x8x32xf32> -> vector<4x8x32xf32>
    "tpu.trace_stop"() : () -> ()
    %94 = vector.shape_cast %93 : vector<4x8x32xf32> to vector<32x32xf32>
    %95 = vector.extract_strided_slice %48 {offsets = [0, 64], sizes = [32, 32], strides = [1, 1]} : vector<32x128xf32> to vector<32x32xf32>
    %96 = arith.truncf %95 : vector<32x32xf32> to vector<32x32xbf16>
    %97 = vector.shape_cast %96 : vector<32x32xbf16> to vector<4x8x32xbf16>
    %98 = vector.extract_strided_slice %42 {offsets = [0, 64], sizes = [32, 32], strides = [1, 1]} : vector<32x128xf32> to vector<32x32xf32>
    %99 = arith.truncf %98 : vector<32x32xf32> to vector<32x32xbf16>
    %100 = vector.shape_cast %99 : vector<32x32xbf16> to vector<4x8x32xbf16>
    %101 = vector.extract_strided_slice %46 {offsets = [0, 64], sizes = [32, 32], strides = [1, 1]} : vector<32x128xf32> to vector<32x32xf32>
    %102 = arith.truncf %101 : vector<32x32xf32> to vector<32x32xbf16>
    %103 = vector.shape_cast %102 : vector<32x32xbf16> to vector<4x8x32xbf16>
    "tpu.trace_start"() <{level = 10 : i32, message = "bqd,bkd->bqk"}> : () -> ()
    %cst_26 = arith.constant dense<0.000000e+00> : vector<4x8x8xf32>
    %104 = tpu.matmul %97, %100, %cst_26 {dimension_numbers = #tpu.dot_dimension_numbers<[2], [2], [1], [1], [0, 0, 0, 1, 1, 1], [0], [0]>} : vector<4x8x32xbf16>, vector<4x8x32xbf16>, vector<4x8x8xf32> -> vector<4x8x8xf32>
    "tpu.trace_stop"() : () -> ()
    %cst_27 = arith.constant dense<0xFF800000> : vector<4x8xf32>
    %105 = vector.multi_reduction <maximumf>, %104, %cst_27 [2] : vector<4x8x8xf32> to vector<4x8xf32>
    %106 = vector.shape_cast %105 : vector<4x8xf32> to vector<4x8x1xf32>
    %107 = vector.broadcast %106 : vector<4x8x1xf32> to vector<4x8x8xf32>
    %108 = arith.subf %104, %107 : vector<4x8x8xf32>
    %109 = math.exp %108 : vector<4x8x8xf32>
    %cst_28 = arith.constant dense<0.000000e+00> : vector<4x8xf32>
    %110 = vector.multi_reduction <add>, %109, %cst_28 [2] : vector<4x8x8xf32> to vector<4x8xf32>
    %111 = vector.shape_cast %110 : vector<4x8xf32> to vector<4x8x1xf32>
    %112 = tpu.reciprocal %111 {approx = true} : vector<4x8x1xf32> -> vector<4x8x1xf32>
    %113 = vector.broadcast %112 : vector<4x8x1xf32> to vector<4x8x8xf32>
    %114 = arith.mulf %109, %113 : vector<4x8x8xf32>
    %115 = arith.truncf %114 : vector<4x8x8xf32> to vector<4x8x8xbf16>
    "tpu.trace_start"() <{level = 10 : i32, message = "bqk,bkd->bqd"}> : () -> ()
    %cst_29 = arith.constant dense<0.000000e+00> : vector<4x8x32xf32>
    %116 = tpu.matmul %115, %103, %cst_29 {dimension_numbers = #tpu.dot_dimension_numbers<[2], [1], [1], [2], [0, 0, 0, 1, 1, 2], [0], [0]>} : vector<4x8x8xbf16>, vector<4x8x32xbf16>, vector<4x8x32xf32> -> vector<4x8x32xf32>
    "tpu.trace_stop"() : () -> ()
    %117 = vector.shape_cast %116 : vector<4x8x32xf32> to vector<32x32xf32>
    %118 = vector.extract_strided_slice %48 {offsets = [0, 96], sizes = [32, 32], strides = [1, 1]} : vector<32x128xf32> to vector<32x32xf32>
    %119 = arith.truncf %118 : vector<32x32xf32> to vector<32x32xbf16>
    %120 = vector.shape_cast %119 : vector<32x32xbf16> to vector<4x8x32xbf16>
    %121 = vector.extract_strided_slice %42 {offsets = [0, 96], sizes = [32, 32], strides = [1, 1]} : vector<32x128xf32> to vector<32x32xf32>
    %122 = arith.truncf %121 : vector<32x32xf32> to vector<32x32xbf16>
    %123 = vector.shape_cast %122 : vector<32x32xbf16> to vector<4x8x32xbf16>
    %124 = vector.extract_strided_slice %46 {offsets = [0, 96], sizes = [32, 32], strides = [1, 1]} : vector<32x128xf32> to vector<32x32xf32>
    %125 = arith.truncf %124 : vector<32x32xf32> to vector<32x32xbf16>
    %126 = vector.shape_cast %125 : vector<32x32xbf16> to vector<4x8x32xbf16>
    "tpu.trace_start"() <{level = 10 : i32, message = "bqd,bkd->bqk"}> : () -> ()
    %cst_30 = arith.constant dense<0.000000e+00> : vector<4x8x8xf32>
    %127 = tpu.matmul %120, %123, %cst_30 {dimension_numbers = #tpu.dot_dimension_numbers<[2], [2], [1], [1], [0, 0, 0, 1, 1, 1], [0], [0]>} : vector<4x8x32xbf16>, vector<4x8x32xbf16>, vector<4x8x8xf32> -> vector<4x8x8xf32>
    "tpu.trace_stop"() : () -> ()
    %cst_31 = arith.constant dense<0xFF800000> : vector<4x8xf32>
    %128 = vector.multi_reduction <maximumf>, %127, %cst_31 [2] : vector<4x8x8xf32> to vector<4x8xf32>
    %129 = vector.shape_cast %128 : vector<4x8xf32> to vector<4x8x1xf32>
    %130 = vector.broadcast %129 : vector<4x8x1xf32> to vector<4x8x8xf32>
    %131 = arith.subf %127, %130 : vector<4x8x8xf32>
    %132 = math.exp %131 : vector<4x8x8xf32>
    %cst_32 = arith.constant dense<0.000000e+00> : vector<4x8xf32>
    %133 = vector.multi_reduction <add>, %132, %cst_32 [2] : vector<4x8x8xf32> to vector<4x8xf32>
    %134 = vector.shape_cast %133 : vector<4x8xf32> to vector<4x8x1xf32>
    %135 = tpu.reciprocal %134 {approx = true} : vector<4x8x1xf32> -> vector<4x8x1xf32>
    %136 = vector.broadcast %135 : vector<4x8x1xf32> to vector<4x8x8xf32>
    %137 = arith.mulf %132, %136 : vector<4x8x8xf32>
    %138 = arith.truncf %137 : vector<4x8x8xf32> to vector<4x8x8xbf16>
    "tpu.trace_start"() <{level = 10 : i32, message = "bqk,bkd->bqd"}> : () -> ()
    %cst_33 = arith.constant dense<0.000000e+00> : vector<4x8x32xf32>
    %139 = tpu.matmul %138, %126, %cst_33 {dimension_numbers = #tpu.dot_dimension_numbers<[2], [1], [1], [2], [0, 0, 0, 1, 1, 2], [0], [0]>} : vector<4x8x8xbf16>, vector<4x8x32xbf16>, vector<4x8x32xf32> -> vector<4x8x32xf32>
    "tpu.trace_stop"() : () -> ()
    %140 = vector.shape_cast %139 : vector<4x8x32xf32> to vector<32x32xf32>
    %141 = tpu.concatenate %71, %94, %117, %140 in 1 : vector<32x32xf32>, vector<32x32xf32>, vector<32x32xf32>, vector<32x32xf32> -> vector<32x128xf32>
    %c0_34 = arith.constant 0 : index
    %c0_35 = arith.constant 0 : index
    %142 = vector.load %arg7[%c0_34, %c0_35] : memref<128x128xbf16, #tpu.memory_space<vmem>>, vector<128x128xbf16>
    %143 = arith.truncf %141 : vector<32x128xf32> to vector<32x128xbf16>
    %cst_36 = arith.constant dense<0.000000e+00> : vector<32x128xf32>
    %144 = tpu.matmul %143, %142, %cst_36 {dimension_numbers = #tpu.dot_dimension_numbers<[1], [0], [0], [1], [0, 0, 1, 1], [], []>} : vector<32x128xbf16>, vector<128x128xbf16>, vector<32x128xf32> -> vector<32x128xf32>
    %145 = vector.extract_strided_slice %0 {offsets = [9, 0], sizes = [1, 128], strides = [1, 1]} : vector<15x128xf32> to vector<1x128xf32>
    %146 = vector.broadcast %145 : vector<1x128xf32> to vector<32x128xf32>
    %147 = arith.addf %144, %146 : vector<32x128xf32>
    %148 = arith.addf %31, %147 : vector<32x128xf32>
    %149 = vector.extract_strided_slice %0 {offsets = [2, 0], sizes = [1, 128], strides = [1, 1]} : vector<15x128xf32> to vector<1x128xf32>
    %150 = vector.extract_strided_slice %0 {offsets = [3, 0], sizes = [1, 128], strides = [1, 1]} : vector<15x128xf32> to vector<1x128xf32>
    %cst_37 = arith.constant dense<0.000000e+00> : vector<32xf32>
    %151 = vector.multi_reduction <add>, %148, %cst_37 [1] : vector<32x128xf32> to vector<32xf32>
    %152 = vector.shape_cast %151 : vector<32xf32> to vector<32x1xf32>
    %cst_38 = arith.constant 1.280000e+02 : f32
    %153 = vector.broadcast %cst_38 : f32 to vector<32x1xf32>
    %154 = arith.divf %152, %153 : vector<32x1xf32>
    %155 = vector.broadcast %154 : vector<32x1xf32> to vector<32x128xf32>
    %156 = arith.subf %148, %155 : vector<32x128xf32>
    %157 = arith.mulf %156, %156 : vector<32x128xf32>
    %cst_39 = arith.constant dense<0.000000e+00> : vector<32xf32>
    %158 = vector.multi_reduction <add>, %157, %cst_39 [1] : vector<32x128xf32> to vector<32xf32>
    %159 = vector.shape_cast %158 : vector<32xf32> to vector<32x1xf32>
    %cst_40 = arith.constant 1.280000e+02 : f32
    %160 = vector.broadcast %cst_40 : f32 to vector<32x1xf32>
    %161 = arith.divf %159, %160 : vector<32x1xf32>
    %162 = vector.broadcast %154 : vector<32x1xf32> to vector<32x128xf32>
    %163 = arith.subf %148, %162 : vector<32x128xf32>
    %cst_41 = arith.constant 9.99999974E-6 : f32
    %164 = vector.broadcast %cst_41 : f32 to vector<32x1xf32>
    %165 = arith.addf %161, %164 : vector<32x1xf32>
    %166 = math.rsqrt %165 : vector<32x1xf32>
    %167 = vector.broadcast %166 : vector<32x1xf32> to vector<32x128xf32>
    %168 = arith.mulf %163, %167 : vector<32x128xf32>
    %169 = vector.broadcast %149 : vector<1x128xf32> to vector<32x128xf32>
    %170 = arith.mulf %168, %169 : vector<32x128xf32>
    %171 = vector.broadcast %150 : vector<1x128xf32> to vector<32x128xf32>
    %172 = arith.addf %170, %171 : vector<32x128xf32>
    %c0_42 = arith.constant 0 : index
    %c0_43 = arith.constant 0 : index
    %173 = vector.load %arg8[%c0_42, %c0_43] : memref<128x384xbf16, #tpu.memory_space<vmem>>, vector<128x128xbf16>
    %174 = arith.truncf %172 : vector<32x128xf32> to vector<32x128xbf16>
    %cst_44 = arith.constant dense<0.000000e+00> : vector<32x128xf32>
    %175 = tpu.matmul %174, %173, %cst_44 {dimension_numbers = #tpu.dot_dimension_numbers<[1], [0], [0], [1], [0, 0, 1, 1], [], []>} : vector<32x128xbf16>, vector<128x128xbf16>, vector<32x128xf32> -> vector<32x128xf32>
    %176 = vector.extract_strided_slice %0 {offsets = [10, 0], sizes = [1, 128], strides = [1, 1]} : vector<15x128xf32> to vector<1x128xf32>
    %177 = vector.broadcast %176 : vector<1x128xf32> to vector<32x128xf32>
    %178 = arith.addf %175, %177 : vector<32x128xf32>
    %c0_45 = arith.constant 0 : index
    %c128 = arith.constant 128 : index
    %179 = vector.load %arg8[%c0_45, %c128] : memref<128x384xbf16, #tpu.memory_space<vmem>>, vector<128x128xbf16>
    %cst_46 = arith.constant dense<0.000000e+00> : vector<64x128xf32>
    %180 = tpu.matmul %5, %179, %cst_46 {dimension_numbers = #tpu.dot_dimension_numbers<[1], [0], [0], [1], [0, 0, 1, 1], [], []>} : vector<64x128xbf16>, vector<128x128xbf16>, vector<64x128xf32> -> vector<64x128xf32>
    %181 = vector.extract_strided_slice %0 {offsets = [11, 0], sizes = [1, 128], strides = [1, 1]} : vector<15x128xf32> to vector<1x128xf32>
    %182 = vector.broadcast %181 : vector<1x128xf32> to vector<64x128xf32>
    %183 = arith.addf %180, %182 : vector<64x128xf32>
    %c0_47 = arith.constant 0 : index
    %c256 = arith.constant 256 : index
    %184 = vector.load %arg8[%c0_47, %c256] : memref<128x384xbf16, #tpu.memory_space<vmem>>, vector<128x128xbf16>
    %cst_48 = arith.constant dense<0.000000e+00> : vector<64x128xf32>
    %185 = tpu.matmul %7, %184, %cst_48 {dimension_numbers = #tpu.dot_dimension_numbers<[1], [0], [0], [1], [0, 0, 1, 1], [], []>} : vector<64x128xbf16>, vector<128x128xbf16>, vector<64x128xf32> -> vector<64x128xf32>
    %186 = vector.extract_strided_slice %0 {offsets = [12, 0], sizes = [1, 128], strides = [1, 1]} : vector<15x128xf32> to vector<1x128xf32>
    %187 = vector.broadcast %186 : vector<1x128xf32> to vector<64x128xf32>
    %188 = arith.addf %185, %187 : vector<64x128xf32>
    %cst_49 = arith.constant 0.176776692 : f32
    %189 = vector.broadcast %cst_49 : f32 to vector<32x128xf32>
    %190 = arith.mulf %178, %189 : vector<32x128xf32>
    %191 = vector.extract_strided_slice %190 {offsets = [0, 0], sizes = [32, 32], strides = [1, 1]} : vector<32x128xf32> to vector<32x32xf32>
    %192 = arith.truncf %191 : vector<32x32xf32> to vector<32x32xbf16>
    %193 = vector.shape_cast %192 : vector<32x32xbf16> to vector<4x8x32xbf16>
    %194 = vector.extract_strided_slice %183 {offsets = [0, 0], sizes = [64, 32], strides = [1, 1]} : vector<64x128xf32> to vector<64x32xf32>
    %195 = arith.truncf %194 : vector<64x32xf32> to vector<64x32xbf16>
    %196 = vector.shape_cast %195 : vector<64x32xbf16> to vector<4x16x32xbf16>
    %197 = vector.extract_strided_slice %188 {offsets = [0, 0], sizes = [64, 32], strides = [1, 1]} : vector<64x128xf32> to vector<64x32xf32>
    %198 = arith.truncf %197 : vector<64x32xf32> to vector<64x32xbf16>
    %199 = vector.shape_cast %198 : vector<64x32xbf16> to vector<4x16x32xbf16>
    "tpu.trace_start"() <{level = 10 : i32, message = "bqd,bkd->bqk"}> : () -> ()
    %cst_50 = arith.constant dense<0.000000e+00> : vector<4x8x16xf32>
    %200 = tpu.matmul %193, %196, %cst_50 {dimension_numbers = #tpu.dot_dimension_numbers<[2], [2], [1], [1], [0, 0, 0, 1, 1, 1], [0], [0]>} : vector<4x8x32xbf16>, vector<4x16x32xbf16>, vector<4x8x16xf32> -> vector<4x8x16xf32>
    "tpu.trace_stop"() : () -> ()
    %cst_51 = arith.constant dense<0xFF800000> : vector<4x8xf32>
    %201 = vector.multi_reduction <maximumf>, %200, %cst_51 [2] : vector<4x8x16xf32> to vector<4x8xf32>
    %202 = vector.shape_cast %201 : vector<4x8xf32> to vector<4x8x1xf32>
    %203 = vector.broadcast %202 : vector<4x8x1xf32> to vector<4x8x16xf32>
    %204 = arith.subf %200, %203 : vector<4x8x16xf32>
    %205 = math.exp %204 : vector<4x8x16xf32>
    %cst_52 = arith.constant dense<0.000000e+00> : vector<4x8xf32>
    %206 = vector.multi_reduction <add>, %205, %cst_52 [2] : vector<4x8x16xf32> to vector<4x8xf32>
    %207 = vector.shape_cast %206 : vector<4x8xf32> to vector<4x8x1xf32>
    %208 = tpu.reciprocal %207 {approx = true} : vector<4x8x1xf32> -> vector<4x8x1xf32>
    %209 = vector.broadcast %208 : vector<4x8x1xf32> to vector<4x8x16xf32>
    %210 = arith.mulf %205, %209 : vector<4x8x16xf32>
    %211 = arith.truncf %210 : vector<4x8x16xf32> to vector<4x8x16xbf16>
    "tpu.trace_start"() <{level = 10 : i32, message = "bqk,bkd->bqd"}> : () -> ()
    %cst_53 = arith.constant dense<0.000000e+00> : vector<4x8x32xf32>
    %212 = tpu.matmul %211, %199, %cst_53 {dimension_numbers = #tpu.dot_dimension_numbers<[2], [1], [1], [2], [0, 0, 0, 1, 1, 2], [0], [0]>} : vector<4x8x16xbf16>, vector<4x16x32xbf16>, vector<4x8x32xf32> -> vector<4x8x32xf32>
    "tpu.trace_stop"() : () -> ()
    %213 = vector.shape_cast %212 : vector<4x8x32xf32> to vector<32x32xf32>
    %214 = vector.extract_strided_slice %190 {offsets = [0, 32], sizes = [32, 32], strides = [1, 1]} : vector<32x128xf32> to vector<32x32xf32>
    %215 = arith.truncf %214 : vector<32x32xf32> to vector<32x32xbf16>
    %216 = vector.shape_cast %215 : vector<32x32xbf16> to vector<4x8x32xbf16>
    %217 = vector.extract_strided_slice %183 {offsets = [0, 32], sizes = [64, 32], strides = [1, 1]} : vector<64x128xf32> to vector<64x32xf32>
    %218 = arith.truncf %217 : vector<64x32xf32> to vector<64x32xbf16>
    %219 = vector.shape_cast %218 : vector<64x32xbf16> to vector<4x16x32xbf16>
    %220 = vector.extract_strided_slice %188 {offsets = [0, 32], sizes = [64, 32], strides = [1, 1]} : vector<64x128xf32> to vector<64x32xf32>
    %221 = arith.truncf %220 : vector<64x32xf32> to vector<64x32xbf16>
    %222 = vector.shape_cast %221 : vector<64x32xbf16> to vector<4x16x32xbf16>
    "tpu.trace_start"() <{level = 10 : i32, message = "bqd,bkd->bqk"}> : () -> ()
    %cst_54 = arith.constant dense<0.000000e+00> : vector<4x8x16xf32>
    %223 = tpu.matmul %216, %219, %cst_54 {dimension_numbers = #tpu.dot_dimension_numbers<[2], [2], [1], [1], [0, 0, 0, 1, 1, 1], [0], [0]>} : vector<4x8x32xbf16>, vector<4x16x32xbf16>, vector<4x8x16xf32> -> vector<4x8x16xf32>
    "tpu.trace_stop"() : () -> ()
    %cst_55 = arith.constant dense<0xFF800000> : vector<4x8xf32>
    %224 = vector.multi_reduction <maximumf>, %223, %cst_55 [2] : vector<4x8x16xf32> to vector<4x8xf32>
    %225 = vector.shape_cast %224 : vector<4x8xf32> to vector<4x8x1xf32>
    %226 = vector.broadcast %225 : vector<4x8x1xf32> to vector<4x8x16xf32>
    %227 = arith.subf %223, %226 : vector<4x8x16xf32>
    %228 = math.exp %227 : vector<4x8x16xf32>
    %cst_56 = arith.constant dense<0.000000e+00> : vector<4x8xf32>
    %229 = vector.multi_reduction <add>, %228, %cst_56 [2] : vector<4x8x16xf32> to vector<4x8xf32>
    %230 = vector.shape_cast %229 : vector<4x8xf32> to vector<4x8x1xf32>
    %231 = tpu.reciprocal %230 {approx = true} : vector<4x8x1xf32> -> vector<4x8x1xf32>
    %232 = vector.broadcast %231 : vector<4x8x1xf32> to vector<4x8x16xf32>
    %233 = arith.mulf %228, %232 : vector<4x8x16xf32>
    %234 = arith.truncf %233 : vector<4x8x16xf32> to vector<4x8x16xbf16>
    "tpu.trace_start"() <{level = 10 : i32, message = "bqk,bkd->bqd"}> : () -> ()
    %cst_57 = arith.constant dense<0.000000e+00> : vector<4x8x32xf32>
    %235 = tpu.matmul %234, %222, %cst_57 {dimension_numbers = #tpu.dot_dimension_numbers<[2], [1], [1], [2], [0, 0, 0, 1, 1, 2], [0], [0]>} : vector<4x8x16xbf16>, vector<4x16x32xbf16>, vector<4x8x32xf32> -> vector<4x8x32xf32>
    "tpu.trace_stop"() : () -> ()
    %236 = vector.shape_cast %235 : vector<4x8x32xf32> to vector<32x32xf32>
    %237 = vector.extract_strided_slice %190 {offsets = [0, 64], sizes = [32, 32], strides = [1, 1]} : vector<32x128xf32> to vector<32x32xf32>
    %238 = arith.truncf %237 : vector<32x32xf32> to vector<32x32xbf16>
    %239 = vector.shape_cast %238 : vector<32x32xbf16> to vector<4x8x32xbf16>
    %240 = vector.extract_strided_slice %183 {offsets = [0, 64], sizes = [64, 32], strides = [1, 1]} : vector<64x128xf32> to vector<64x32xf32>
    %241 = arith.truncf %240 : vector<64x32xf32> to vector<64x32xbf16>
    %242 = vector.shape_cast %241 : vector<64x32xbf16> to vector<4x16x32xbf16>
    %243 = vector.extract_strided_slice %188 {offsets = [0, 64], sizes = [64, 32], strides = [1, 1]} : vector<64x128xf32> to vector<64x32xf32>
    %244 = arith.truncf %243 : vector<64x32xf32> to vector<64x32xbf16>
    %245 = vector.shape_cast %244 : vector<64x32xbf16> to vector<4x16x32xbf16>
    "tpu.trace_start"() <{level = 10 : i32, message = "bqd,bkd->bqk"}> : () -> ()
    %cst_58 = arith.constant dense<0.000000e+00> : vector<4x8x16xf32>
    %246 = tpu.matmul %239, %242, %cst_58 {dimension_numbers = #tpu.dot_dimension_numbers<[2], [2], [1], [1], [0, 0, 0, 1, 1, 1], [0], [0]>} : vector<4x8x32xbf16>, vector<4x16x32xbf16>, vector<4x8x16xf32> -> vector<4x8x16xf32>
    "tpu.trace_stop"() : () -> ()
    %cst_59 = arith.constant dense<0xFF800000> : vector<4x8xf32>
    %247 = vector.multi_reduction <maximumf>, %246, %cst_59 [2] : vector<4x8x16xf32> to vector<4x8xf32>
    %248 = vector.shape_cast %247 : vector<4x8xf32> to vector<4x8x1xf32>
    %249 = vector.broadcast %248 : vector<4x8x1xf32> to vector<4x8x16xf32>
    %250 = arith.subf %246, %249 : vector<4x8x16xf32>
    %251 = math.exp %250 : vector<4x8x16xf32>
    %cst_60 = arith.constant dense<0.000000e+00> : vector<4x8xf32>
    %252 = vector.multi_reduction <add>, %251, %cst_60 [2] : vector<4x8x16xf32> to vector<4x8xf32>
    %253 = vector.shape_cast %252 : vector<4x8xf32> to vector<4x8x1xf32>
    %254 = tpu.reciprocal %253 {approx = true} : vector<4x8x1xf32> -> vector<4x8x1xf32>
    %255 = vector.broadcast %254 : vector<4x8x1xf32> to vector<4x8x16xf32>
    %256 = arith.mulf %251, %255 : vector<4x8x16xf32>
    %257 = arith.truncf %256 : vector<4x8x16xf32> to vector<4x8x16xbf16>
    "tpu.trace_start"() <{level = 10 : i32, message = "bqk,bkd->bqd"}> : () -> ()
    %cst_61 = arith.constant dense<0.000000e+00> : vector<4x8x32xf32>
    %258 = tpu.matmul %257, %245, %cst_61 {dimension_numbers = #tpu.dot_dimension_numbers<[2], [1], [1], [2], [0, 0, 0, 1, 1, 2], [0], [0]>} : vector<4x8x16xbf16>, vector<4x16x32xbf16>, vector<4x8x32xf32> -> vector<4x8x32xf32>
    "tpu.trace_stop"() : () -> ()
    %259 = vector.shape_cast %258 : vector<4x8x32xf32> to vector<32x32xf32>
    %260 = vector.extract_strided_slice %190 {offsets = [0, 96], sizes = [32, 32], strides = [1, 1]} : vector<32x128xf32> to vector<32x32xf32>
    %261 = arith.truncf %260 : vector<32x32xf32> to vector<32x32xbf16>
    %262 = vector.shape_cast %261 : vector<32x32xbf16> to vector<4x8x32xbf16>
    %263 = vector.extract_strided_slice %183 {offsets = [0, 96], sizes = [64, 32], strides = [1, 1]} : vector<64x128xf32> to vector<64x32xf32>
    %264 = arith.truncf %263 : vector<64x32xf32> to vector<64x32xbf16>
    %265 = vector.shape_cast %264 : vector<64x32xbf16> to vector<4x16x32xbf16>
    %266 = vector.extract_strided_slice %188 {offsets = [0, 96], sizes = [64, 32], strides = [1, 1]} : vector<64x128xf32> to vector<64x32xf32>
    %267 = arith.truncf %266 : vector<64x32xf32> to vector<64x32xbf16>
    %268 = vector.shape_cast %267 : vector<64x32xbf16> to vector<4x16x32xbf16>
    "tpu.trace_start"() <{level = 10 : i32, message = "bqd,bkd->bqk"}> : () -> ()
    %cst_62 = arith.constant dense<0.000000e+00> : vector<4x8x16xf32>
    %269 = tpu.matmul %262, %265, %cst_62 {dimension_numbers = #tpu.dot_dimension_numbers<[2], [2], [1], [1], [0, 0, 0, 1, 1, 1], [0], [0]>} : vector<4x8x32xbf16>, vector<4x16x32xbf16>, vector<4x8x16xf32> -> vector<4x8x16xf32>
    "tpu.trace_stop"() : () -> ()
    %cst_63 = arith.constant dense<0xFF800000> : vector<4x8xf32>
    %270 = vector.multi_reduction <maximumf>, %269, %cst_63 [2] : vector<4x8x16xf32> to vector<4x8xf32>
    %271 = vector.shape_cast %270 : vector<4x8xf32> to vector<4x8x1xf32>
    %272 = vector.broadcast %271 : vector<4x8x1xf32> to vector<4x8x16xf32>
    %273 = arith.subf %269, %272 : vector<4x8x16xf32>
    %274 = math.exp %273 : vector<4x8x16xf32>
    %cst_64 = arith.constant dense<0.000000e+00> : vector<4x8xf32>
    %275 = vector.multi_reduction <add>, %274, %cst_64 [2] : vector<4x8x16xf32> to vector<4x8xf32>
    %276 = vector.shape_cast %275 : vector<4x8xf32> to vector<4x8x1xf32>
    %277 = tpu.reciprocal %276 {approx = true} : vector<4x8x1xf32> -> vector<4x8x1xf32>
    %278 = vector.broadcast %277 : vector<4x8x1xf32> to vector<4x8x16xf32>
    %279 = arith.mulf %274, %278 : vector<4x8x16xf32>
    %280 = arith.truncf %279 : vector<4x8x16xf32> to vector<4x8x16xbf16>
    "tpu.trace_start"() <{level = 10 : i32, message = "bqk,bkd->bqd"}> : () -> ()
    %cst_65 = arith.constant dense<0.000000e+00> : vector<4x8x32xf32>
    %281 = tpu.matmul %280, %268, %cst_65 {dimension_numbers = #tpu.dot_dimension_numbers<[2], [1], [1], [2], [0, 0, 0, 1, 1, 2], [0], [0]>} : vector<4x8x16xbf16>, vector<4x16x32xbf16>, vector<4x8x32xf32> -> vector<4x8x32xf32>
    "tpu.trace_stop"() : () -> ()
    %282 = vector.shape_cast %281 : vector<4x8x32xf32> to vector<32x32xf32>
    %283 = tpu.concatenate %213, %236, %259, %282 in 1 : vector<32x32xf32>, vector<32x32xf32>, vector<32x32xf32>, vector<32x32xf32> -> vector<32x128xf32>
    %c0_66 = arith.constant 0 : index
    %c0_67 = arith.constant 0 : index
    %284 = vector.load %arg9[%c0_66, %c0_67] : memref<128x128xbf16, #tpu.memory_space<vmem>>, vector<128x128xbf16>
    %285 = arith.truncf %283 : vector<32x128xf32> to vector<32x128xbf16>
    %cst_68 = arith.constant dense<0.000000e+00> : vector<32x128xf32>
    %286 = tpu.matmul %285, %284, %cst_68 {dimension_numbers = #tpu.dot_dimension_numbers<[1], [0], [0], [1], [0, 0, 1, 1], [], []>} : vector<32x128xbf16>, vector<128x128xbf16>, vector<32x128xf32> -> vector<32x128xf32>
    %287 = vector.extract_strided_slice %0 {offsets = [13, 0], sizes = [1, 128], strides = [1, 1]} : vector<15x128xf32> to vector<1x128xf32>
    %288 = vector.broadcast %287 : vector<1x128xf32> to vector<32x128xf32>
    %289 = arith.addf %286, %288 : vector<32x128xf32>
    %290 = arith.addf %172, %289 : vector<32x128xf32>
    %291 = vector.extract_strided_slice %0 {offsets = [4, 0], sizes = [1, 128], strides = [1, 1]} : vector<15x128xf32> to vector<1x128xf32>
    %292 = vector.extract_strided_slice %0 {offsets = [5, 0], sizes = [1, 128], strides = [1, 1]} : vector<15x128xf32> to vector<1x128xf32>
    %cst_69 = arith.constant dense<0.000000e+00> : vector<32xf32>
    %293 = vector.multi_reduction <add>, %290, %cst_69 [1] : vector<32x128xf32> to vector<32xf32>
    %294 = vector.shape_cast %293 : vector<32xf32> to vector<32x1xf32>
    %cst_70 = arith.constant 1.280000e+02 : f32
    %295 = vector.broadcast %cst_70 : f32 to vector<32x1xf32>
    %296 = arith.divf %294, %295 : vector<32x1xf32>
    %297 = vector.broadcast %296 : vector<32x1xf32> to vector<32x128xf32>
    %298 = arith.subf %290, %297 : vector<32x128xf32>
    %299 = arith.mulf %298, %298 : vector<32x128xf32>
    %cst_71 = arith.constant dense<0.000000e+00> : vector<32xf32>
    %300 = vector.multi_reduction <add>, %299, %cst_71 [1] : vector<32x128xf32> to vector<32xf32>
    %301 = vector.shape_cast %300 : vector<32xf32> to vector<32x1xf32>
    %cst_72 = arith.constant 1.280000e+02 : f32
    %302 = vector.broadcast %cst_72 : f32 to vector<32x1xf32>
    %303 = arith.divf %301, %302 : vector<32x1xf32>
    %304 = vector.broadcast %296 : vector<32x1xf32> to vector<32x128xf32>
    %305 = arith.subf %290, %304 : vector<32x128xf32>
    %cst_73 = arith.constant 9.99999974E-6 : f32
    %306 = vector.broadcast %cst_73 : f32 to vector<32x1xf32>
    %307 = arith.addf %303, %306 : vector<32x1xf32>
    %308 = math.rsqrt %307 : vector<32x1xf32>
    %309 = vector.broadcast %308 : vector<32x1xf32> to vector<32x128xf32>
    %310 = arith.mulf %305, %309 : vector<32x128xf32>
    %311 = vector.broadcast %291 : vector<1x128xf32> to vector<32x128xf32>
    %312 = arith.mulf %310, %311 : vector<32x128xf32>
    %313 = vector.broadcast %292 : vector<1x128xf32> to vector<32x128xf32>
    %314 = arith.addf %312, %313 : vector<32x128xf32>
    %c0_74 = arith.constant 0 : index
    %c0_75 = arith.constant 0 : index
    %315 = vector.load %arg10[%c0_74, %c0_75] : memref<128x256xbf16, #tpu.memory_space<vmem>>, vector<128x256xbf16>
    %316 = arith.truncf %314 : vector<32x128xf32> to vector<32x128xbf16>
    %cst_76 = arith.constant dense<0.000000e+00> : vector<32x256xf32>
    %317 = tpu.matmul %316, %315, %cst_76 {dimension_numbers = #tpu.dot_dimension_numbers<[1], [0], [0], [1], [0, 0, 1, 1], [], []>} : vector<32x128xbf16>, vector<128x256xbf16>, vector<32x256xf32> -> vector<32x256xf32>
    %c0_77 = arith.constant 0 : index
    %c0_78 = arith.constant 0 : index
    %318 = vector.load %arg5[%c0_77, %c0_78] : memref<1x256xf32, #tpu.memory_space<vmem>>, vector<1x256xf32>
    %319 = vector.broadcast %318 : vector<1x256xf32> to vector<32x256xf32>
    %320 = arith.addf %317, %319 : vector<32x256xf32>
    %cst_79 = arith.constant 5.000000e-01 : f32
    %321 = vector.broadcast %cst_79 : f32 to vector<32x256xf32>
    %322 = arith.mulf %321, %320 : vector<32x256xf32>
    %cst_80 = arith.constant 4.471500e-02 : f32
    %323 = vector.broadcast %cst_80 : f32 to vector<32x256xf32>
    %324 = arith.mulf %323, %320 : vector<32x256xf32>
    %325 = arith.mulf %324, %320 : vector<32x256xf32>
    %326 = arith.mulf %325, %320 : vector<32x256xf32>
    %327 = arith.addf %320, %326 : vector<32x256xf32>
    %cst_81 = arith.constant 0.797884583 : f32
    %328 = vector.broadcast %cst_81 : f32 to vector<32x256xf32>
    %329 = arith.mulf %328, %327 : vector<32x256xf32>
    %330 = math.tanh %329 : vector<32x256xf32>
    %cst_82 = arith.constant 1.000000e+00 : f32
    %331 = vector.broadcast %cst_82 : f32 to vector<32x256xf32>
    %332 = arith.addf %331, %330 : vector<32x256xf32>
    %333 = arith.mulf %322, %332 : vector<32x256xf32>
    %c0_83 = arith.constant 0 : index
    %c0_84 = arith.constant 0 : index
    %334 = vector.load %arg11[%c0_83, %c0_84] : memref<256x128xbf16, #tpu.memory_space<vmem>>, vector<256x128xbf16>
    %335 = arith.truncf %333 : vector<32x256xf32> to vector<32x256xbf16>
    %cst_85 = arith.constant dense<0.000000e+00> : vector<32x128xf32>
    %336 = tpu.matmul %335, %334, %cst_85 {dimension_numbers = #tpu.dot_dimension_numbers<[1], [0], [0], [1], [0, 0, 1, 1], [], []>} : vector<32x256xbf16>, vector<256x128xbf16>, vector<32x128xf32> -> vector<32x128xf32>
    %337 = vector.extract_strided_slice %0 {offsets = [14, 0], sizes = [1, 128], strides = [1, 1]} : vector<15x128xf32> to vector<1x128xf32>
    %338 = vector.broadcast %337 : vector<1x128xf32> to vector<32x128xf32>
    %339 = arith.addf %336, %338 : vector<32x128xf32>
    %340 = arith.addf %314, %339 : vector<32x128xf32>
    %341 = vector.shape_cast %340 : vector<32x128xf32> to vector<4x8x128xf32>
    %c0_86 = arith.constant 0 : index
    %c0_87 = arith.constant 0 : index
    %c0_88 = arith.constant 0 : index
    %342 = vector.load %arg12[%c0_86, %c0_87, %c0_88] : memref<4x8x128xf32, #tpu.memory_space<vmem>>, vector<4x8x128xf32>
    tpu.vector_store %arg12[%c0_86, %c0_87, %c0_88], %341 {strides = array<i32>} : memref<4x8x128xf32, #tpu.memory_space<vmem>>, vector<4x8x128xf32>,
    return
  }
  func.func @transform_0(%arg0: i32) -> (i32, i32, i32) {
    %c0_i32 = arith.constant 0 : i32
    %c0_i32_0 = arith.constant 0 : i32
    %c0_i32_1 = arith.constant 0 : i32
    return %arg0, %c0_i32, %c0_i32_0 : i32, i32, i32
  }
  func.func @transform_1(%arg0: i32) -> (i32, i32, i32) {
    %c0_i32 = arith.constant 0 : i32
    %c0_i32_0 = arith.constant 0 : i32
    %c0_i32_1 = arith.constant 0 : i32
    return %arg0, %c0_i32, %c0_i32_0 : i32, i32, i32
  }
  func.func @transform_2(%arg0: i32) -> (i32, i32, i32) {
    %c0_i32 = arith.constant 0 : i32
    %c0_i32_0 = arith.constant 0 : i32
    %c0_i32_1 = arith.constant 0 : i32
    return %arg0, %c0_i32, %c0_i32_0 : i32, i32, i32
  }
  func.func @transform_3(%arg0: i32) -> (i32, i32) {
    %c0_i32 = arith.constant 0 : i32
    %c0_i32_0 = arith.constant 0 : i32
    %c0_i32_1 = arith.constant 0 : i32
    return %c0_i32, %c0_i32_0 : i32, i32
  }
  func.func @transform_4(%arg0: i32) -> (i32, i32) {
    %c0_i32 = arith.constant 0 : i32
    %c0_i32_0 = arith.constant 0 : i32
    %c0_i32_1 = arith.constant 0 : i32
    return %c0_i32, %c0_i32_0 : i32, i32
  }
  func.func @transform_5(%arg0: i32) -> (i32, i32) {
    %c0_i32 = arith.constant 0 : i32
    %c0_i32_0 = arith.constant 0 : i32
    %c0_i32_1 = arith.constant 0 : i32
    return %c0_i32, %c0_i32_0 : i32, i32
  }
  func.func @transform_6(%arg0: i32) -> (i32, i32) {
    %c0_i32 = arith.constant 0 : i32
    %c0_i32_0 = arith.constant 0 : i32
    %c0_i32_1 = arith.constant 0 : i32
    return %c0_i32, %c0_i32_0 : i32, i32
  }
  func.func @transform_7(%arg0: i32) -> (i32, i32) {
    %c0_i32 = arith.constant 0 : i32
    %c0_i32_0 = arith.constant 0 : i32
    %c0_i32_1 = arith.constant 0 : i32
    return %c0_i32, %c0_i32_0 : i32, i32
  }
  func.func @transform_8(%arg0: i32) -> (i32, i32) {
    %c0_i32 = arith.constant 0 : i32
    %c0_i32_0 = arith.constant 0 : i32
    %c0_i32_1 = arith.constant 0 : i32
    return %c0_i32, %c0_i32_0 : i32, i32
  }
  func.func @transform_9(%arg0: i32) -> (i32, i32) {
    %c0_i32 = arith.constant 0 : i32
    %c0_i32_0 = arith.constant 0 : i32
    %c0_i32_1 = arith.constant 0 : i32
    return %c0_i32, %c0_i32_0 : i32, i32
  }
  func.func @transform_10(%arg0: i32) -> (i32, i32) {
    %c0_i32 = arith.constant 0 : i32
    %c0_i32_0 = arith.constant 0 : i32
    %c0_i32_1 = arith.constant 0 : i32
    return %c0_i32, %c0_i32_0 : i32, i32
  }
  func.func @transform_11(%arg0: i32) -> (i32, i32, i32) {
    %c0_i32 = arith.constant 0 : i32
    %c0_i32_0 = arith.constant 0 : i32
    %c0_i32_1 = arith.constant 0 : i32
    return %arg0, %c0_i32, %c0_i32_0 : i32, i32, i32
  }
}

</mosaic_0001>

<llo_original>
// kernel: tpu_custom_call.1
$region0: #{tpu_custom_call.1}
  #allocation0 [shape = 'u32[]', space=smem, size = 0x4, offset = 0x4, fixed_abs, tag = 'smem constant byte address 0x4 - core index']
  #allocation1 [shape = 'u32[144,128]{1,0:T(1,128)}', space=vmem, size = 0x12000, scoped, tag = 'internal scratch']
  %s0 = inlined_call_operand.hbm [shape: bf16[8,8,128], index: 0, kind: input, shape index: {}]
  %s1 = inlined_call_operand.hbm [shape: bf16[8,16,128], index: 1, kind: input, shape index: {}]
  %s2 = inlined_call_operand.hbm [shape: bf16[8,16,128], index: 2, kind: input, shape index: {}]
  %s3 = inlined_call_operand.hbm [shape: f32[15,128], index: 3, kind: input, shape index: {}]
  %s4 = inlined_call_operand.vmem [shape: f32[1,256], index: 4, kind: input, shape index: {}]
  %s5 = inlined_call_operand.hbm [shape: bf16[128,384], index: 5, kind: input, shape index: {}]
  %s6 = inlined_call_operand.hbm [shape: bf16[128,128], index: 6, kind: input, shape index: {}]
  %s7 = inlined_call_operand.hbm [shape: bf16[128,384], index: 7, kind: input, shape index: {}]
  %s8 = inlined_call_operand.hbm [shape: bf16[128,128], index: 8, kind: input, shape index: {}]
  %s9 = inlined_call_operand.hbm [shape: bf16[128,256], index: 9, kind: input, shape index: {}]
  %s10 = inlined_call_operand.hbm [shape: bf16[256,128], index: 10, kind: input, shape index: {}]
  %s11 = inlined_call_operand.hbm [shape: f32[8,8,128], index: 11, kind: output, shape index: {}]
  %s12 = sld [smem:[#allocation0]]
  $region117: #{tpu_custom_call.1} parent=0
    _
  %s14 = ssub.s32 1, %s12
  %s15 = scalar_select 0, %s14, %s12
  $region1: #{tpu_custom_call.1} parent=0
    #allocation2 [shape = 'u8[16384]{0}', space=vmem, size = 0x4000, scoped, tag = 'input window, operand 0']
    #allocation3 [shape = 's32[2]{0}', space=sflag, size = 0x8, scoped, tag = 'scoped memory for tpu_custom_call.1']
    #allocation4 [shape = 's32[2]{0}', space=sflag, size = 0x8, scoped, tag = 'scoped memory for tpu_custom_call.1']
    #allocation5 [shape = 'u8[32768]{0}', space=vmem, size = 0x8000, scoped, tag = 'input window, operand 1']
    #allocation6 [shape = 's32[2]{0}', space=sflag, size = 0x8, scoped, tag = 'scoped memory for tpu_custom_call.1']
    #allocation7 [shape = 'u8[32768]{0}', space=vmem, size = 0x8000, scoped, tag = 'input window, operand 2']
    #allocation8 [shape = 'u8[8192]{0}', space=vmem, size = 0x2000, scoped, tag = 'input window, operand 3, single buffered']
    #allocation9 [shape = 's32[1]{0}', space=sflag, size = 0x4, scoped, tag = 'scoped memory for tpu_custom_call.1']
    #allocation10 [shape = 'u8[98304]{0}', space=vmem, size = 0x18000, scoped, tag = 'input window, operand 5, single buffered']
    #allocation11 [shape = 'u8[32768]{0}', space=vmem, size = 0x8000, scoped, tag = 'input window, operand 6, single buffered']
    #allocation12 [shape = 's32[1]{0}', space=sflag, size = 0x4, scoped, tag = 'scoped memory for tpu_custom_call.1']
    #allocation13 [shape = 'u8[98304]{0}', space=vmem, size = 0x18000, scoped, tag = 'input window, operand 7, single buffered']
    #allocation14 [shape = 'u8[32768]{0}', space=vmem, size = 0x8000, scoped, tag = 'input window, operand 8, single buffered']
    #allocation15 [shape = 's32[1]{0}', space=sflag, size = 0x4, scoped, tag = 'scoped memory for tpu_custom_call.1']
    #allocation16 [shape = 'u8[65536]{0}', space=vmem, size = 0x10000, scoped, tag = 'input window, operand 9, single buffered']
    #allocation17 [shape = 'u8[65536]{0}', space=vmem, size = 0x10000, scoped, tag = 'input window, operand 10, single buffered']
    #allocation18 [shape = 's32[1]{0}', space=sflag, size = 0x4, scoped, tag = 'scoped memory for tpu_custom_call.1']
    #allocation19 [shape = 'u8[32768]{0}', space=vmem, size = 0x8000, scoped, tag = 'output window, operand 0']
    %16 = vsyncpa [#allocation3], 0
    %s17 = scalar_lea.sflag [#allocation3], 1
    %18 = vsyncpa %s17, 0
    %19 = vsyncpa [#allocation6], 0
    %s20 = scalar_lea.sflag [#allocation6], 1
    %21 = vsyncpa %s20, 0
    %22 = vsyncpa [#allocation9], 0
    %23 = vsyncpa [#allocation12], 0
    %24 = vsyncpa [#allocation15], 0
    %25 = vsyncpa [#allocation18], 0
    %26 = vsyncpa [#allocation4], 0
    %s27 = scalar_lea.sflag [#allocation4], 1
    %28 = vsyncpa %s27, 0
    loop: start=0, step=1, limit=4
    $region2: #{tpu_custom_call.1} parent=1 // loop_pre_header
      _
    $region3: #{tpu_custom_call.1} parent=1 // loop_header
      %s30 = sphi 0, %s34
      %p31 = scmp.ge.s32.totalorder %s30, 4
      %s40 = sphi 0, %s42
      %s43 = sphi 0, %s40
      %s44 = sphi 0, %s43
      %s60 = sphi 0, %s44
      %s66 = sphi 0, %s68
      %s69 = sphi 0, %s66
      %s70 = sphi 0, %s69
      %s86 = sphi 0, %s70
      %s92 = sphi 0, %s94
      %s95 = sphi 0, %s92
      %s96 = sphi 0, %s95
      %s112 = sphi 0, %s96
      %s116 = sphi 0, %s116
      %s118 = sphi 0, %s116
      %s119 = sphi 0, %s118
      %s133 = sphi 0, %s119
      %s137 = sphi 0, %s137
      %s139 = sphi 0, %s137
      %s140 = sphi 0, %s139
      %s154 = sphi 0, %s140
      %s158 = sphi 0, %s158
      %s160 = sphi 0, %s158
      %s161 = sphi 0, %s160
      %s175 = sphi 0, %s161
      %s179 = sphi 0, %s179
      %s181 = sphi 0, %s179
      %s182 = sphi 0, %s181
      %s196 = sphi 0, %s182
      %s200 = sphi 0, %s200
      %s202 = sphi 0, %s200
      %s203 = sphi 0, %s202
      %s217 = sphi 0, %s203
      %s221 = sphi 0, %s221
      %s223 = sphi 0, %s221
      %s224 = sphi 0, %s223
      %s238 = sphi 0, %s224
      %s242 = sphi 0, %s242
      %s244 = sphi 0, %s242
      %s245 = sphi 0, %s244
      %s259 = sphi 0, %s245
      %s263 = sphi 0, %s263
      %s265 = sphi 0, %s263
      %s266 = sphi 0, %s265
      %s280 = sphi 0, %s266
      %s286 = sphi 0, %s288
      %s289 = sphi 0, %s286
      %s290 = sphi 0, %s289
      %s306 = sphi 0, %s290
    $region4: #{tpu_custom_call.1} parent=1 // loop_header_branch
      %33 = sbr.rel (%p31) target = $region8
    $region5: #{tpu_custom_call.1} parent=1 // loop_body
      %s35 = ssub.s32 %s30, 1
      %s36 = ssub.s32 %s30, 2
      %s37 = sadd.s32 %s30, 1
      %s38 = ssub.s32 %s30, %s37
      %p39 = scmp.eq.s32.totalorder %s38, 0
      %s41 = sadd.s32 %s40, 1
      %s42 = scalar_select %p39, %s40, %s41
      %p45 = pneg %p39
      %p46 = scmp.eq.s32.totalorder %s30, 1
      %p47 = por %p45, %p46
      %p48 = scmp.ne.s32.totalorder %s40, %s43
      %p49 = scmp.eq.s32.totalorder %s30, 0
      %p50 = por %p48, %p49
      %p51 = scmp.ne.s32.totalorder %s40, %s43
      %p52 = scmp.eq.s32.totalorder %s35, 1
      %p53 = por %p51, %p52
      %p54 = scmp.ne.s32.totalorder %s43, %s44
      %p55 = scmp.eq.s32.totalorder %s35, 0
      %p56 = por %p54, %p55
      %p57 = scmp.ne.s32.totalorder %s43, %s44
      %p58 = scmp.eq.s32.totalorder %s36, 1
      %p59 = por %p57, %p58
      %p61 = scmp.ne.s32.totalorder %s44, %s60
      %p62 = scmp.eq.s32.totalorder %s36, 0
      %p63 = por %p61, %p62
      %s64 = ssub.s32 %s30, %s37
      %p65 = scmp.eq.s32.totalorder %s64, 0
      %s67 = sadd.s32 %s66, 1
      %s68 = scalar_select %p65, %s66, %s67
      %p71 = pneg %p65
      %p72 = scmp.eq.s32.totalorder %s30, 1
      %p73 = por %p71, %p72
      %p74 = scmp.ne.s32.totalorder %s66, %s69
      %p75 = scmp.eq.s32.totalorder %s30, 0
      %p76 = por %p74, %p75
      %p77 = scmp.ne.s32.totalorder %s66, %s69
      %p78 = scmp.eq.s32.totalorder %s35, 1
      %p79 = por %p77, %p78
      %p80 = scmp.ne.s32.totalorder %s69, %s70
      %p81 = scmp.eq.s32.totalorder %s35, 0
      %p82 = por %p80, %p81
      %p83 = scmp.ne.s32.totalorder %s69, %s70
      %p84 = scmp.eq.s32.totalorder %s36, 1
      %p85 = por %p83, %p84
      %p87 = scmp.ne.s32.totalorder %s70, %s86
      %p88 = scmp.eq.s32.totalorder %s36, 0
      %p89 = por %p87, %p88
      %s90 = ssub.s32 %s30, %s37
      %p91 = scmp.eq.s32.totalorder %s90, 0
      %s93 = sadd.s32 %s92, 1
      %s94 = scalar_select %p91, %s92, %s93
      %p97 = pneg %p91
      %p98 = scmp.eq.s32.totalorder %s30, 1
      %p99 = por %p97, %p98
      %p100 = scmp.ne.s32.totalorder %s92, %s95
      %p101 = scmp.eq.s32.totalorder %s30, 0
      %p102 = por %p100, %p101
      %p103 = scmp.ne.s32.totalorder %s92, %s95
      %p104 = scmp.eq.s32.totalorder %s35, 1
      %p105 = por %p103, %p104
      %p106 = scmp.ne.s32.totalorder %s95, %s96
      %p107 = scmp.eq.s32.totalorder %s35, 0
      %p108 = por %p106, %p107
      %p109 = scmp.ne.s32.totalorder %s95, %s96
      %p110 = scmp.eq.s32.totalorder %s36, 1
      %p111 = por %p109, %p110
      %p113 = scmp.ne.s32.totalorder %s96, %s112
      %p114 = scmp.eq.s32.totalorder %s36, 0
      %p115 = por %p113, %p114
      %s117 = sadd.s32 %s116, 1
      %p120 = scmp.eq.s32.totalorder %s30, 1
      %p121 = scmp.ne.s32.totalorder %s116, %s118
      %p122 = scmp.eq.s32.totalorder %s30, 0
      %p123 = por %p121, %p122
      %p124 = scmp.ne.s32.totalorder %s116, %s118
      %p125 = scmp.eq.s32.totalorder %s35, 1
      %p126 = por %p124, %p125
      %p127 = scmp.ne.s32.totalorder %s118, %s119
      %p128 = scmp.eq.s32.totalorder %s35, 0
      %p129 = por %p127, %p128
      %p130 = scmp.ne.s32.totalorder %s118, %s119
      %p131 = scmp.eq.s32.totalorder %s36, 1
      %p132 = por %p130, %p131
      %p134 = scmp.ne.s32.totalorder %s119, %s133
      %p135 = scmp.eq.s32.totalorder %s36, 0
      %p136 = por %p134, %p135
      %s138 = sadd.s32 %s137, 1
      %p141 = scmp.eq.s32.totalorder %s30, 1
      %p142 = scmp.ne.s32.totalorder %s137, %s139
      %p143 = scmp.eq.s32.totalorder %s30, 0
      %p144 = por %p142, %p143
      %p145 = scmp.ne.s32.totalorder %s137, %s139
      %p146 = scmp.eq.s32.totalorder %s35, 1
      %p147 = por %p145, %p146
      %p148 = scmp.ne.s32.totalorder %s139, %s140
      %p149 = scmp.eq.s32.totalorder %s35, 0
      %p150 = por %p148, %p149
      %p151 = scmp.ne.s32.totalorder %s139, %s140
      %p152 = scmp.eq.s32.totalorder %s36, 1
      %p153 = por %p151, %p152
      %p155 = scmp.ne.s32.totalorder %s140, %s154
      %p156 = scmp.eq.s32.totalorder %s36, 0
      %p157 = por %p155, %p156
      %s159 = sadd.s32 %s158, 1
      %p162 = scmp.eq.s32.totalorder %s30, 1
      %p163 = scmp.ne.s32.totalorder %s158, %s160
      %p164 = scmp.eq.s32.totalorder %s30, 0
      %p165 = por %p163, %p164
      %p166 = scmp.ne.s32.totalorder %s158, %s160
      %p167 = scmp.eq.s32.totalorder %s35, 1
      %p168 = por %p166, %p167
      %p169 = scmp.ne.s32.totalorder %s160, %s161
      %p170 = scmp.eq.s32.totalorder %s35, 0
      %p171 = por %p169, %p170
      %p172 = scmp.ne.s32.totalorder %s160, %s161
      %p173 = scmp.eq.s32.totalorder %s36, 1
      %p174 = por %p172, %p173
      %p176 = scmp.ne.s32.totalorder %s161, %s175
      %p177 = scmp.eq.s32.totalorder %s36, 0
      %p178 = por %p176, %p177
      %s180 = sadd.s32 %s179, 1
      %p183 = scmp.eq.s32.totalorder %s30, 1
      %p184 = scmp.ne.s32.totalorder %s179, %s181
      %p185 = scmp.eq.s32.totalorder %s30, 0
      %p186 = por %p184, %p185
      %p187 = scmp.ne.s32.totalorder %s179, %s181
      %p188 = scmp.eq.s32.totalorder %s35, 1
      %p189 = por %p187, %p188
      %p190 = scmp.ne.s32.totalorder %s181, %s182
      %p191 = scmp.eq.s32.totalorder %s35, 0
      %p192 = por %p190, %p191
      %p193 = scmp.ne.s32.totalorder %s181, %s182
      %p194 = scmp.eq.s32.totalorder %s36, 1
      %p195 = por %p193, %p194
      %p197 = scmp.ne.s32.totalorder %s182, %s196
      %p198 = scmp.eq.s32.totalorder %s36, 0
      %p199 = por %p197, %p198
      %s201 = sadd.s32 %s200, 1
      %p204 = scmp.eq.s32.totalorder %s30, 1
      %p205 = scmp.ne.s32.totalorder %s200, %s202
      %p206 = scmp.eq.s32.totalorder %s30, 0
      %p207 = por %p205, %p206
      %p208 = scmp.ne.s32.totalorder %s200, %s202
      %p209 = scmp.eq.s32.totalorder %s35, 1
      %p210 = por %p208, %p209
      %p211 = scmp.ne.s32.totalorder %s202, %s203
      %p212 = scmp.eq.s32.totalorder %s35, 0
      %p213 = por %p211, %p212
      %p214 = scmp.ne.s32.totalorder %s202, %s203
      %p215 = scmp.eq.s32.totalorder %s36, 1
      %p216 = por %p214, %p215
      %p218 = scmp.ne.s32.totalorder %s203, %s217
      %p219 = scmp.eq.s32.totalorder %s36, 0
      %p220 = por %p218, %p219
      %s222 = sadd.s32 %s221, 1
      %p225 = scmp.eq.s32.totalorder %s30, 1
      %p226 = scmp.ne.s32.totalorder %s221, %s223
      %p227 = scmp.eq.s32.totalorder %s30, 0
      %p228 = por %p226, %p227
      %p229 = scmp.ne.s32.totalorder %s221, %s223
      %p230 = scmp.eq.s32.totalorder %s35, 1
      %p231 = por %p229, %p230
      %p232 = scmp.ne.s32.totalorder %s223, %s224
      %p233 = scmp.eq.s32.totalorder %s35, 0
      %p234 = por %p232, %p233
      %p235 = scmp.ne.s32.totalorder %s223, %s224
      %p236 = scmp.eq.s32.totalorder %s36, 1
      %p237 = por %p235, %p236
      %p239 = scmp.ne.s32.totalorder %s224, %s238
      %p240 = scmp.eq.s32.totalorder %s36, 0
      %p241 = por %p239, %p240
      %s243 = sadd.s32 %s242, 1
      %p246 = scmp.eq.s32.totalorder %s30, 1
      %p247 = scmp.ne.s32.totalorder %s242, %s244
      %p248 = scmp.eq.s32.totalorder %s30, 0
      %p249 = por %p247, %p248
      %p250 = scmp.ne.s32.totalorder %s242, %s244
      %p251 = scmp.eq.s32.totalorder %s35, 1
      %p252 = por %p250, %p251
      %p253 = scmp.ne.s32.totalorder %s244, %s245
      %p254 = scmp.eq.s32.totalorder %s35, 0
      %p255 = por %p253, %p254
      %p256 = scmp.ne.s32.totalorder %s244, %s245
      %p257 = scmp.eq.s32.totalorder %s36, 1
      %p258 = por %p256, %p257
      %p260 = scmp.ne.s32.totalorder %s245, %s259
      %p261 = scmp.eq.s32.totalorder %s36, 0
      %p262 = por %p260, %p261
      %s264 = sadd.s32 %s263, 1
      %p267 = scmp.eq.s32.totalorder %s30, 1
      %p268 = scmp.ne.s32.totalorder %s263, %s265
      %p269 = scmp.eq.s32.totalorder %s30, 0
      %p270 = por %p268, %p269
      %p271 = scmp.ne.s32.totalorder %s263, %s265
      %p272 = scmp.eq.s32.totalorder %s35, 1
      %p273 = por %p271, %p272
      %p274 = scmp.ne.s32.totalorder %s265, %s266
      %p275 = scmp.eq.s32.totalorder %s35, 0
      %p276 = por %p274, %p275
      %p277 = scmp.ne.s32.totalorder %s265, %s266
      %p278 = scmp.eq.s32.totalorder %s36, 1
      %p279 = por %p277, %p278
      %p281 = scmp.ne.s32.totalorder %s266, %s280
      %p282 = scmp.eq.s32.totalorder %s36, 0
      %p283 = por %p281, %p282
      %s284 = ssub.s32 %s30, %s37
      %p285 = scmp.eq.s32.totalorder %s284, 0
      %s287 = sadd.s32 %s286, 1
      %s288 = scalar_select %p285, %s286, %s287
      %p291 = pneg %p285
      %p292 = scmp.eq.s32.totalorder %s30, 1
      %p293 = por %p291, %p292
      %p294 = scmp.ne.s32.totalorder %s286, %s289
      %p295 = scmp.eq.s32.totalorder %s30, 0
      %p296 = por %p294, %p295
      %p297 = scmp.ne.s32.totalorder %s286, %s289
      %p298 = scmp.eq.s32.totalorder %s35, 1
      %p299 = por %p297, %p298
      %p300 = scmp.ne.s32.totalorder %s289, %s290
      %p301 = scmp.eq.s32.totalorder %s35, 0
      %p302 = por %p300, %p301
      %p303 = scmp.ne.s32.totalorder %s289, %s290
      %p304 = scmp.eq.s32.totalorder %s36, 1
      %p305 = por %p303, %p304
      %p307 = scmp.ne.s32.totalorder %s290, %s306
      %p308 = scmp.eq.s32.totalorder %s36, 0
      %p309 = por %p307, %p308
      %p310 = scmp.le.s32.totalorder 1, %s30
      %p311 = scmp.lt.s32.totalorder %s30, 3
      %p312 = pnand %p310, %p311
      %p313 = pneg %p312
      // Predicated region
      $region9: #{tpu_custom_call.1} parent=5 // pred_check
        _
      $region10: #{tpu_custom_call.1} parent=5 // pred_check_branch
        %315 = sbr.rel (%p312) target = $region12
      $region11: #{tpu_custom_call.1} parent=5 // pred_region
        %s316 = ssub.s32 %s30, 1
        // Predicated region
        $region13: #{tpu_custom_call.1} parent=11 // pred_check
          %p317 = pneg %p129
        $region14: #{tpu_custom_call.1} parent=11 // pred_check_branch
          %319 = sbr.rel (%p317) target = $region16
        $region15: #{tpu_custom_call.1} parent=11 // pred_region
          %s321 = ssub.s32 256, 256
          %322 = vsyncadd [#allocation9], %s321
          %s323 = sshll.u32 [#allocation8], 4
          %s324 = int_to_ptr.vmem [resolvable:$true] %s323
          %329 = dma.hbm_to_vmem [thread:$0]  %s3, 256, %s324, [#allocation9], 128, 128, 8
        $region16: #{tpu_custom_call.1} parent=11 // pred_fallthru
          _
        // Predicated region
        $region17: #{tpu_custom_call.1} parent=11 // pred_check
          %p330 = pneg %p150
        $region18: #{tpu_custom_call.1} parent=11 // pred_check_branch
          %332 = sbr.rel (%p330) target = $region20
        $region19: #{tpu_custom_call.1} parent=11 // pred_region
          _
        $region20: #{tpu_custom_call.1} parent=11 // pred_fallthru
          _
        // Predicated region
        $region21: #{tpu_custom_call.1} parent=11 // pred_check
          %p333 = pneg %p171
        $region22: #{tpu_custom_call.1} parent=11 // pred_check_branch
          %335 = sbr.rel (%p333) target = $region24
        $region23: #{tpu_custom_call.1} parent=11 // pred_region
          %s337 = ssub.s32 3072, 3072
          %338 = vsyncadd [#allocation9], %s337
          %s339 = sshll.u32 [#allocation10], 4
          %s340 = int_to_ptr.vmem [resolvable:$true] %s339
          %345 = dma.hbm_to_vmem [thread:$0]  %s5, 3072, %s340, [#allocation9], 192, 192, 12
        $region24: #{tpu_custom_call.1} parent=11 // pred_fallthru
          _
        // Predicated region
        $region25: #{tpu_custom_call.1} parent=11 // pred_check
          %p346 = pneg %p192
        $region26: #{tpu_custom_call.1} parent=11 // pred_check_branch
          %348 = sbr.rel (%p346) target = $region28
        $region27: #{tpu_custom_call.1} parent=11 // pred_region
          %s350 = ssub.s32 1024, 1024
          %351 = vsyncadd [#allocation12], %s350
          %s352 = sshll.u32 [#allocation11], 4
          %s353 = int_to_ptr.vmem [resolvable:$true] %s352
          %358 = dma.hbm_to_vmem [thread:$0]  %s6, 1024, %s353, [#allocation12], 64, 64, 4
        $region28: #{tpu_custom_call.1} parent=11 // pred_fallthru
          _
        // Predicated region
        $region29: #{tpu_custom_call.1} parent=11 // pred_check
          %p359 = pneg %p213
        $region30: #{tpu_custom_call.1} parent=11 // pred_check_branch
          %361 = sbr.rel (%p359) target = $region32
        $region31: #{tpu_custom_call.1} parent=11 // pred_region
          %s363 = ssub.s32 3072, 3072
          %364 = vsyncadd [#allocation12], %s363
          %s365 = sshll.u32 [#allocation13], 4
          %s366 = int_to_ptr.vmem [resolvable:$true] %s365
          %371 = dma.hbm_to_vmem [thread:$0]  %s7, 3072, %s366, [#allocation12], 192, 192, 12
        $region32: #{tpu_custom_call.1} parent=11 // pred_fallthru
          _
        // Predicated region
        $region33: #{tpu_custom_call.1} parent=11 // pred_check
          %p372 = pneg %p234
        $region34: #{tpu_custom_call.1} parent=11 // pred_check_branch
          %374 = sbr.rel (%p372) target = $region36
        $region35: #{tpu_custom_call.1} parent=11 // pred_region
          %s376 = ssub.s32 1024, 1024
          %377 = vsyncadd [#allocation15], %s376
          %s378 = sshll.u32 [#allocation14], 4
          %s379 = int_to_ptr.vmem [resolvable:$true] %s378
          %384 = dma.hbm_to_vmem [thread:$0]  %s8, 1024, %s379, [#allocation15], 64, 64, 4
        $region36: #{tpu_custom_call.1} parent=11 // pred_fallthru
          _
        // Predicated region
        $region37: #{tpu_custom_call.1} parent=11 // pred_check
          %p385 = pneg %p255
        $region38: #{tpu_custom_call.1} parent=11 // pred_check_branch
          %387 = sbr.rel (%p385) target = $region40
        $region39: #{tpu_custom_call.1} parent=11 // pred_region
          %s389 = ssub.s32 2048, 2048
          %390 = vsyncadd [#allocation15], %s389
          %s391 = sshll.u32 [#allocation16], 4
          %s392 = int_to_ptr.vmem [resolvable:$true] %s391
          %397 = dma.hbm_to_vmem [thread:$0]  %s9, 2048, %s392, [#allocation15], 128, 128, 8
        $region40: #{tpu_custom_call.1} parent=11 // pred_fallthru
          _
        // Predicated region
        $region41: #{tpu_custom_call.1} parent=11 // pred_check
          %p398 = pneg %p276
        $region42: #{tpu_custom_call.1} parent=11 // pred_check_branch
          %400 = sbr.rel (%p398) target = $region44
        $region43: #{tpu_custom_call.1} parent=11 // pred_region
          %s402 = ssub.s32 2048, 2048
          %403 = vsyncadd [#allocation18], %s402
          %s404 = sshll.u32 [#allocation17], 4
          %s405 = int_to_ptr.vmem [resolvable:$true] %s404
          %410 = dma.hbm_to_vmem [thread:$0]  %s10, 2048, %s405, [#allocation18], 64, 64, 4
        $region44: #{tpu_custom_call.1} parent=11 // pred_fallthru
          _
      $region12: #{tpu_custom_call.1} parent=5 // pred_fallthru
        _
      %p411 = scmp.lt.s32.totalorder %s30, 2
      // Predicated region
      $region45: #{tpu_custom_call.1} parent=5 // pred_check
        %p412 = pneg %p411
      $region46: #{tpu_custom_call.1} parent=5 // pred_check_branch
        %414 = sbr.rel (%p412) target = $region48
      $region47: #{tpu_custom_call.1} parent=5 // pred_region
        // Predicated region
        $region49: #{tpu_custom_call.1} parent=47 // pred_check
          %p415 = pneg %p50
        $region50: #{tpu_custom_call.1} parent=47 // pred_check_branch
          %417 = sbr.rel (%p415) target = $region52
        $region51: #{tpu_custom_call.1} parent=47 // pred_region
          %s418 = sand.u32 %s40, 1
          %s419 = scalar_lea.sflag [#allocation3], %s418
          %s420 = sand.u32 %s40, 1
          %s421 = smul.addr %s420, 16
          %s422 = scalar_lea.vmem [#allocation2], %s421
          %s423 = smul.u32 4, %s30
          %s425 = ssub.s32 256, 256
          %426 = vsyncadd %s419, %s425
          %s427 = smul.addr %s423, 64
          %s428 = scalar_lea.hbm %s0, %s427
          %s429 = sshll.u32 %s422, 4
          %s430 = int_to_ptr.vmem [resolvable:$true] %s429
          %435 = dma.hbm_to_vmem [thread:$0]  %s428, 256, %s430, %s419, 64, 64, 4
        $region52: #{tpu_custom_call.1} parent=47 // pred_fallthru
          _
        // Predicated region
        $region53: #{tpu_custom_call.1} parent=47 // pred_check
          %p436 = pneg %p76
        $region54: #{tpu_custom_call.1} parent=47 // pred_check_branch
          %438 = sbr.rel (%p436) target = $region56
        $region55: #{tpu_custom_call.1} parent=47 // pred_region
          %s439 = sand.u32 %s30, 1
          %s440 = scalar_lea.sflag [#allocation6], %s439
          %s441 = sand.u32 %s66, 1
          %s442 = smul.addr %s441, 32
          %s443 = scalar_lea.vmem [#allocation5], %s442
          %s444 = smul.u32 4, %s30
          %s446 = ssub.s32 512, 512
          %447 = vsyncadd %s440, %s446
          %s448 = smul.addr %s444, 2
          %s449 = smul.addr %s448, 64
          %s450 = scalar_lea.hbm %s1, %s449
          %s451 = sshll.u32 %s443, 4
          %s452 = int_to_ptr.vmem [resolvable:$true] %s451
          %457 = dma.hbm_to_vmem [thread:$0]  %s450, 512, %s452, %s440, 64, 64, 4
        $region56: #{tpu_custom_call.1} parent=47 // pred_fallthru
          _
        // Predicated region
        $region57: #{tpu_custom_call.1} parent=47 // pred_check
          %p458 = pneg %p102
        $region58: #{tpu_custom_call.1} parent=47 // pred_check_branch
          %460 = sbr.rel (%p458) target = $region60
        $region59: #{tpu_custom_call.1} parent=47 // pred_region
          %s461 = sand.u32 %s30, 1
          %s462 = scalar_lea.sflag [#allocation6], %s461
          %s463 = sand.u32 %s92, 1
          %s464 = smul.addr %s463, 32
          %s465 = scalar_lea.vmem [#allocation7], %s464
          %s466 = smul.u32 4, %s30
          %s468 = ssub.s32 512, 512
          %469 = vsyncadd %s462, %s468
          %s470 = smul.addr %s466, 2
          %s471 = smul.addr %s470, 64
          %s472 = scalar_lea.hbm %s2, %s471
          %s473 = sshll.u32 %s465, 4
          %s474 = int_to_ptr.vmem [resolvable:$true] %s473
          %479 = dma.hbm_to_vmem [thread:$0]  %s472, 512, %s474, %s462, 64, 64, 4
        $region60: #{tpu_custom_call.1} parent=47 // pred_fallthru
          _
      $region48: #{tpu_custom_call.1} parent=5 // pred_fallthru
        _
      %p480 = scmp.le.s32.totalorder 1, %s30
      %p481 = scmp.lt.s32.totalorder %s30, 3
      %p482 = pnand %p480, %p481
      %p483 = pneg %p482
      // Predicated region
      $region61: #{tpu_custom_call.1} parent=5 // pred_check
        _
      $region62: #{tpu_custom_call.1} parent=5 // pred_check_branch
        %485 = sbr.rel (%p482) target = $region64
      $region63: #{tpu_custom_call.1} parent=5 // pred_region
        %s486 = ssub.s32 %s30, 1
        %s487 = sand.u32 %s43, 1
        %s488 = scalar_lea.sflag [#allocation3], %s487
        %s489 = sand.u32 %s43, 1
        %s490 = smul.addr %s489, 16
        %s491 = scalar_lea.vmem [#allocation2], %s490
        // Predicated region
        $region65: #{tpu_custom_call.1} parent=63 // pred_check
          %p492 = pneg %p56
        $region66: #{tpu_custom_call.1} parent=63 // pred_check_branch
          %494 = sbr.rel (%p492) target = $region68
        $region67: #{tpu_custom_call.1} parent=63 // pred_region
          %495 = dma.done %s488, 256
        $region68: #{tpu_custom_call.1} parent=63 // pred_fallthru
          _
        %s496 = sand.u32 %s35, 1
        %s497 = scalar_lea.sflag [#allocation6], %s496
        %s498 = sand.u32 %s69, 1
        %s499 = smul.addr %s498, 32
        %s500 = scalar_lea.vmem [#allocation5], %s499
        // Predicated region
        $region69: #{tpu_custom_call.1} parent=63 // pred_check
          %p501 = pneg %p82
        $region70: #{tpu_custom_call.1} parent=63 // pred_check_branch
          %503 = sbr.rel (%p501) target = $region72
        $region71: #{tpu_custom_call.1} parent=63 // pred_region
          %504 = dma.done %s497, 512
        $region72: #{tpu_custom_call.1} parent=63 // pred_fallthru
          _
        %s505 = sand.u32 %s35, 1
        %s506 = scalar_lea.sflag [#allocation6], %s505
        %s507 = sand.u32 %s95, 1
        %s508 = smul.addr %s507, 32
        %s509 = scalar_lea.vmem [#allocation7], %s508
        // Predicated region
        $region73: #{tpu_custom_call.1} parent=63 // pred_check
          %p510 = pneg %p108
        $region74: #{tpu_custom_call.1} parent=63 // pred_check_branch
          %512 = sbr.rel (%p510) target = $region76
        $region75: #{tpu_custom_call.1} parent=63 // pred_region
          %513 = dma.done %s506, 512
        $region76: #{tpu_custom_call.1} parent=63 // pred_fallthru
          _
        // Predicated region
        $region77: #{tpu_custom_call.1} parent=63 // pred_check
          %p514 = pneg %p129
        $region78: #{tpu_custom_call.1} parent=63 // pred_check_branch
          %516 = sbr.rel (%p514) target = $region80
        $region79: #{tpu_custom_call.1} parent=63 // pred_region
          %517 = dma.done [#allocation9], 256
        $region80: #{tpu_custom_call.1} parent=63 // pred_fallthru
          _
        // Predicated region
        $region81: #{tpu_custom_call.1} parent=63 // pred_check
          %p518 = pneg %p171
        $region82: #{tpu_custom_call.1} parent=63 // pred_check_branch
          %520 = sbr.rel (%p518) target = $region84
        $region83: #{tpu_custom_call.1} parent=63 // pred_region
          %521 = dma.done [#allocation9], 3072
        $region84: #{tpu_custom_call.1} parent=63 // pred_fallthru
          _
        // Predicated region
        $region85: #{tpu_custom_call.1} parent=63 // pred_check
          %p522 = pneg %p192
        $region86: #{tpu_custom_call.1} parent=63 // pred_check_branch
          %524 = sbr.rel (%p522) target = $region88
        $region87: #{tpu_custom_call.1} parent=63 // pred_region
          %525 = dma.done [#allocation12], 1024
        $region88: #{tpu_custom_call.1} parent=63 // pred_fallthru
          _
        // Predicated region
        $region89: #{tpu_custom_call.1} parent=63 // pred_check
          %p526 = pneg %p213
        $region90: #{tpu_custom_call.1} parent=63 // pred_check_branch
          %528 = sbr.rel (%p526) target = $region92
        $region91: #{tpu_custom_call.1} parent=63 // pred_region
          %529 = dma.done [#allocation12], 3072
        $region92: #{tpu_custom_call.1} parent=63 // pred_fallthru
          _
        // Predicated region
        $region93: #{tpu_custom_call.1} parent=63 // pred_check
          %p530 = pneg %p234
        $region94: #{tpu_custom_call.1} parent=63 // pred_check_branch
          %532 = sbr.rel (%p530) target = $region96
        $region95: #{tpu_custom_call.1} parent=63 // pred_region
          %533 = dma.done [#allocation15], 1024
        $region96: #{tpu_custom_call.1} parent=63 // pred_fallthru
          _
        // Predicated region
        $region97: #{tpu_custom_call.1} parent=63 // pred_check
          %p534 = pneg %p255
        $region98: #{tpu_custom_call.1} parent=63 // pred_check_branch
          %536 = sbr.rel (%p534) target = $region100
        $region99: #{tpu_custom_call.1} parent=63 // pred_region
          %537 = dma.done [#allocation15], 2048
        $region100: #{tpu_custom_call.1} parent=63 // pred_fallthru
          _
        // Predicated region
        $region101: #{tpu_custom_call.1} parent=63 // pred_check
          %p538 = pneg %p276
        $region102: #{tpu_custom_call.1} parent=63 // pred_check_branch
          %540 = sbr.rel (%p538) target = $region104
        $region103: #{tpu_custom_call.1} parent=63 // pred_region
          %541 = dma.done [#allocation18], 2048
        $region104: #{tpu_custom_call.1} parent=63 // pred_fallthru
          _
        %s542 = sand.u32 %s43, 1
        %s543 = scalar_lea.sflag [#allocation3], %s542
        %s544 = sand.u32 %s43, 1
        %s545 = smul.addr %s544, 16
        %s546 = scalar_lea.vmem [#allocation2], %s545
        %p547 = pneg %p56
        %p548 = pneg %p53
        %s549 = sand.u32 %s35, 1
        %s550 = scalar_lea.sflag [#allocation6], %s549
        %s551 = sand.u32 %s69, 1
        %s552 = smul.addr %s551, 32
        %s553 = scalar_lea.vmem [#allocation5], %s552
        %p554 = pneg %p82
        %p555 = pneg %p79
        %s556 = sand.u32 %s35, 1
        %s557 = scalar_lea.sflag [#allocation6], %s556
        %s558 = sand.u32 %s95, 1
        %s559 = smul.addr %s558, 32
        %s560 = scalar_lea.vmem [#allocation7], %s559
        %p561 = pneg %p108
        %p562 = pneg %p105
        %p563 = pneg %p129
        %p564 = pneg %p126
        %p565 = pneg %p150
        %p566 = pneg %p147
        %p567 = pneg %p171
        %p568 = pneg %p168
        %p569 = pneg %p192
        %p570 = pneg %p189
        %p571 = pneg %p213
        %p572 = pneg %p210
        %p573 = pneg %p234
        %p574 = pneg %p231
        %p575 = pneg %p255
        %p576 = pneg %p252
        %p577 = pneg %p276
        %p578 = pneg %p273
        %p579 = pneg %p302
        %p580 = pneg %p299
        %s581 = sand.u32 %s289, 1
        %s582 = scalar_lea.sflag [#allocation4], %s581
        %s583 = sand.u32 %s289, 1
        %s584 = smul.addr %s583, 32
        %s585 = scalar_lea.vmem [#allocation19], %s584
        %s586 = smul.u32 4, %s35
        %s587 = smul.u32 4, %s35
        %s588 = smul.u32 4, %s35
        %s589 = smul.u32 4, %s35
        %v591 = vld [vmem:[#allocation8] sm:$0xff]
        %v592 = vld [vmem:[#allocation8 + $0x8] sm:$0x7f]
        %v593 = vld [vmem:[%s491] sm:$0xf]
        %v594 = vld [vmem:[%s491 + $0x4] sm:$0xf]
        %v595 = vld [vmem:[%s491 + $0x8] sm:$0xf]
        %v596 = vld [vmem:[%s491 + $0xc] sm:$0xf]
        %v597 = vunpack.c.l.bf16 %v593
        %v598 = vunpack.c.l.bf16 %v594
        %v599 = vunpack.c.l.bf16 %v595
        %v600 = vunpack.c.l.bf16 %v596
        %v601 = vld [vmem:[%s500] sm:$0xf]
        %v602 = vld [vmem:[%s500 + $0x4] sm:$0xf]
        %v603 = vld [vmem:[%s500 + $0x8] sm:$0xf]
        %v604 = vld [vmem:[%s500 + $0xc] sm:$0xf]
        %v605 = vld [vmem:[%s500 + $0x10] sm:$0xf]
        %v606 = vld [vmem:[%s500 + $0x14] sm:$0xf]
        %v607 = vld [vmem:[%s500 + $0x18] sm:$0xf]
        %v608 = vld [vmem:[%s500 + $0x1c] sm:$0xf]
        %v609 = vld [vmem:[%s509] sm:$0xf]
        %v610 = vld [vmem:[%s509 + $0x4] sm:$0xf]
        %v611 = vld [vmem:[%s509 + $0x8] sm:$0xf]
        %v612 = vld [vmem:[%s509 + $0xc] sm:$0xf]
        %v613 = vld [vmem:[%s509 + $0x10] sm:$0xf]
        %v614 = vld [vmem:[%s509 + $0x14] sm:$0xf]
        %v615 = vld [vmem:[%s509 + $0x18] sm:$0xf]
        %v616 = vld [vmem:[%s509 + $0x1c] sm:$0xf]
        %617 = vadd.xlane.f32.xlu0 %v597
        %v618 = vpop.xlane.xlu0 %617
        %619 = vadd.xlane.f32.xlu0 %v598
        %v620 = vpop.xlane.xlu0 %619
        %621 = vadd.xlane.f32.xlu0 %v599
        %v622 = vpop.xlane.xlu0 %621
        %623 = vadd.xlane.f32.xlu0 %v600
        %v624 = vpop.xlane.xlu0 %623
        %v625 = vrcp.pop 128.0
        %v626 = vmul.f32 %v618, %v625
        %v627 = vmul.f32 %v620, %v625
        %v628 = vmul.f32 %v622, %v625
        %v629 = vmul.f32 %v624, %v625
        %v630 = vsub.f32 %v597, %v626
        %v631 = vsub.f32 %v598, %v627
        %v632 = vsub.f32 %v599, %v628
        %v633 = vsub.f32 %v600, %v629
        %v634 = vmul.f32 %v630, %v630
        %v635 = vmul.f32 %v631, %v631
        %v636 = vmul.f32 %v632, %v632
        %v637 = vmul.f32 %v633, %v633
        %638 = vadd.xlane.f32.xlu0 %v634
        %v639 = vpop.xlane.xlu0 %638
        %640 = vadd.xlane.f32.xlu0 %v635
        %v641 = vpop.xlane.xlu0 %640
        %642 = vadd.xlane.f32.xlu0 %v636
        %v643 = vpop.xlane.xlu0 %642
        %644 = vadd.xlane.f32.xlu0 %v637
        %v645 = vpop.xlane.xlu0 %644
        %v646 = vmul.f32 %v639, %v625
        %v647 = vmul.f32 %v641, %v625
        %v648 = vmul.f32 %v643, %v625
        %v649 = vmul.f32 %v645, %v625
        %v650 = vadd.f32 %v646, 1e-05
        %v651 = vadd.f32 %v647, 1e-05
        %v652 = vadd.f32 %v648, 1e-05
        %v653 = vadd.f32 %v649, 1e-05
        %v654 = vrsqrt.pop %v650
        %v655 = vrsqrt.pop %v651
        %v656 = vrsqrt.pop %v652
        %v657 = vrsqrt.pop %v653
        %v658 = vmul.f32 %v630, %v654
        %v659 = vmul.f32 %v631, %v655
        %v660 = vmul.f32 %v632, %v656
        %v661 = vmul.f32 %v633, %v657
        %v662 = vlaneseq
        %v663 = vshrl.u32 %v662, 7
        %v664 = vsub.s32 0, %v663
        %v665 = vrot.slane %v591, %v664
        %v666 = vmul.f32 %v658, %v665
        %v667 = vmul.f32 %v659, %v665
        %v668 = vmul.f32 %v660, %v665
        %v669 = vmul.f32 %v661, %v665
        %v670 = vlaneseq
        %v671 = vshrl.u32 %v670, 7
        %v672 = vsub.s32 1, %v671
        %v673 = vrot.slane %v591, %v672
        %v674 = vadd.f32 %v666, %v673
        %v675 = vadd.f32 %v667, %v673
        %v676 = vadd.f32 %v668, %v673
        %v677 = vadd.f32 %v669, %v673
        %v678 = vld [vmem:[#allocation10] sm:$0xff]
        %v679 = vld [vmem:[#allocation10 + $0x8] sm:$0xf]
        %v680 = vld [vmem:[#allocation10 + $0xc] sm:$0xff]
        %v681 = vld [vmem:[#allocation10 + $0x14] sm:$0xf]
        %v682 = vld [vmem:[#allocation10 + $0x18] sm:$0xff]
        %v683 = vld [vmem:[#allocation10 + $0x20] sm:$0xf]
        %v684 = vld [vmem:[#allocation10 + $0x24] sm:$0xff]
        %v685 = vld [vmem:[#allocation10 + $0x2c] sm:$0xf]
        %v686 = vld [vmem:[#allocation10 + $0x30] sm:$0xff]
        %v687 = vld [vmem:[#allocation10 + $0x38] sm:$0xf]
        %v688 = vld [vmem:[#allocation10 + $0x3c] sm:$0xff]
        %v689 = vld [vmem:[#allocation10 + $0x44] sm:$0xf]
        %v690 = vld [vmem:[#allocation10 + $0x48] sm:$0xff]
        %v691 = vld [vmem:[#allocation10 + $0x50] sm:$0xf]
        %v692 = vld [vmem:[#allocation10 + $0x54] sm:$0xff]
        %v693 = vld [vmem:[#allocation10 + $0x5c] sm:$0xf]
        %v694 = vld [vmem:[#allocation10 + $0x60] sm:$0xff]
        %v695 = vld [vmem:[#allocation10 + $0x68] sm:$0xf]
        %v696 = vld [vmem:[#allocation10 + $0x6c] sm:$0xff]
        %v697 = vld [vmem:[#allocation10 + $0x74] sm:$0xf]
        %v698 = vld [vmem:[#allocation10 + $0x78] sm:$0xff]
        %v699 = vld [vmem:[#allocation10 + $0x80] sm:$0xf]
        %v700 = vld [vmem:[#allocation10 + $0x84] sm:$0xff]
        %v701 = vld [vmem:[#allocation10 + $0x8c] sm:$0xf]
        %v702 = vld [vmem:[#allocation10 + $0x90] sm:$0xff]
        %v703 = vld [vmem:[#allocation10 + $0x98] sm:$0xf]
        %v704 = vld [vmem:[#allocation10 + $0x9c] sm:$0xff]
        %v705 = vld [vmem:[#allocation10 + $0xa4] sm:$0xf]
        %v706 = vld [vmem:[#allocation10 + $0xa8] sm:$0xff]
        %v707 = vld [vmem:[#allocation10 + $0xb0] sm:$0xf]
        %v708 = vld [vmem:[#allocation10 + $0xb4] sm:$0xff]
        %v709 = vld [vmem:[#allocation10 + $0xbc] sm:$0xf]
        %v710 = vpack.c.bf16 %v675, %v674
        %v711 = vpack.c.bf16 %v677, %v676
        %v744 = vunpack.c.l.b16 %v678
        %v745 = vunpack.c.h.b16 %v678
        %v746 = vunpack.c.l.b16 %v679
        %v747 = vunpack.c.l.b16 %v680
        %v748 = vunpack.c.h.b16 %v680
        %v749 = vunpack.c.l.b16 %v681
        %v750 = vunpack.c.l.b16 %v682
        %v751 = vunpack.c.h.b16 %v682
        %v752 = vunpack.c.l.b16 %v683
        %v753 = vunpack.c.l.b16 %v684
        %v754 = vunpack.c.h.b16 %v684
        %v755 = vunpack.c.l.b16 %v685
        %v756 = vunpack.c.l.b16 %v686
        %v757 = vunpack.c.h.b16 %v686
        %v758 = vunpack.c.l.b16 %v687
        %v759 = vunpack.c.l.b16 %v688
        %v760 = vunpack.c.h.b16 %v688
        %v761 = vunpack.c.l.b16 %v689
        %v762 = vunpack.c.l.b16 %v690
        %v763 = vunpack.c.h.b16 %v690
        %v764 = vunpack.c.l.b16 %v691
        %v765 = vunpack.c.l.b16 %v692
        %v766 = vunpack.c.h.b16 %v692
        %v767 = vunpack.c.l.b16 %v693
        %v768 = vunpack.c.l.b16 %v694
        %v769 = vunpack.c.h.b16 %v694
        %v770 = vunpack.c.l.b16 %v695
        %v771 = vunpack.c.l.b16 %v696
        %v772 = vunpack.c.h.b16 %v696
        %v773 = vunpack.c.l.b16 %v697
        %v774 = vunpack.c.l.b16 %v698
        %v775 = vunpack.c.h.b16 %v698
        %v776 = vunpack.c.l.b16 %v699
        %v777 = vunpack.c.l.b16 %v700
        %v778 = vunpack.c.h.b16 %v700
        %v779 = vunpack.c.l.b16 %v701
        %v780 = vunpack.c.l.b16 %v702
        %v781 = vunpack.c.h.b16 %v702
        %v782 = vunpack.c.l.b16 %v703
        %v783 = vunpack.c.l.b16 %v704
        %v784 = vunpack.c.h.b16 %v704
        %v785 = vunpack.c.l.b16 %v705
        %v786 = vunpack.c.l.b16 %v706
        %v787 = vunpack.c.h.b16 %v706
        %v788 = vunpack.c.l.b16 %v707
        %v789 = vunpack.c.l.b16 %v708
        %v790 = vunpack.c.h.b16 %v708
        %v791 = vunpack.c.l.b16 %v709
        %v792 = vpack.c.b16 %v747, %v744
        %v793 = vpack.c.b16 %v748, %v745
        %v794 = vpack.c.b16 %v749, %v746
        %v795 = vpack.c.b16 %v753, %v750
        %v796 = vpack.c.b16 %v754, %v751
        %v797 = vpack.c.b16 %v755, %v752
        %v798 = vpack.c.b16 %v759, %v756
        %v799 = vpack.c.b16 %v760, %v757
        %v800 = vpack.c.b16 %v761, %v758
        %v801 = vpack.c.b16 %v765, %v762
        %v802 = vpack.c.b16 %v766, %v763
        %v803 = vpack.c.b16 %v767, %v764
        %v804 = vpack.c.b16 %v771, %v768
        %v805 = vpack.c.b16 %v772, %v769
        %v806 = vpack.c.b16 %v773, %v770
        %v807 = vpack.c.b16 %v777, %v774
        %v808 = vpack.c.b16 %v778, %v775
        %v809 = vpack.c.b16 %v779, %v776
        %v810 = vpack.c.b16 %v783, %v780
        %v811 = vpack.c.b16 %v784, %v781
        %v812 = vpack.c.b16 %v785, %v782
        %v813 = vpack.c.b16 %v789, %v786
        %v814 = vpack.c.b16 %v790, %v787
        %v815 = vpack.c.b16 %v791, %v788
        %840 = vmatprep.subr.bf16.mxu0 %v793
        %841 = vmatpush1.bf16.msra.mxu0 %v792
        %842 = vmatprep.subr.bf16.mxu0 %v796
        %843 = vmatpush1.bf16.msra.mxu0 %v795
        %844 = vmatprep.subr.bf16.mxu0 %v799
        %845 = vmatpush1.bf16.msra.mxu0 %v798
        %846 = vmatprep.subr.bf16.mxu0 %v802
        %847 = vmatpush1.bf16.msra.mxu0 %v801
        %848 = vmatprep.subr.bf16.mxu0 %v805
        %849 = vmatpush1.bf16.msra.mxu0 %v804
        %850 = vmatprep.subr.bf16.mxu0 %v808
        %851 = vmatpush1.bf16.msra.mxu0 %v807
        %852 = vmatprep.subr.bf16.mxu0 %v811
        %853 = vmatpush1.bf16.msra.mxu0 %v810
        %854 = vmatprep.subr.bf16.mxu0 %v814
        %855 = vmatpush1.bf16.msra.mxu0 %v813
        %856 = vmatprep.subr.bf16.mxu0 0
        %857 = vmatpush1.bf16.msra.mxu0 0
        %858 = vmatprep.subr.bf16.mxu0 0
        %859 = vmatpush1.bf16.msra.mxu0 0
        %860 = vmatprep.subr.bf16.mxu0 0
        %861 = vmatpush1.bf16.msra.mxu0 0
        %862 = vmatprep.subr.bf16.mxu0 0
        %863 = vmatpush1.bf16.msra.mxu0 0
        %864 = vmatprep.subr.bf16.mxu0 0
        %865 = vmatpush1.bf16.msra.mxu0 0
        %866 = vmatprep.subr.bf16.mxu0 0
        %867 = vmatpush1.bf16.msra.mxu0 0
        %868 = vmatprep.subr.bf16.mxu0 0
        %869 = vmatpush1.bf16.msra.mxu0 0
        %870 = vmatprep.subr.bf16.mxu0 0
        %871 = vmatpush1.bf16.msra.mxu0 0
        %872 = vmatprep.mubr.bf16.mxu0 0
        %873 = vmatmul.mubr.bf16.gmra.mrb[0].mxu0 %v710
        %v874 = vpop.f32.mrb[0].mxu0
        %v875 = vadd.f32 0.0, %v874
        %v876 = vpop.f32.mrb[0].mxu0
        %v877 = vadd.f32 0.0, %v876
        %v878 = vpop.f32.mrb[0].mxu0
        %v879 = vadd.f32 0.0, %v878
        %v880 = vpop.f32.mrb[0].mxu0
        %v881 = vadd.f32 0.0, %v880
        %882 = vmatprep.mubr.bf16.mxu0 0
        %883 = vmatmul.mubr.bf16.gmra.mrb[0].mxu0 %v711
        %v884 = vpop.f32.mrb[0].mxu0
        %v885 = vadd.f32 0.0, %v884
        %v886 = vpop.f32.mrb[0].mxu0
        %v887 = vadd.f32 0.0, %v886
        %v888 = vpop.f32.mrb[0].mxu0
        %v889 = vadd.f32 0.0, %v888
        %v890 = vpop.f32.mrb[0].mxu0
        %v891 = vadd.f32 0.0, %v890
        %892 = vdwg.mxu0
        %893 = vmatprep.subr.bf16.mxu0 0
        %894 = vmatpush1.bf16.msra.mxu0 %v794
        %895 = vmatprep.subr.bf16.mxu0 0
        %896 = vmatpush1.bf16.msra.mxu0 %v797
        %897 = vmatprep.subr.bf16.mxu0 0
        %898 = vmatpush1.bf16.msra.mxu0 %v800
        %899 = vmatprep.subr.bf16.mxu0 0
        %900 = vmatpush1.bf16.msra.mxu0 %v803
        %901 = vmatprep.subr.bf16.mxu0 0
        %902 = vmatpush1.bf16.msra.mxu0 %v806
        %903 = vmatprep.subr.bf16.mxu0 0
        %904 = vmatpush1.bf16.msra.mxu0 %v809
        %905 = vmatprep.subr.bf16.mxu0 0
        %906 = vmatpush1.bf16.msra.mxu0 %v812
        %907 = vmatprep.subr.bf16.mxu0 0
        %908 = vmatpush1.bf16.msra.mxu0 %v815
        %909 = vmatprep.subr.bf16.mxu0 0
        %910 = vmatpush1.bf16.msra.mxu0 0
        %911 = vmatprep.subr.bf16.mxu0 0
        %912 = vmatpush1.bf16.msra.mxu0 0
        %913 = vmatprep.subr.bf16.mxu0 0
        %914 = vmatpush1.bf16.msra.mxu0 0
        %915 = vmatprep.subr.bf16.mxu0 0
        %916 = vmatpush1.bf16.msra.mxu0 0
        %917 = vmatprep.subr.bf16.mxu0 0
        %918 = vmatpush1.bf16.msra.mxu0 0
        %919 = vmatprep.subr.bf16.mxu0 0
        %920 = vmatpush1.bf16.msra.mxu0 0
        %921 = vmatprep.subr.bf16.mxu0 0
        %922 = vmatpush1.bf16.msra.mxu0 0
        %923 = vmatprep.subr.bf16.mxu0 0
        %924 = vmatpush1.bf16.msra.mxu0 0
        %925 = vmatprep.mubr.bf16.mxu0 0
        %926 = vmatmul.mubr.bf16.gmra.mrb[0].mxu0 %v710
        %v927 = vpop.f32.mrb[0].mxu0
        %v928 = vadd.f32 0.0, %v927
        %v929 = vpop.f32.mrb[0].mxu0
        %v930 = vpop.f32.mrb[0].mxu0
        %v931 = vadd.f32 0.0, %v930
        %v932 = vpop.f32.mrb[0].mxu0
        %933 = vmatprep.mubr.bf16.mxu0 0
        %934 = vmatmul.mubr.bf16.gmra.mrb[0].mxu0 %v711
        %v935 = vpop.f32.mrb[0].mxu0
        %v936 = vadd.f32 0.0, %v935
        %v937 = vpop.f32.mrb[0].mxu0
        %v938 = vpop.f32.mrb[0].mxu0
        %v939 = vadd.f32 0.0, %v938
        %v940 = vpop.f32.mrb[0].mxu0
        %941 = vdwg.mxu0
        %v942 = vlaneseq
        %v943 = vshrl.u32 %v942, 7
        %v944 = vsub.s32 6, %v943
        %v945 = vrot.slane %v591, %v944
        %v946 = vadd.f32 %v875, %v945
        %v947 = vadd.f32 %v879, %v945
        %v948 = vadd.f32 %v885, %v945
        %v949 = vadd.f32 %v889, %v945
        %v950 = vlaneseq
        %v951 = vshrl.u32 %v950, 7
        %v952 = vsub.s32 7, %v951
        %v953 = vrot.slane %v591, %v952
        %v954 = vadd.f32 %v877, %v953
        %v955 = vadd.f32 %v881, %v953
        %v956 = vadd.f32 %v887, %v953
        %v957 = vadd.f32 %v891, %v953
        %v958 = vlaneseq
        %v959 = vshrl.u32 %v958, 7
        %v960 = vsub.s32 0, %v959
        %v961 = vrot.slane %v592, %v960
        %v962 = vadd.f32 %v928, %v961
        %v963 = vadd.f32 %v931, %v961
        %v964 = vadd.f32 %v936, %v961
        %v965 = vadd.f32 %v939, %v961
        %v966 = vmul.f32 %v946, 0.17677669
        %v967 = vmul.f32 %v947, 0.17677669
        %v968 = vmul.f32 %v948, 0.17677669
        %v969 = vmul.f32 %v949, 0.17677669
        %v970 = vpack.c.bf16 %v967, %v966
        %v971 = vpack.c.bf16 %v969, %v968
        %v974 = vunpack.c.l.b16 %v970
        %v975 = vunpack.c.h.b16 %v970
        %v976 = vunpack.c.l.b16 %v971
        %v977 = vunpack.c.h.b16 %v971
        %v978 = vpack.c.b16 %v974, %v974
        %v979 = vpack.c.b16 %v975, %v975
        %v980 = vpack.c.b16 %v976, %v976
        %v981 = vpack.c.b16 %v977, %v977
        %v982 = vpack.c.bf16 %v955, %v954
        %v983 = vpack.c.bf16 %v957, %v956
        %v986 = vunpack.c.l.b16 %v982
        %v987 = vunpack.c.h.b16 %v982
        %v988 = vunpack.c.l.b16 %v983
        %v989 = vunpack.c.h.b16 %v983
        %v990 = vpack.c.b16 %v986, %v986
        %v991 = vpack.c.b16 %v987, %v987
        %v992 = vpack.c.b16 %v988, %v988
        %v993 = vpack.c.b16 %v989, %v989
        %v994 = vpack.c.bf16 %v963, %v962
        %v995 = vpack.c.bf16 %v965, %v964
        %v998 = vunpack.c.l.b16 %v994
        %v999 = vunpack.c.h.b16 %v994
        %v1000 = vunpack.c.l.b16 %v995
        %v1001 = vunpack.c.h.b16 %v995
        %v1002 = vpack.c.b16 %v998, %v998
        %v1003 = vpack.c.b16 %v999, %v999
        %v1004 = vpack.c.b16 %v1000, %v1000
        %v1005 = vpack.c.b16 %v1001, %v1001
        %vm1006 = vcmask 261120
        %v1008 = vsel %vm1006, %v978, 0
        %v1011 = vsel %vm1006, %v990, 0
        %1013 = vmatprep.subr.bf16.mxu0 0
        %1014 = vmatpush1.bf16.xpose.msra.mxu0 %v1011
        %1015 = vmatprep.subr.bf16.mxu0 0
        %1016 = vmatpush1.bf16.xpose.msra.mxu0 0
        %1017 = vmatprep.subr.bf16.mxu0 0
        %1018 = vmatpush1.bf16.xpose.msra.mxu0 0
        %1019 = vmatprep.subr.bf16.mxu0 0
        %1020 = vmatpush1.bf16.xpose.msra.mxu0 0
        %1021 = vmatprep.subr.bf16.mxu0 0
        %1022 = vmatpush1.bf16.xpose.msra.mxu0 0
        %1023 = vmatprep.subr.bf16.mxu0 0
        %1024 = vmatpush1.bf16.xpose.msra.mxu0 0
        %1025 = vmatprep.subr.bf16.mxu0 0
        %1026 = vmatpush1.bf16.xpose.msra.mxu0 0
        %1027 = vmatprep.subr.bf16.mxu0 0
        %1028 = vmatpush1.bf16.xpose.msra.mxu0 0
        %1029 = vmatprep.subr.bf16.mxu0 0
        %1030 = vmatpush1.bf16.xpose.msra.mxu0 0
        %1031 = vmatprep.subr.bf16.mxu0 0
        %1032 = vmatpush1.bf16.xpose.msra.mxu0 0
        %1033 = vmatprep.subr.bf16.mxu0 0
        %1034 = vmatpush1.bf16.xpose.msra.mxu0 0
        %1035 = vmatprep.subr.bf16.mxu0 0
        %1036 = vmatpush1.bf16.xpose.msra.mxu0 0
        %1037 = vmatprep.subr.bf16.mxu0 0
        %1038 = vmatpush1.bf16.xpose.msra.mxu0 0
        %1039 = vmatprep.subr.bf16.mxu0 0
        %1040 = vmatpush1.bf16.xpose.msra.mxu0 0
        %1041 = vmatprep.subr.bf16.mxu0 0
        %1042 = vmatpush1.bf16.xpose.msra.mxu0 0
        %1043 = vmatprep.subr.bf16.mxu0 0
        %1044 = vmatpush1.bf16.xpose.msra.mxu0 0
        %1045 = vmatprep.mubr.bf16.mxu0 0
        %1046 = vmatmul.mubr.bf16.gmra.mrb[0].mxu0 %v1008
        %v1047 = vpop.f32.mrb[0].mxu0
        %v1048 = vadd.f32 0.0, %v1047
        %v1049 = vpop.f32.mrb[0].mxu0
        %v1050 = vpop.f32.mrb[0].mxu0
        %v1051 = vpop.f32.mrb[0].mxu0
        %1052 = vdwg.mxu0
        %v1054 = vsel %vm1006, %v979, 0
        %v1057 = vsel %vm1006, %v991, 0
        %1059 = vmatprep.subr.bf16.mxu0 0
        %1060 = vmatpush1.bf16.xpose.msra.mxu0 %v1057
        %1061 = vmatprep.subr.bf16.mxu0 0
        %1062 = vmatpush1.bf16.xpose.msra.mxu0 0
        %1063 = vmatprep.subr.bf16.mxu0 0
        %1064 = vmatpush1.bf16.xpose.msra.mxu0 0
        %1065 = vmatprep.subr.bf16.mxu0 0
        %1066 = vmatpush1.bf16.xpose.msra.mxu0 0
        %1067 = vmatprep.subr.bf16.mxu0 0
        %1068 = vmatpush1.bf16.xpose.msra.mxu0 0
        %1069 = vmatprep.subr.bf16.mxu0 0
        %1070 = vmatpush1.bf16.xpose.msra.mxu0 0
        %1071 = vmatprep.subr.bf16.mxu0 0
        %1072 = vmatpush1.bf16.xpose.msra.mxu0 0
        %1073 = vmatprep.subr.bf16.mxu0 0
        %1074 = vmatpush1.bf16.xpose.msra.mxu0 0
        %1075 = vmatprep.subr.bf16.mxu0 0
        %1076 = vmatpush1.bf16.xpose.msra.mxu0 0
        %1077 = vmatprep.subr.bf16.mxu0 0
        %1078 = vmatpush1.bf16.xpose.msra.mxu0 0
        %1079 = vmatprep.subr.bf16.mxu0 0
        %1080 = vmatpush1.bf16.xpose.msra.mxu0 0
        %1081 = vmatprep.subr.bf16.mxu0 0
        %1082 = vmatpush1.bf16.xpose.msra.mxu0 0
        %1083 = vmatprep.subr.bf16.mxu0 0
        %1084 = vmatpush1.bf16.xpose.msra.mxu0 0
        %1085 = vmatprep.subr.bf16.mxu0 0
        %1086 = vmatpush1.bf16.xpose.msra.mxu0 0
        %1087 = vmatprep.subr.bf16.mxu0 0
        %1088 = vmatpush1.bf16.xpose.msra.mxu0 0
        %1089 = vmatprep.subr.bf16.mxu0 0
        %1090 = vmatpush1.bf16.xpose.msra.mxu0 0
        %1091 = vmatprep.mubr.bf16.mxu0 0
        %1092 = vmatmul.mubr.bf16.gmra.mrb[0].mxu0 %v1054
        %v1093 = vpop.f32.mrb[0].mxu0
        %v1094 = vadd.f32 0.0, %v1093
        %v1095 = vpop.f32.mrb[0].mxu0
        %v1096 = vpop.f32.mrb[0].mxu0
        %v1097 = vpop.f32.mrb[0].mxu0
        %1098 = vdwg.mxu0
        %v1100 = vsel %vm1006, %v980, 0
        %v1103 = vsel %vm1006, %v992, 0
        %1105 = vmatprep.subr.bf16.mxu0 0
        %1106 = vmatpush1.bf16.xpose.msra.mxu0 %v1103
        %1107 = vmatprep.subr.bf16.mxu0 0
        %1108 = vmatpush1.bf16.xpose.msra.mxu0 0
        %1109 = vmatprep.subr.bf16.mxu0 0
        %1110 = vmatpush1.bf16.xpose.msra.mxu0 0
        %1111 = vmatprep.subr.bf16.mxu0 0
        %1112 = vmatpush1.bf16.xpose.msra.mxu0 0
        %1113 = vmatprep.subr.bf16.mxu0 0
        %1114 = vmatpush1.bf16.xpose.msra.mxu0 0
        %1115 = vmatprep.subr.bf16.mxu0 0
        %1116 = vmatpush1.bf16.xpose.msra.mxu0 0
        %1117 = vmatprep.subr.bf16.mxu0 0
        %1118 = vmatpush1.bf16.xpose.msra.mxu0 0
        %1119 = vmatprep.subr.bf16.mxu0 0
        %1120 = vmatpush1.bf16.xpose.msra.mxu0 0
        %1121 = vmatprep.subr.bf16.mxu0 0
        %1122 = vmatpush1.bf16.xpose.msra.mxu0 0
        %1123 = vmatprep.subr.bf16.mxu0 0
        %1124 = vmatpush1.bf16.xpose.msra.mxu0 0
        %1125 = vmatprep.subr.bf16.mxu0 0
        %1126 = vmatpush1.bf16.xpose.msra.mxu0 0
        %1127 = vmatprep.subr.bf16.mxu0 0
        %1128 = vmatpush1.bf16.xpose.msra.mxu0 0
        %1129 = vmatprep.subr.bf16.mxu0 0
        %1130 = vmatpush1.bf16.xpose.msra.mxu0 0
        %1131 = vmatprep.subr.bf16.mxu0 0
        %1132 = vmatpush1.bf16.xpose.msra.mxu0 0
        %1133 = vmatprep.subr.bf16.mxu0 0
        %1134 = vmatpush1.bf16.xpose.msra.mxu0 0
        %1135 = vmatprep.subr.bf16.mxu0 0
        %1136 = vmatpush1.bf16.xpose.msra.mxu0 0
        %1137 = vmatprep.mubr.bf16.mxu0 0
        %1138 = vmatmul.mubr.bf16.gmra.mrb[0].mxu0 %v1100
        %v1139 = vpop.f32.mrb[0].mxu0
        %v1140 = vadd.f32 0.0, %v1139
        %v1141 = vpop.f32.mrb[0].mxu0
        %v1142 = vpop.f32.mrb[0].mxu0
        %v1143 = vpop.f32.mrb[0].mxu0
        %1144 = vdwg.mxu0
        %v1146 = vsel %vm1006, %v981, 0
        %v1149 = vsel %vm1006, %v993, 0
        %1151 = vmatprep.subr.bf16.mxu0 0
        %1152 = vmatpush1.bf16.xpose.msra.mxu0 %v1149
        %1153 = vmatprep.subr.bf16.mxu0 0
        %1154 = vmatpush1.bf16.xpose.msra.mxu0 0
        %1155 = vmatprep.subr.bf16.mxu0 0
        %1156 = vmatpush1.bf16.xpose.msra.mxu0 0
        %1157 = vmatprep.subr.bf16.mxu0 0
        %1158 = vmatpush1.bf16.xpose.msra.mxu0 0
        %1159 = vmatprep.subr.bf16.mxu0 0
        %1160 = vmatpush1.bf16.xpose.msra.mxu0 0
        %1161 = vmatprep.subr.bf16.mxu0 0
        %1162 = vmatpush1.bf16.xpose.msra.mxu0 0
        %1163 = vmatprep.subr.bf16.mxu0 0
        %1164 = vmatpush1.bf16.xpose.msra.mxu0 0
        %1165 = vmatprep.subr.bf16.mxu0 0
        %1166 = vmatpush1.bf16.xpose.msra.mxu0 0
        %1167 = vmatprep.subr.bf16.mxu0 0
        %1168 = vmatpush1.bf16.xpose.msra.mxu0 0
        %1169 = vmatprep.subr.bf16.mxu0 0
        %1170 = vmatpush1.bf16.xpose.msra.mxu0 0
        %1171 = vmatprep.subr.bf16.mxu0 0
        %1172 = vmatpush1.bf16.xpose.msra.mxu0 0
        %1173 = vmatprep.subr.bf16.mxu0 0
        %1174 = vmatpush1.bf16.xpose.msra.mxu0 0
        %1175 = vmatprep.subr.bf16.mxu0 0
        %1176 = vmatpush1.bf16.xpose.msra.mxu0 0
        %1177 = vmatprep.subr.bf16.mxu0 0
        %1178 = vmatpush1.bf16.xpose.msra.mxu0 0
        %1179 = vmatprep.subr.bf16.mxu0 0
        %1180 = vmatpush1.bf16.xpose.msra.mxu0 0
        %1181 = vmatprep.subr.bf16.mxu0 0
        %1182 = vmatpush1.bf16.xpose.msra.mxu0 0
        %1183 = vmatprep.mubr.bf16.mxu0 0
        %1184 = vmatmul.mubr.bf16.gmra.mrb[0].mxu0 %v1146
        %v1185 = vpop.f32.mrb[0].mxu0
        %v1186 = vadd.f32 0.0, %v1185
        %v1187 = vpop.f32.mrb[0].mxu0
        %v1188 = vpop.f32.mrb[0].mxu0
        %v1189 = vpop.f32.mrb[0].mxu0
        %1190 = vdwg.mxu0
        %vm1191 = vcmask 64512
        %v1192 = vsel %vm1191, %v1048, -inf
        %1193 = vmax.xlane.f32.xlu0 %v1192
        %v1194 = vpop.xlane.xlu0 %1193
        %v1195 = vsel %vm1191, %v1094, -inf
        %1196 = vmax.xlane.f32.xlu0 %v1195
        %v1197 = vpop.xlane.xlu0 %1196
        %v1198 = vsel %vm1191, %v1140, -inf
        %1199 = vmax.xlane.f32.xlu0 %v1198
        %v1200 = vpop.xlane.xlu0 %1199
        %v1201 = vsel %vm1191, %v1186, -inf
        %1202 = vmax.xlane.f32.xlu0 %v1201
        %v1203 = vpop.xlane.xlu0 %1202
        %v1204 = vsub.f32 %v1048, %v1194
        %v1205 = vsub.f32 %v1094, %v1197
        %v1206 = vsub.f32 %v1140, %v1200
        %v1207 = vsub.f32 %v1186, %v1203
        %v1208 = vmul.f32 %v1204, 1.442695
        %v1209 = vpow.pop %v1208
        %v1210 = vmul.f32 %v1205, 1.442695
        %v1211 = vpow.pop %v1210
        %v1212 = vmul.f32 %v1206, 1.442695
        %v1213 = vpow.pop %v1212
        %v1214 = vmul.f32 %v1207, 1.442695
        %v1215 = vpow.pop %v1214
        %v1216 = vsel %vm1191, %v1209, 0.0
        %1217 = vadd.xlane.f32.xlu0 %v1216
        %v1218 = vpop.xlane.xlu0 %1217
        %v1219 = vsel %vm1191, %v1211, 0.0
        %1220 = vadd.xlane.f32.xlu0 %v1219
        %v1221 = vpop.xlane.xlu0 %1220
        %v1222 = vsel %vm1191, %v1213, 0.0
        %1223 = vadd.xlane.f32.xlu0 %v1222
        %v1224 = vpop.xlane.xlu0 %1223
        %v1225 = vsel %vm1191, %v1215, 0.0
        %1226 = vadd.xlane.f32.xlu0 %v1225
        %v1227 = vpop.xlane.xlu0 %1226
        %v1228 = vrcp.pop %v1218
        %v1229 = vrcp.pop %v1221
        %v1230 = vrcp.pop %v1224
        %v1231 = vrcp.pop %v1227
        %v1232 = vmul.f32 %v1209, %v1228
        %v1233 = vmul.f32 %v1211, %v1229
        %v1234 = vmul.f32 %v1213, %v1230
        %v1235 = vmul.f32 %v1215, %v1231
        %v1236 = vpack.c.bf16 %v1232, %v1232
        %v1237 = vpack.c.bf16 %v1233, %v1233
        %v1238 = vpack.c.bf16 %v1234, %v1234
        %v1239 = vpack.c.bf16 %v1235, %v1235
        %v1241 = vsel %vm1191, %v1236, 0
        %vm1243 = vcmask 1043456
        %v1245 = vsel %vm1243, %v1002, 0
        %1247 = vmatprep.subr.bf16.mxu0 0
        %1248 = vmatpush1.bf16.msra.mxu0 %v1245
        %1249 = vmatprep.subr.bf16.mxu0 0
        %1250 = vmatpush1.bf16.msra.mxu0 0
        %1251 = vmatprep.subr.bf16.mxu0 0
        %1252 = vmatpush1.bf16.msra.mxu0 0
        %1253 = vmatprep.subr.bf16.mxu0 0
        %1254 = vmatpush1.bf16.msra.mxu0 0
        %1255 = vmatprep.subr.bf16.mxu0 0
        %1256 = vmatpush1.bf16.msra.mxu0 0
        %1257 = vmatprep.subr.bf16.mxu0 0
        %1258 = vmatpush1.bf16.msra.mxu0 0
        %1259 = vmatprep.subr.bf16.mxu0 0
        %1260 = vmatpush1.bf16.msra.mxu0 0
        %1261 = vmatprep.subr.bf16.mxu0 0
        %1262 = vmatpush1.bf16.msra.mxu0 0
        %1263 = vmatprep.subr.bf16.mxu0 0
        %1264 = vmatpush1.bf16.msra.mxu0 0
        %1265 = vmatprep.subr.bf16.mxu0 0
        %1266 = vmatpush1.bf16.msra.mxu0 0
        %1267 = vmatprep.subr.bf16.mxu0 0
        %1268 = vmatpush1.bf16.msra.mxu0 0
        %1269 = vmatprep.subr.bf16.mxu0 0
        %1270 = vmatpush1.bf16.msra.mxu0 0
        %1271 = vmatprep.subr.bf16.mxu0 0
        %1272 = vmatpush1.bf16.msra.mxu0 0
        %1273 = vmatprep.subr.bf16.mxu0 0
        %1274 = vmatpush1.bf16.msra.mxu0 0
        %1275 = vmatprep.subr.bf16.mxu0 0
        %1276 = vmatpush1.bf16.msra.mxu0 0
        %1277 = vmatprep.subr.bf16.mxu0 0
        %1278 = vmatpush1.bf16.msra.mxu0 0
        %1279 = vmatprep.mubr.bf16.mxu0 0
        %1280 = vmatmul.mubr.bf16.gmra.mrb[0].mxu0 %v1241
        %v1281 = vpop.f32.mrb[0].mxu0
        %v1282 = vadd.f32 0.0, %v1281
        %v1283 = vpop.f32.mrb[0].mxu0
        %v1284 = vpop.f32.mrb[0].mxu0
        %v1285 = vpop.f32.mrb[0].mxu0
        %1286 = vdwg.mxu0
        %v1288 = vsel %vm1191, %v1237, 0
        %v1291 = vsel %vm1243, %v1003, 0
        %1293 = vmatprep.subr.bf16.mxu0 0
        %1294 = vmatpush1.bf16.msra.mxu0 %v1291
        %1295 = vmatprep.subr.bf16.mxu0 0
        %1296 = vmatpush1.bf16.msra.mxu0 0
        %1297 = vmatprep.subr.bf16.mxu0 0
        %1298 = vmatpush1.bf16.msra.mxu0 0
        %1299 = vmatprep.subr.bf16.mxu0 0
        %1300 = vmatpush1.bf16.msra.mxu0 0
        %1301 = vmatprep.subr.bf16.mxu0 0
        %1302 = vmatpush1.bf16.msra.mxu0 0
        %1303 = vmatprep.subr.bf16.mxu0 0
        %1304 = vmatpush1.bf16.msra.mxu0 0
        %1305 = vmatprep.subr.bf16.mxu0 0
        %1306 = vmatpush1.bf16.msra.mxu0 0
        %1307 = vmatprep.subr.bf16.mxu0 0
        %1308 = vmatpush1.bf16.msra.mxu0 0
        %1309 = vmatprep.subr.bf16.mxu0 0
        %1310 = vmatpush1.bf16.msra.mxu0 0
        %1311 = vmatprep.subr.bf16.mxu0 0
        %1312 = vmatpush1.bf16.msra.mxu0 0
        %1313 = vmatprep.subr.bf16.mxu0 0
        %1314 = vmatpush1.bf16.msra.mxu0 0
        %1315 = vmatprep.subr.bf16.mxu0 0
        %1316 = vmatpush1.bf16.msra.mxu0 0
        %1317 = vmatprep.subr.bf16.mxu0 0
        %1318 = vmatpush1.bf16.msra.mxu0 0
        %1319 = vmatprep.subr.bf16.mxu0 0
        %1320 = vmatpush1.bf16.msra.mxu0 0
        %1321 = vmatprep.subr.bf16.mxu0 0
        %1322 = vmatpush1.bf16.msra.mxu0 0
        %1323 = vmatprep.subr.bf16.mxu0 0
        %1324 = vmatpush1.bf16.msra.mxu0 0
        %1325 = vmatprep.mubr.bf16.mxu0 0
        %1326 = vmatmul.mubr.bf16.gmra.mrb[0].mxu0 %v1288
        %v1327 = vpop.f32.mrb[0].mxu0
        %v1328 = vadd.f32 0.0, %v1327
        %v1329 = vpop.f32.mrb[0].mxu0
        %v1330 = vpop.f32.mrb[0].mxu0
        %v1331 = vpop.f32.mrb[0].mxu0
        %1332 = vdwg.mxu0
        %v1334 = vsel %vm1191, %v1238, 0
        %v1337 = vsel %vm1243, %v1004, 0
        %1339 = vmatprep.subr.bf16.mxu0 0
        %1340 = vmatpush1.bf16.msra.mxu0 %v1337
        %1341 = vmatprep.subr.bf16.mxu0 0
        %1342 = vmatpush1.bf16.msra.mxu0 0
        %1343 = vmatprep.subr.bf16.mxu0 0
        %1344 = vmatpush1.bf16.msra.mxu0 0
        %1345 = vmatprep.subr.bf16.mxu0 0
        %1346 = vmatpush1.bf16.msra.mxu0 0
        %1347 = vmatprep.subr.bf16.mxu0 0
        %1348 = vmatpush1.bf16.msra.mxu0 0
        %1349 = vmatprep.subr.bf16.mxu0 0
        %1350 = vmatpush1.bf16.msra.mxu0 0
        %1351 = vmatprep.subr.bf16.mxu0 0
        %1352 = vmatpush1.bf16.msra.mxu0 0
        %1353 = vmatprep.subr.bf16.mxu0 0
        %1354 = vmatpush1.bf16.msra.mxu0 0
        %1355 = vmatprep.subr.bf16.mxu0 0
        %1356 = vmatpush1.bf16.msra.mxu0 0
        %1357 = vmatprep.subr.bf16.mxu0 0
        %1358 = vmatpush1.bf16.msra.mxu0 0
        %1359 = vmatprep.subr.bf16.mxu0 0
        %1360 = vmatpush1.bf16.msra.mxu0 0
        %1361 = vmatprep.subr.bf16.mxu0 0
        %1362 = vmatpush1.bf16.msra.mxu0 0
        %1363 = vmatprep.subr.bf16.mxu0 0
        %1364 = vmatpush1.bf16.msra.mxu0 0
        %1365 = vmatprep.subr.bf16.mxu0 0
        %1366 = vmatpush1.bf16.msra.mxu0 0
        %1367 = vmatprep.subr.bf16.mxu0 0
        %1368 = vmatpush1.bf16.msra.mxu0 0
        %1369 = vmatprep.subr.bf16.mxu0 0
        %1370 = vmatpush1.bf16.msra.mxu0 0
        %1371 = vmatprep.mubr.bf16.mxu0 0
        %1372 = vmatmul.mubr.bf16.gmra.mrb[0].mxu0 %v1334
        %v1373 = vpop.f32.mrb[0].mxu0
        %v1374 = vadd.f32 0.0, %v1373
        %v1375 = vpop.f32.mrb[0].mxu0
        %v1376 = vpop.f32.mrb[0].mxu0
        %v1377 = vpop.f32.mrb[0].mxu0
        %1378 = vdwg.mxu0
        %v1380 = vsel %vm1191, %v1239, 0
        %v1383 = vsel %vm1243, %v1005, 0
        %1385 = vmatprep.subr.bf16.mxu0 0
        %1386 = vmatpush1.bf16.msra.mxu0 %v1383
        %1387 = vmatprep.subr.bf16.mxu0 0
        %1388 = vmatpush1.bf16.msra.mxu0 0
        %1389 = vmatprep.subr.bf16.mxu0 0
        %1390 = vmatpush1.bf16.msra.mxu0 0
        %1391 = vmatprep.subr.bf16.mxu0 0
        %1392 = vmatpush1.bf16.msra.mxu0 0
        %1393 = vmatprep.subr.bf16.mxu0 0
        %1394 = vmatpush1.bf16.msra.mxu0 0
        %1395 = vmatprep.subr.bf16.mxu0 0
        %1396 = vmatpush1.bf16.msra.mxu0 0
        %1397 = vmatprep.subr.bf16.mxu0 0
        %1398 = vmatpush1.bf16.msra.mxu0 0
        %1399 = vmatprep.subr.bf16.mxu0 0
        %1400 = vmatpush1.bf16.msra.mxu0 0
        %1401 = vmatprep.subr.bf16.mxu0 0
        %1402 = vmatpush1.bf16.msra.mxu0 0
        %1403 = vmatprep.subr.bf16.mxu0 0
        %1404 = vmatpush1.bf16.msra.mxu0 0
        %1405 = vmatprep.subr.bf16.mxu0 0
        %1406 = vmatpush1.bf16.msra.mxu0 0
        %1407 = vmatprep.subr.bf16.mxu0 0
        %1408 = vmatpush1.bf16.msra.mxu0 0
        %1409 = vmatprep.subr.bf16.mxu0 0
        %1410 = vmatpush1.bf16.msra.mxu0 0
        %1411 = vmatprep.subr.bf16.mxu0 0
        %1412 = vmatpush1.bf16.msra.mxu0 0
        %1413 = vmatprep.subr.bf16.mxu0 0
        %1414 = vmatpush1.bf16.msra.mxu0 0
        %1415 = vmatprep.subr.bf16.mxu0 0
        %1416 = vmatpush1.bf16.msra.mxu0 0
        %1417 = vmatprep.mubr.bf16.mxu0 0
        %1418 = vmatmul.mubr.bf16.gmra.mrb[0].mxu0 %v1380
        %v1419 = vpop.f32.mrb[0].mxu0
        %v1420 = vadd.f32 0.0, %v1419
        %v1421 = vpop.f32.mrb[0].mxu0
        %v1422 = vpop.f32.mrb[0].mxu0
        %v1423 = vpop.f32.mrb[0].mxu0
        %1424 = vdwg.mxu0
        %1425 = vrot.lane.b32.xlu0 %v978, 96
        %v1426 = vpop.permute.xlu0 %1425
        %1427 = vrot.lane.b32.xlu0 %v990, 96
        %v1428 = vpop.permute.xlu0 %1427
        %v1430 = vsel %vm1006, %v1426, 0
        %v1433 = vsel %vm1006, %v1428, 0
        %1435 = vmatprep.subr.bf16.mxu0 0
        %1436 = vmatpush1.bf16.xpose.msra.mxu0 %v1433
        %1437 = vmatprep.subr.bf16.mxu0 0
        %1438 = vmatpush1.bf16.xpose.msra.mxu0 0
        %1439 = vmatprep.subr.bf16.mxu0 0
        %1440 = vmatpush1.bf16.xpose.msra.mxu0 0
        %1441 = vmatprep.subr.bf16.mxu0 0
        %1442 = vmatpush1.bf16.xpose.msra.mxu0 0
        %1443 = vmatprep.subr.bf16.mxu0 0
        %1444 = vmatpush1.bf16.xpose.msra.mxu0 0
        %1445 = vmatprep.subr.bf16.mxu0 0
        %1446 = vmatpush1.bf16.xpose.msra.mxu0 0
        %1447 = vmatprep.subr.bf16.mxu0 0
        %1448 = vmatpush1.bf16.xpose.msra.mxu0 0
        %1449 = vmatprep.subr.bf16.mxu0 0
        %1450 = vmatpush1.bf16.xpose.msra.mxu0 0
        %1451 = vmatprep.subr.bf16.mxu0 0
        %1452 = vmatpush1.bf16.xpose.msra.mxu0 0
        %1453 = vmatprep.subr.bf16.mxu0 0
        %1454 = vmatpush1.bf16.xpose.msra.mxu0 0
        %1455 = vmatprep.subr.bf16.mxu0 0
        %1456 = vmatpush1.bf16.xpose.msra.mxu0 0
        %1457 = vmatprep.subr.bf16.mxu0 0
        %1458 = vmatpush1.bf16.xpose.msra.mxu0 0
        %1459 = vmatprep.subr.bf16.mxu0 0
        %1460 = vmatpush1.bf16.xpose.msra.mxu0 0
        %1461 = vmatprep.subr.bf16.mxu0 0
        %1462 = vmatpush1.bf16.xpose.msra.mxu0 0
        %1463 = vmatprep.subr.bf16.mxu0 0
        %1464 = vmatpush1.bf16.xpose.msra.mxu0 0
        %1465 = vmatprep.subr.bf16.mxu0 0
        %1466 = vmatpush1.bf16.xpose.msra.mxu0 0
        %1467 = vmatprep.mubr.bf16.mxu0 0
        %1468 = vmatmul.mubr.bf16.gmra.mrb[0].mxu0 %v1430
        %v1469 = vpop.f32.mrb[0].mxu0
        %v1470 = vadd.f32 0.0, %v1469
        %v1471 = vpop.f32.mrb[0].mxu0
        %v1472 = vpop.f32.mrb[0].mxu0
        %v1473 = vpop.f32.mrb[0].mxu0
        %1474 = vdwg.mxu0
        %1475 = vrot.lane.b32.xlu0 %v979, 96
        %v1476 = vpop.permute.xlu0 %1475
        %1477 = vrot.lane.b32.xlu0 %v991, 96
        %v1478 = vpop.permute.xlu0 %1477
        %v1480 = vsel %vm1006, %v1476, 0
        %v1483 = vsel %vm1006, %v1478, 0
        %1485 = vmatprep.subr.bf16.mxu0 0
        %1486 = vmatpush1.bf16.xpose.msra.mxu0 %v1483
        %1487 = vmatprep.subr.bf16.mxu0 0
        %1488 = vmatpush1.bf16.xpose.msra.mxu0 0
        %1489 = vmatprep.subr.bf16.mxu0 0
        %1490 = vmatpush1.bf16.xpose.msra.mxu0 0
        %1491 = vmatprep.subr.bf16.mxu0 0
        %1492 = vmatpush1.bf16.xpose.msra.mxu0 0
        %1493 = vmatprep.subr.bf16.mxu0 0
        %1494 = vmatpush1.bf16.xpose.msra.mxu0 0
        %1495 = vmatprep.subr.bf16.mxu0 0
        %1496 = vmatpush1.bf16.xpose.msra.mxu0 0
        %1497 = vmatprep.subr.bf16.mxu0 0
        %1498 = vmatpush1.bf16.xpose.msra.mxu0 0
        %1499 = vmatprep.subr.bf16.mxu0 0
        %1500 = vmatpush1.bf16.xpose.msra.mxu0 0
        %1501 = vmatprep.subr.bf16.mxu0 0
        %1502 = vmatpush1.bf16.xpose.msra.mxu0 0
        %1503 = vmatprep.subr.bf16.mxu0 0
        %1504 = vmatpush1.bf16.xpose.msra.mxu0 0
        %1505 = vmatprep.subr.bf16.mxu0 0
        %1506 = vmatpush1.bf16.xpose.msra.mxu0 0
        %1507 = vmatprep.subr.bf16.mxu0 0
        %1508 = vmatpush1.bf16.xpose.msra.mxu0 0
        %1509 = vmatprep.subr.bf16.mxu0 0
        %1510 = vmatpush1.bf16.xpose.msra.mxu0 0
        %1511 = vmatprep.subr.bf16.mxu0 0
        %1512 = vmatpush1.bf16.xpose.msra.mxu0 0
        %1513 = vmatprep.subr.bf16.mxu0 0
        %1514 = vmatpush1.bf16.xpose.msra.mxu0 0
        %1515 = vmatprep.subr.bf16.mxu0 0
        %1516 = vmatpush1.bf16.xpose.msra.mxu0 0
        %1517 = vmatprep.mubr.bf16.mxu0 0
        %1518 = vmatmul.mubr.bf16.gmra.mrb[0].mxu0 %v1480
        %v1519 = vpop.f32.mrb[0].mxu0
        %v1520 = vadd.f32 0.0, %v1519
        %v1521 = vpop.f32.mrb[0].mxu0
        %v1522 = vpop.f32.mrb[0].mxu0
        %v1523 = vpop.f32.mrb[0].mxu0
        %1524 = vdwg.mxu0
        %1525 = vrot.lane.b32.xlu0 %v980, 96
        %v1526 = vpop.permute.xlu0 %1525
        %1527 = vrot.lane.b32.xlu0 %v992, 96
        %v1528 = vpop.permute.xlu0 %1527
        %v1530 = vsel %vm1006, %v1526, 0
        %v1533 = vsel %vm1006, %v1528, 0
        %1535 = vmatprep.subr.bf16.mxu0 0
        %1536 = vmatpush1.bf16.xpose.msra.mxu0 %v1533
        %1537 = vmatprep.subr.bf16.mxu0 0
        %1538 = vmatpush1.bf16.xpose.msra.mxu0 0
        %1539 = vmatprep.subr.bf16.mxu0 0
        %1540 = vmatpush1.bf16.xpose.msra.mxu0 0
        %1541 = vmatprep.subr.bf16.mxu0 0
        %1542 = vmatpush1.bf16.xpose.msra.mxu0 0
        %1543 = vmatprep.subr.bf16.mxu0 0
        %1544 = vmatpush1.bf16.xpose.msra.mxu0 0
        %1545 = vmatprep.subr.bf16.mxu0 0
        %1546 = vmatpush1.bf16.xpose.msra.mxu0 0
        %1547 = vmatprep.subr.bf16.mxu0 0
        %1548 = vmatpush1.bf16.xpose.msra.mxu0 0
        %1549 = vmatprep.subr.bf16.mxu0 0
        %1550 = vmatpush1.bf16.xpose.msra.mxu0 0
        %1551 = vmatprep.subr.bf16.mxu0 0
        %1552 = vmatpush1.bf16.xpose.msra.mxu0 0
        %1553 = vmatprep.subr.bf16.mxu0 0
        %1554 = vmatpush1.bf16.xpose.msra.mxu0 0
        %1555 = vmatprep.subr.bf16.mxu0 0
        %1556 = vmatpush1.bf16.xpose.msra.mxu0 0
        %1557 = vmatprep.subr.bf16.mxu0 0
        %1558 = vmatpush1.bf16.xpose.msra.mxu0 0
        %1559 = vmatprep.subr.bf16.mxu0 0
        %1560 = vmatpush1.bf16.xpose.msra.mxu0 0
        %1561 = vmatprep.subr.bf16.mxu0 0
        %1562 = vmatpush1.bf16.xpose.msra.mxu0 0
        %1563 = vmatprep.subr.bf16.mxu0 0
        %1564 = vmatpush1.bf16.xpose.msra.mxu0 0
        %1565 = vmatprep.subr.bf16.mxu0 0
        %1566 = vmatpush1.bf16.xpose.msra.mxu0 0
        %1567 = vmatprep.mubr.bf16.mxu0 0
        %1568 = vmatmul.mubr.bf16.gmra.mrb[0].mxu0 %v1530
        %v1569 = vpop.f32.mrb[0].mxu0
        %v1570 = vadd.f32 0.0, %v1569
        %v1571 = vpop.f32.mrb[0].mxu0
        %v1572 = vpop.f32.mrb[0].mxu0
        %v1573 = vpop.f32.mrb[0].mxu0
        %1574 = vdwg.mxu0
        %1575 = vrot.lane.b32.xlu0 %v981, 96
        %v1576 = vpop.permute.xlu0 %1575
        %1577 = vrot.lane.b32.xlu0 %v993, 96
        %v1578 = vpop.permute.xlu0 %1577
        %v1580 = vsel %vm1006, %v1576, 0
        %v1583 = vsel %vm1006, %v1578, 0
        %1585 = vmatprep.subr.bf16.mxu0 0
        %1586 = vmatpush1.bf16.xpose.msra.mxu0 %v1583
        %1587 = vmatprep.subr.bf16.mxu0 0
        %1588 = vmatpush1.bf16.xpose.msra.mxu0 0
        %1589 = vmatprep.subr.bf16.mxu0 0
        %1590 = vmatpush1.bf16.xpose.msra.mxu0 0
        %1591 = vmatprep.subr.bf16.mxu0 0
        %1592 = vmatpush1.bf16.xpose.msra.mxu0 0
        %1593 = vmatprep.subr.bf16.mxu0 0
        %1594 = vmatpush1.bf16.xpose.msra.mxu0 0
        %1595 = vmatprep.subr.bf16.mxu0 0
        %1596 = vmatpush1.bf16.xpose.msra.mxu0 0
        %1597 = vmatprep.subr.bf16.mxu0 0
        %1598 = vmatpush1.bf16.xpose.msra.mxu0 0
        %1599 = vmatprep.subr.bf16.mxu0 0
        %1600 = vmatpush1.bf16.xpose.msra.mxu0 0
        %1601 = vmatprep.subr.bf16.mxu0 0
        %1602 = vmatpush1.bf16.xpose.msra.mxu0 0
        %1603 = vmatprep.subr.bf16.mxu0 0
        %1604 = vmatpush1.bf16.xpose.msra.mxu0 0
        %1605 = vmatprep.subr.bf16.mxu0 0
        %1606 = vmatpush1.bf16.xpose.msra.mxu0 0
        %1607 = vmatprep.subr.bf16.mxu0 0
        %1608 = vmatpush1.bf16.xpose.msra.mxu0 0
        %1609 = vmatprep.subr.bf16.mxu0 0
        %1610 = vmatpush1.bf16.xpose.msra.mxu0 0
        %1611 = vmatprep.subr.bf16.mxu0 0
        %1612 = vmatpush1.bf16.xpose.msra.mxu0 0
        %1613 = vmatprep.subr.bf16.mxu0 0
        %1614 = vmatpush1.bf16.xpose.msra.mxu0 0
        %1615 = vmatprep.subr.bf16.mxu0 0
        %1616 = vmatpush1.bf16.xpose.msra.mxu0 0
        %1617 = vmatprep.mubr.bf16.mxu0 0
        %1618 = vmatmul.mubr.bf16.gmra.mrb[0].mxu0 %v1580
        %v1619 = vpop.f32.mrb[0].mxu0
        %v1620 = vadd.f32 0.0, %v1619
        %v1621 = vpop.f32.mrb[0].mxu0
        %v1622 = vpop.f32.mrb[0].mxu0
        %v1623 = vpop.f32.mrb[0].mxu0
        %1624 = vdwg.mxu0
        %v1625 = vsel %vm1191, %v1470, -inf
        %1626 = vmax.xlane.f32.xlu0 %v1625
        %v1627 = vpop.xlane.xlu0 %1626
        %v1628 = vsel %vm1191, %v1520, -inf
        %1629 = vmax.xlane.f32.xlu0 %v1628
        %v1630 = vpop.xlane.xlu0 %1629
        %v1631 = vsel %vm1191, %v1570, -inf
        %1632 = vmax.xlane.f32.xlu0 %v1631
        %v1633 = vpop.xlane.xlu0 %1632
        %v1634 = vsel %vm1191, %v1620, -inf
        %1635 = vmax.xlane.f32.xlu0 %v1634
        %v1636 = vpop.xlane.xlu0 %1635
        %v1637 = vsub.f32 %v1470, %v1627
        %v1638 = vsub.f32 %v1520, %v1630
        %v1639 = vsub.f32 %v1570, %v1633
        %v1640 = vsub.f32 %v1620, %v1636
        %v1641 = vmul.f32 %v1637, 1.442695
        %v1642 = vpow.pop %v1641
        %v1643 = vmul.f32 %v1638, 1.442695
        %v1644 = vpow.pop %v1643
        %v1645 = vmul.f32 %v1639, 1.442695
        %v1646 = vpow.pop %v1645
        %v1647 = vmul.f32 %v1640, 1.442695
        %v1648 = vpow.pop %v1647
        %v1649 = vsel %vm1191, %v1642, 0.0
        %1650 = vadd.xlane.f32.xlu0 %v1649
        %v1651 = vpop.xlane.xlu0 %1650
        %v1652 = vsel %vm1191, %v1644, 0.0
        %1653 = vadd.xlane.f32.xlu0 %v1652
        %v1654 = vpop.xlane.xlu0 %1653
        %v1655 = vsel %vm1191, %v1646, 0.0
        %1656 = vadd.xlane.f32.xlu0 %v1655
        %v1657 = vpop.xlane.xlu0 %1656
        %v1658 = vsel %vm1191, %v1648, 0.0
        %1659 = vadd.xlane.f32.xlu0 %v1658
        %v1660 = vpop.xlane.xlu0 %1659
        %v1661 = vrcp.pop %v1651
        %v1662 = vrcp.pop %v1654
        %v1663 = vrcp.pop %v1657
        %v1664 = vrcp.pop %v1660
        %v1665 = vmul.f32 %v1642, %v1661
        %v1666 = vmul.f32 %v1644, %v1662
        %v1667 = vmul.f32 %v1646, %v1663
        %v1668 = vmul.f32 %v1648, %v1664
        %v1669 = vpack.c.bf16 %v1665, %v1665
        %v1670 = vpack.c.bf16 %v1666, %v1666
        %v1671 = vpack.c.bf16 %v1667, %v1667
        %v1672 = vpack.c.bf16 %v1668, %v1668
        %1673 = vrot.lane.b32.xlu0 %v1002, 96
        %v1674 = vpop.permute.xlu0 %1673
        %v1676 = vsel %vm1191, %v1669, 0
        %v1679 = vsel %vm1243, %v1674, 0
        %1681 = vmatprep.subr.bf16.mxu0 0
        %1682 = vmatpush1.bf16.msra.mxu0 %v1679
        %1683 = vmatprep.subr.bf16.mxu0 0
        %1684 = vmatpush1.bf16.msra.mxu0 0
        %1685 = vmatprep.subr.bf16.mxu0 0
        %1686 = vmatpush1.bf16.msra.mxu0 0
        %1687 = vmatprep.subr.bf16.mxu0 0
        %1688 = vmatpush1.bf16.msra.mxu0 0
        %1689 = vmatprep.subr.bf16.mxu0 0
        %1690 = vmatpush1.bf16.msra.mxu0 0
        %1691 = vmatprep.subr.bf16.mxu0 0
        %1692 = vmatpush1.bf16.msra.mxu0 0
        %1693 = vmatprep.subr.bf16.mxu0 0
        %1694 = vmatpush1.bf16.msra.mxu0 0
        %1695 = vmatprep.subr.bf16.mxu0 0
        %1696 = vmatpush1.bf16.msra.mxu0 0
        %1697 = vmatprep.subr.bf16.mxu0 0
        %1698 = vmatpush1.bf16.msra.mxu0 0
        %1699 = vmatprep.subr.bf16.mxu0 0
        %1700 = vmatpush1.bf16.msra.mxu0 0
        %1701 = vmatprep.subr.bf16.mxu0 0
        %1702 = vmatpush1.bf16.msra.mxu0 0
        %1703 = vmatprep.subr.bf16.mxu0 0
        %1704 = vmatpush1.bf16.msra.mxu0 0
        %1705 = vmatprep.subr.bf16.mxu0 0
        %1706 = vmatpush1.bf16.msra.mxu0 0
        %1707 = vmatprep.subr.bf16.mxu0 0
        %1708 = vmatpush1.bf16.msra.mxu0 0
        %1709 = vmatprep.subr.bf16.mxu0 0
        %1710 = vmatpush1.bf16.msra.mxu0 0
        %1711 = vmatprep.subr.bf16.mxu0 0
        %1712 = vmatpush1.bf16.msra.mxu0 0
        %1713 = vmatprep.mubr.bf16.mxu0 0
        %1714 = vmatmul.mubr.bf16.gmra.mrb[0].mxu0 %v1676
        %v1715 = vpop.f32.mrb[0].mxu0
        %v1716 = vadd.f32 0.0, %v1715
        %v1717 = vpop.f32.mrb[0].mxu0
        %v1718 = vpop.f32.mrb[0].mxu0
        %v1719 = vpop.f32.mrb[0].mxu0
        %1720 = vdwg.mxu0
        %1721 = vrot.lane.b32.xlu0 %v1003, 96
        %v1722 = vpop.permute.xlu0 %1721
        %v1724 = vsel %vm1191, %v1670, 0
        %v1727 = vsel %vm1243, %v1722, 0
        %1729 = vmatprep.subr.bf16.mxu0 0
        %1730 = vmatpush1.bf16.msra.mxu0 %v1727
        %1731 = vmatprep.subr.bf16.mxu0 0
        %1732 = vmatpush1.bf16.msra.mxu0 0
        %1733 = vmatprep.subr.bf16.mxu0 0
        %1734 = vmatpush1.bf16.msra.mxu0 0
        %1735 = vmatprep.subr.bf16.mxu0 0
        %1736 = vmatpush1.bf16.msra.mxu0 0
        %1737 = vmatprep.subr.bf16.mxu0 0
        %1738 = vmatpush1.bf16.msra.mxu0 0
        %1739 = vmatprep.subr.bf16.mxu0 0
        %1740 = vmatpush1.bf16.msra.mxu0 0
        %1741 = vmatprep.subr.bf16.mxu0 0
        %1742 = vmatpush1.bf16.msra.mxu0 0
        %1743 = vmatprep.subr.bf16.mxu0 0
        %1744 = vmatpush1.bf16.msra.mxu0 0
        %1745 = vmatprep.subr.bf16.mxu0 0
        %1746 = vmatpush1.bf16.msra.mxu0 0
        %1747 = vmatprep.subr.bf16.mxu0 0
        %1748 = vmatpush1.bf16.msra.mxu0 0
        %1749 = vmatprep.subr.bf16.mxu0 0
        %1750 = vmatpush1.bf16.msra.mxu0 0
        %1751 = vmatprep.subr.bf16.mxu0 0
        %1752 = vmatpush1.bf16.msra.mxu0 0
        %1753 = vmatprep.subr.bf16.mxu0 0
        %1754 = vmatpush1.bf16.msra.mxu0 0
        %1755 = vmatprep.subr.bf16.mxu0 0
        %1756 = vmatpush1.bf16.msra.mxu0 0
        %1757 = vmatprep.subr.bf16.mxu0 0
        %1758 = vmatpush1.bf16.msra.mxu0 0
        %1759 = vmatprep.subr.bf16.mxu0 0
        %1760 = vmatpush1.bf16.msra.mxu0 0
        %1761 = vmatprep.mubr.bf16.mxu0 0
        %1762 = vmatmul.mubr.bf16.gmra.mrb[0].mxu0 %v1724
        %v1763 = vpop.f32.mrb[0].mxu0
        %v1764 = vadd.f32 0.0, %v1763
        %v1765 = vpop.f32.mrb[0].mxu0
        %v1766 = vpop.f32.mrb[0].mxu0
        %v1767 = vpop.f32.mrb[0].mxu0
        %1768 = vdwg.mxu0
        %1769 = vrot.lane.b32.xlu0 %v1004, 96
        %v1770 = vpop.permute.xlu0 %1769
        %v1772 = vsel %vm1191, %v1671, 0
        %v1775 = vsel %vm1243, %v1770, 0
        %1777 = vmatprep.subr.bf16.mxu0 0
        %1778 = vmatpush1.bf16.msra.mxu0 %v1775
        %1779 = vmatprep.subr.bf16.mxu0 0
        %1780 = vmatpush1.bf16.msra.mxu0 0
        %1781 = vmatprep.subr.bf16.mxu0 0
        %1782 = vmatpush1.bf16.msra.mxu0 0
        %1783 = vmatprep.subr.bf16.mxu0 0
        %1784 = vmatpush1.bf16.msra.mxu0 0
        %1785 = vmatprep.subr.bf16.mxu0 0
        %1786 = vmatpush1.bf16.msra.mxu0 0
        %1787 = vmatprep.subr.bf16.mxu0 0
        %1788 = vmatpush1.bf16.msra.mxu0 0
        %1789 = vmatprep.subr.bf16.mxu0 0
        %1790 = vmatpush1.bf16.msra.mxu0 0
        %1791 = vmatprep.subr.bf16.mxu0 0
        %1792 = vmatpush1.bf16.msra.mxu0 0
        %1793 = vmatprep.subr.bf16.mxu0 0
        %1794 = vmatpush1.bf16.msra.mxu0 0
        %1795 = vmatprep.subr.bf16.mxu0 0
        %1796 = vmatpush1.bf16.msra.mxu0 0
        %1797 = vmatprep.subr.bf16.mxu0 0
        %1798 = vmatpush1.bf16.msra.mxu0 0
        %1799 = vmatprep.subr.bf16.mxu0 0
        %1800 = vmatpush1.bf16.msra.mxu0 0
        %1801 = vmatprep.subr.bf16.mxu0 0
        %1802 = vmatpush1.bf16.msra.mxu0 0
        %1803 = vmatprep.subr.bf16.mxu0 0
        %1804 = vmatpush1.bf16.msra.mxu0 0
        %1805 = vmatprep.subr.bf16.mxu0 0
        %1806 = vmatpush1.bf16.msra.mxu0 0
        %1807 = vmatprep.subr.bf16.mxu0 0
        %1808 = vmatpush1.bf16.msra.mxu0 0
        %1809 = vmatprep.mubr.bf16.mxu0 0
        %1810 = vmatmul.mubr.bf16.gmra.mrb[0].mxu0 %v1772
        %v1811 = vpop.f32.mrb[0].mxu0
        %v1812 = vadd.f32 0.0, %v1811
        %v1813 = vpop.f32.mrb[0].mxu0
        %v1814 = vpop.f32.mrb[0].mxu0
        %v1815 = vpop.f32.mrb[0].mxu0
        %1816 = vdwg.mxu0
        %1817 = vrot.lane.b32.xlu0 %v1005, 96
        %v1818 = vpop.permute.xlu0 %1817
        %v1820 = vsel %vm1191, %v1672, 0
        %v1823 = vsel %vm1243, %v1818, 0
        %1825 = vmatprep.subr.bf16.mxu0 0
        %1826 = vmatpush1.bf16.msra.mxu0 %v1823
        %1827 = vmatprep.subr.bf16.mxu0 0
        %1828 = vmatpush1.bf16.msra.mxu0 0
        %1829 = vmatprep.subr.bf16.mxu0 0
        %1830 = vmatpush1.bf16.msra.mxu0 0
        %1831 = vmatprep.subr.bf16.mxu0 0
        %1832 = vmatpush1.bf16.msra.mxu0 0
        %1833 = vmatprep.subr.bf16.mxu0 0
        %1834 = vmatpush1.bf16.msra.mxu0 0
        %1835 = vmatprep.subr.bf16.mxu0 0
        %1836 = vmatpush1.bf16.msra.mxu0 0
        %1837 = vmatprep.subr.bf16.mxu0 0
        %1838 = vmatpush1.bf16.msra.mxu0 0
        %1839 = vmatprep.subr.bf16.mxu0 0
        %1840 = vmatpush1.bf16.msra.mxu0 0
        %1841 = vmatprep.subr.bf16.mxu0 0
        %1842 = vmatpush1.bf16.msra.mxu0 0
        %1843 = vmatprep.subr.bf16.mxu0 0
        %1844 = vmatpush1.bf16.msra.mxu0 0
        %1845 = vmatprep.subr.bf16.mxu0 0
        %1846 = vmatpush1.bf16.msra.mxu0 0
        %1847 = vmatprep.subr.bf16.mxu0 0
        %1848 = vmatpush1.bf16.msra.mxu0 0
        %1849 = vmatprep.subr.bf16.mxu0 0
        %1850 = vmatpush1.bf16.msra.mxu0 0
        %1851 = vmatprep.subr.bf16.mxu0 0
        %1852 = vmatpush1.bf16.msra.mxu0 0
        %1853 = vmatprep.subr.bf16.mxu0 0
        %1854 = vmatpush1.bf16.msra.mxu0 0
        %1855 = vmatprep.subr.bf16.mxu0 0
        %1856 = vmatpush1.bf16.msra.mxu0 0
        %1857 = vmatprep.mubr.bf16.mxu0 0
        %1858 = vmatmul.mubr.bf16.gmra.mrb[0].mxu0 %v1820
        %v1859 = vpop.f32.mrb[0].mxu0
        %v1860 = vadd.f32 0.0, %v1859
        %v1861 = vpop.f32.mrb[0].mxu0
        %v1862 = vpop.f32.mrb[0].mxu0
        %v1863 = vpop.f32.mrb[0].mxu0
        %1864 = vdwg.mxu0
        %1865 = vrot.lane.b32.xlu0 %v978, 64
        %v1866 = vpop.permute.xlu0 %1865
        %1867 = vrot.lane.b32.xlu0 %v990, 64
        %v1868 = vpop.permute.xlu0 %1867
        %v1870 = vsel %vm1006, %v1866, 0
        %v1873 = vsel %vm1006, %v1868, 0
        %1875 = vmatprep.subr.bf16.mxu0 0
        %1876 = vmatpush1.bf16.xpose.msra.mxu0 %v1873
        %1877 = vmatprep.subr.bf16.mxu0 0
        %1878 = vmatpush1.bf16.xpose.msra.mxu0 0
        %1879 = vmatprep.subr.bf16.mxu0 0
        %1880 = vmatpush1.bf16.xpose.msra.mxu0 0
        %1881 = vmatprep.subr.bf16.mxu0 0
        %1882 = vmatpush1.bf16.xpose.msra.mxu0 0
        %1883 = vmatprep.subr.bf16.mxu0 0
        %1884 = vmatpush1.bf16.xpose.msra.mxu0 0
        %1885 = vmatprep.subr.bf16.mxu0 0
        %1886 = vmatpush1.bf16.xpose.msra.mxu0 0
        %1887 = vmatprep.subr.bf16.mxu0 0
        %1888 = vmatpush1.bf16.xpose.msra.mxu0 0
        %1889 = vmatprep.subr.bf16.mxu0 0
        %1890 = vmatpush1.bf16.xpose.msra.mxu0 0
        %1891 = vmatprep.subr.bf16.mxu0 0
        %1892 = vmatpush1.bf16.xpose.msra.mxu0 0
        %1893 = vmatprep.subr.bf16.mxu0 0
        %1894 = vmatpush1.bf16.xpose.msra.mxu0 0
        %1895 = vmatprep.subr.bf16.mxu0 0
        %1896 = vmatpush1.bf16.xpose.msra.mxu0 0
        %1897 = vmatprep.subr.bf16.mxu0 0
        %1898 = vmatpush1.bf16.xpose.msra.mxu0 0
        %1899 = vmatprep.subr.bf16.mxu0 0
        %1900 = vmatpush1.bf16.xpose.msra.mxu0 0
        %1901 = vmatprep.subr.bf16.mxu0 0
        %1902 = vmatpush1.bf16.xpose.msra.mxu0 0
        %1903 = vmatprep.subr.bf16.mxu0 0
        %1904 = vmatpush1.bf16.xpose.msra.mxu0 0
        %1905 = vmatprep.subr.bf16.mxu0 0
        %1906 = vmatpush1.bf16.xpose.msra.mxu0 0
        %1907 = vmatprep.mubr.bf16.mxu0 0
        %1908 = vmatmul.mubr.bf16.gmra.mrb[0].mxu0 %v1870
        %v1909 = vpop.f32.mrb[0].mxu0
        %v1910 = vadd.f32 0.0, %v1909
        %v1911 = vpop.f32.mrb[0].mxu0
        %v1912 = vpop.f32.mrb[0].mxu0
        %v1913 = vpop.f32.mrb[0].mxu0
        %1914 = vdwg.mxu0
        %1915 = vrot.lane.b32.xlu0 %v979, 64
        %v1916 = vpop.permute.xlu0 %1915
        %1917 = vrot.lane.b32.xlu0 %v991, 64
        %v1918 = vpop.permute.xlu0 %1917
        %v1920 = vsel %vm1006, %v1916, 0
        %v1923 = vsel %vm1006, %v1918, 0
        %1925 = vmatprep.subr.bf16.mxu0 0
        %1926 = vmatpush1.bf16.xpose.msra.mxu0 %v1923
        %1927 = vmatprep.subr.bf16.mxu0 0
        %1928 = vmatpush1.bf16.xpose.msra.mxu0 0
        %1929 = vmatprep.subr.bf16.mxu0 0
        %1930 = vmatpush1.bf16.xpose.msra.mxu0 0
        %1931 = vmatprep.subr.bf16.mxu0 0
        %1932 = vmatpush1.bf16.xpose.msra.mxu0 0
        %1933 = vmatprep.subr.bf16.mxu0 0
        %1934 = vmatpush1.bf16.xpose.msra.mxu0 0
        %1935 = vmatprep.subr.bf16.mxu0 0
        %1936 = vmatpush1.bf16.xpose.msra.mxu0 0
        %1937 = vmatprep.subr.bf16.mxu0 0
        %1938 = vmatpush1.bf16.xpose.msra.mxu0 0
        %1939 = vmatprep.subr.bf16.mxu0 0
        %1940 = vmatpush1.bf16.xpose.msra.mxu0 0
        %1941 = vmatprep.subr.bf16.mxu0 0
        %1942 = vmatpush1.bf16.xpose.msra.mxu0 0
        %1943 = vmatprep.subr.bf16.mxu0 0
        %1944 = vmatpush1.bf16.xpose.msra.mxu0 0
        %1945 = vmatprep.subr.bf16.mxu0 0
        %1946 = vmatpush1.bf16.xpose.msra.mxu0 0
        %1947 = vmatprep.subr.bf16.mxu0 0
        %1948 = vmatpush1.bf16.xpose.msra.mxu0 0
        %1949 = vmatprep.subr.bf16.mxu0 0
        %1950 = vmatpush1.bf16.xpose.msra.mxu0 0
        %1951 = vmatprep.subr.bf16.mxu0 0
        %1952 = vmatpush1.bf16.xpose.msra.mxu0 0
        %1953 = vmatprep.subr.bf16.mxu0 0
        %1954 = vmatpush1.bf16.xpose.msra.mxu0 0
        %1955 = vmatprep.subr.bf16.mxu0 0
        %1956 = vmatpush1.bf16.xpose.msra.mxu0 0
        %1957 = vmatprep.mubr.bf16.mxu0 0
        %1958 = vmatmul.mubr.bf16.gmra.mrb[0].mxu0 %v1920
        %v1959 = vpop.f32.mrb[0].mxu0
        %v1960 = vadd.f32 0.0, %v1959
        %v1961 = vpop.f32.mrb[0].mxu0
        %v1962 = vpop.f32.mrb[0].mxu0
        %v1963 = vpop.f32.mrb[0].mxu0
        %1964 = vdwg.mxu0
        %1965 = vrot.lane.b32.xlu0 %v980, 64
        %v1966 = vpop.permute.xlu0 %1965
        %1967 = vrot.lane.b32.xlu0 %v992, 64
        %v1968 = vpop.permute.xlu0 %1967
        %v1970 = vsel %vm1006, %v1966, 0
        %v1973 = vsel %vm1006, %v1968, 0
        %1975 = vmatprep.subr.bf16.mxu0 0
        %1976 = vmatpush1.bf16.xpose.msra.mxu0 %v1973
        %1977 = vmatprep.subr.bf16.mxu0 0
        %1978 = vmatpush1.bf16.xpose.msra.mxu0 0
        %1979 = vmatprep.subr.bf16.mxu0 0
        %1980 = vmatpush1.bf16.xpose.msra.mxu0 0
        %1981 = vmatprep.subr.bf16.mxu0 0
        %1982 = vmatpush1.bf16.xpose.msra.mxu0 0
        %1983 = vmatprep.subr.bf16.mxu0 0
        %1984 = vmatpush1.bf16.xpose.msra.mxu0 0
        %1985 = vmatprep.subr.bf16.mxu0 0
        %1986 = vmatpush1.bf16.xpose.msra.mxu0 0
        %1987 = vmatprep.subr.bf16.mxu0 0
        %1988 = vmatpush1.bf16.xpose.msra.mxu0 0
        %1989 = vmatprep.subr.bf16.mxu0 0
        %1990 = vmatpush1.bf16.xpose.msra.mxu0 0
        %1991 = vmatprep.subr.bf16.mxu0 0
        %1992 = vmatpush1.bf16.xpose.msra.mxu0 0
        %1993 = vmatprep.subr.bf16.mxu0 0
        %1994 = vmatpush1.bf16.xpose.msra.mxu0 0
        %1995 = vmatprep.subr.bf16.mxu0 0
        %1996 = vmatpush1.bf16.xpose.msra.mxu0 0
        %1997 = vmatprep.subr.bf16.mxu0 0
        %1998 = vmatpush1.bf16.xpose.msra.mxu0 0
        %1999 = vmatprep.subr.bf16.mxu0 0
        %2000 = vmatpush1.bf16.xpose.msra.mxu0 0
        %2001 = vmatprep.subr.bf16.mxu0 0
        %2002 = vmatpush1.bf16.xpose.msra.mxu0 0
        %2003 = vmatprep.subr.bf16.mxu0 0
        %2004 = vmatpush1.bf16.xpose.msra.mxu0 0
        %2005 = vmatprep.subr.bf16.mxu0 0
        %2006 = vmatpush1.bf16.xpose.msra.mxu0 0
        %2007 = vmatprep.mubr.bf16.mxu0 0
        %2008 = vmatmul.mubr.bf16.gmra.mrb[0].mxu0 %v1970
        %v2009 = vpop.f32.mrb[0].mxu0
        %v2010 = vadd.f32 0.0, %v2009
        %v2011 = vpop.f32.mrb[0].mxu0
        %v2012 = vpop.f32.mrb[0].mxu0
        %v2013 = vpop.f32.mrb[0].mxu0
        %2014 = vdwg.mxu0
        %2015 = vrot.lane.b32.xlu0 %v981, 64
        %v2016 = vpop.permute.xlu0 %2015
        %2017 = vrot.lane.b32.xlu0 %v993, 64
        %v2018 = vpop.permute.xlu0 %2017
        %v2020 = vsel %vm1006, %v2016, 0
        %v2023 = vsel %vm1006, %v2018, 0
        %2025 = vmatprep.subr.bf16.mxu0 0
        %2026 = vmatpush1.bf16.xpose.msra.mxu0 %v2023
        %2027 = vmatprep.subr.bf16.mxu0 0
        %2028 = vmatpush1.bf16.xpose.msra.mxu0 0
        %2029 = vmatprep.subr.bf16.mxu0 0
        %2030 = vmatpush1.bf16.xpose.msra.mxu0 0
        %2031 = vmatprep.subr.bf16.mxu0 0
        %2032 = vmatpush1.bf16.xpose.msra.mxu0 0
        %2033 = vmatprep.subr.bf16.mxu0 0
        %2034 = vmatpush1.bf16.xpose.msra.mxu0 0
        %2035 = vmatprep.subr.bf16.mxu0 0
        %2036 = vmatpush1.bf16.xpose.msra.mxu0 0
        %2037 = vmatprep.subr.bf16.mxu0 0
        %2038 = vmatpush1.bf16.xpose.msra.mxu0 0
        %2039 = vmatprep.subr.bf16.mxu0 0
        %2040 = vmatpush1.bf16.xpose.msra.mxu0 0
        %2041 = vmatprep.subr.bf16.mxu0 0
        %2042 = vmatpush1.bf16.xpose.msra.mxu0 0
        %2043 = vmatprep.subr.bf16.mxu0 0
        %2044 = vmatpush1.bf16.xpose.msra.mxu0 0
        %2045 = vmatprep.subr.bf16.mxu0 0
        %2046 = vmatpush1.bf16.xpose.msra.mxu0 0
        %2047 = vmatprep.subr.bf16.mxu0 0
        %2048 = vmatpush1.bf16.xpose.msra.mxu0 0
        %2049 = vmatprep.subr.bf16.mxu0 0
        %2050 = vmatpush1.bf16.xpose.msra.mxu0 0
        %2051 = vmatprep.subr.bf16.mxu0 0
        %2052 = vmatpush1.bf16.xpose.msra.mxu0 0
        %2053 = vmatprep.subr.bf16.mxu0 0
        %2054 = vmatpush1.bf16.xpose.msra.mxu0 0
        %2055 = vmatprep.subr.bf16.mxu0 0
        %2056 = vmatpush1.bf16.xpose.msra.mxu0 0
        %2057 = vmatprep.mubr.bf16.mxu0 0
        %2058 = vmatmul.mubr.bf16.gmra.mrb[0].mxu0 %v2020
        %v2059 = vpop.f32.mrb[0].mxu0
        %v2060 = vadd.f32 0.0, %v2059
        %v2061 = vpop.f32.mrb[0].mxu0
        %v2062 = vpop.f32.mrb[0].mxu0
        %v2063 = vpop.f32.mrb[0].mxu0
        %2064 = vdwg.mxu0
        %v2065 = vsel %vm1191, %v1910, -inf
        %2066 = vmax.xlane.f32.xlu0 %v2065
        %v2067 = vpop.xlane.xlu0 %2066
        %v2068 = vsel %vm1191, %v1960, -inf
        %2069 = vmax.xlane.f32.xlu0 %v2068
        %v2070 = vpop.xlane.xlu0 %2069
        %v2071 = vsel %vm1191, %v2010, -inf
        %2072 = vmax.xlane.f32.xlu0 %v2071
        %v2073 = vpop.xlane.xlu0 %2072
        %v2074 = vsel %vm1191, %v2060, -inf
        %2075 = vmax.xlane.f32.xlu0 %v2074
        %v2076 = vpop.xlane.xlu0 %2075
        %v2077 = vsub.f32 %v1910, %v2067
        %v2078 = vsub.f32 %v1960, %v2070
        %v2079 = vsub.f32 %v2010, %v2073
        %v2080 = vsub.f32 %v2060, %v2076
        %v2081 = vmul.f32 %v2077, 1.442695
        %v2082 = vpow.pop %v2081
        %v2083 = vmul.f32 %v2078, 1.442695
        %v2084 = vpow.pop %v2083
        %v2085 = vmul.f32 %v2079, 1.442695
        %v2086 = vpow.pop %v2085
        %v2087 = vmul.f32 %v2080, 1.442695
        %v2088 = vpow.pop %v2087
        %v2089 = vsel %vm1191, %v2082, 0.0
        %2090 = vadd.xlane.f32.xlu0 %v2089
        %v2091 = vpop.xlane.xlu0 %2090
        %v2092 = vsel %vm1191, %v2084, 0.0
        %2093 = vadd.xlane.f32.xlu0 %v2092
        %v2094 = vpop.xlane.xlu0 %2093
        %v2095 = vsel %vm1191, %v2086, 0.0
        %2096 = vadd.xlane.f32.xlu0 %v2095
        %v2097 = vpop.xlane.xlu0 %2096
        %v2098 = vsel %vm1191, %v2088, 0.0
        %2099 = vadd.xlane.f32.xlu0 %v2098
        %v2100 = vpop.xlane.xlu0 %2099
        %v2101 = vrcp.pop %v2091
        %v2102 = vrcp.pop %v2094
        %v2103 = vrcp.pop %v2097
        %v2104 = vrcp.pop %v2100
        %v2105 = vmul.f32 %v2082, %v2101
        %v2106 = vmul.f32 %v2084, %v2102
        %v2107 = vmul.f32 %v2086, %v2103
        %v2108 = vmul.f32 %v2088, %v2104
        %v2109 = vpack.c.bf16 %v2105, %v2105
        %v2110 = vpack.c.bf16 %v2106, %v2106
        %v2111 = vpack.c.bf16 %v2107, %v2107
        %v2112 = vpack.c.bf16 %v2108, %v2108
        %2113 = vrot.lane.b32.xlu0 %v1002, 64
        %v2114 = vpop.permute.xlu0 %2113
        %v2116 = vsel %vm1191, %v2109, 0
        %v2119 = vsel %vm1243, %v2114, 0
        %2121 = vmatprep.subr.bf16.mxu0 0
        %2122 = vmatpush1.bf16.msra.mxu0 %v2119
        %2123 = vmatprep.subr.bf16.mxu0 0
        %2124 = vmatpush1.bf16.msra.mxu0 0
        %2125 = vmatprep.subr.bf16.mxu0 0
        %2126 = vmatpush1.bf16.msra.mxu0 0
        %2127 = vmatprep.subr.bf16.mxu0 0
        %2128 = vmatpush1.bf16.msra.mxu0 0
        %2129 = vmatprep.subr.bf16.mxu0 0
        %2130 = vmatpush1.bf16.msra.mxu0 0
        %2131 = vmatprep.subr.bf16.mxu0 0
        %2132 = vmatpush1.bf16.msra.mxu0 0
        %2133 = vmatprep.subr.bf16.mxu0 0
        %2134 = vmatpush1.bf16.msra.mxu0 0
        %2135 = vmatprep.subr.bf16.mxu0 0
        %2136 = vmatpush1.bf16.msra.mxu0 0
        %2137 = vmatprep.subr.bf16.mxu0 0
        %2138 = vmatpush1.bf16.msra.mxu0 0
        %2139 = vmatprep.subr.bf16.mxu0 0
        %2140 = vmatpush1.bf16.msra.mxu0 0
        %2141 = vmatprep.subr.bf16.mxu0 0
        %2142 = vmatpush1.bf16.msra.mxu0 0
        %2143 = vmatprep.subr.bf16.mxu0 0
        %2144 = vmatpush1.bf16.msra.mxu0 0
        %2145 = vmatprep.subr.bf16.mxu0 0
        %2146 = vmatpush1.bf16.msra.mxu0 0
        %2147 = vmatprep.subr.bf16.mxu0 0
        %2148 = vmatpush1.bf16.msra.mxu0 0
        %2149 = vmatprep.subr.bf16.mxu0 0
        %2150 = vmatpush1.bf16.msra.mxu0 0
        %2151 = vmatprep.subr.bf16.mxu0 0
        %2152 = vmatpush1.bf16.msra.mxu0 0
        %2153 = vmatprep.mubr.bf16.mxu0 0
        %2154 = vmatmul.mubr.bf16.gmra.mrb[0].mxu0 %v2116
        %v2155 = vpop.f32.mrb[0].mxu0
        %v2156 = vadd.f32 0.0, %v2155
        %v2157 = vpop.f32.mrb[0].mxu0
        %v2158 = vpop.f32.mrb[0].mxu0
        %v2159 = vpop.f32.mrb[0].mxu0
        %2160 = vdwg.mxu0
        %2161 = vrot.lane.b32.xlu0 %v1003, 64
        %v2162 = vpop.permute.xlu0 %2161
        %v2164 = vsel %vm1191, %v2110, 0
        %v2167 = vsel %vm1243, %v2162, 0
        %2169 = vmatprep.subr.bf16.mxu0 0
        %2170 = vmatpush1.bf16.msra.mxu0 %v2167
        %2171 = vmatprep.subr.bf16.mxu0 0
        %2172 = vmatpush1.bf16.msra.mxu0 0
        %2173 = vmatprep.subr.bf16.mxu0 0
        %2174 = vmatpush1.bf16.msra.mxu0 0
        %2175 = vmatprep.subr.bf16.mxu0 0
        %2176 = vmatpush1.bf16.msra.mxu0 0
        %2177 = vmatprep.subr.bf16.mxu0 0
        %2178 = vmatpush1.bf16.msra.mxu0 0
        %2179 = vmatprep.subr.bf16.mxu0 0
        %2180 = vmatpush1.bf16.msra.mxu0 0
        %2181 = vmatprep.subr.bf16.mxu0 0
        %2182 = vmatpush1.bf16.msra.mxu0 0
        %2183 = vmatprep.subr.bf16.mxu0 0
        %2184 = vmatpush1.bf16.msra.mxu0 0
        %2185 = vmatprep.subr.bf16.mxu0 0
        %2186 = vmatpush1.bf16.msra.mxu0 0
        %2187 = vmatprep.subr.bf16.mxu0 0
        %2188 = vmatpush1.bf16.msra.mxu0 0
        %2189 = vmatprep.subr.bf16.mxu0 0
        %2190 = vmatpush1.bf16.msra.mxu0 0
        %2191 = vmatprep.subr.bf16.mxu0 0
        %2192 = vmatpush1.bf16.msra.mxu0 0
        %2193 = vmatprep.subr.bf16.mxu0 0
        %2194 = vmatpush1.bf16.msra.mxu0 0
        %2195 = vmatprep.subr.bf16.mxu0 0
        %2196 = vmatpush1.bf16.msra.mxu0 0
        %2197 = vmatprep.subr.bf16.mxu0 0
        %2198 = vmatpush1.bf16.msra.mxu0 0
        %2199 = vmatprep.subr.bf16.mxu0 0
        %2200 = vmatpush1.bf16.msra.mxu0 0
        %2201 = vmatprep.mubr.bf16.mxu0 0
        %2202 = vmatmul.mubr.bf16.gmra.mrb[0].mxu0 %v2164
        %v2203 = vpop.f32.mrb[0].mxu0
        %v2204 = vadd.f32 0.0, %v2203
        %v2205 = vpop.f32.mrb[0].mxu0
        %v2206 = vpop.f32.mrb[0].mxu0
        %v2207 = vpop.f32.mrb[0].mxu0
        %2208 = vdwg.mxu0
        %2209 = vrot.lane.b32.xlu0 %v1004, 64
        %v2210 = vpop.permute.xlu0 %2209
        %v2212 = vsel %vm1191, %v2111, 0
        %v2215 = vsel %vm1243, %v2210, 0
        %2217 = vmatprep.subr.bf16.mxu0 0
        %2218 = vmatpush1.bf16.msra.mxu0 %v2215
        %2219 = vmatprep.subr.bf16.mxu0 0
        %2220 = vmatpush1.bf16.msra.mxu0 0
        %2221 = vmatprep.subr.bf16.mxu0 0
        %2222 = vmatpush1.bf16.msra.mxu0 0
        %2223 = vmatprep.subr.bf16.mxu0 0
        %2224 = vmatpush1.bf16.msra.mxu0 0
        %2225 = vmatprep.subr.bf16.mxu0 0
        %2226 = vmatpush1.bf16.msra.mxu0 0
        %2227 = vmatprep.subr.bf16.mxu0 0
        %2228 = vmatpush1.bf16.msra.mxu0 0
        %2229 = vmatprep.subr.bf16.mxu0 0
        %2230 = vmatpush1.bf16.msra.mxu0 0
        %2231 = vmatprep.subr.bf16.mxu0 0
        %2232 = vmatpush1.bf16.msra.mxu0 0
        %2233 = vmatprep.subr.bf16.mxu0 0
        %2234 = vmatpush1.bf16.msra.mxu0 0
        %2235 = vmatprep.subr.bf16.mxu0 0
        %2236 = vmatpush1.bf16.msra.mxu0 0
        %2237 = vmatprep.subr.bf16.mxu0 0
        %2238 = vmatpush1.bf16.msra.mxu0 0
        %2239 = vmatprep.subr.bf16.mxu0 0
        %2240 = vmatpush1.bf16.msra.mxu0 0
        %2241 = vmatprep.subr.bf16.mxu0 0
        %2242 = vmatpush1.bf16.msra.mxu0 0
        %2243 = vmatprep.subr.bf16.mxu0 0
        %2244 = vmatpush1.bf16.msra.mxu0 0
        %2245 = vmatprep.subr.bf16.mxu0 0
        %2246 = vmatpush1.bf16.msra.mxu0 0
        %2247 = vmatprep.subr.bf16.mxu0 0
        %2248 = vmatpush1.bf16.msra.mxu0 0
        %2249 = vmatprep.mubr.bf16.mxu0 0
        %2250 = vmatmul.mubr.bf16.gmra.mrb[0].mxu0 %v2212
        %v2251 = vpop.f32.mrb[0].mxu0
        %v2252 = vadd.f32 0.0, %v2251
        %v2253 = vpop.f32.mrb[0].mxu0
        %v2254 = vpop.f32.mrb[0].mxu0
        %v2255 = vpop.f32.mrb[0].mxu0
        %2256 = vdwg.mxu0
        %2257 = vrot.lane.b32.xlu0 %v1005, 64
        %v2258 = vpop.permute.xlu0 %2257
        %v2260 = vsel %vm1191, %v2112, 0
        %v2263 = vsel %vm1243, %v2258, 0
        %2265 = vmatprep.subr.bf16.mxu0 0
        %2266 = vmatpush1.bf16.msra.mxu0 %v2263
        %2267 = vmatprep.subr.bf16.mxu0 0
        %2268 = vmatpush1.bf16.msra.mxu0 0
        %2269 = vmatprep.subr.bf16.mxu0 0
        %2270 = vmatpush1.bf16.msra.mxu0 0
        %2271 = vmatprep.subr.bf16.mxu0 0
        %2272 = vmatpush1.bf16.msra.mxu0 0
        %2273 = vmatprep.subr.bf16.mxu0 0
        %2274 = vmatpush1.bf16.msra.mxu0 0
        %2275 = vmatprep.subr.bf16.mxu0 0
        %2276 = vmatpush1.bf16.msra.mxu0 0
        %2277 = vmatprep.subr.bf16.mxu0 0
        %2278 = vmatpush1.bf16.msra.mxu0 0
        %2279 = vmatprep.subr.bf16.mxu0 0
        %2280 = vmatpush1.bf16.msra.mxu0 0
        %2281 = vmatprep.subr.bf16.mxu0 0
        %2282 = vmatpush1.bf16.msra.mxu0 0
        %2283 = vmatprep.subr.bf16.mxu0 0
        %2284 = vmatpush1.bf16.msra.mxu0 0
        %2285 = vmatprep.subr.bf16.mxu0 0
        %2286 = vmatpush1.bf16.msra.mxu0 0
        %2287 = vmatprep.subr.bf16.mxu0 0
        %2288 = vmatpush1.bf16.msra.mxu0 0
        %2289 = vmatprep.subr.bf16.mxu0 0
        %2290 = vmatpush1.bf16.msra.mxu0 0
        %2291 = vmatprep.subr.bf16.mxu0 0
        %2292 = vmatpush1.bf16.msra.mxu0 0
        %2293 = vmatprep.subr.bf16.mxu0 0
        %2294 = vmatpush1.bf16.msra.mxu0 0
        %2295 = vmatprep.subr.bf16.mxu0 0
        %2296 = vmatpush1.bf16.msra.mxu0 0
        %2297 = vmatprep.mubr.bf16.mxu0 0
        %2298 = vmatmul.mubr.bf16.gmra.mrb[0].mxu0 %v2260
        %v2299 = vpop.f32.mrb[0].mxu0
        %v2300 = vadd.f32 0.0, %v2299
        %v2301 = vpop.f32.mrb[0].mxu0
        %v2302 = vpop.f32.mrb[0].mxu0
        %v2303 = vpop.f32.mrb[0].mxu0
        %2304 = vdwg.mxu0
        %2305 = vrot.lane.b32.xlu0 %v978, 32
        %v2306 = vpop.permute.xlu0 %2305
        %2307 = vrot.lane.b32.xlu0 %v990, 32
        %v2308 = vpop.permute.xlu0 %2307
        %v2310 = vsel %vm1006, %v2306, 0
        %v2313 = vsel %vm1006, %v2308, 0
        %2315 = vmatprep.subr.bf16.mxu0 0
        %2316 = vmatpush1.bf16.xpose.msra.mxu0 %v2313
        %2317 = vmatprep.subr.bf16.mxu0 0
        %2318 = vmatpush1.bf16.xpose.msra.mxu0 0
        %2319 = vmatprep.subr.bf16.mxu0 0
        %2320 = vmatpush1.bf16.xpose.msra.mxu0 0
        %2321 = vmatprep.subr.bf16.mxu0 0
        %2322 = vmatpush1.bf16.xpose.msra.mxu0 0
        %2323 = vmatprep.subr.bf16.mxu0 0
        %2324 = vmatpush1.bf16.xpose.msra.mxu0 0
        %2325 = vmatprep.subr.bf16.mxu0 0
        %2326 = vmatpush1.bf16.xpose.msra.mxu0 0
        %2327 = vmatprep.subr.bf16.mxu0 0
        %2328 = vmatpush1.bf16.xpose.msra.mxu0 0
        %2329 = vmatprep.subr.bf16.mxu0 0
        %2330 = vmatpush1.bf16.xpose.msra.mxu0 0
        %2331 = vmatprep.subr.bf16.mxu0 0
        %2332 = vmatpush1.bf16.xpose.msra.mxu0 0
        %2333 = vmatprep.subr.bf16.mxu0 0
        %2334 = vmatpush1.bf16.xpose.msra.mxu0 0
        %2335 = vmatprep.subr.bf16.mxu0 0
        %2336 = vmatpush1.bf16.xpose.msra.mxu0 0
        %2337 = vmatprep.subr.bf16.mxu0 0
        %2338 = vmatpush1.bf16.xpose.msra.mxu0 0
        %2339 = vmatprep.subr.bf16.mxu0 0
        %2340 = vmatpush1.bf16.xpose.msra.mxu0 0
        %2341 = vmatprep.subr.bf16.mxu0 0
        %2342 = vmatpush1.bf16.xpose.msra.mxu0 0
        %2343 = vmatprep.subr.bf16.mxu0 0
        %2344 = vmatpush1.bf16.xpose.msra.mxu0 0
        %2345 = vmatprep.subr.bf16.mxu0 0
        %2346 = vmatpush1.bf16.xpose.msra.mxu0 0
        %2347 = vmatprep.mubr.bf16.mxu0 0
        %2348 = vmatmul.mubr.bf16.gmra.mrb[0].mxu0 %v2310
        %v2349 = vpop.f32.mrb[0].mxu0
        %v2350 = vadd.f32 0.0, %v2349
        %v2351 = vpop.f32.mrb[0].mxu0
        %v2352 = vpop.f32.mrb[0].mxu0
        %v2353 = vpop.f32.mrb[0].mxu0
        %2354 = vdwg.mxu0
        %2355 = vrot.lane.b32.xlu0 %v979, 32
        %v2356 = vpop.permute.xlu0 %2355
        %2357 = vrot.lane.b32.xlu0 %v991, 32
        %v2358 = vpop.permute.xlu0 %2357
        %v2360 = vsel %vm1006, %v2356, 0
        %v2363 = vsel %vm1006, %v2358, 0
        %2365 = vmatprep.subr.bf16.mxu0 0
        %2366 = vmatpush1.bf16.xpose.msra.mxu0 %v2363
        %2367 = vmatprep.subr.bf16.mxu0 0
        %2368 = vmatpush1.bf16.xpose.msra.mxu0 0
        %2369 = vmatprep.subr.bf16.mxu0 0
        %2370 = vmatpush1.bf16.xpose.msra.mxu0 0
        %2371 = vmatprep.subr.bf16.mxu0 0
        %2372 = vmatpush1.bf16.xpose.msra.mxu0 0
        %2373 = vmatprep.subr.bf16.mxu0 0
        %2374 = vmatpush1.bf16.xpose.msra.mxu0 0
        %2375 = vmatprep.subr.bf16.mxu0 0
        %2376 = vmatpush1.bf16.xpose.msra.mxu0 0
        %2377 = vmatprep.subr.bf16.mxu0 0
        %2378 = vmatpush1.bf16.xpose.msra.mxu0 0
        %2379 = vmatprep.subr.bf16.mxu0 0
        %2380 = vmatpush1.bf16.xpose.msra.mxu0 0
        %2381 = vmatprep.subr.bf16.mxu0 0
        %2382 = vmatpush1.bf16.xpose.msra.mxu0 0
        %2383 = vmatprep.subr.bf16.mxu0 0
        %2384 = vmatpush1.bf16.xpose.msra.mxu0 0
        %2385 = vmatprep.subr.bf16.mxu0 0
        %2386 = vmatpush1.bf16.xpose.msra.mxu0 0
        %2387 = vmatprep.subr.bf16.mxu0 0
        %2388 = vmatpush1.bf16.xpose.msra.mxu0 0
        %2389 = vmatprep.subr.bf16.mxu0 0
        %2390 = vmatpush1.bf16.xpose.msra.mxu0 0
        %2391 = vmatprep.subr.bf16.mxu0 0
        %2392 = vmatpush1.bf16.xpose.msra.mxu0 0
        %2393 = vmatprep.subr.bf16.mxu0 0
        %2394 = vmatpush1.bf16.xpose.msra.mxu0 0
        %2395 = vmatprep.subr.bf16.mxu0 0
        %2396 = vmatpush1.bf16.xpose.msra.mxu0 0
        %2397 = vmatprep.mubr.bf16.mxu0 0
        %2398 = vmatmul.mubr.bf16.gmra.mrb[0].mxu0 %v2360
        %v2399 = vpop.f32.mrb[0].mxu0
        %v2400 = vadd.f32 0.0, %v2399
        %v2401 = vpop.f32.mrb[0].mxu0
        %v2402 = vpop.f32.mrb[0].mxu0
        %v2403 = vpop.f32.mrb[0].mxu0
        %2404 = vdwg.mxu0
        %2405 = vrot.lane.b32.xlu0 %v980, 32
        %v2406 = vpop.permute.xlu0 %2405
        %2407 = vrot.lane.b32.xlu0 %v992, 32
        %v2408 = vpop.permute.xlu0 %2407
        %v2410 = vsel %vm1006, %v2406, 0
        %v2413 = vsel %vm1006, %v2408, 0
        %2415 = vmatprep.subr.bf16.mxu0 0
        %2416 = vmatpush1.bf16.xpose.msra.mxu0 %v2413
        %2417 = vmatprep.subr.bf16.mxu0 0
        %2418 = vmatpush1.bf16.xpose.msra.mxu0 0
        %2419 = vmatprep.subr.bf16.mxu0 0
        %2420 = vmatpush1.bf16.xpose.msra.mxu0 0
        %2421 = vmatprep.subr.bf16.mxu0 0
        %2422 = vmatpush1.bf16.xpose.msra.mxu0 0
        %2423 = vmatprep.subr.bf16.mxu0 0
        %2424 = vmatpush1.bf16.xpose.msra.mxu0 0
        %2425 = vmatprep.subr.bf16.mxu0 0
        %2426 = vmatpush1.bf16.xpose.msra.mxu0 0
        %2427 = vmatprep.subr.bf16.mxu0 0
        %2428 = vmatpush1.bf16.xpose.msra.mxu0 0
        %2429 = vmatprep.subr.bf16.mxu0 0
        %2430 = vmatpush1.bf16.xpose.msra.mxu0 0
        %2431 = vmatprep.subr.bf16.mxu0 0
        %2432 = vmatpush1.bf16.xpose.msra.mxu0 0
        %2433 = vmatprep.subr.bf16.mxu0 0
        %2434 = vmatpush1.bf16.xpose.msra.mxu0 0
        %2435 = vmatprep.subr.bf16.mxu0 0
        %2436 = vmatpush1.bf16.xpose.msra.mxu0 0
        %2437 = vmatprep.subr.bf16.mxu0 0
        %2438 = vmatpush1.bf16.xpose.msra.mxu0 0
        %2439 = vmatprep.subr.bf16.mxu0 0
        %2440 = vmatpush1.bf16.xpose.msra.mxu0 0
        %2441 = vmatprep.subr.bf16.mxu0 0
        %2442 = vmatpush1.bf16.xpose.msra.mxu0 0
        %2443 = vmatprep.subr.bf16.mxu0 0
        %2444 = vmatpush1.bf16.xpose.msra.mxu0 0
        %2445 = vmatprep.subr.bf16.mxu0 0
        %2446 = vmatpush1.bf16.xpose.msra.mxu0 0
        %2447 = vmatprep.mubr.bf16.mxu0 0
        %2448 = vmatmul.mubr.bf16.gmra.mrb[0].mxu0 %v2410
        %v2449 = vpop.f32.mrb[0].mxu0
        %v2450 = vadd.f32 0.0, %v2449
        %v2451 = vpop.f32.mrb[0].mxu0
        %v2452 = vpop.f32.mrb[0].mxu0
        %v2453 = vpop.f32.mrb[0].mxu0
        %2454 = vdwg.mxu0
        %2455 = vrot.lane.b32.xlu0 %v981, 32
        %v2456 = vpop.permute.xlu0 %2455
        %2457 = vrot.lane.b32.xlu0 %v993, 32
        %v2458 = vpop.permute.xlu0 %2457
        %v2460 = vsel %vm1006, %v2456, 0
        %v2463 = vsel %vm1006, %v2458, 0
        %2465 = vmatprep.subr.bf16.mxu0 0
        %2466 = vmatpush1.bf16.xpose.msra.mxu0 %v2463
        %2467 = vmatprep.subr.bf16.mxu0 0
        %2468 = vmatpush1.bf16.xpose.msra.mxu0 0
        %2469 = vmatprep.subr.bf16.mxu0 0
        %2470 = vmatpush1.bf16.xpose.msra.mxu0 0
        %2471 = vmatprep.subr.bf16.mxu0 0
        %2472 = vmatpush1.bf16.xpose.msra.mxu0 0
        %2473 = vmatprep.subr.bf16.mxu0 0
        %2474 = vmatpush1.bf16.xpose.msra.mxu0 0
        %2475 = vmatprep.subr.bf16.mxu0 0
        %2476 = vmatpush1.bf16.xpose.msra.mxu0 0
        %2477 = vmatprep.subr.bf16.mxu0 0
        %2478 = vmatpush1.bf16.xpose.msra.mxu0 0
        %2479 = vmatprep.subr.bf16.mxu0 0
        %2480 = vmatpush1.bf16.xpose.msra.mxu0 0
        %2481 = vmatprep.subr.bf16.mxu0 0
        %2482 = vmatpush1.bf16.xpose.msra.mxu0 0
        %2483 = vmatprep.subr.bf16.mxu0 0
        %2484 = vmatpush1.bf16.xpose.msra.mxu0 0
        %2485 = vmatprep.subr.bf16.mxu0 0
        %2486 = vmatpush1.bf16.xpose.msra.mxu0 0
        %2487 = vmatprep.subr.bf16.mxu0 0
        %2488 = vmatpush1.bf16.xpose.msra.mxu0 0
        %2489 = vmatprep.subr.bf16.mxu0 0
        %2490 = vmatpush1.bf16.xpose.msra.mxu0 0
        %2491 = vmatprep.subr.bf16.mxu0 0
        %2492 = vmatpush1.bf16.xpose.msra.mxu0 0
        %2493 = vmatprep.subr.bf16.mxu0 0
        %2494 = vmatpush1.bf16.xpose.msra.mxu0 0
        %2495 = vmatprep.subr.bf16.mxu0 0
        %2496 = vmatpush1.bf16.xpose.msra.mxu0 0
        %2497 = vmatprep.mubr.bf16.mxu0 0
        %2498 = vmatmul.mubr.bf16.gmra.mrb[0].mxu0 %v2460
        %v2499 = vpop.f32.mrb[0].mxu0
        %v2500 = vadd.f32 0.0, %v2499
        %v2501 = vpop.f32.mrb[0].mxu0
        %v2502 = vpop.f32.mrb[0].mxu0
        %v2503 = vpop.f32.mrb[0].mxu0
        %2504 = vdwg.mxu0
        %v2505 = vsel %vm1191, %v2350, -inf
        %2506 = vmax.xlane.f32.xlu0 %v2505
        %v2507 = vpop.xlane.xlu0 %2506
        %v2508 = vsel %vm1191, %v2400, -inf
        %2509 = vmax.xlane.f32.xlu0 %v2508
        %v2510 = vpop.xlane.xlu0 %2509
        %v2511 = vsel %vm1191, %v2450, -inf
        %2512 = vmax.xlane.f32.xlu0 %v2511
        %v2513 = vpop.xlane.xlu0 %2512
        %v2514 = vsel %vm1191, %v2500, -inf
        %2515 = vmax.xlane.f32.xlu0 %v2514
        %v2516 = vpop.xlane.xlu0 %2515
        %v2517 = vsub.f32 %v2350, %v2507
        %v2518 = vsub.f32 %v2400, %v2510
        %v2519 = vsub.f32 %v2450, %v2513
        %v2520 = vsub.f32 %v2500, %v2516
        %v2521 = vmul.f32 %v2517, 1.442695
        %v2522 = vpow.pop %v2521
        %v2523 = vmul.f32 %v2518, 1.442695
        %v2524 = vpow.pop %v2523
        %v2525 = vmul.f32 %v2519, 1.442695
        %v2526 = vpow.pop %v2525
        %v2527 = vmul.f32 %v2520, 1.442695
        %v2528 = vpow.pop %v2527
        %v2529 = vsel %vm1191, %v2522, 0.0
        %2530 = vadd.xlane.f32.xlu0 %v2529
        %v2531 = vpop.xlane.xlu0 %2530
        %v2532 = vsel %vm1191, %v2524, 0.0
        %2533 = vadd.xlane.f32.xlu0 %v2532
        %v2534 = vpop.xlane.xlu0 %2533
        %v2535 = vsel %vm1191, %v2526, 0.0
        %2536 = vadd.xlane.f32.xlu0 %v2535
        %v2537 = vpop.xlane.xlu0 %2536
        %v2538 = vsel %vm1191, %v2528, 0.0
        %2539 = vadd.xlane.f32.xlu0 %v2538
        %v2540 = vpop.xlane.xlu0 %2539
        %v2541 = vrcp.pop %v2531
        %v2542 = vrcp.pop %v2534
        %v2543 = vrcp.pop %v2537
        %v2544 = vrcp.pop %v2540
        %v2545 = vmul.f32 %v2522, %v2541
        %v2546 = vmul.f32 %v2524, %v2542
        %v2547 = vmul.f32 %v2526, %v2543
        %v2548 = vmul.f32 %v2528, %v2544
        %v2549 = vpack.c.bf16 %v2545, %v2545
        %v2550 = vpack.c.bf16 %v2546, %v2546
        %v2551 = vpack.c.bf16 %v2547, %v2547
        %v2552 = vpack.c.bf16 %v2548, %v2548
        %2553 = vrot.lane.b32.xlu0 %v1002, 32
        %v2554 = vpop.permute.xlu0 %2553
        %v2556 = vsel %vm1191, %v2549, 0
        %v2559 = vsel %vm1243, %v2554, 0
        %2561 = vmatprep.subr.bf16.mxu0 0
        %2562 = vmatpush1.bf16.msra.mxu0 %v2559
        %2563 = vmatprep.subr.bf16.mxu0 0
        %2564 = vmatpush1.bf16.msra.mxu0 0
        %2565 = vmatprep.subr.bf16.mxu0 0
        %2566 = vmatpush1.bf16.msra.mxu0 0
        %2567 = vmatprep.subr.bf16.mxu0 0
        %2568 = vmatpush1.bf16.msra.mxu0 0
        %2569 = vmatprep.subr.bf16.mxu0 0
        %2570 = vmatpush1.bf16.msra.mxu0 0
        %2571 = vmatprep.subr.bf16.mxu0 0
        %2572 = vmatpush1.bf16.msra.mxu0 0
        %2573 = vmatprep.subr.bf16.mxu0 0
        %2574 = vmatpush1.bf16.msra.mxu0 0
        %2575 = vmatprep.subr.bf16.mxu0 0
        %2576 = vmatpush1.bf16.msra.mxu0 0
        %2577 = vmatprep.subr.bf16.mxu0 0
        %2578 = vmatpush1.bf16.msra.mxu0 0
        %2579 = vmatprep.subr.bf16.mxu0 0
        %2580 = vmatpush1.bf16.msra.mxu0 0
        %2581 = vmatprep.subr.bf16.mxu0 0
        %2582 = vmatpush1.bf16.msra.mxu0 0
        %2583 = vmatprep.subr.bf16.mxu0 0
        %2584 = vmatpush1.bf16.msra.mxu0 0
        %2585 = vmatprep.subr.bf16.mxu0 0
        %2586 = vmatpush1.bf16.msra.mxu0 0
        %2587 = vmatprep.subr.bf16.mxu0 0
        %2588 = vmatpush1.bf16.msra.mxu0 0
        %2589 = vmatprep.subr.bf16.mxu0 0
        %2590 = vmatpush1.bf16.msra.mxu0 0
        %2591 = vmatprep.subr.bf16.mxu0 0
        %2592 = vmatpush1.bf16.msra.mxu0 0
        %2593 = vmatprep.mubr.bf16.mxu0 0
        %2594 = vmatmul.mubr.bf16.gmra.mrb[0].mxu0 %v2556
        %v2595 = vpop.f32.mrb[0].mxu0
        %v2596 = vadd.f32 0.0, %v2595
        %v2597 = vpop.f32.mrb[0].mxu0
        %v2598 = vpop.f32.mrb[0].mxu0
        %v2599 = vpop.f32.mrb[0].mxu0
        %2600 = vdwg.mxu0
        %2601 = vrot.lane.b32.xlu0 %v1003, 32
        %v2602 = vpop.permute.xlu0 %2601
        %v2604 = vsel %vm1191, %v2550, 0
        %v2607 = vsel %vm1243, %v2602, 0
        %2609 = vmatprep.subr.bf16.mxu0 0
        %2610 = vmatpush1.bf16.msra.mxu0 %v2607
        %2611 = vmatprep.subr.bf16.mxu0 0
        %2612 = vmatpush1.bf16.msra.mxu0 0
        %2613 = vmatprep.subr.bf16.mxu0 0
        %2614 = vmatpush1.bf16.msra.mxu0 0
        %2615 = vmatprep.subr.bf16.mxu0 0
        %2616 = vmatpush1.bf16.msra.mxu0 0
        %2617 = vmatprep.subr.bf16.mxu0 0
        %2618 = vmatpush1.bf16.msra.mxu0 0
        %2619 = vmatprep.subr.bf16.mxu0 0
        %2620 = vmatpush1.bf16.msra.mxu0 0
        %2621 = vmatprep.subr.bf16.mxu0 0
        %2622 = vmatpush1.bf16.msra.mxu0 0
        %2623 = vmatprep.subr.bf16.mxu0 0
        %2624 = vmatpush1.bf16.msra.mxu0 0
        %2625 = vmatprep.subr.bf16.mxu0 0
        %2626 = vmatpush1.bf16.msra.mxu0 0
        %2627 = vmatprep.subr.bf16.mxu0 0
        %2628 = vmatpush1.bf16.msra.mxu0 0
        %2629 = vmatprep.subr.bf16.mxu0 0
        %2630 = vmatpush1.bf16.msra.mxu0 0
        %2631 = vmatprep.subr.bf16.mxu0 0
        %2632 = vmatpush1.bf16.msra.mxu0 0
        %2633 = vmatprep.subr.bf16.mxu0 0
        %2634 = vmatpush1.bf16.msra.mxu0 0
        %2635 = vmatprep.subr.bf16.mxu0 0
        %2636 = vmatpush1.bf16.msra.mxu0 0
        %2637 = vmatprep.subr.bf16.mxu0 0
        %2638 = vmatpush1.bf16.msra.mxu0 0
        %2639 = vmatprep.subr.bf16.mxu0 0
        %2640 = vmatpush1.bf16.msra.mxu0 0
        %2641 = vmatprep.mubr.bf16.mxu0 0
        %2642 = vmatmul.mubr.bf16.gmra.mrb[0].mxu0 %v2604
        %v2643 = vpop.f32.mrb[0].mxu0
        %v2644 = vadd.f32 0.0, %v2643
        %v2645 = vpop.f32.mrb[0].mxu0
        %v2646 = vpop.f32.mrb[0].mxu0
        %v2647 = vpop.f32.mrb[0].mxu0
        %2648 = vdwg.mxu0
        %2649 = vrot.lane.b32.xlu0 %v1004, 32
        %v2650 = vpop.permute.xlu0 %2649
        %v2652 = vsel %vm1191, %v2551, 0
        %v2655 = vsel %vm1243, %v2650, 0
        %2657 = vmatprep.subr.bf16.mxu0 0
        %2658 = vmatpush1.bf16.msra.mxu0 %v2655
        %2659 = vmatprep.subr.bf16.mxu0 0
        %2660 = vmatpush1.bf16.msra.mxu0 0
        %2661 = vmatprep.subr.bf16.mxu0 0
        %2662 = vmatpush1.bf16.msra.mxu0 0
        %2663 = vmatprep.subr.bf16.mxu0 0
        %2664 = vmatpush1.bf16.msra.mxu0 0
        %2665 = vmatprep.subr.bf16.mxu0 0
        %2666 = vmatpush1.bf16.msra.mxu0 0
        %2667 = vmatprep.subr.bf16.mxu0 0
        %2668 = vmatpush1.bf16.msra.mxu0 0
        %2669 = vmatprep.subr.bf16.mxu0 0
        %2670 = vmatpush1.bf16.msra.mxu0 0
        %2671 = vmatprep.subr.bf16.mxu0 0
        %2672 = vmatpush1.bf16.msra.mxu0 0
        %2673 = vmatprep.subr.bf16.mxu0 0
        %2674 = vmatpush1.bf16.msra.mxu0 0
        %2675 = vmatprep.subr.bf16.mxu0 0
        %2676 = vmatpush1.bf16.msra.mxu0 0
        %2677 = vmatprep.subr.bf16.mxu0 0
        %2678 = vmatpush1.bf16.msra.mxu0 0
        %2679 = vmatprep.subr.bf16.mxu0 0
        %2680 = vmatpush1.bf16.msra.mxu0 0
        %2681 = vmatprep.subr.bf16.mxu0 0
        %2682 = vmatpush1.bf16.msra.mxu0 0
        %2683 = vmatprep.subr.bf16.mxu0 0
        %2684 = vmatpush1.bf16.msra.mxu0 0
        %2685 = vmatprep.subr.bf16.mxu0 0
        %2686 = vmatpush1.bf16.msra.mxu0 0
        %2687 = vmatprep.subr.bf16.mxu0 0
        %2688 = vmatpush1.bf16.msra.mxu0 0
        %2689 = vmatprep.mubr.bf16.mxu0 0
        %2690 = vmatmul.mubr.bf16.gmra.mrb[0].mxu0 %v2652
        %v2691 = vpop.f32.mrb[0].mxu0
        %v2692 = vadd.f32 0.0, %v2691
        %v2693 = vpop.f32.mrb[0].mxu0
        %v2694 = vpop.f32.mrb[0].mxu0
        %v2695 = vpop.f32.mrb[0].mxu0
        %2696 = vdwg.mxu0
        %2697 = vrot.lane.b32.xlu0 %v1005, 32
        %v2698 = vpop.permute.xlu0 %2697
        %v2700 = vsel %vm1191, %v2552, 0
        %v2703 = vsel %vm1243, %v2698, 0
        %2705 = vmatprep.subr.bf16.mxu0 0
        %2706 = vmatpush1.bf16.msra.mxu0 %v2703
        %2707 = vmatprep.subr.bf16.mxu0 0
        %2708 = vmatpush1.bf16.msra.mxu0 0
        %2709 = vmatprep.subr.bf16.mxu0 0
        %2710 = vmatpush1.bf16.msra.mxu0 0
        %2711 = vmatprep.subr.bf16.mxu0 0
        %2712 = vmatpush1.bf16.msra.mxu0 0
        %2713 = vmatprep.subr.bf16.mxu0 0
        %2714 = vmatpush1.bf16.msra.mxu0 0
        %2715 = vmatprep.subr.bf16.mxu0 0
        %2716 = vmatpush1.bf16.msra.mxu0 0
        %2717 = vmatprep.subr.bf16.mxu0 0
        %2718 = vmatpush1.bf16.msra.mxu0 0
        %2719 = vmatprep.subr.bf16.mxu0 0
        %2720 = vmatpush1.bf16.msra.mxu0 0
        %2721 = vmatprep.subr.bf16.mxu0 0
        %2722 = vmatpush1.bf16.msra.mxu0 0
        %2723 = vmatprep.subr.bf16.mxu0 0
        %2724 = vmatpush1.bf16.msra.mxu0 0
        %2725 = vmatprep.subr.bf16.mxu0 0
        %2726 = vmatpush1.bf16.msra.mxu0 0
        %2727 = vmatprep.subr.bf16.mxu0 0
        %2728 = vmatpush1.bf16.msra.mxu0 0
        %2729 = vmatprep.subr.bf16.mxu0 0
        %2730 = vmatpush1.bf16.msra.mxu0 0
        %2731 = vmatprep.subr.bf16.mxu0 0
        %2732 = vmatpush1.bf16.msra.mxu0 0
        %2733 = vmatprep.subr.bf16.mxu0 0
        %2734 = vmatpush1.bf16.msra.mxu0 0
        %2735 = vmatprep.subr.bf16.mxu0 0
        %2736 = vmatpush1.bf16.msra.mxu0 0
        %2737 = vmatprep.mubr.bf16.mxu0 0
        %2738 = vmatmul.mubr.bf16.gmra.mrb[0].mxu0 %v2700
        %v2739 = vpop.f32.mrb[0].mxu0
        %v2740 = vadd.f32 0.0, %v2739
        %v2741 = vpop.f32.mrb[0].mxu0
        %v2742 = vpop.f32.mrb[0].mxu0
        %v2743 = vpop.f32.mrb[0].mxu0
        %2744 = vdwg.mxu0
        %2749 = vrot.lane.b32.xlu0 %v1716, 32
        %v2750 = vpop.permute.xlu0 %2749
        %2751 = vrot.lane.b32.xlu0 %v1764, 32
        %v2752 = vpop.permute.xlu0 %2751
        %2753 = vrot.lane.b32.xlu0 %v1812, 32
        %v2754 = vpop.permute.xlu0 %2753
        %2755 = vrot.lane.b32.xlu0 %v1860, 32
        %v2756 = vpop.permute.xlu0 %2755
        %2765 = vrot.lane.b32.xlu0 %v2156, 64
        %v2766 = vpop.permute.xlu0 %2765
        %2767 = vrot.lane.b32.xlu0 %v2204, 64
        %v2768 = vpop.permute.xlu0 %2767
        %2769 = vrot.lane.b32.xlu0 %v2252, 64
        %v2770 = vpop.permute.xlu0 %2769
        %2771 = vrot.lane.b32.xlu0 %v2300, 64
        %v2772 = vpop.permute.xlu0 %2771
        %2781 = vrot.lane.b32.xlu0 %v2596, 96
        %v2782 = vpop.permute.xlu0 %2781
        %2783 = vrot.lane.b32.xlu0 %v2644, 96
        %v2784 = vpop.permute.xlu0 %2783
        %2785 = vrot.lane.b32.xlu0 %v2692, 96
        %v2786 = vpop.permute.xlu0 %2785
        %2787 = vrot.lane.b32.xlu0 %v2740, 96
        %v2788 = vpop.permute.xlu0 %2787
        %v2793 = vsel %vm1006, %v1282, %v2750
        %v2794 = vsel %vm1006, %v1328, %v2752
        %v2795 = vsel %vm1006, %v1374, %v2754
        %v2796 = vsel %vm1006, %v1420, %v2756
        %vm2797 = vcmask 523264
        %v2798 = vsel %vm2797, %v2793, %v2766
        %v2799 = vsel %vm2797, %v2794, %v2768
        %v2800 = vsel %vm2797, %v2795, %v2770
        %v2801 = vsel %vm2797, %v2796, %v2772
        %vm2802 = vcmask 785408
        %v2803 = vsel %vm2802, %v2798, %v2782
        %v2804 = vsel %vm2802, %v2799, %v2784
        %v2805 = vsel %vm2802, %v2800, %v2786
        %v2806 = vsel %vm2802, %v2801, %v2788
        %v2807 = vld [vmem:[#allocation11] sm:$0xf]
        %v2808 = vld [vmem:[#allocation11 + $0x4] sm:$0xf]
        %v2809 = vld [vmem:[#allocation11 + $0x8] sm:$0xf]
        %v2810 = vld [vmem:[#allocation11 + $0xc] sm:$0xf]
        %v2811 = vld [vmem:[#allocation11 + $0x10] sm:$0xf]
        %v2812 = vld [vmem:[#allocation11 + $0x14] sm:$0xf]
        %v2813 = vld [vmem:[#allocation11 + $0x18] sm:$0xf]
        %v2814 = vld [vmem:[#allocation11 + $0x1c] sm:$0xf]
        %v2815 = vld [vmem:[#allocation11 + $0x20] sm:$0xf]
        %v2816 = vld [vmem:[#allocation11 + $0x24] sm:$0xf]
        %v2817 = vld [vmem:[#allocation11 + $0x28] sm:$0xf]
        %v2818 = vld [vmem:[#allocation11 + $0x2c] sm:$0xf]
        %v2819 = vld [vmem:[#allocation11 + $0x30] sm:$0xf]
        %v2820 = vld [vmem:[#allocation11 + $0x34] sm:$0xf]
        %v2821 = vld [vmem:[#allocation11 + $0x38] sm:$0xf]
        %v2822 = vld [vmem:[#allocation11 + $0x3c] sm:$0xf]
        %v2823 = vpack.c.bf16 %v2804, %v2803
        %v2824 = vpack.c.bf16 %v2806, %v2805
        %v2825 = vlaneseq
        %v2826 = vshrl.u32 %v2825, 7
        %v2827 = vsub.s32 1, %v2826
        %v2828 = vrot.slane %v592, %v2827
        %v2845 = vunpack.c.l.b16 %v2807
        %v2846 = vunpack.c.l.b16 %v2808
        %v2847 = vunpack.c.l.b16 %v2809
        %v2848 = vunpack.c.l.b16 %v2810
        %v2849 = vunpack.c.l.b16 %v2811
        %v2850 = vunpack.c.l.b16 %v2812
        %v2851 = vunpack.c.l.b16 %v2813
        %v2852 = vunpack.c.l.b16 %v2814
        %v2853 = vunpack.c.l.b16 %v2815
        %v2854 = vunpack.c.l.b16 %v2816
        %v2855 = vunpack.c.l.b16 %v2817
        %v2856 = vunpack.c.l.b16 %v2818
        %v2857 = vunpack.c.l.b16 %v2819
        %v2858 = vunpack.c.l.b16 %v2820
        %v2859 = vunpack.c.l.b16 %v2821
        %v2860 = vunpack.c.l.b16 %v2822
        %v2861 = vpack.c.b16 %v2846, %v2845
        %v2862 = vpack.c.b16 %v2848, %v2847
        %v2863 = vpack.c.b16 %v2850, %v2849
        %v2864 = vpack.c.b16 %v2852, %v2851
        %v2865 = vpack.c.b16 %v2854, %v2853
        %v2866 = vpack.c.b16 %v2856, %v2855
        %v2867 = vpack.c.b16 %v2858, %v2857
        %v2868 = vpack.c.b16 %v2860, %v2859
        %2877 = vmatprep.subr.bf16.mxu0 0
        %2878 = vmatpush1.bf16.msra.mxu0 %v2861
        %2879 = vmatprep.subr.bf16.mxu0 0
        %2880 = vmatpush1.bf16.msra.mxu0 %v2862
        %2881 = vmatprep.subr.bf16.mxu0 0
        %2882 = vmatpush1.bf16.msra.mxu0 %v2863
        %2883 = vmatprep.subr.bf16.mxu0 0
        %2884 = vmatpush1.bf16.msra.mxu0 %v2864
        %2885 = vmatprep.subr.bf16.mxu0 0
        %2886 = vmatpush1.bf16.msra.mxu0 %v2865
        %2887 = vmatprep.subr.bf16.mxu0 0
        %2888 = vmatpush1.bf16.msra.mxu0 %v2866
        %2889 = vmatprep.subr.bf16.mxu0 0
        %2890 = vmatpush1.bf16.msra.mxu0 %v2867
        %2891 = vmatprep.subr.bf16.mxu0 0
        %2892 = vmatpush1.bf16.msra.mxu0 %v2868
        %2893 = vmatprep.subr.bf16.mxu0 0
        %2894 = vmatpush1.bf16.msra.mxu0 0
        %2895 = vmatprep.subr.bf16.mxu0 0
        %2896 = vmatpush1.bf16.msra.mxu0 0
        %2897 = vmatprep.subr.bf16.mxu0 0
        %2898 = vmatpush1.bf16.msra.mxu0 0
        %2899 = vmatprep.subr.bf16.mxu0 0
        %2900 = vmatpush1.bf16.msra.mxu0 0
        %2901 = vmatprep.subr.bf16.mxu0 0
        %2902 = vmatpush1.bf16.msra.mxu0 0
        %2903 = vmatprep.subr.bf16.mxu0 0
        %2904 = vmatpush1.bf16.msra.mxu0 0
        %2905 = vmatprep.subr.bf16.mxu0 0
        %2906 = vmatpush1.bf16.msra.mxu0 0
        %2907 = vmatprep.subr.bf16.mxu0 0
        %2908 = vmatpush1.bf16.msra.mxu0 0
        %2909 = vmatprep.mubr.bf16.mxu0 0
        %2910 = vmatmul.mubr.bf16.gmra.mrb[0].mxu0 %v2823
        %v2911 = vpop.f32.mrb[0].mxu0
        %v2912 = vadd.f32 %v2828, %v2911
        %v2913 = vpop.f32.mrb[0].mxu0
        %v2914 = vpop.f32.mrb[0].mxu0
        %v2915 = vadd.f32 %v2828, %v2914
        %v2916 = vpop.f32.mrb[0].mxu0
        %2917 = vmatprep.mubr.bf16.mxu0 0
        %2918 = vmatmul.mubr.bf16.gmra.mrb[0].mxu0 %v2824
        %v2919 = vpop.f32.mrb[0].mxu0
        %v2920 = vadd.f32 %v2828, %v2919
        %v2921 = vpop.f32.mrb[0].mxu0
        %v2922 = vpop.f32.mrb[0].mxu0
        %v2923 = vadd.f32 %v2828, %v2922
        %v2924 = vpop.f32.mrb[0].mxu0
        %2925 = vdwg.mxu0
        %v2926 = vadd.f32 %v674, %v2912
        %v2927 = vadd.f32 %v675, %v2915
        %v2928 = vadd.f32 %v676, %v2920
        %v2929 = vadd.f32 %v677, %v2923
        %2930 = vadd.xlane.f32.xlu0 %v2926
        %v2931 = vpop.xlane.xlu0 %2930
        %2932 = vadd.xlane.f32.xlu0 %v2927
        %v2933 = vpop.xlane.xlu0 %2932
        %2934 = vadd.xlane.f32.xlu0 %v2928
        %v2935 = vpop.xlane.xlu0 %2934
        %2936 = vadd.xlane.f32.xlu0 %v2929
        %v2937 = vpop.xlane.xlu0 %2936
        %v2938 = vmul.f32 %v2931, %v625
        %v2939 = vmul.f32 %v2933, %v625
        %v2940 = vmul.f32 %v2935, %v625
        %v2941 = vmul.f32 %v2937, %v625
        %v2942 = vsub.f32 %v2926, %v2938
        %v2943 = vsub.f32 %v2927, %v2939
        %v2944 = vsub.f32 %v2928, %v2940
        %v2945 = vsub.f32 %v2929, %v2941
        %v2946 = vmul.f32 %v2942, %v2942
        %v2947 = vmul.f32 %v2943, %v2943
        %v2948 = vmul.f32 %v2944, %v2944
        %v2949 = vmul.f32 %v2945, %v2945
        %2950 = vadd.xlane.f32.xlu0 %v2946
        %v2951 = vpop.xlane.xlu0 %2950
        %2952 = vadd.xlane.f32.xlu0 %v2947
        %v2953 = vpop.xlane.xlu0 %2952
        %2954 = vadd.xlane.f32.xlu0 %v2948
        %v2955 = vpop.xlane.xlu0 %2954
        %2956 = vadd.xlane.f32.xlu0 %v2949
        %v2957 = vpop.xlane.xlu0 %2956
        %v2958 = vmul.f32 %v2951, %v625
        %v2959 = vmul.f32 %v2953, %v625
        %v2960 = vmul.f32 %v2955, %v625
        %v2961 = vmul.f32 %v2957, %v625
        %v2962 = vadd.f32 %v2958, 1e-05
        %v2963 = vadd.f32 %v2959, 1e-05
        %v2964 = vadd.f32 %v2960, 1e-05
        %v2965 = vadd.f32 %v2961, 1e-05
        %v2966 = vrsqrt.pop %v2962
        %v2967 = vrsqrt.pop %v2963
        %v2968 = vrsqrt.pop %v2964
        %v2969 = vrsqrt.pop %v2965
        %v2970 = vmul.f32 %v2942, %v2966
        %v2971 = vmul.f32 %v2943, %v2967
        %v2972 = vmul.f32 %v2944, %v2968
        %v2973 = vmul.f32 %v2945, %v2969
        %v2974 = vlaneseq
        %v2975 = vshrl.u32 %v2974, 7
        %v2976 = vsub.s32 2, %v2975
        %v2977 = vrot.slane %v591, %v2976
        %v2978 = vmul.f32 %v2970, %v2977
        %v2979 = vmul.f32 %v2971, %v2977
        %v2980 = vmul.f32 %v2972, %v2977
        %v2981 = vmul.f32 %v2973, %v2977
        %v2982 = vlaneseq
        %v2983 = vshrl.u32 %v2982, 7
        %v2984 = vsub.s32 3, %v2983
        %v2985 = vrot.slane %v591, %v2984
        %v2986 = vadd.f32 %v2978, %v2985
        %v2987 = vadd.f32 %v2979, %v2985
        %v2988 = vadd.f32 %v2980, %v2985
        %v2989 = vadd.f32 %v2981, %v2985
        %v2990 = vld [vmem:[#allocation13] sm:$0xf]
        %v2991 = vld [vmem:[#allocation13 + $0xc] sm:$0xf]
        %v2992 = vld [vmem:[#allocation13 + $0x18] sm:$0xf]
        %v2993 = vld [vmem:[#allocation13 + $0x24] sm:$0xf]
        %v2994 = vld [vmem:[#allocation13 + $0x30] sm:$0xf]
        %v2995 = vld [vmem:[#allocation13 + $0x3c] sm:$0xf]
        %v2996 = vld [vmem:[#allocation13 + $0x48] sm:$0xf]
        %v2997 = vld [vmem:[#allocation13 + $0x54] sm:$0xf]
        %v2998 = vld [vmem:[#allocation13 + $0x60] sm:$0xf]
        %v2999 = vld [vmem:[#allocation13 + $0x6c] sm:$0xf]
        %v3000 = vld [vmem:[#allocation13 + $0x78] sm:$0xf]
        %v3001 = vld [vmem:[#allocation13 + $0x84] sm:$0xf]
        %v3002 = vld [vmem:[#allocation13 + $0x90] sm:$0xf]
        %v3003 = vld [vmem:[#allocation13 + $0x9c] sm:$0xf]
        %v3004 = vld [vmem:[#allocation13 + $0xa8] sm:$0xf]
        %v3005 = vld [vmem:[#allocation13 + $0xb4] sm:$0xf]
        %v3006 = vpack.c.bf16 %v2987, %v2986
        %v3007 = vpack.c.bf16 %v2989, %v2988
        %v3008 = vlaneseq
        %v3009 = vshrl.u32 %v3008, 7
        %v3010 = vsub.s32 2, %v3009
        %v3011 = vrot.slane %v592, %v3010
        %v3028 = vunpack.c.l.b16 %v2990
        %v3029 = vunpack.c.l.b16 %v2991
        %v3030 = vunpack.c.l.b16 %v2992
        %v3031 = vunpack.c.l.b16 %v2993
        %v3032 = vunpack.c.l.b16 %v2994
        %v3033 = vunpack.c.l.b16 %v2995
        %v3034 = vunpack.c.l.b16 %v2996
        %v3035 = vunpack.c.l.b16 %v2997
        %v3036 = vunpack.c.l.b16 %v2998
        %v3037 = vunpack.c.l.b16 %v2999
        %v3038 = vunpack.c.l.b16 %v3000
        %v3039 = vunpack.c.l.b16 %v3001
        %v3040 = vunpack.c.l.b16 %v3002
        %v3041 = vunpack.c.l.b16 %v3003
        %v3042 = vunpack.c.l.b16 %v3004
        %v3043 = vunpack.c.l.b16 %v3005
        %v3044 = vpack.c.b16 %v3029, %v3028
        %v3045 = vpack.c.b16 %v3031, %v3030
        %v3046 = vpack.c.b16 %v3033, %v3032
        %v3047 = vpack.c.b16 %v3035, %v3034
        %v3048 = vpack.c.b16 %v3037, %v3036
        %v3049 = vpack.c.b16 %v3039, %v3038
        %v3050 = vpack.c.b16 %v3041, %v3040
        %v3051 = vpack.c.b16 %v3043, %v3042
        %3060 = vmatprep.subr.bf16.mxu0 0
        %3061 = vmatpush1.bf16.msra.mxu0 %v3044
        %3062 = vmatprep.subr.bf16.mxu0 0
        %3063 = vmatpush1.bf16.msra.mxu0 %v3045
        %3064 = vmatprep.subr.bf16.mxu0 0
        %3065 = vmatpush1.bf16.msra.mxu0 %v3046
        %3066 = vmatprep.subr.bf16.mxu0 0
        %3067 = vmatpush1.bf16.msra.mxu0 %v3047
        %3068 = vmatprep.subr.bf16.mxu0 0
        %3069 = vmatpush1.bf16.msra.mxu0 %v3048
        %3070 = vmatprep.subr.bf16.mxu0 0
        %3071 = vmatpush1.bf16.msra.mxu0 %v3049
        %3072 = vmatprep.subr.bf16.mxu0 0
        %3073 = vmatpush1.bf16.msra.mxu0 %v3050
        %3074 = vmatprep.subr.bf16.mxu0 0
        %3075 = vmatpush1.bf16.msra.mxu0 %v3051
        %3076 = vmatprep.subr.bf16.mxu0 0
        %3077 = vmatpush1.bf16.msra.mxu0 0
        %3078 = vmatprep.subr.bf16.mxu0 0
        %3079 = vmatpush1.bf16.msra.mxu0 0
        %3080 = vmatprep.subr.bf16.mxu0 0
        %3081 = vmatpush1.bf16.msra.mxu0 0
        %3082 = vmatprep.subr.bf16.mxu0 0
        %3083 = vmatpush1.bf16.msra.mxu0 0
        %3084 = vmatprep.subr.bf16.mxu0 0
        %3085 = vmatpush1.bf16.msra.mxu0 0
        %3086 = vmatprep.subr.bf16.mxu0 0
        %3087 = vmatpush1.bf16.msra.mxu0 0
        %3088 = vmatprep.subr.bf16.mxu0 0
        %3089 = vmatpush1.bf16.msra.mxu0 0
        %3090 = vmatprep.subr.bf16.mxu0 0
        %3091 = vmatpush1.bf16.msra.mxu0 0
        %3092 = vmatprep.mubr.bf16.mxu0 0
        %3093 = vmatmul.mubr.bf16.gmra.mrb[0].mxu0 %v3006
        %v3094 = vpop.f32.mrb[0].mxu0
        %v3095 = vadd.f32 %v3011, %v3094
        %v3096 = vpop.f32.mrb[0].mxu0
        %v3097 = vpop.f32.mrb[0].mxu0
        %v3098 = vadd.f32 %v3011, %v3097
        %v3099 = vpop.f32.mrb[0].mxu0
        %3100 = vmatprep.mubr.bf16.mxu0 0
        %3101 = vmatmul.mubr.bf16.gmra.mrb[0].mxu0 %v3007
        %v3102 = vpop.f32.mrb[0].mxu0
        %v3103 = vadd.f32 %v3011, %v3102
        %v3104 = vpop.f32.mrb[0].mxu0
        %v3105 = vpop.f32.mrb[0].mxu0
        %v3106 = vadd.f32 %v3011, %v3105
        %v3107 = vpop.f32.mrb[0].mxu0
        %3108 = vdwg.mxu0
        %v3109 = vld [vmem:[#allocation13 + $0x4] sm:$0xf]
        %v3110 = vld [vmem:[#allocation13 + $0x10] sm:$0xf]
        %v3111 = vld [vmem:[#allocation13 + $0x1c] sm:$0xf]
        %v3112 = vld [vmem:[#allocation13 + $0x28] sm:$0xf]
        %v3113 = vld [vmem:[#allocation13 + $0x34] sm:$0xf]
        %v3114 = vld [vmem:[#allocation13 + $0x40] sm:$0xf]
        %v3115 = vld [vmem:[#allocation13 + $0x4c] sm:$0xf]
        %v3116 = vld [vmem:[#allocation13 + $0x58] sm:$0xf]
        %v3117 = vld [vmem:[#allocation13 + $0x64] sm:$0xf]
        %v3118 = vld [vmem:[#allocation13 + $0x70] sm:$0xf]
        %v3119 = vld [vmem:[#allocation13 + $0x7c] sm:$0xf]
        %v3120 = vld [vmem:[#allocation13 + $0x88] sm:$0xf]
        %v3121 = vld [vmem:[#allocation13 + $0x94] sm:$0xf]
        %v3122 = vld [vmem:[#allocation13 + $0xa0] sm:$0xf]
        %v3123 = vld [vmem:[#allocation13 + $0xac] sm:$0xf]
        %v3124 = vld [vmem:[#allocation13 + $0xb8] sm:$0xf]
        %v3125 = vlaneseq
        %v3126 = vshrl.u32 %v3125, 7
        %v3127 = vsub.s32 3, %v3126
        %v3128 = vrot.slane %v592, %v3127
        %v3137 = vunpack.c.l.b16 %v601
        %v3138 = vunpack.c.l.b16 %v602
        %v3139 = vunpack.c.l.b16 %v603
        %v3140 = vunpack.c.l.b16 %v604
        %v3141 = vunpack.c.l.b16 %v605
        %v3142 = vunpack.c.l.b16 %v606
        %v3143 = vunpack.c.l.b16 %v607
        %v3144 = vunpack.c.l.b16 %v608
        %v3145 = vpack.c.b16 %v3138, %v3137
        %v3146 = vpack.c.b16 %v3140, %v3139
        %v3147 = vpack.c.b16 %v3142, %v3141
        %v3148 = vpack.c.b16 %v3144, %v3143
        %v3169 = vunpack.c.l.b16 %v3109
        %v3170 = vunpack.c.l.b16 %v3110
        %v3171 = vunpack.c.l.b16 %v3111
        %v3172 = vunpack.c.l.b16 %v3112
        %v3173 = vunpack.c.l.b16 %v3113
        %v3174 = vunpack.c.l.b16 %v3114
        %v3175 = vunpack.c.l.b16 %v3115
        %v3176 = vunpack.c.l.b16 %v3116
        %v3177 = vunpack.c.l.b16 %v3117
        %v3178 = vunpack.c.l.b16 %v3118
        %v3179 = vunpack.c.l.b16 %v3119
        %v3180 = vunpack.c.l.b16 %v3120
        %v3181 = vunpack.c.l.b16 %v3121
        %v3182 = vunpack.c.l.b16 %v3122
        %v3183 = vunpack.c.l.b16 %v3123
        %v3184 = vunpack.c.l.b16 %v3124
        %v3185 = vpack.c.b16 %v3170, %v3169
        %v3186 = vpack.c.b16 %v3172, %v3171
        %v3187 = vpack.c.b16 %v3174, %v3173
        %v3188 = vpack.c.b16 %v3176, %v3175
        %v3189 = vpack.c.b16 %v3178, %v3177
        %v3190 = vpack.c.b16 %v3180, %v3179
        %v3191 = vpack.c.b16 %v3182, %v3181
        %v3192 = vpack.c.b16 %v3184, %v3183
        %3201 = vmatprep.subr.bf16.mxu0 0
        %3202 = vmatpush1.bf16.msra.mxu0 %v3185
        %3203 = vmatprep.subr.bf16.mxu0 0
        %3204 = vmatpush1.bf16.msra.mxu0 %v3186
        %3205 = vmatprep.subr.bf16.mxu0 0
        %3206 = vmatpush1.bf16.msra.mxu0 %v3187
        %3207 = vmatprep.subr.bf16.mxu0 0
        %3208 = vmatpush1.bf16.msra.mxu0 %v3188
        %3209 = vmatprep.subr.bf16.mxu0 0
        %3210 = vmatpush1.bf16.msra.mxu0 %v3189
        %3211 = vmatprep.subr.bf16.mxu0 0
        %3212 = vmatpush1.bf16.msra.mxu0 %v3190
        %3213 = vmatprep.subr.bf16.mxu0 0
        %3214 = vmatpush1.bf16.msra.mxu0 %v3191
        %3215 = vmatprep.subr.bf16.mxu0 0
        %3216 = vmatpush1.bf16.msra.mxu0 %v3192
        %3217 = vmatprep.subr.bf16.mxu0 0
        %3218 = vmatpush1.bf16.msra.mxu0 0
        %3219 = vmatprep.subr.bf16.mxu0 0
        %3220 = vmatpush1.bf16.msra.mxu0 0
        %3221 = vmatprep.subr.bf16.mxu0 0
        %3222 = vmatpush1.bf16.msra.mxu0 0
        %3223 = vmatprep.subr.bf16.mxu0 0
        %3224 = vmatpush1.bf16.msra.mxu0 0
        %3225 = vmatprep.subr.bf16.mxu0 0
        %3226 = vmatpush1.bf16.msra.mxu0 0
        %3227 = vmatprep.subr.bf16.mxu0 0
        %3228 = vmatpush1.bf16.msra.mxu0 0
        %3229 = vmatprep.subr.bf16.mxu0 0
        %3230 = vmatpush1.bf16.msra.mxu0 0
        %3231 = vmatprep.subr.bf16.mxu0 0
        %3232 = vmatpush1.bf16.msra.mxu0 0
        %3233 = vmatprep.mubr.bf16.mxu0 0
        %3234 = vmatmul.mubr.bf16.gmra.mrb[0].mxu0 %v3145
        %v3235 = vpop.f32.mrb[0].mxu0
        %v3236 = vadd.f32 %v3128, %v3235
        %v3237 = vpop.f32.mrb[0].mxu0
        %v3238 = vpop.f32.mrb[0].mxu0
        %v3239 = vadd.f32 %v3128, %v3238
        %v3240 = vpop.f32.mrb[0].mxu0
        %3241 = vmatprep.mubr.bf16.mxu0 0
        %3242 = vmatmul.mubr.bf16.gmra.mrb[0].mxu0 %v3146
        %v3243 = vpop.f32.mrb[0].mxu0
        %v3244 = vadd.f32 %v3128, %v3243
        %v3245 = vpop.f32.mrb[0].mxu0
        %v3246 = vpop.f32.mrb[0].mxu0
        %v3247 = vadd.f32 %v3128, %v3246
        %v3248 = vpop.f32.mrb[0].mxu0
        %3249 = vmatprep.mubr.bf16.mxu0 0
        %3250 = vmatmul.mubr.bf16.gmra.mrb[0].mxu0 %v3147
        %v3251 = vpop.f32.mrb[0].mxu0
        %v3252 = vadd.f32 %v3128, %v3251
        %v3253 = vpop.f32.mrb[0].mxu0
        %v3254 = vpop.f32.mrb[0].mxu0
        %v3255 = vadd.f32 %v3128, %v3254
        %v3256 = vpop.f32.mrb[0].mxu0
        %3257 = vmatprep.mubr.bf16.mxu0 0
        %3258 = vmatmul.mubr.bf16.gmra.mrb[0].mxu0 %v3148
        %v3259 = vpop.f32.mrb[0].mxu0
        %v3260 = vadd.f32 %v3128, %v3259
        %v3261 = vpop.f32.mrb[0].mxu0
        %v3262 = vpop.f32.mrb[0].mxu0
        %v3263 = vadd.f32 %v3128, %v3262
        %v3264 = vpop.f32.mrb[0].mxu0
        %3265 = vdwg.mxu0
        %v3266 = vld [vmem:[#allocation13 + $0x8] sm:$0xf]
        %v3267 = vld [vmem:[#allocation13 + $0x14] sm:$0xf]
        %v3268 = vld [vmem:[#allocation13 + $0x20] sm:$0xf]
        %v3269 = vld [vmem:[#allocation13 + $0x2c] sm:$0xf]
        %v3270 = vld [vmem:[#allocation13 + $0x38] sm:$0xf]
        %v3271 = vld [vmem:[#allocation13 + $0x44] sm:$0xf]
        %v3272 = vld [vmem:[#allocation13 + $0x50] sm:$0xf]
        %v3273 = vld [vmem:[#allocation13 + $0x5c] sm:$0xf]
        %v3274 = vld [vmem:[#allocation13 + $0x68] sm:$0xf]
        %v3275 = vld [vmem:[#allocation13 + $0x74] sm:$0xf]
        %v3276 = vld [vmem:[#allocation13 + $0x80] sm:$0xf]
        %v3277 = vld [vmem:[#allocation13 + $0x8c] sm:$0xf]
        %v3278 = vld [vmem:[#allocation13 + $0x98] sm:$0xf]
        %v3279 = vld [vmem:[#allocation13 + $0xa4] sm:$0xf]
        %v3280 = vld [vmem:[#allocation13 + $0xb0] sm:$0xf]
        %v3281 = vld [vmem:[#allocation13 + $0xbc] sm:$0xf]
        %v3282 = vlaneseq
        %v3283 = vshrl.u32 %v3282, 7
        %v3284 = vsub.s32 4, %v3283
        %v3285 = vrot.slane %v592, %v3284
        %v3294 = vunpack.c.l.b16 %v609
        %v3295 = vunpack.c.l.b16 %v610
        %v3296 = vunpack.c.l.b16 %v611
        %v3297 = vunpack.c.l.b16 %v612
        %v3298 = vunpack.c.l.b16 %v613
        %v3299 = vunpack.c.l.b16 %v614
        %v3300 = vunpack.c.l.b16 %v615
        %v3301 = vunpack.c.l.b16 %v616
        %v3302 = vpack.c.b16 %v3295, %v3294
        %v3303 = vpack.c.b16 %v3297, %v3296
        %v3304 = vpack.c.b16 %v3299, %v3298
        %v3305 = vpack.c.b16 %v3301, %v3300
        %v3326 = vunpack.c.l.b16 %v3266
        %v3327 = vunpack.c.l.b16 %v3267
        %v3328 = vunpack.c.l.b16 %v3268
        %v3329 = vunpack.c.l.b16 %v3269
        %v3330 = vunpack.c.l.b16 %v3270
        %v3331 = vunpack.c.l.b16 %v3271
        %v3332 = vunpack.c.l.b16 %v3272
        %v3333 = vunpack.c.l.b16 %v3273
        %v3334 = vunpack.c.l.b16 %v3274
        %v3335 = vunpack.c.l.b16 %v3275
        %v3336 = vunpack.c.l.b16 %v3276
        %v3337 = vunpack.c.l.b16 %v3277
        %v3338 = vunpack.c.l.b16 %v3278
        %v3339 = vunpack.c.l.b16 %v3279
        %v3340 = vunpack.c.l.b16 %v3280
        %v3341 = vunpack.c.l.b16 %v3281
        %v3342 = vpack.c.b16 %v3327, %v3326
        %v3343 = vpack.c.b16 %v3329, %v3328
        %v3344 = vpack.c.b16 %v3331, %v3330
        %v3345 = vpack.c.b16 %v3333, %v3332
        %v3346 = vpack.c.b16 %v3335, %v3334
        %v3347 = vpack.c.b16 %v3337, %v3336
        %v3348 = vpack.c.b16 %v3339, %v3338
        %v3349 = vpack.c.b16 %v3341, %v3340
        %3358 = vmatprep.subr.bf16.mxu0 0
        %3359 = vmatpush1.bf16.msra.mxu0 %v3342
        %3360 = vmatprep.subr.bf16.mxu0 0
        %3361 = vmatpush1.bf16.msra.mxu0 %v3343
        %3362 = vmatprep.subr.bf16.mxu0 0
        %3363 = vmatpush1.bf16.msra.mxu0 %v3344
        %3364 = vmatprep.subr.bf16.mxu0 0
        %3365 = vmatpush1.bf16.msra.mxu0 %v3345
        %3366 = vmatprep.subr.bf16.mxu0 0
        %3367 = vmatpush1.bf16.msra.mxu0 %v3346
        %3368 = vmatprep.subr.bf16.mxu0 0
        %3369 = vmatpush1.bf16.msra.mxu0 %v3347
        %3370 = vmatprep.subr.bf16.mxu0 0
        %3371 = vmatpush1.bf16.msra.mxu0 %v3348
        %3372 = vmatprep.subr.bf16.mxu0 0
        %3373 = vmatpush1.bf16.msra.mxu0 %v3349
        %3374 = vmatprep.subr.bf16.mxu0 0
        %3375 = vmatpush1.bf16.msra.mxu0 0
        %3376 = vmatprep.subr.bf16.mxu0 0
        %3377 = vmatpush1.bf16.msra.mxu0 0
        %3378 = vmatprep.subr.bf16.mxu0 0
        %3379 = vmatpush1.bf16.msra.mxu0 0
        %3380 = vmatprep.subr.bf16.mxu0 0
        %3381 = vmatpush1.bf16.msra.mxu0 0
        %3382 = vmatprep.subr.bf16.mxu0 0
        %3383 = vmatpush1.bf16.msra.mxu0 0
        %3384 = vmatprep.subr.bf16.mxu0 0
        %3385 = vmatpush1.bf16.msra.mxu0 0
        %3386 = vmatprep.subr.bf16.mxu0 0
        %3387 = vmatpush1.bf16.msra.mxu0 0
        %3388 = vmatprep.subr.bf16.mxu0 0
        %3389 = vmatpush1.bf16.msra.mxu0 0
        %3390 = vmatprep.mubr.bf16.mxu0 0
        %3391 = vmatmul.mubr.bf16.gmra.mrb[0].mxu0 %v3302
        %v3392 = vpop.f32.mrb[0].mxu0
        %v3393 = vadd.f32 %v3285, %v3392
        %v3394 = vpop.f32.mrb[0].mxu0
        %v3395 = vpop.f32.mrb[0].mxu0
        %v3396 = vadd.f32 %v3285, %v3395
        %v3397 = vpop.f32.mrb[0].mxu0
        %3398 = vmatprep.mubr.bf16.mxu0 0
        %3399 = vmatmul.mubr.bf16.gmra.mrb[0].mxu0 %v3303
        %v3400 = vpop.f32.mrb[0].mxu0
        %v3401 = vadd.f32 %v3285, %v3400
        %v3402 = vpop.f32.mrb[0].mxu0
        %v3403 = vpop.f32.mrb[0].mxu0
        %v3404 = vadd.f32 %v3285, %v3403
        %v3405 = vpop.f32.mrb[0].mxu0
        %3406 = vmatprep.mubr.bf16.mxu0 0
        %3407 = vmatmul.mubr.bf16.gmra.mrb[0].mxu0 %v3304
        %v3408 = vpop.f32.mrb[0].mxu0
        %v3409 = vadd.f32 %v3285, %v3408
        %v3410 = vpop.f32.mrb[0].mxu0
        %v3411 = vpop.f32.mrb[0].mxu0
        %v3412 = vadd.f32 %v3285, %v3411
        %v3413 = vpop.f32.mrb[0].mxu0
        %3414 = vmatprep.mubr.bf16.mxu0 0
        %3415 = vmatmul.mubr.bf16.gmra.mrb[0].mxu0 %v3305
        %v3416 = vpop.f32.mrb[0].mxu0
        %v3417 = vadd.f32 %v3285, %v3416
        %v3418 = vpop.f32.mrb[0].mxu0
        %v3419 = vpop.f32.mrb[0].mxu0
        %v3420 = vadd.f32 %v3285, %v3419
        %v3421 = vpop.f32.mrb[0].mxu0
        %3422 = vdwg.mxu0
        %v3423 = vmul.f32 %v3095, 0.17677669
        %v3424 = vmul.f32 %v3098, 0.17677669
        %v3425 = vmul.f32 %v3103, 0.17677669
        %v3426 = vmul.f32 %v3106, 0.17677669
        %v3427 = vpack.c.bf16 %v3424, %v3423
        %v3428 = vpack.c.bf16 %v3426, %v3425
        %v3431 = vunpack.c.l.b16 %v3427
        %v3432 = vunpack.c.h.b16 %v3427
        %v3433 = vunpack.c.l.b16 %v3428
        %v3434 = vunpack.c.h.b16 %v3428
        %v3435 = vpack.c.b16 %v3431, %v3431
        %v3436 = vpack.c.b16 %v3432, %v3432
        %v3437 = vpack.c.b16 %v3433, %v3433
        %v3438 = vpack.c.b16 %v3434, %v3434
        %v3439 = vpack.c.bf16 %v3239, %v3236
        %v3440 = vpack.c.bf16 %v3247, %v3244
        %v3441 = vpack.c.bf16 %v3255, %v3252
        %v3442 = vpack.c.bf16 %v3263, %v3260
        %v3443 = vpack.c.bf16 %v3396, %v3393
        %v3444 = vpack.c.bf16 %v3404, %v3401
        %v3445 = vpack.c.bf16 %v3412, %v3409
        %v3446 = vpack.c.bf16 %v3420, %v3417
        %v3448 = vsel %vm1006, %v3435, 0
        %v3451 = vsel %vm1006, %v3439, 0
        %3453 = vmatprep.subr.bf16.mxu0 0
        %3454 = vmatpush1.bf16.xpose.msra.mxu0 %v3451
        %3455 = vmatprep.subr.bf16.mxu0 0
        %3456 = vmatpush1.bf16.xpose.msra.mxu0 0
        %3457 = vmatprep.subr.bf16.mxu0 0
        %3458 = vmatpush1.bf16.xpose.msra.mxu0 0
        %3459 = vmatprep.subr.bf16.mxu0 0
        %3460 = vmatpush1.bf16.xpose.msra.mxu0 0
        %3461 = vmatprep.subr.bf16.mxu0 0
        %3462 = vmatpush1.bf16.xpose.msra.mxu0 0
        %3463 = vmatprep.subr.bf16.mxu0 0
        %3464 = vmatpush1.bf16.xpose.msra.mxu0 0
        %3465 = vmatprep.subr.bf16.mxu0 0
        %3466 = vmatpush1.bf16.xpose.msra.mxu0 0
        %3467 = vmatprep.subr.bf16.mxu0 0
        %3468 = vmatpush1.bf16.xpose.msra.mxu0 0
        %3469 = vmatprep.subr.bf16.mxu0 0
        %3470 = vmatpush1.bf16.xpose.msra.mxu0 0
        %3471 = vmatprep.subr.bf16.mxu0 0
        %3472 = vmatpush1.bf16.xpose.msra.mxu0 0
        %3473 = vmatprep.subr.bf16.mxu0 0
        %3474 = vmatpush1.bf16.xpose.msra.mxu0 0
        %3475 = vmatprep.subr.bf16.mxu0 0
        %3476 = vmatpush1.bf16.xpose.msra.mxu0 0
        %3477 = vmatprep.subr.bf16.mxu0 0
        %3478 = vmatpush1.bf16.xpose.msra.mxu0 0
        %3479 = vmatprep.subr.bf16.mxu0 0
        %3480 = vmatpush1.bf16.xpose.msra.mxu0 0
        %3481 = vmatprep.subr.bf16.mxu0 0
        %3482 = vmatpush1.bf16.xpose.msra.mxu0 0
        %3483 = vmatprep.subr.bf16.mxu0 0
        %3484 = vmatpush1.bf16.xpose.msra.mxu0 0
        %3485 = vmatprep.mubr.bf16.mxu0 0
        %3486 = vmatmul.mubr.bf16.gmra.mrb[0].mxu0 %v3448
        %v3487 = vpop.f32.mrb[0].mxu0
        %v3488 = vadd.f32 0.0, %v3487
        %v3489 = vpop.f32.mrb[0].mxu0
        %v3490 = vpop.f32.mrb[0].mxu0
        %v3491 = vpop.f32.mrb[0].mxu0
        %3492 = vdwg.mxu0
        %v3494 = vsel %vm1006, %v3436, 0
        %v3497 = vsel %vm1006, %v3440, 0
        %3499 = vmatprep.subr.bf16.mxu0 0
        %3500 = vmatpush1.bf16.xpose.msra.mxu0 %v3497
        %3501 = vmatprep.subr.bf16.mxu0 0
        %3502 = vmatpush1.bf16.xpose.msra.mxu0 0
        %3503 = vmatprep.subr.bf16.mxu0 0
        %3504 = vmatpush1.bf16.xpose.msra.mxu0 0
        %3505 = vmatprep.subr.bf16.mxu0 0
        %3506 = vmatpush1.bf16.xpose.msra.mxu0 0
        %3507 = vmatprep.subr.bf16.mxu0 0
        %3508 = vmatpush1.bf16.xpose.msra.mxu0 0
        %3509 = vmatprep.subr.bf16.mxu0 0
        %3510 = vmatpush1.bf16.xpose.msra.mxu0 0
        %3511 = vmatprep.subr.bf16.mxu0 0
        %3512 = vmatpush1.bf16.xpose.msra.mxu0 0
        %3513 = vmatprep.subr.bf16.mxu0 0
        %3514 = vmatpush1.bf16.xpose.msra.mxu0 0
        %3515 = vmatprep.subr.bf16.mxu0 0
        %3516 = vmatpush1.bf16.xpose.msra.mxu0 0
        %3517 = vmatprep.subr.bf16.mxu0 0
        %3518 = vmatpush1.bf16.xpose.msra.mxu0 0
        %3519 = vmatprep.subr.bf16.mxu0 0
        %3520 = vmatpush1.bf16.xpose.msra.mxu0 0
        %3521 = vmatprep.subr.bf16.mxu0 0
        %3522 = vmatpush1.bf16.xpose.msra.mxu0 0
        %3523 = vmatprep.subr.bf16.mxu0 0
        %3524 = vmatpush1.bf16.xpose.msra.mxu0 0
        %3525 = vmatprep.subr.bf16.mxu0 0
        %3526 = vmatpush1.bf16.xpose.msra.mxu0 0
        %3527 = vmatprep.subr.bf16.mxu0 0
        %3528 = vmatpush1.bf16.xpose.msra.mxu0 0
        %3529 = vmatprep.subr.bf16.mxu0 0
        %3530 = vmatpush1.bf16.xpose.msra.mxu0 0
        %3531 = vmatprep.mubr.bf16.mxu0 0
        %3532 = vmatmul.mubr.bf16.gmra.mrb[0].mxu0 %v3494
        %v3533 = vpop.f32.mrb[0].mxu0
        %v3534 = vadd.f32 0.0, %v3533
        %v3535 = vpop.f32.mrb[0].mxu0
        %v3536 = vpop.f32.mrb[0].mxu0
        %v3537 = vpop.f32.mrb[0].mxu0
        %3538 = vdwg.mxu0
        %v3540 = vsel %vm1006, %v3437, 0
        %v3543 = vsel %vm1006, %v3441, 0
        %3545 = vmatprep.subr.bf16.mxu0 0
        %3546 = vmatpush1.bf16.xpose.msra.mxu0 %v3543
        %3547 = vmatprep.subr.bf16.mxu0 0
        %3548 = vmatpush1.bf16.xpose.msra.mxu0 0
        %3549 = vmatprep.subr.bf16.mxu0 0
        %3550 = vmatpush1.bf16.xpose.msra.mxu0 0
        %3551 = vmatprep.subr.bf16.mxu0 0
        %3552 = vmatpush1.bf16.xpose.msra.mxu0 0
        %3553 = vmatprep.subr.bf16.mxu0 0
        %3554 = vmatpush1.bf16.xpose.msra.mxu0 0
        %3555 = vmatprep.subr.bf16.mxu0 0
        %3556 = vmatpush1.bf16.xpose.msra.mxu0 0
        %3557 = vmatprep.subr.bf16.mxu0 0
        %3558 = vmatpush1.bf16.xpose.msra.mxu0 0
        %3559 = vmatprep.subr.bf16.mxu0 0
        %3560 = vmatpush1.bf16.xpose.msra.mxu0 0
        %3561 = vmatprep.subr.bf16.mxu0 0
        %3562 = vmatpush1.bf16.xpose.msra.mxu0 0
        %3563 = vmatprep.subr.bf16.mxu0 0
        %3564 = vmatpush1.bf16.xpose.msra.mxu0 0
        %3565 = vmatprep.subr.bf16.mxu0 0
        %3566 = vmatpush1.bf16.xpose.msra.mxu0 0
        %3567 = vmatprep.subr.bf16.mxu0 0
        %3568 = vmatpush1.bf16.xpose.msra.mxu0 0
        %3569 = vmatprep.subr.bf16.mxu0 0
        %3570 = vmatpush1.bf16.xpose.msra.mxu0 0
        %3571 = vmatprep.subr.bf16.mxu0 0
        %3572 = vmatpush1.bf16.xpose.msra.mxu0 0
        %3573 = vmatprep.subr.bf16.mxu0 0
        %3574 = vmatpush1.bf16.xpose.msra.mxu0 0
        %3575 = vmatprep.subr.bf16.mxu0 0
        %3576 = vmatpush1.bf16.xpose.msra.mxu0 0
        %3577 = vmatprep.mubr.bf16.mxu0 0
        %3578 = vmatmul.mubr.bf16.gmra.mrb[0].mxu0 %v3540
        %v3579 = vpop.f32.mrb[0].mxu0
        %v3580 = vadd.f32 0.0, %v3579
        %v3581 = vpop.f32.mrb[0].mxu0
        %v3582 = vpop.f32.mrb[0].mxu0
        %v3583 = vpop.f32.mrb[0].mxu0
        %3584 = vdwg.mxu0
        %v3586 = vsel %vm1006, %v3438, 0
        %v3589 = vsel %vm1006, %v3442, 0
        %3591 = vmatprep.subr.bf16.mxu0 0
        %3592 = vmatpush1.bf16.xpose.msra.mxu0 %v3589
        %3593 = vmatprep.subr.bf16.mxu0 0
        %3594 = vmatpush1.bf16.xpose.msra.mxu0 0
        %3595 = vmatprep.subr.bf16.mxu0 0
        %3596 = vmatpush1.bf16.xpose.msra.mxu0 0
        %3597 = vmatprep.subr.bf16.mxu0 0
        %3598 = vmatpush1.bf16.xpose.msra.mxu0 0
        %3599 = vmatprep.subr.bf16.mxu0 0
        %3600 = vmatpush1.bf16.xpose.msra.mxu0 0
        %3601 = vmatprep.subr.bf16.mxu0 0
        %3602 = vmatpush1.bf16.xpose.msra.mxu0 0
        %3603 = vmatprep.subr.bf16.mxu0 0
        %3604 = vmatpush1.bf16.xpose.msra.mxu0 0
        %3605 = vmatprep.subr.bf16.mxu0 0
        %3606 = vmatpush1.bf16.xpose.msra.mxu0 0
        %3607 = vmatprep.subr.bf16.mxu0 0
        %3608 = vmatpush1.bf16.xpose.msra.mxu0 0
        %3609 = vmatprep.subr.bf16.mxu0 0
        %3610 = vmatpush1.bf16.xpose.msra.mxu0 0
        %3611 = vmatprep.subr.bf16.mxu0 0
        %3612 = vmatpush1.bf16.xpose.msra.mxu0 0
        %3613 = vmatprep.subr.bf16.mxu0 0
        %3614 = vmatpush1.bf16.xpose.msra.mxu0 0
        %3615 = vmatprep.subr.bf16.mxu0 0
        %3616 = vmatpush1.bf16.xpose.msra.mxu0 0
        %3617 = vmatprep.subr.bf16.mxu0 0
        %3618 = vmatpush1.bf16.xpose.msra.mxu0 0
        %3619 = vmatprep.subr.bf16.mxu0 0
        %3620 = vmatpush1.bf16.xpose.msra.mxu0 0
        %3621 = vmatprep.subr.bf16.mxu0 0
        %3622 = vmatpush1.bf16.xpose.msra.mxu0 0
        %3623 = vmatprep.mubr.bf16.mxu0 0
        %3624 = vmatmul.mubr.bf16.gmra.mrb[0].mxu0 %v3586
        %v3625 = vpop.f32.mrb[0].mxu0
        %v3626 = vadd.f32 0.0, %v3625
        %v3627 = vpop.f32.mrb[0].mxu0
        %v3628 = vpop.f32.mrb[0].mxu0
        %v3629 = vpop.f32.mrb[0].mxu0
        %3630 = vdwg.mxu0
        %vm3631 = vcmask 130048
        %v3632 = vsel %vm3631, %v3488, -inf
        %3633 = vmax.xlane.f32.xlu0 %v3632
        %v3634 = vpop.xlane.xlu0 %3633
        %v3635 = vsel %vm3631, %v3534, -inf
        %3636 = vmax.xlane.f32.xlu0 %v3635
        %v3637 = vpop.xlane.xlu0 %3636
        %v3638 = vsel %vm3631, %v3580, -inf
        %3639 = vmax.xlane.f32.xlu0 %v3638
        %v3640 = vpop.xlane.xlu0 %3639
        %v3641 = vsel %vm3631, %v3626, -inf
        %3642 = vmax.xlane.f32.xlu0 %v3641
        %v3643 = vpop.xlane.xlu0 %3642
        %v3644 = vsub.f32 %v3488, %v3634
        %v3645 = vsub.f32 %v3534, %v3637
        %v3646 = vsub.f32 %v3580, %v3640
        %v3647 = vsub.f32 %v3626, %v3643
        %v3648 = vmul.f32 %v3644, 1.442695
        %v3649 = vpow.pop %v3648
        %v3650 = vmul.f32 %v3645, 1.442695
        %v3651 = vpow.pop %v3650
        %v3652 = vmul.f32 %v3646, 1.442695
        %v3653 = vpow.pop %v3652
        %v3654 = vmul.f32 %v3647, 1.442695
        %v3655 = vpow.pop %v3654
        %v3656 = vsel %vm3631, %v3649, 0.0
        %3657 = vadd.xlane.f32.xlu0 %v3656
        %v3658 = vpop.xlane.xlu0 %3657
        %v3659 = vsel %vm3631, %v3651, 0.0
        %3660 = vadd.xlane.f32.xlu0 %v3659
        %v3661 = vpop.xlane.xlu0 %3660
        %v3662 = vsel %vm3631, %v3653, 0.0
        %3663 = vadd.xlane.f32.xlu0 %v3662
        %v3664 = vpop.xlane.xlu0 %3663
        %v3665 = vsel %vm3631, %v3655, 0.0
        %3666 = vadd.xlane.f32.xlu0 %v3665
        %v3667 = vpop.xlane.xlu0 %3666
        %v3668 = vrcp.pop %v3658
        %v3669 = vrcp.pop %v3661
        %v3670 = vrcp.pop %v3664
        %v3671 = vrcp.pop %v3667
        %v3672 = vmul.f32 %v3649, %v3668
        %v3673 = vmul.f32 %v3651, %v3669
        %v3674 = vmul.f32 %v3653, %v3670
        %v3675 = vmul.f32 %v3655, %v3671
        %v3676 = vpack.c.bf16 %v3672, %v3672
        %v3677 = vpack.c.bf16 %v3673, %v3673
        %v3678 = vpack.c.bf16 %v3674, %v3674
        %v3679 = vpack.c.bf16 %v3675, %v3675
        %v3681 = vsel %vm3631, %v3676, 0
        %3683 = vmatprep.subr.bf16.mxu0 0
        %3684 = vmatpush1.bf16.msra.mxu0 %v3443
        %3685 = vmatprep.subr.bf16.mxu0 0
        %3686 = vmatpush1.bf16.msra.mxu0 0
        %3687 = vmatprep.subr.bf16.mxu0 0
        %3688 = vmatpush1.bf16.msra.mxu0 0
        %3689 = vmatprep.subr.bf16.mxu0 0
        %3690 = vmatpush1.bf16.msra.mxu0 0
        %3691 = vmatprep.subr.bf16.mxu0 0
        %3692 = vmatpush1.bf16.msra.mxu0 0
        %3693 = vmatprep.subr.bf16.mxu0 0
        %3694 = vmatpush1.bf16.msra.mxu0 0
        %3695 = vmatprep.subr.bf16.mxu0 0
        %3696 = vmatpush1.bf16.msra.mxu0 0
        %3697 = vmatprep.subr.bf16.mxu0 0
        %3698 = vmatpush1.bf16.msra.mxu0 0
        %3699 = vmatprep.subr.bf16.mxu0 0
        %3700 = vmatpush1.bf16.msra.mxu0 0
        %3701 = vmatprep.subr.bf16.mxu0 0
        %3702 = vmatpush1.bf16.msra.mxu0 0
        %3703 = vmatprep.subr.bf16.mxu0 0
        %3704 = vmatpush1.bf16.msra.mxu0 0
        %3705 = vmatprep.subr.bf16.mxu0 0
        %3706 = vmatpush1.bf16.msra.mxu0 0
        %3707 = vmatprep.subr.bf16.mxu0 0
        %3708 = vmatpush1.bf16.msra.mxu0 0
        %3709 = vmatprep.subr.bf16.mxu0 0
        %3710 = vmatpush1.bf16.msra.mxu0 0
        %3711 = vmatprep.subr.bf16.mxu0 0
        %3712 = vmatpush1.bf16.msra.mxu0 0
        %3713 = vmatprep.subr.bf16.mxu0 0
        %3714 = vmatpush1.bf16.msra.mxu0 0
        %3715 = vmatprep.mubr.bf16.mxu0 0
        %3716 = vmatmul.mubr.bf16.gmra.mrb[0].mxu0 %v3681
        %v3717 = vpop.f32.mrb[0].mxu0
        %v3718 = vadd.f32 0.0, %v3717
        %v3719 = vpop.f32.mrb[0].mxu0
        %v3720 = vpop.f32.mrb[0].mxu0
        %v3721 = vpop.f32.mrb[0].mxu0
        %3722 = vdwg.mxu0
        %v3724 = vsel %vm3631, %v3677, 0
        %3726 = vmatprep.subr.bf16.mxu0 0
        %3727 = vmatpush1.bf16.msra.mxu0 %v3444
        %3728 = vmatprep.subr.bf16.mxu0 0
        %3729 = vmatpush1.bf16.msra.mxu0 0
        %3730 = vmatprep.subr.bf16.mxu0 0
        %3731 = vmatpush1.bf16.msra.mxu0 0
        %3732 = vmatprep.subr.bf16.mxu0 0
        %3733 = vmatpush1.bf16.msra.mxu0 0
        %3734 = vmatprep.subr.bf16.mxu0 0
        %3735 = vmatpush1.bf16.msra.mxu0 0
        %3736 = vmatprep.subr.bf16.mxu0 0
        %3737 = vmatpush1.bf16.msra.mxu0 0
        %3738 = vmatprep.subr.bf16.mxu0 0
        %3739 = vmatpush1.bf16.msra.mxu0 0
        %3740 = vmatprep.subr.bf16.mxu0 0
        %3741 = vmatpush1.bf16.msra.mxu0 0
        %3742 = vmatprep.subr.bf16.mxu0 0
        %3743 = vmatpush1.bf16.msra.mxu0 0
        %3744 = vmatprep.subr.bf16.mxu0 0
        %3745 = vmatpush1.bf16.msra.mxu0 0
        %3746 = vmatprep.subr.bf16.mxu0 0
        %3747 = vmatpush1.bf16.msra.mxu0 0
        %3748 = vmatprep.subr.bf16.mxu0 0
        %3749 = vmatpush1.bf16.msra.mxu0 0
        %3750 = vmatprep.subr.bf16.mxu0 0
        %3751 = vmatpush1.bf16.msra.mxu0 0
        %3752 = vmatprep.subr.bf16.mxu0 0
        %3753 = vmatpush1.bf16.msra.mxu0 0
        %3754 = vmatprep.subr.bf16.mxu0 0
        %3755 = vmatpush1.bf16.msra.mxu0 0
        %3756 = vmatprep.subr.bf16.mxu0 0
        %3757 = vmatpush1.bf16.msra.mxu0 0
        %3758 = vmatprep.mubr.bf16.mxu0 0
        %3759 = vmatmul.mubr.bf16.gmra.mrb[0].mxu0 %v3724
        %v3760 = vpop.f32.mrb[0].mxu0
        %v3761 = vadd.f32 0.0, %v3760
        %v3762 = vpop.f32.mrb[0].mxu0
        %v3763 = vpop.f32.mrb[0].mxu0
        %v3764 = vpop.f32.mrb[0].mxu0
        %3765 = vdwg.mxu0
        %v3767 = vsel %vm3631, %v3678, 0
        %3769 = vmatprep.subr.bf16.mxu0 0
        %3770 = vmatpush1.bf16.msra.mxu0 %v3445
        %3771 = vmatprep.subr.bf16.mxu0 0
        %3772 = vmatpush1.bf16.msra.mxu0 0
        %3773 = vmatprep.subr.bf16.mxu0 0
        %3774 = vmatpush1.bf16.msra.mxu0 0
        %3775 = vmatprep.subr.bf16.mxu0 0
        %3776 = vmatpush1.bf16.msra.mxu0 0
        %3777 = vmatprep.subr.bf16.mxu0 0
        %3778 = vmatpush1.bf16.msra.mxu0 0
        %3779 = vmatprep.subr.bf16.mxu0 0
        %3780 = vmatpush1.bf16.msra.mxu0 0
        %3781 = vmatprep.subr.bf16.mxu0 0
        %3782 = vmatpush1.bf16.msra.mxu0 0
        %3783 = vmatprep.subr.bf16.mxu0 0
        %3784 = vmatpush1.bf16.msra.mxu0 0
        %3785 = vmatprep.subr.bf16.mxu0 0
        %3786 = vmatpush1.bf16.msra.mxu0 0
        %3787 = vmatprep.subr.bf16.mxu0 0
        %3788 = vmatpush1.bf16.msra.mxu0 0
        %3789 = vmatprep.subr.bf16.mxu0 0
        %3790 = vmatpush1.bf16.msra.mxu0 0
        %3791 = vmatprep.subr.bf16.mxu0 0
        %3792 = vmatpush1.bf16.msra.mxu0 0
        %3793 = vmatprep.subr.bf16.mxu0 0
        %3794 = vmatpush1.bf16.msra.mxu0 0
        %3795 = vmatprep.subr.bf16.mxu0 0
        %3796 = vmatpush1.bf16.msra.mxu0 0
        %3797 = vmatprep.subr.bf16.mxu0 0
        %3798 = vmatpush1.bf16.msra.mxu0 0
        %3799 = vmatprep.subr.bf16.mxu0 0
        %3800 = vmatpush1.bf16.msra.mxu0 0
        %3801 = vmatprep.mubr.bf16.mxu0 0
        %3802 = vmatmul.mubr.bf16.gmra.mrb[0].mxu0 %v3767
        %v3803 = vpop.f32.mrb[0].mxu0
        %v3804 = vadd.f32 0.0, %v3803
        %v3805 = vpop.f32.mrb[0].mxu0
        %v3806 = vpop.f32.mrb[0].mxu0
        %v3807 = vpop.f32.mrb[0].mxu0
        %3808 = vdwg.mxu0
        %v3810 = vsel %vm3631, %v3679, 0
        %3812 = vmatprep.subr.bf16.mxu0 0
        %3813 = vmatpush1.bf16.msra.mxu0 %v3446
        %3814 = vmatprep.subr.bf16.mxu0 0
        %3815 = vmatpush1.bf16.msra.mxu0 0
        %3816 = vmatprep.subr.bf16.mxu0 0
        %3817 = vmatpush1.bf16.msra.mxu0 0
        %3818 = vmatprep.subr.bf16.mxu0 0
        %3819 = vmatpush1.bf16.msra.mxu0 0
        %3820 = vmatprep.subr.bf16.mxu0 0
        %3821 = vmatpush1.bf16.msra.mxu0 0
        %3822 = vmatprep.subr.bf16.mxu0 0
        %3823 = vmatpush1.bf16.msra.mxu0 0
        %3824 = vmatprep.subr.bf16.mxu0 0
        %3825 = vmatpush1.bf16.msra.mxu0 0
        %3826 = vmatprep.subr.bf16.mxu0 0
        %3827 = vmatpush1.bf16.msra.mxu0 0
        %3828 = vmatprep.subr.bf16.mxu0 0
        %3829 = vmatpush1.bf16.msra.mxu0 0
        %3830 = vmatprep.subr.bf16.mxu0 0
        %3831 = vmatpush1.bf16.msra.mxu0 0
        %3832 = vmatprep.subr.bf16.mxu0 0
        %3833 = vmatpush1.bf16.msra.mxu0 0
        %3834 = vmatprep.subr.bf16.mxu0 0
        %3835 = vmatpush1.bf16.msra.mxu0 0
        %3836 = vmatprep.subr.bf16.mxu0 0
        %3837 = vmatpush1.bf16.msra.mxu0 0
        %3838 = vmatprep.subr.bf16.mxu0 0
        %3839 = vmatpush1.bf16.msra.mxu0 0
        %3840 = vmatprep.subr.bf16.mxu0 0
        %3841 = vmatpush1.bf16.msra.mxu0 0
        %3842 = vmatprep.subr.bf16.mxu0 0
        %3843 = vmatpush1.bf16.msra.mxu0 0
        %3844 = vmatprep.mubr.bf16.mxu0 0
        %3845 = vmatmul.mubr.bf16.gmra.mrb[0].mxu0 %v3810
        %v3846 = vpop.f32.mrb[0].mxu0
        %v3847 = vadd.f32 0.0, %v3846
        %v3848 = vpop.f32.mrb[0].mxu0
        %v3849 = vpop.f32.mrb[0].mxu0
        %v3850 = vpop.f32.mrb[0].mxu0
        %3851 = vdwg.mxu0
        %3852 = vrot.lane.b32.xlu0 %v3435, 96
        %v3853 = vpop.permute.xlu0 %3852
        %3855 = vrot.lane.b32.xlu0 %v3439, 96
        %v3856 = vpop.permute.xlu0 %3855
        %v3858 = vsel %vm1006, %v3853, 0
        %v3861 = vsel %vm1006, %v3856, 0
        %3863 = vmatprep.subr.bf16.mxu0 0
        %3864 = vmatpush1.bf16.xpose.msra.mxu0 %v3861
        %3865 = vmatprep.subr.bf16.mxu0 0
        %3866 = vmatpush1.bf16.xpose.msra.mxu0 0
        %3867 = vmatprep.subr.bf16.mxu0 0
        %3868 = vmatpush1.bf16.xpose.msra.mxu0 0
        %3869 = vmatprep.subr.bf16.mxu0 0
        %3870 = vmatpush1.bf16.xpose.msra.mxu0 0
        %3871 = vmatprep.subr.bf16.mxu0 0
        %3872 = vmatpush1.bf16.xpose.msra.mxu0 0
        %3873 = vmatprep.subr.bf16.mxu0 0
        %3874 = vmatpush1.bf16.xpose.msra.mxu0 0
        %3875 = vmatprep.subr.bf16.mxu0 0
        %3876 = vmatpush1.bf16.xpose.msra.mxu0 0
        %3877 = vmatprep.subr.bf16.mxu0 0
        %3878 = vmatpush1.bf16.xpose.msra.mxu0 0
        %3879 = vmatprep.subr.bf16.mxu0 0
        %3880 = vmatpush1.bf16.xpose.msra.mxu0 0
        %3881 = vmatprep.subr.bf16.mxu0 0
        %3882 = vmatpush1.bf16.xpose.msra.mxu0 0
        %3883 = vmatprep.subr.bf16.mxu0 0
        %3884 = vmatpush1.bf16.xpose.msra.mxu0 0
        %3885 = vmatprep.subr.bf16.mxu0 0
        %3886 = vmatpush1.bf16.xpose.msra.mxu0 0
        %3887 = vmatprep.subr.bf16.mxu0 0
        %3888 = vmatpush1.bf16.xpose.msra.mxu0 0
        %3889 = vmatprep.subr.bf16.mxu0 0
        %3890 = vmatpush1.bf16.xpose.msra.mxu0 0
        %3891 = vmatprep.subr.bf16.mxu0 0
        %3892 = vmatpush1.bf16.xpose.msra.mxu0 0
        %3893 = vmatprep.subr.bf16.mxu0 0
        %3894 = vmatpush1.bf16.xpose.msra.mxu0 0
        %3895 = vmatprep.mubr.bf16.mxu0 0
        %3896 = vmatmul.mubr.bf16.gmra.mrb[0].mxu0 %v3858
        %v3897 = vpop.f32.mrb[0].mxu0
        %v3898 = vadd.f32 0.0, %v3897
        %v3899 = vpop.f32.mrb[0].mxu0
        %v3900 = vpop.f32.mrb[0].mxu0
        %v3901 = vpop.f32.mrb[0].mxu0
        %3902 = vdwg.mxu0
        %3903 = vrot.lane.b32.xlu0 %v3436, 96
        %v3904 = vpop.permute.xlu0 %3903
        %3906 = vrot.lane.b32.xlu0 %v3440, 96
        %v3907 = vpop.permute.xlu0 %3906
        %v3909 = vsel %vm1006, %v3904, 0
        %v3912 = vsel %vm1006, %v3907, 0
        %3914 = vmatprep.subr.bf16.mxu0 0
        %3915 = vmatpush1.bf16.xpose.msra.mxu0 %v3912
        %3916 = vmatprep.subr.bf16.mxu0 0
        %3917 = vmatpush1.bf16.xpose.msra.mxu0 0
        %3918 = vmatprep.subr.bf16.mxu0 0
        %3919 = vmatpush1.bf16.xpose.msra.mxu0 0
        %3920 = vmatprep.subr.bf16.mxu0 0
        %3921 = vmatpush1.bf16.xpose.msra.mxu0 0
        %3922 = vmatprep.subr.bf16.mxu0 0
        %3923 = vmatpush1.bf16.xpose.msra.mxu0 0
        %3924 = vmatprep.subr.bf16.mxu0 0
        %3925 = vmatpush1.bf16.xpose.msra.mxu0 0
        %3926 = vmatprep.subr.bf16.mxu0 0
        %3927 = vmatpush1.bf16.xpose.msra.mxu0 0
        %3928 = vmatprep.subr.bf16.mxu0 0
        %3929 = vmatpush1.bf16.xpose.msra.mxu0 0
        %3930 = vmatprep.subr.bf16.mxu0 0
        %3931 = vmatpush1.bf16.xpose.msra.mxu0 0
        %3932 = vmatprep.subr.bf16.mxu0 0
        %3933 = vmatpush1.bf16.xpose.msra.mxu0 0
        %3934 = vmatprep.subr.bf16.mxu0 0
        %3935 = vmatpush1.bf16.xpose.msra.mxu0 0
        %3936 = vmatprep.subr.bf16.mxu0 0
        %3937 = vmatpush1.bf16.xpose.msra.mxu0 0
        %3938 = vmatprep.subr.bf16.mxu0 0
        %3939 = vmatpush1.bf16.xpose.msra.mxu0 0
        %3940 = vmatprep.subr.bf16.mxu0 0
        %3941 = vmatpush1.bf16.xpose.msra.mxu0 0
        %3942 = vmatprep.subr.bf16.mxu0 0
        %3943 = vmatpush1.bf16.xpose.msra.mxu0 0
        %3944 = vmatprep.subr.bf16.mxu0 0
        %3945 = vmatpush1.bf16.xpose.msra.mxu0 0
        %3946 = vmatprep.mubr.bf16.mxu0 0
        %3947 = vmatmul.mubr.bf16.gmra.mrb[0].mxu0 %v3909
        %v3948 = vpop.f32.mrb[0].mxu0
        %v3949 = vadd.f32 0.0, %v3948
        %v3950 = vpop.f32.mrb[0].mxu0
        %v3951 = vpop.f32.mrb[0].mxu0
        %v3952 = vpop.f32.mrb[0].mxu0
        %3953 = vdwg.mxu0
        %3954 = vrot.lane.b32.xlu0 %v3437, 96
        %v3955 = vpop.permute.xlu0 %3954
        %3957 = vrot.lane.b32.xlu0 %v3441, 96
        %v3958 = vpop.permute.xlu0 %3957
        %v3960 = vsel %vm1006, %v3955, 0
        %v3963 = vsel %vm1006, %v3958, 0
        %3965 = vmatprep.subr.bf16.mxu0 0
        %3966 = vmatpush1.bf16.xpose.msra.mxu0 %v3963
        %3967 = vmatprep.subr.bf16.mxu0 0
        %3968 = vmatpush1.bf16.xpose.msra.mxu0 0
        %3969 = vmatprep.subr.bf16.mxu0 0
        %3970 = vmatpush1.bf16.xpose.msra.mxu0 0
        %3971 = vmatprep.subr.bf16.mxu0 0
        %3972 = vmatpush1.bf16.xpose.msra.mxu0 0
        %3973 = vmatprep.subr.bf16.mxu0 0
        %3974 = vmatpush1.bf16.xpose.msra.mxu0 0
        %3975 = vmatprep.subr.bf16.mxu0 0
        %3976 = vmatpush1.bf16.xpose.msra.mxu0 0
        %3977 = vmatprep.subr.bf16.mxu0 0
        %3978 = vmatpush1.bf16.xpose.msra.mxu0 0
        %3979 = vmatprep.subr.bf16.mxu0 0
        %3980 = vmatpush1.bf16.xpose.msra.mxu0 0
        %3981 = vmatprep.subr.bf16.mxu0 0
        %3982 = vmatpush1.bf16.xpose.msra.mxu0 0
        %3983 = vmatprep.subr.bf16.mxu0 0
        %3984 = vmatpush1.bf16.xpose.msra.mxu0 0
        %3985 = vmatprep.subr.bf16.mxu0 0
        %3986 = vmatpush1.bf16.xpose.msra.mxu0 0
        %3987 = vmatprep.subr.bf16.mxu0 0
        %3988 = vmatpush1.bf16.xpose.msra.mxu0 0
        %3989 = vmatprep.subr.bf16.mxu0 0
        %3990 = vmatpush1.bf16.xpose.msra.mxu0 0
        %3991 = vmatprep.subr.bf16.mxu0 0
        %3992 = vmatpush1.bf16.xpose.msra.mxu0 0
        %3993 = vmatprep.subr.bf16.mxu0 0
        %3994 = vmatpush1.bf16.xpose.msra.mxu0 0
        %3995 = vmatprep.subr.bf16.mxu0 0
        %3996 = vmatpush1.bf16.xpose.msra.mxu0 0
        %3997 = vmatprep.mubr.bf16.mxu0 0
        %3998 = vmatmul.mubr.bf16.gmra.mrb[0].mxu0 %v3960
        %v3999 = vpop.f32.mrb[0].mxu0
        %v4000 = vadd.f32 0.0, %v3999
        %v4001 = vpop.f32.mrb[0].mxu0
        %v4002 = vpop.f32.mrb[0].mxu0
        %v4003 = vpop.f32.mrb[0].mxu0
        %4004 = vdwg.mxu0
        %4005 = vrot.lane.b32.xlu0 %v3438, 96
        %v4006 = vpop.permute.xlu0 %4005
        %4008 = vrot.lane.b32.xlu0 %v3442, 96
        %v4009 = vpop.permute.xlu0 %4008
        %v4011 = vsel %vm1006, %v4006, 0
        %v4014 = vsel %vm1006, %v4009, 0
        %4016 = vmatprep.subr.bf16.mxu0 0
        %4017 = vmatpush1.bf16.xpose.msra.mxu0 %v4014
        %4018 = vmatprep.subr.bf16.mxu0 0
        %4019 = vmatpush1.bf16.xpose.msra.mxu0 0
        %4020 = vmatprep.subr.bf16.mxu0 0
        %4021 = vmatpush1.bf16.xpose.msra.mxu0 0
        %4022 = vmatprep.subr.bf16.mxu0 0
        %4023 = vmatpush1.bf16.xpose.msra.mxu0 0
        %4024 = vmatprep.subr.bf16.mxu0 0
        %4025 = vmatpush1.bf16.xpose.msra.mxu0 0
        %4026 = vmatprep.subr.bf16.mxu0 0
        %4027 = vmatpush1.bf16.xpose.msra.mxu0 0
        %4028 = vmatprep.subr.bf16.mxu0 0
        %4029 = vmatpush1.bf16.xpose.msra.mxu0 0
        %4030 = vmatprep.subr.bf16.mxu0 0
        %4031 = vmatpush1.bf16.xpose.msra.mxu0 0
        %4032 = vmatprep.subr.bf16.mxu0 0
        %4033 = vmatpush1.bf16.xpose.msra.mxu0 0
        %4034 = vmatprep.subr.bf16.mxu0 0
        %4035 = vmatpush1.bf16.xpose.msra.mxu0 0
        %4036 = vmatprep.subr.bf16.mxu0 0
        %4037 = vmatpush1.bf16.xpose.msra.mxu0 0
        %4038 = vmatprep.subr.bf16.mxu0 0
        %4039 = vmatpush1.bf16.xpose.msra.mxu0 0
        %4040 = vmatprep.subr.bf16.mxu0 0
        %4041 = vmatpush1.bf16.xpose.msra.mxu0 0
        %4042 = vmatprep.subr.bf16.mxu0 0
        %4043 = vmatpush1.bf16.xpose.msra.mxu0 0
        %4044 = vmatprep.subr.bf16.mxu0 0
        %4045 = vmatpush1.bf16.xpose.msra.mxu0 0
        %4046 = vmatprep.subr.bf16.mxu0 0
        %4047 = vmatpush1.bf16.xpose.msra.mxu0 0
        %4048 = vmatprep.mubr.bf16.mxu0 0
        %4049 = vmatmul.mubr.bf16.gmra.mrb[0].mxu0 %v4011
        %v4050 = vpop.f32.mrb[0].mxu0
        %v4051 = vadd.f32 0.0, %v4050
        %v4052 = vpop.f32.mrb[0].mxu0
        %v4053 = vpop.f32.mrb[0].mxu0
        %v4054 = vpop.f32.mrb[0].mxu0
        %4055 = vdwg.mxu0
        %v4056 = vsel %vm3631, %v3898, -inf
        %4057 = vmax.xlane.f32.xlu0 %v4056
        %v4058 = vpop.xlane.xlu0 %4057
        %v4059 = vsel %vm3631, %v3949, -inf
        %4060 = vmax.xlane.f32.xlu0 %v4059
        %v4061 = vpop.xlane.xlu0 %4060
        %v4062 = vsel %vm3631, %v4000, -inf
        %4063 = vmax.xlane.f32.xlu0 %v4062
        %v4064 = vpop.xlane.xlu0 %4063
        %v4065 = vsel %vm3631, %v4051, -inf
        %4066 = vmax.xlane.f32.xlu0 %v4065
        %v4067 = vpop.xlane.xlu0 %4066
        %v4068 = vsub.f32 %v3898, %v4058
        %v4069 = vsub.f32 %v3949, %v4061
        %v4070 = vsub.f32 %v4000, %v4064
        %v4071 = vsub.f32 %v4051, %v4067
        %v4072 = vmul.f32 %v4068, 1.442695
        %v4073 = vpow.pop %v4072
        %v4074 = vmul.f32 %v4069, 1.442695
        %v4075 = vpow.pop %v4074
        %v4076 = vmul.f32 %v4070, 1.442695
        %v4077 = vpow.pop %v4076
        %v4078 = vmul.f32 %v4071, 1.442695
        %v4079 = vpow.pop %v4078
        %v4080 = vsel %vm3631, %v4073, 0.0
        %4081 = vadd.xlane.f32.xlu0 %v4080
        %v4082 = vpop.xlane.xlu0 %4081
        %v4083 = vsel %vm3631, %v4075, 0.0
        %4084 = vadd.xlane.f32.xlu0 %v4083
        %v4085 = vpop.xlane.xlu0 %4084
        %v4086 = vsel %vm3631, %v4077, 0.0
        %4087 = vadd.xlane.f32.xlu0 %v4086
        %v4088 = vpop.xlane.xlu0 %4087
        %v4089 = vsel %vm3631, %v4079, 0.0
        %4090 = vadd.xlane.f32.xlu0 %v4089
        %v4091 = vpop.xlane.xlu0 %4090
        %v4092 = vrcp.pop %v4082
        %v4093 = vrcp.pop %v4085
        %v4094 = vrcp.pop %v4088
        %v4095 = vrcp.pop %v4091
        %v4096 = vmul.f32 %v4073, %v4092
        %v4097 = vmul.f32 %v4075, %v4093
        %v4098 = vmul.f32 %v4077, %v4094
        %v4099 = vmul.f32 %v4079, %v4095
        %v4100 = vpack.c.bf16 %v4096, %v4096
        %v4101 = vpack.c.bf16 %v4097, %v4097
        %v4102 = vpack.c.bf16 %v4098, %v4098
        %v4103 = vpack.c.bf16 %v4099, %v4099
        %4105 = vrot.lane.b32.xlu0 %v3443, 96
        %v4106 = vpop.permute.xlu0 %4105
        %v4109 = vsel %vm3631, %v4100, 0
        %4111 = vmatprep.subr.bf16.mxu0 0
        %4112 = vmatpush1.bf16.msra.mxu0 %v4106
        %4113 = vmatprep.subr.bf16.mxu0 0
        %4114 = vmatpush1.bf16.msra.mxu0 0
        %4115 = vmatprep.subr.bf16.mxu0 0
        %4116 = vmatpush1.bf16.msra.mxu0 0
        %4117 = vmatprep.subr.bf16.mxu0 0
        %4118 = vmatpush1.bf16.msra.mxu0 0
        %4119 = vmatprep.subr.bf16.mxu0 0
        %4120 = vmatpush1.bf16.msra.mxu0 0
        %4121 = vmatprep.subr.bf16.mxu0 0
        %4122 = vmatpush1.bf16.msra.mxu0 0
        %4123 = vmatprep.subr.bf16.mxu0 0
        %4124 = vmatpush1.bf16.msra.mxu0 0
        %4125 = vmatprep.subr.bf16.mxu0 0
        %4126 = vmatpush1.bf16.msra.mxu0 0
        %4127 = vmatprep.subr.bf16.mxu0 0
        %4128 = vmatpush1.bf16.msra.mxu0 0
        %4129 = vmatprep.subr.bf16.mxu0 0
        %4130 = vmatpush1.bf16.msra.mxu0 0
        %4131 = vmatprep.subr.bf16.mxu0 0
        %4132 = vmatpush1.bf16.msra.mxu0 0
        %4133 = vmatprep.subr.bf16.mxu0 0
        %4134 = vmatpush1.bf16.msra.mxu0 0
        %4135 = vmatprep.subr.bf16.mxu0 0
        %4136 = vmatpush1.bf16.msra.mxu0 0
        %4137 = vmatprep.subr.bf16.mxu0 0
        %4138 = vmatpush1.bf16.msra.mxu0 0
        %4139 = vmatprep.subr.bf16.mxu0 0
        %4140 = vmatpush1.bf16.msra.mxu0 0
        %4141 = vmatprep.subr.bf16.mxu0 0
        %4142 = vmatpush1.bf16.msra.mxu0 0
        %4143 = vmatprep.mubr.bf16.mxu0 0
        %4144 = vmatmul.mubr.bf16.gmra.mrb[0].mxu0 %v4109
        %v4145 = vpop.f32.mrb[0].mxu0
        %v4146 = vadd.f32 0.0, %v4145
        %v4147 = vpop.f32.mrb[0].mxu0
        %v4148 = vpop.f32.mrb[0].mxu0
        %v4149 = vpop.f32.mrb[0].mxu0
        %4150 = vdwg.mxu0
        %4152 = vrot.lane.b32.xlu0 %v3444, 96
        %v4153 = vpop.permute.xlu0 %4152
        %v4156 = vsel %vm3631, %v4101, 0
        %4158 = vmatprep.subr.bf16.mxu0 0
        %4159 = vmatpush1.bf16.msra.mxu0 %v4153
        %4160 = vmatprep.subr.bf16.mxu0 0
        %4161 = vmatpush1.bf16.msra.mxu0 0
        %4162 = vmatprep.subr.bf16.mxu0 0
        %4163 = vmatpush1.bf16.msra.mxu0 0
        %4164 = vmatprep.subr.bf16.mxu0 0
        %4165 = vmatpush1.bf16.msra.mxu0 0
        %4166 = vmatprep.subr.bf16.mxu0 0
        %4167 = vmatpush1.bf16.msra.mxu0 0
        %4168 = vmatprep.subr.bf16.mxu0 0
        %4169 = vmatpush1.bf16.msra.mxu0 0
        %4170 = vmatprep.subr.bf16.mxu0 0
        %4171 = vmatpush1.bf16.msra.mxu0 0
        %4172 = vmatprep.subr.bf16.mxu0 0
        %4173 = vmatpush1.bf16.msra.mxu0 0
        %4174 = vmatprep.subr.bf16.mxu0 0
        %4175 = vmatpush1.bf16.msra.mxu0 0
        %4176 = vmatprep.subr.bf16.mxu0 0
        %4177 = vmatpush1.bf16.msra.mxu0 0
        %4178 = vmatprep.subr.bf16.mxu0 0
        %4179 = vmatpush1.bf16.msra.mxu0 0
        %4180 = vmatprep.subr.bf16.mxu0 0
        %4181 = vmatpush1.bf16.msra.mxu0 0
        %4182 = vmatprep.subr.bf16.mxu0 0
        %4183 = vmatpush1.bf16.msra.mxu0 0
        %4184 = vmatprep.subr.bf16.mxu0 0
        %4185 = vmatpush1.bf16.msra.mxu0 0
        %4186 = vmatprep.subr.bf16.mxu0 0
        %4187 = vmatpush1.bf16.msra.mxu0 0
        %4188 = vmatprep.subr.bf16.mxu0 0
        %4189 = vmatpush1.bf16.msra.mxu0 0
        %4190 = vmatprep.mubr.bf16.mxu0 0
        %4191 = vmatmul.mubr.bf16.gmra.mrb[0].mxu0 %v4156
        %v4192 = vpop.f32.mrb[0].mxu0
        %v4193 = vadd.f32 0.0, %v4192
        %v4194 = vpop.f32.mrb[0].mxu0
        %v4195 = vpop.f32.mrb[0].mxu0
        %v4196 = vpop.f32.mrb[0].mxu0
        %4197 = vdwg.mxu0
        %4199 = vrot.lane.b32.xlu0 %v3445, 96
        %v4200 = vpop.permute.xlu0 %4199
        %v4203 = vsel %vm3631, %v4102, 0
        %4205 = vmatprep.subr.bf16.mxu0 0
        %4206 = vmatpush1.bf16.msra.mxu0 %v4200
        %4207 = vmatprep.subr.bf16.mxu0 0
        %4208 = vmatpush1.bf16.msra.mxu0 0
        %4209 = vmatprep.subr.bf16.mxu0 0
        %4210 = vmatpush1.bf16.msra.mxu0 0
        %4211 = vmatprep.subr.bf16.mxu0 0
        %4212 = vmatpush1.bf16.msra.mxu0 0
        %4213 = vmatprep.subr.bf16.mxu0 0
        %4214 = vmatpush1.bf16.msra.mxu0 0
        %4215 = vmatprep.subr.bf16.mxu0 0
        %4216 = vmatpush1.bf16.msra.mxu0 0
        %4217 = vmatprep.subr.bf16.mxu0 0
        %4218 = vmatpush1.bf16.msra.mxu0 0
        %4219 = vmatprep.subr.bf16.mxu0 0
        %4220 = vmatpush1.bf16.msra.mxu0 0
        %4221 = vmatprep.subr.bf16.mxu0 0
        %4222 = vmatpush1.bf16.msra.mxu0 0
        %4223 = vmatprep.subr.bf16.mxu0 0
        %4224 = vmatpush1.bf16.msra.mxu0 0
        %4225 = vmatprep.subr.bf16.mxu0 0
        %4226 = vmatpush1.bf16.msra.mxu0 0
        %4227 = vmatprep.subr.bf16.mxu0 0
        %4228 = vmatpush1.bf16.msra.mxu0 0
        %4229 = vmatprep.subr.bf16.mxu0 0
        %4230 = vmatpush1.bf16.msra.mxu0 0
        %4231 = vmatprep.subr.bf16.mxu0 0
        %4232 = vmatpush1.bf16.msra.mxu0 0
        %4233 = vmatprep.subr.bf16.mxu0 0
        %4234 = vmatpush1.bf16.msra.mxu0 0
        %4235 = vmatprep.subr.bf16.mxu0 0
        %4236 = vmatpush1.bf16.msra.mxu0 0
        %4237 = vmatprep.mubr.bf16.mxu0 0
        %4238 = vmatmul.mubr.bf16.gmra.mrb[0].mxu0 %v4203
        %v4239 = vpop.f32.mrb[0].mxu0
        %v4240 = vadd.f32 0.0, %v4239
        %v4241 = vpop.f32.mrb[0].mxu0
        %v4242 = vpop.f32.mrb[0].mxu0
        %v4243 = vpop.f32.mrb[0].mxu0
        %4244 = vdwg.mxu0
        %4246 = vrot.lane.b32.xlu0 %v3446, 96
        %v4247 = vpop.permute.xlu0 %4246
        %v4250 = vsel %vm3631, %v4103, 0
        %4252 = vmatprep.subr.bf16.mxu0 0
        %4253 = vmatpush1.bf16.msra.mxu0 %v4247
        %4254 = vmatprep.subr.bf16.mxu0 0
        %4255 = vmatpush1.bf16.msra.mxu0 0
        %4256 = vmatprep.subr.bf16.mxu0 0
        %4257 = vmatpush1.bf16.msra.mxu0 0
        %4258 = vmatprep.subr.bf16.mxu0 0
        %4259 = vmatpush1.bf16.msra.mxu0 0
        %4260 = vmatprep.subr.bf16.mxu0 0
        %4261 = vmatpush1.bf16.msra.mxu0 0
        %4262 = vmatprep.subr.bf16.mxu0 0
        %4263 = vmatpush1.bf16.msra.mxu0 0
        %4264 = vmatprep.subr.bf16.mxu0 0
        %4265 = vmatpush1.bf16.msra.mxu0 0
        %4266 = vmatprep.subr.bf16.mxu0 0
        %4267 = vmatpush1.bf16.msra.mxu0 0
        %4268 = vmatprep.subr.bf16.mxu0 0
        %4269 = vmatpush1.bf16.msra.mxu0 0
        %4270 = vmatprep.subr.bf16.mxu0 0
        %4271 = vmatpush1.bf16.msra.mxu0 0
        %4272 = vmatprep.subr.bf16.mxu0 0
        %4273 = vmatpush1.bf16.msra.mxu0 0
        %4274 = vmatprep.subr.bf16.mxu0 0
        %4275 = vmatpush1.bf16.msra.mxu0 0
        %4276 = vmatprep.subr.bf16.mxu0 0
        %4277 = vmatpush1.bf16.msra.mxu0 0
        %4278 = vmatprep.subr.bf16.mxu0 0
        %4279 = vmatpush1.bf16.msra.mxu0 0
        %4280 = vmatprep.subr.bf16.mxu0 0
        %4281 = vmatpush1.bf16.msra.mxu0 0
        %4282 = vmatprep.subr.bf16.mxu0 0
        %4283 = vmatpush1.bf16.msra.mxu0 0
        %4284 = vmatprep.mubr.bf16.mxu0 0
        %4285 = vmatmul.mubr.bf16.gmra.mrb[0].mxu0 %v4250
        %v4286 = vpop.f32.mrb[0].mxu0
        %v4287 = vadd.f32 0.0, %v4286
        %v4288 = vpop.f32.mrb[0].mxu0
        %v4289 = vpop.f32.mrb[0].mxu0
        %v4290 = vpop.f32.mrb[0].mxu0
        %4291 = vdwg.mxu0
        %4292 = vrot.lane.b32.xlu0 %v3435, 64
        %v4293 = vpop.permute.xlu0 %4292
        %4294 = vrot.lane.b32.xlu0 %v3439, 64
        %v4295 = vpop.permute.xlu0 %4294
        %v4297 = vsel %vm1006, %v4293, 0
        %v4300 = vsel %vm1006, %v4295, 0
        %4302 = vmatprep.subr.bf16.mxu0 0
        %4303 = vmatpush1.bf16.xpose.msra.mxu0 %v4300
        %4304 = vmatprep.subr.bf16.mxu0 0
        %4305 = vmatpush1.bf16.xpose.msra.mxu0 0
        %4306 = vmatprep.subr.bf16.mxu0 0
        %4307 = vmatpush1.bf16.xpose.msra.mxu0 0
        %4308 = vmatprep.subr.bf16.mxu0 0
        %4309 = vmatpush1.bf16.xpose.msra.mxu0 0
        %4310 = vmatprep.subr.bf16.mxu0 0
        %4311 = vmatpush1.bf16.xpose.msra.mxu0 0
        %4312 = vmatprep.subr.bf16.mxu0 0
        %4313 = vmatpush1.bf16.xpose.msra.mxu0 0
        %4314 = vmatprep.subr.bf16.mxu0 0
        %4315 = vmatpush1.bf16.xpose.msra.mxu0 0
        %4316 = vmatprep.subr.bf16.mxu0 0
        %4317 = vmatpush1.bf16.xpose.msra.mxu0 0
        %4318 = vmatprep.subr.bf16.mxu0 0
        %4319 = vmatpush1.bf16.xpose.msra.mxu0 0
        %4320 = vmatprep.subr.bf16.mxu0 0
        %4321 = vmatpush1.bf16.xpose.msra.mxu0 0
        %4322 = vmatprep.subr.bf16.mxu0 0
        %4323 = vmatpush1.bf16.xpose.msra.mxu0 0
        %4324 = vmatprep.subr.bf16.mxu0 0
        %4325 = vmatpush1.bf16.xpose.msra.mxu0 0
        %4326 = vmatprep.subr.bf16.mxu0 0
        %4327 = vmatpush1.bf16.xpose.msra.mxu0 0
        %4328 = vmatprep.subr.bf16.mxu0 0
        %4329 = vmatpush1.bf16.xpose.msra.mxu0 0
        %4330 = vmatprep.subr.bf16.mxu0 0
        %4331 = vmatpush1.bf16.xpose.msra.mxu0 0
        %4332 = vmatprep.subr.bf16.mxu0 0
        %4333 = vmatpush1.bf16.xpose.msra.mxu0 0
        %4334 = vmatprep.mubr.bf16.mxu0 0
        %4335 = vmatmul.mubr.bf16.gmra.mrb[0].mxu0 %v4297
        %v4336 = vpop.f32.mrb[0].mxu0
        %v4337 = vadd.f32 0.0, %v4336
        %v4338 = vpop.f32.mrb[0].mxu0
        %v4339 = vpop.f32.mrb[0].mxu0
        %v4340 = vpop.f32.mrb[0].mxu0
        %4341 = vdwg.mxu0
        %4342 = vrot.lane.b32.xlu0 %v3436, 64
        %v4343 = vpop.permute.xlu0 %4342
        %4344 = vrot.lane.b32.xlu0 %v3440, 64
        %v4345 = vpop.permute.xlu0 %4344
        %v4347 = vsel %vm1006, %v4343, 0
        %v4350 = vsel %vm1006, %v4345, 0
        %4352 = vmatprep.subr.bf16.mxu0 0
        %4353 = vmatpush1.bf16.xpose.msra.mxu0 %v4350
        %4354 = vmatprep.subr.bf16.mxu0 0
        %4355 = vmatpush1.bf16.xpose.msra.mxu0 0
        %4356 = vmatprep.subr.bf16.mxu0 0
        %4357 = vmatpush1.bf16.xpose.msra.mxu0 0
        %4358 = vmatprep.subr.bf16.mxu0 0
        %4359 = vmatpush1.bf16.xpose.msra.mxu0 0
        %4360 = vmatprep.subr.bf16.mxu0 0
        %4361 = vmatpush1.bf16.xpose.msra.mxu0 0
        %4362 = vmatprep.subr.bf16.mxu0 0
        %4363 = vmatpush1.bf16.xpose.msra.mxu0 0
        %4364 = vmatprep.subr.bf16.mxu0 0
        %4365 = vmatpush1.bf16.xpose.msra.mxu0 0
        %4366 = vmatprep.subr.bf16.mxu0 0
        %4367 = vmatpush1.bf16.xpose.msra.mxu0 0
        %4368 = vmatprep.subr.bf16.mxu0 0
        %4369 = vmatpush1.bf16.xpose.msra.mxu0 0
        %4370 = vmatprep.subr.bf16.mxu0 0
        %4371 = vmatpush1.bf16.xpose.msra.mxu0 0
        %4372 = vmatprep.subr.bf16.mxu0 0
        %4373 = vmatpush1.bf16.xpose.msra.mxu0 0
        %4374 = vmatprep.subr.bf16.mxu0 0
        %4375 = vmatpush1.bf16.xpose.msra.mxu0 0
        %4376 = vmatprep.subr.bf16.mxu0 0
        %4377 = vmatpush1.bf16.xpose.msra.mxu0 0
        %4378 = vmatprep.subr.bf16.mxu0 0
        %4379 = vmatpush1.bf16.xpose.msra.mxu0 0
        %4380 = vmatprep.subr.bf16.mxu0 0
        %4381 = vmatpush1.bf16.xpose.msra.mxu0 0
        %4382 = vmatprep.subr.bf16.mxu0 0
        %4383 = vmatpush1.bf16.xpose.msra.mxu0 0
        %4384 = vmatprep.mubr.bf16.mxu0 0
        %4385 = vmatmul.mubr.bf16.gmra.mrb[0].mxu0 %v4347
        %v4386 = vpop.f32.mrb[0].mxu0
        %v4387 = vadd.f32 0.0, %v4386
        %v4388 = vpop.f32.mrb[0].mxu0
        %v4389 = vpop.f32.mrb[0].mxu0
        %v4390 = vpop.f32.mrb[0].mxu0
        %4391 = vdwg.mxu0
        %4392 = vrot.lane.b32.xlu0 %v3437, 64
        %v4393 = vpop.permute.xlu0 %4392
        %4394 = vrot.lane.b32.xlu0 %v3441, 64
        %v4395 = vpop.permute.xlu0 %4394
        %v4397 = vsel %vm1006, %v4393, 0
        %v4400 = vsel %vm1006, %v4395, 0
        %4402 = vmatprep.subr.bf16.mxu0 0
        %4403 = vmatpush1.bf16.xpose.msra.mxu0 %v4400
        %4404 = vmatprep.subr.bf16.mxu0 0
        %4405 = vmatpush1.bf16.xpose.msra.mxu0 0
        %4406 = vmatprep.subr.bf16.mxu0 0
        %4407 = vmatpush1.bf16.xpose.msra.mxu0 0
        %4408 = vmatprep.subr.bf16.mxu0 0
        %4409 = vmatpush1.bf16.xpose.msra.mxu0 0
        %4410 = vmatprep.subr.bf16.mxu0 0
        %4411 = vmatpush1.bf16.xpose.msra.mxu0 0
        %4412 = vmatprep.subr.bf16.mxu0 0
        %4413 = vmatpush1.bf16.xpose.msra.mxu0 0
        %4414 = vmatprep.subr.bf16.mxu0 0
        %4415 = vmatpush1.bf16.xpose.msra.mxu0 0
        %4416 = vmatprep.subr.bf16.mxu0 0
        %4417 = vmatpush1.bf16.xpose.msra.mxu0 0
        %4418 = vmatprep.subr.bf16.mxu0 0
        %4419 = vmatpush1.bf16.xpose.msra.mxu0 0
        %4420 = vmatprep.subr.bf16.mxu0 0
        %4421 = vmatpush1.bf16.xpose.msra.mxu0 0
        %4422 = vmatprep.subr.bf16.mxu0 0
        %4423 = vmatpush1.bf16.xpose.msra.mxu0 0
        %4424 = vmatprep.subr.bf16.mxu0 0
        %4425 = vmatpush1.bf16.xpose.msra.mxu0 0
        %4426 = vmatprep.subr.bf16.mxu0 0
        %4427 = vmatpush1.bf16.xpose.msra.mxu0 0
        %4428 = vmatprep.subr.bf16.mxu0 0
        %4429 = vmatpush1.bf16.xpose.msra.mxu0 0
        %4430 = vmatprep.subr.bf16.mxu0 0
        %4431 = vmatpush1.bf16.xpose.msra.mxu0 0
        %4432 = vmatprep.subr.bf16.mxu0 0
        %4433 = vmatpush1.bf16.xpose.msra.mxu0 0
        %4434 = vmatprep.mubr.bf16.mxu0 0
        %4435 = vmatmul.mubr.bf16.gmra.mrb[0].mxu0 %v4397
        %v4436 = vpop.f32.mrb[0].mxu0
        %v4437 = vadd.f32 0.0, %v4436
        %v4438 = vpop.f32.mrb[0].mxu0
        %v4439 = vpop.f32.mrb[0].mxu0
        %v4440 = vpop.f32.mrb[0].mxu0
        %4441 = vdwg.mxu0
        %4442 = vrot.lane.b32.xlu0 %v3438, 64
        %v4443 = vpop.permute.xlu0 %4442
        %4444 = vrot.lane.b32.xlu0 %v3442, 64
        %v4445 = vpop.permute.xlu0 %4444
        %v4447 = vsel %vm1006, %v4443, 0
        %v4450 = vsel %vm1006, %v4445, 0
        %4452 = vmatprep.subr.bf16.mxu0 0
        %4453 = vmatpush1.bf16.xpose.msra.mxu0 %v4450
        %4454 = vmatprep.subr.bf16.mxu0 0
        %4455 = vmatpush1.bf16.xpose.msra.mxu0 0
        %4456 = vmatprep.subr.bf16.mxu0 0
        %4457 = vmatpush1.bf16.xpose.msra.mxu0 0
        %4458 = vmatprep.subr.bf16.mxu0 0
        %4459 = vmatpush1.bf16.xpose.msra.mxu0 0
        %4460 = vmatprep.subr.bf16.mxu0 0
        %4461 = vmatpush1.bf16.xpose.msra.mxu0 0
        %4462 = vmatprep.subr.bf16.mxu0 0
        %4463 = vmatpush1.bf16.xpose.msra.mxu0 0
        %4464 = vmatprep.subr.bf16.mxu0 0
        %4465 = vmatpush1.bf16.xpose.msra.mxu0 0
        %4466 = vmatprep.subr.bf16.mxu0 0
        %4467 = vmatpush1.bf16.xpose.msra.mxu0 0
        %4468 = vmatprep.subr.bf16.mxu0 0
        %4469 = vmatpush1.bf16.xpose.msra.mxu0 0
        %4470 = vmatprep.subr.bf16.mxu0 0
        %4471 = vmatpush1.bf16.xpose.msra.mxu0 0
        %4472 = vmatprep.subr.bf16.mxu0 0
        %4473 = vmatpush1.bf16.xpose.msra.mxu0 0
        %4474 = vmatprep.subr.bf16.mxu0 0
        %4475 = vmatpush1.bf16.xpose.msra.mxu0 0
        %4476 = vmatprep.subr.bf16.mxu0 0
        %4477 = vmatpush1.bf16.xpose.msra.mxu0 0
        %4478 = vmatprep.subr.bf16.mxu0 0
        %4479 = vmatpush1.bf16.xpose.msra.mxu0 0
        %4480 = vmatprep.subr.bf16.mxu0 0
        %4481 = vmatpush1.bf16.xpose.msra.mxu0 0
        %4482 = vmatprep.subr.bf16.mxu0 0
        %4483 = vmatpush1.bf16.xpose.msra.mxu0 0
        %4484 = vmatprep.mubr.bf16.mxu0 0
        %4485 = vmatmul.mubr.bf16.gmra.mrb[0].mxu0 %v4447
        %v4486 = vpop.f32.mrb[0].mxu0
        %v4487 = vadd.f32 0.0, %v4486
        %v4488 = vpop.f32.mrb[0].mxu0
        %v4489 = vpop.f32.mrb[0].mxu0
        %v4490 = vpop.f32.mrb[0].mxu0
        %4491 = vdwg.mxu0
        %v4492 = vsel %vm3631, %v4337, -inf
        %4493 = vmax.xlane.f32.xlu0 %v4492
        %v4494 = vpop.xlane.xlu0 %4493
        %v4495 = vsel %vm3631, %v4387, -inf
        %4496 = vmax.xlane.f32.xlu0 %v4495
        %v4497 = vpop.xlane.xlu0 %4496
        %v4498 = vsel %vm3631, %v4437, -inf
        %4499 = vmax.xlane.f32.xlu0 %v4498
        %v4500 = vpop.xlane.xlu0 %4499
        %v4501 = vsel %vm3631, %v4487, -inf
        %4502 = vmax.xlane.f32.xlu0 %v4501
        %v4503 = vpop.xlane.xlu0 %4502
        %v4504 = vsub.f32 %v4337, %v4494
        %v4505 = vsub.f32 %v4387, %v4497
        %v4506 = vsub.f32 %v4437, %v4500
        %v4507 = vsub.f32 %v4487, %v4503
        %v4508 = vmul.f32 %v4504, 1.442695
        %v4509 = vpow.pop %v4508
        %v4510 = vmul.f32 %v4505, 1.442695
        %v4511 = vpow.pop %v4510
        %v4512 = vmul.f32 %v4506, 1.442695
        %v4513 = vpow.pop %v4512
        %v4514 = vmul.f32 %v4507, 1.442695
        %v4515 = vpow.pop %v4514
        %v4516 = vsel %vm3631, %v4509, 0.0
        %4517 = vadd.xlane.f32.xlu0 %v4516
        %v4518 = vpop.xlane.xlu0 %4517
        %v4519 = vsel %vm3631, %v4511, 0.0
        %4520 = vadd.xlane.f32.xlu0 %v4519
        %v4521 = vpop.xlane.xlu0 %4520
        %v4522 = vsel %vm3631, %v4513, 0.0
        %4523 = vadd.xlane.f32.xlu0 %v4522
        %v4524 = vpop.xlane.xlu0 %4523
        %v4525 = vsel %vm3631, %v4515, 0.0
        %4526 = vadd.xlane.f32.xlu0 %v4525
        %v4527 = vpop.xlane.xlu0 %4526
        %v4528 = vrcp.pop %v4518
        %v4529 = vrcp.pop %v4521
        %v4530 = vrcp.pop %v4524
        %v4531 = vrcp.pop %v4527
        %v4532 = vmul.f32 %v4509, %v4528
        %v4533 = vmul.f32 %v4511, %v4529
        %v4534 = vmul.f32 %v4513, %v4530
        %v4535 = vmul.f32 %v4515, %v4531
        %v4536 = vpack.c.bf16 %v4532, %v4532
        %v4537 = vpack.c.bf16 %v4533, %v4533
        %v4538 = vpack.c.bf16 %v4534, %v4534
        %v4539 = vpack.c.bf16 %v4535, %v4535
        %4540 = vrot.lane.b32.xlu0 %v3443, 64
        %v4541 = vpop.permute.xlu0 %4540
        %v4544 = vsel %vm3631, %v4536, 0
        %4546 = vmatprep.subr.bf16.mxu0 0
        %4547 = vmatpush1.bf16.msra.mxu0 %v4541
        %4548 = vmatprep.subr.bf16.mxu0 0
        %4549 = vmatpush1.bf16.msra.mxu0 0
        %4550 = vmatprep.subr.bf16.mxu0 0
        %4551 = vmatpush1.bf16.msra.mxu0 0
        %4552 = vmatprep.subr.bf16.mxu0 0
        %4553 = vmatpush1.bf16.msra.mxu0 0
        %4554 = vmatprep.subr.bf16.mxu0 0
        %4555 = vmatpush1.bf16.msra.mxu0 0
        %4556 = vmatprep.subr.bf16.mxu0 0
        %4557 = vmatpush1.bf16.msra.mxu0 0
        %4558 = vmatprep.subr.bf16.mxu0 0
        %4559 = vmatpush1.bf16.msra.mxu0 0
        %4560 = vmatprep.subr.bf16.mxu0 0
        %4561 = vmatpush1.bf16.msra.mxu0 0
        %4562 = vmatprep.subr.bf16.mxu0 0
        %4563 = vmatpush1.bf16.msra.mxu0 0
        %4564 = vmatprep.subr.bf16.mxu0 0
        %4565 = vmatpush1.bf16.msra.mxu0 0
        %4566 = vmatprep.subr.bf16.mxu0 0
        %4567 = vmatpush1.bf16.msra.mxu0 0
        %4568 = vmatprep.subr.bf16.mxu0 0
        %4569 = vmatpush1.bf16.msra.mxu0 0
        %4570 = vmatprep.subr.bf16.mxu0 0
        %4571 = vmatpush1.bf16.msra.mxu0 0
        %4572 = vmatprep.subr.bf16.mxu0 0
        %4573 = vmatpush1.bf16.msra.mxu0 0
        %4574 = vmatprep.subr.bf16.mxu0 0
        %4575 = vmatpush1.bf16.msra.mxu0 0
        %4576 = vmatprep.subr.bf16.mxu0 0
        %4577 = vmatpush1.bf16.msra.mxu0 0
        %4578 = vmatprep.mubr.bf16.mxu0 0
        %4579 = vmatmul.mubr.bf16.gmra.mrb[0].mxu0 %v4544
        %v4580 = vpop.f32.mrb[0].mxu0
        %v4581 = vadd.f32 0.0, %v4580
        %v4582 = vpop.f32.mrb[0].mxu0
        %v4583 = vpop.f32.mrb[0].mxu0
        %v4584 = vpop.f32.mrb[0].mxu0
        %4585 = vdwg.mxu0
        %4586 = vrot.lane.b32.xlu0 %v3444, 64
        %v4587 = vpop.permute.xlu0 %4586
        %v4590 = vsel %vm3631, %v4537, 0
        %4592 = vmatprep.subr.bf16.mxu0 0
        %4593 = vmatpush1.bf16.msra.mxu0 %v4587
        %4594 = vmatprep.subr.bf16.mxu0 0
        %4595 = vmatpush1.bf16.msra.mxu0 0
        %4596 = vmatprep.subr.bf16.mxu0 0
        %4597 = vmatpush1.bf16.msra.mxu0 0
        %4598 = vmatprep.subr.bf16.mxu0 0
        %4599 = vmatpush1.bf16.msra.mxu0 0
        %4600 = vmatprep.subr.bf16.mxu0 0
        %4601 = vmatpush1.bf16.msra.mxu0 0
        %4602 = vmatprep.subr.bf16.mxu0 0
        %4603 = vmatpush1.bf16.msra.mxu0 0
        %4604 = vmatprep.subr.bf16.mxu0 0
        %4605 = vmatpush1.bf16.msra.mxu0 0
        %4606 = vmatprep.subr.bf16.mxu0 0
        %4607 = vmatpush1.bf16.msra.mxu0 0
        %4608 = vmatprep.subr.bf16.mxu0 0
        %4609 = vmatpush1.bf16.msra.mxu0 0
        %4610 = vmatprep.subr.bf16.mxu0 0
        %4611 = vmatpush1.bf16.msra.mxu0 0
        %4612 = vmatprep.subr.bf16.mxu0 0
        %4613 = vmatpush1.bf16.msra.mxu0 0
        %4614 = vmatprep.subr.bf16.mxu0 0
        %4615 = vmatpush1.bf16.msra.mxu0 0
        %4616 = vmatprep.subr.bf16.mxu0 0
        %4617 = vmatpush1.bf16.msra.mxu0 0
        %4618 = vmatprep.subr.bf16.mxu0 0
        %4619 = vmatpush1.bf16.msra.mxu0 0
        %4620 = vmatprep.subr.bf16.mxu0 0
        %4621 = vmatpush1.bf16.msra.mxu0 0
        %4622 = vmatprep.subr.bf16.mxu0 0
        %4623 = vmatpush1.bf16.msra.mxu0 0
        %4624 = vmatprep.mubr.bf16.mxu0 0
        %4625 = vmatmul.mubr.bf16.gmra.mrb[0].mxu0 %v4590
        %v4626 = vpop.f32.mrb[0].mxu0
        %v4627 = vadd.f32 0.0, %v4626
        %v4628 = vpop.f32.mrb[0].mxu0
        %v4629 = vpop.f32.mrb[0].mxu0
        %v4630 = vpop.f32.mrb[0].mxu0
        %4631 = vdwg.mxu0
        %4632 = vrot.lane.b32.xlu0 %v3445, 64
        %v4633 = vpop.permute.xlu0 %4632
        %v4636 = vsel %vm3631, %v4538, 0
        %4638 = vmatprep.subr.bf16.mxu0 0
        %4639 = vmatpush1.bf16.msra.mxu0 %v4633
        %4640 = vmatprep.subr.bf16.mxu0 0
        %4641 = vmatpush1.bf16.msra.mxu0 0
        %4642 = vmatprep.subr.bf16.mxu0 0
        %4643 = vmatpush1.bf16.msra.mxu0 0
        %4644 = vmatprep.subr.bf16.mxu0 0
        %4645 = vmatpush1.bf16.msra.mxu0 0
        %4646 = vmatprep.subr.bf16.mxu0 0
        %4647 = vmatpush1.bf16.msra.mxu0 0
        %4648 = vmatprep.subr.bf16.mxu0 0
        %4649 = vmatpush1.bf16.msra.mxu0 0
        %4650 = vmatprep.subr.bf16.mxu0 0
        %4651 = vmatpush1.bf16.msra.mxu0 0
        %4652 = vmatprep.subr.bf16.mxu0 0
        %4653 = vmatpush1.bf16.msra.mxu0 0
        %4654 = vmatprep.subr.bf16.mxu0 0
        %4655 = vmatpush1.bf16.msra.mxu0 0
        %4656 = vmatprep.subr.bf16.mxu0 0
        %4657 = vmatpush1.bf16.msra.mxu0 0
        %4658 = vmatprep.subr.bf16.mxu0 0
        %4659 = vmatpush1.bf16.msra.mxu0 0
        %4660 = vmatprep.subr.bf16.mxu0 0
        %4661 = vmatpush1.bf16.msra.mxu0 0
        %4662 = vmatprep.subr.bf16.mxu0 0
        %4663 = vmatpush1.bf16.msra.mxu0 0
        %4664 = vmatprep.subr.bf16.mxu0 0
        %4665 = vmatpush1.bf16.msra.mxu0 0
        %4666 = vmatprep.subr.bf16.mxu0 0
        %4667 = vmatpush1.bf16.msra.mxu0 0
        %4668 = vmatprep.subr.bf16.mxu0 0
        %4669 = vmatpush1.bf16.msra.mxu0 0
        %4670 = vmatprep.mubr.bf16.mxu0 0
        %4671 = vmatmul.mubr.bf16.gmra.mrb[0].mxu0 %v4636
        %v4672 = vpop.f32.mrb[0].mxu0
        %v4673 = vadd.f32 0.0, %v4672
        %v4674 = vpop.f32.mrb[0].mxu0
        %v4675 = vpop.f32.mrb[0].mxu0
        %v4676 = vpop.f32.mrb[0].mxu0
        %4677 = vdwg.mxu0
        %4678 = vrot.lane.b32.xlu0 %v3446, 64
        %v4679 = vpop.permute.xlu0 %4678
        %v4682 = vsel %vm3631, %v4539, 0
        %4684 = vmatprep.subr.bf16.mxu0 0
        %4685 = vmatpush1.bf16.msra.mxu0 %v4679
        %4686 = vmatprep.subr.bf16.mxu0 0
        %4687 = vmatpush1.bf16.msra.mxu0 0
        %4688 = vmatprep.subr.bf16.mxu0 0
        %4689 = vmatpush1.bf16.msra.mxu0 0
        %4690 = vmatprep.subr.bf16.mxu0 0
        %4691 = vmatpush1.bf16.msra.mxu0 0
        %4692 = vmatprep.subr.bf16.mxu0 0
        %4693 = vmatpush1.bf16.msra.mxu0 0
        %4694 = vmatprep.subr.bf16.mxu0 0
        %4695 = vmatpush1.bf16.msra.mxu0 0
        %4696 = vmatprep.subr.bf16.mxu0 0
        %4697 = vmatpush1.bf16.msra.mxu0 0
        %4698 = vmatprep.subr.bf16.mxu0 0
        %4699 = vmatpush1.bf16.msra.mxu0 0
        %4700 = vmatprep.subr.bf16.mxu0 0
        %4701 = vmatpush1.bf16.msra.mxu0 0
        %4702 = vmatprep.subr.bf16.mxu0 0
        %4703 = vmatpush1.bf16.msra.mxu0 0
        %4704 = vmatprep.subr.bf16.mxu0 0
        %4705 = vmatpush1.bf16.msra.mxu0 0
        %4706 = vmatprep.subr.bf16.mxu0 0
        %4707 = vmatpush1.bf16.msra.mxu0 0
        %4708 = vmatprep.subr.bf16.mxu0 0
        %4709 = vmatpush1.bf16.msra.mxu0 0
        %4710 = vmatprep.subr.bf16.mxu0 0
        %4711 = vmatpush1.bf16.msra.mxu0 0
        %4712 = vmatprep.subr.bf16.mxu0 0
        %4713 = vmatpush1.bf16.msra.mxu0 0
        %4714 = vmatprep.subr.bf16.mxu0 0
        %4715 = vmatpush1.bf16.msra.mxu0 0
        %4716 = vmatprep.mubr.bf16.mxu0 0
        %4717 = vmatmul.mubr.bf16.gmra.mrb[0].mxu0 %v4682
        %v4718 = vpop.f32.mrb[0].mxu0
        %v4719 = vadd.f32 0.0, %v4718
        %v4720 = vpop.f32.mrb[0].mxu0
        %v4721 = vpop.f32.mrb[0].mxu0
        %v4722 = vpop.f32.mrb[0].mxu0
        %4723 = vdwg.mxu0
        %4724 = vrot.lane.b32.xlu0 %v3435, 32
        %v4725 = vpop.permute.xlu0 %4724
        %4726 = vrot.lane.b32.xlu0 %v3439, 32
        %v4727 = vpop.permute.xlu0 %4726
        %v4729 = vsel %vm1006, %v4725, 0
        %v4732 = vsel %vm1006, %v4727, 0
        %4734 = vmatprep.subr.bf16.mxu0 0
        %4735 = vmatpush1.bf16.xpose.msra.mxu0 %v4732
        %4736 = vmatprep.subr.bf16.mxu0 0
        %4737 = vmatpush1.bf16.xpose.msra.mxu0 0
        %4738 = vmatprep.subr.bf16.mxu0 0
        %4739 = vmatpush1.bf16.xpose.msra.mxu0 0
        %4740 = vmatprep.subr.bf16.mxu0 0
        %4741 = vmatpush1.bf16.xpose.msra.mxu0 0
        %4742 = vmatprep.subr.bf16.mxu0 0
        %4743 = vmatpush1.bf16.xpose.msra.mxu0 0
        %4744 = vmatprep.subr.bf16.mxu0 0
        %4745 = vmatpush1.bf16.xpose.msra.mxu0 0
        %4746 = vmatprep.subr.bf16.mxu0 0
        %4747 = vmatpush1.bf16.xpose.msra.mxu0 0
        %4748 = vmatprep.subr.bf16.mxu0 0
        %4749 = vmatpush1.bf16.xpose.msra.mxu0 0
        %4750 = vmatprep.subr.bf16.mxu0 0
        %4751 = vmatpush1.bf16.xpose.msra.mxu0 0
        %4752 = vmatprep.subr.bf16.mxu0 0
        %4753 = vmatpush1.bf16.xpose.msra.mxu0 0
        %4754 = vmatprep.subr.bf16.mxu0 0
        %4755 = vmatpush1.bf16.xpose.msra.mxu0 0
        %4756 = vmatprep.subr.bf16.mxu0 0
        %4757 = vmatpush1.bf16.xpose.msra.mxu0 0
        %4758 = vmatprep.subr.bf16.mxu0 0
        %4759 = vmatpush1.bf16.xpose.msra.mxu0 0
        %4760 = vmatprep.subr.bf16.mxu0 0
        %4761 = vmatpush1.bf16.xpose.msra.mxu0 0
        %4762 = vmatprep.subr.bf16.mxu0 0
        %4763 = vmatpush1.bf16.xpose.msra.mxu0 0
        %4764 = vmatprep.subr.bf16.mxu0 0
        %4765 = vmatpush1.bf16.xpose.msra.mxu0 0
        %4766 = vmatprep.mubr.bf16.mxu0 0
        %4767 = vmatmul.mubr.bf16.gmra.mrb[0].mxu0 %v4729
        %v4768 = vpop.f32.mrb[0].mxu0
        %v4769 = vadd.f32 0.0, %v4768
        %v4770 = vpop.f32.mrb[0].mxu0
        %v4771 = vpop.f32.mrb[0].mxu0
        %v4772 = vpop.f32.mrb[0].mxu0
        %4773 = vdwg.mxu0
        %4774 = vrot.lane.b32.xlu0 %v3436, 32
        %v4775 = vpop.permute.xlu0 %4774
        %4776 = vrot.lane.b32.xlu0 %v3440, 32
        %v4777 = vpop.permute.xlu0 %4776
        %v4779 = vsel %vm1006, %v4775, 0
        %v4782 = vsel %vm1006, %v4777, 0
        %4784 = vmatprep.subr.bf16.mxu0 0
        %4785 = vmatpush1.bf16.xpose.msra.mxu0 %v4782
        %4786 = vmatprep.subr.bf16.mxu0 0
        %4787 = vmatpush1.bf16.xpose.msra.mxu0 0
        %4788 = vmatprep.subr.bf16.mxu0 0
        %4789 = vmatpush1.bf16.xpose.msra.mxu0 0
        %4790 = vmatprep.subr.bf16.mxu0 0
        %4791 = vmatpush1.bf16.xpose.msra.mxu0 0
        %4792 = vmatprep.subr.bf16.mxu0 0
        %4793 = vmatpush1.bf16.xpose.msra.mxu0 0
        %4794 = vmatprep.subr.bf16.mxu0 0
        %4795 = vmatpush1.bf16.xpose.msra.mxu0 0
        %4796 = vmatprep.subr.bf16.mxu0 0
        %4797 = vmatpush1.bf16.xpose.msra.mxu0 0
        %4798 = vmatprep.subr.bf16.mxu0 0
        %4799 = vmatpush1.bf16.xpose.msra.mxu0 0
        %4800 = vmatprep.subr.bf16.mxu0 0
        %4801 = vmatpush1.bf16.xpose.msra.mxu0 0
        %4802 = vmatprep.subr.bf16.mxu0 0
        %4803 = vmatpush1.bf16.xpose.msra.mxu0 0
        %4804 = vmatprep.subr.bf16.mxu0 0
        %4805 = vmatpush1.bf16.xpose.msra.mxu0 0
        %4806 = vmatprep.subr.bf16.mxu0 0
        %4807 = vmatpush1.bf16.xpose.msra.mxu0 0
        %4808 = vmatprep.subr.bf16.mxu0 0
        %4809 = vmatpush1.bf16.xpose.msra.mxu0 0
        %4810 = vmatprep.subr.bf16.mxu0 0
        %4811 = vmatpush1.bf16.xpose.msra.mxu0 0
        %4812 = vmatprep.subr.bf16.mxu0 0
        %4813 = vmatpush1.bf16.xpose.msra.mxu0 0
        %4814 = vmatprep.subr.bf16.mxu0 0
        %4815 = vmatpush1.bf16.xpose.msra.mxu0 0
        %4816 = vmatprep.mubr.bf16.mxu0 0
        %4817 = vmatmul.mubr.bf16.gmra.mrb[0].mxu0 %v4779
        %v4818 = vpop.f32.mrb[0].mxu0
        %v4819 = vadd.f32 0.0, %v4818
        %v4820 = vpop.f32.mrb[0].mxu0
        %v4821 = vpop.f32.mrb[0].mxu0
        %v4822 = vpop.f32.mrb[0].mxu0
        %4823 = vdwg.mxu0
        %4824 = vrot.lane.b32.xlu0 %v3437, 32
        %v4825 = vpop.permute.xlu0 %4824
        %4826 = vrot.lane.b32.xlu0 %v3441, 32
        %v4827 = vpop.permute.xlu0 %4826
        %v4829 = vsel %vm1006, %v4825, 0
        %v4832 = vsel %vm1006, %v4827, 0
        %4834 = vmatprep.subr.bf16.mxu0 0
        %4835 = vmatpush1.bf16.xpose.msra.mxu0 %v4832
        %4836 = vmatprep.subr.bf16.mxu0 0
        %4837 = vmatpush1.bf16.xpose.msra.mxu0 0
        %4838 = vmatprep.subr.bf16.mxu0 0
        %4839 = vmatpush1.bf16.xpose.msra.mxu0 0
        %4840 = vmatprep.subr.bf16.mxu0 0
        %4841 = vmatpush1.bf16.xpose.msra.mxu0 0
        %4842 = vmatprep.subr.bf16.mxu0 0
        %4843 = vmatpush1.bf16.xpose.msra.mxu0 0
        %4844 = vmatprep.subr.bf16.mxu0 0
        %4845 = vmatpush1.bf16.xpose.msra.mxu0 0
        %4846 = vmatprep.subr.bf16.mxu0 0
        %4847 = vmatpush1.bf16.xpose.msra.mxu0 0
        %4848 = vmatprep.subr.bf16.mxu0 0
        %4849 = vmatpush1.bf16.xpose.msra.mxu0 0
        %4850 = vmatprep.subr.bf16.mxu0 0
        %4851 = vmatpush1.bf16.xpose.msra.mxu0 0
        %4852 = vmatprep.subr.bf16.mxu0 0
        %4853 = vmatpush1.bf16.xpose.msra.mxu0 0
        %4854 = vmatprep.subr.bf16.mxu0 0
        %4855 = vmatpush1.bf16.xpose.msra.mxu0 0
        %4856 = vmatprep.subr.bf16.mxu0 0
        %4857 = vmatpush1.bf16.xpose.msra.mxu0 0
        %4858 = vmatprep.subr.bf16.mxu0 0
        %4859 = vmatpush1.bf16.xpose.msra.mxu0 0
        %4860 = vmatprep.subr.bf16.mxu0 0
        %4861 = vmatpush1.bf16.xpose.msra.mxu0 0
        %4862 = vmatprep.subr.bf16.mxu0 0
        %4863 = vmatpush1.bf16.xpose.msra.mxu0 0
        %4864 = vmatprep.subr.bf16.mxu0 0
        %4865 = vmatpush1.bf16.xpose.msra.mxu0 0
        %4866 = vmatprep.mubr.bf16.mxu0 0
        %4867 = vmatmul.mubr.bf16.gmra.mrb[0].mxu0 %v4829
        %v4868 = vpop.f32.mrb[0].mxu0
        %v4869 = vadd.f32 0.0, %v4868
        %v4870 = vpop.f32.mrb[0].mxu0
        %v4871 = vpop.f32.mrb[0].mxu0
        %v4872 = vpop.f32.mrb[0].mxu0
        %4873 = vdwg.mxu0
        %4874 = vrot.lane.b32.xlu0 %v3438, 32
        %v4875 = vpop.permute.xlu0 %4874
        %4876 = vrot.lane.b32.xlu0 %v3442, 32
        %v4877 = vpop.permute.xlu0 %4876
        %v4879 = vsel %vm1006, %v4875, 0
        %v4882 = vsel %vm1006, %v4877, 0
        %4884 = vmatprep.subr.bf16.mxu0 0
        %4885 = vmatpush1.bf16.xpose.msra.mxu0 %v4882
        %4886 = vmatprep.subr.bf16.mxu0 0
        %4887 = vmatpush1.bf16.xpose.msra.mxu0 0
        %4888 = vmatprep.subr.bf16.mxu0 0
        %4889 = vmatpush1.bf16.xpose.msra.mxu0 0
        %4890 = vmatprep.subr.bf16.mxu0 0
        %4891 = vmatpush1.bf16.xpose.msra.mxu0 0
        %4892 = vmatprep.subr.bf16.mxu0 0
        %4893 = vmatpush1.bf16.xpose.msra.mxu0 0
        %4894 = vmatprep.subr.bf16.mxu0 0
        %4895 = vmatpush1.bf16.xpose.msra.mxu0 0
        %4896 = vmatprep.subr.bf16.mxu0 0
        %4897 = vmatpush1.bf16.xpose.msra.mxu0 0
        %4898 = vmatprep.subr.bf16.mxu0 0
        %4899 = vmatpush1.bf16.xpose.msra.mxu0 0
        %4900 = vmatprep.subr.bf16.mxu0 0
        %4901 = vmatpush1.bf16.xpose.msra.mxu0 0
        %4902 = vmatprep.subr.bf16.mxu0 0
        %4903 = vmatpush1.bf16.xpose.msra.mxu0 0
        %4904 = vmatprep.subr.bf16.mxu0 0
        %4905 = vmatpush1.bf16.xpose.msra.mxu0 0
        %4906 = vmatprep.subr.bf16.mxu0 0
        %4907 = vmatpush1.bf16.xpose.msra.mxu0 0
        %4908 = vmatprep.subr.bf16.mxu0 0
        %4909 = vmatpush1.bf16.xpose.msra.mxu0 0
        %4910 = vmatprep.subr.bf16.mxu0 0
        %4911 = vmatpush1.bf16.xpose.msra.mxu0 0
        %4912 = vmatprep.subr.bf16.mxu0 0
        %4913 = vmatpush1.bf16.xpose.msra.mxu0 0
        %4914 = vmatprep.subr.bf16.mxu0 0
        %4915 = vmatpush1.bf16.xpose.msra.mxu0 0
        %4916 = vmatprep.mubr.bf16.mxu0 0
        %4917 = vmatmul.mubr.bf16.gmra.mrb[0].mxu0 %v4879
        %v4918 = vpop.f32.mrb[0].mxu0
        %v4919 = vadd.f32 0.0, %v4918
        %v4920 = vpop.f32.mrb[0].mxu0
        %v4921 = vpop.f32.mrb[0].mxu0
        %v4922 = vpop.f32.mrb[0].mxu0
        %4923 = vdwg.mxu0
        %v4924 = vsel %vm3631, %v4769, -inf
        %4925 = vmax.xlane.f32.xlu0 %v4924
        %v4926 = vpop.xlane.xlu0 %4925
        %v4927 = vsel %vm3631, %v4819, -inf
        %4928 = vmax.xlane.f32.xlu0 %v4927
        %v4929 = vpop.xlane.xlu0 %4928
        %v4930 = vsel %vm3631, %v4869, -inf
        %4931 = vmax.xlane.f32.xlu0 %v4930
        %v4932 = vpop.xlane.xlu0 %4931
        %v4933 = vsel %vm3631, %v4919, -inf
        %4934 = vmax.xlane.f32.xlu0 %v4933
        %v4935 = vpop.xlane.xlu0 %4934
        %v4936 = vsub.f32 %v4769, %v4926
        %v4937 = vsub.f32 %v4819, %v4929
        %v4938 = vsub.f32 %v4869, %v4932
        %v4939 = vsub.f32 %v4919, %v4935
        %v4940 = vmul.f32 %v4936, 1.442695
        %v4941 = vpow.pop %v4940
        %v4942 = vmul.f32 %v4937, 1.442695
        %v4943 = vpow.pop %v4942
        %v4944 = vmul.f32 %v4938, 1.442695
        %v4945 = vpow.pop %v4944
        %v4946 = vmul.f32 %v4939, 1.442695
        %v4947 = vpow.pop %v4946
        %v4948 = vsel %vm3631, %v4941, 0.0
        %4949 = vadd.xlane.f32.xlu0 %v4948
        %v4950 = vpop.xlane.xlu0 %4949
        %v4951 = vsel %vm3631, %v4943, 0.0
        %4952 = vadd.xlane.f32.xlu0 %v4951
        %v4953 = vpop.xlane.xlu0 %4952
        %v4954 = vsel %vm3631, %v4945, 0.0
        %4955 = vadd.xlane.f32.xlu0 %v4954
        %v4956 = vpop.xlane.xlu0 %4955
        %v4957 = vsel %vm3631, %v4947, 0.0
        %4958 = vadd.xlane.f32.xlu0 %v4957
        %v4959 = vpop.xlane.xlu0 %4958
        %v4960 = vrcp.pop %v4950
        %v4961 = vrcp.pop %v4953
        %v4962 = vrcp.pop %v4956
        %v4963 = vrcp.pop %v4959
        %v4964 = vmul.f32 %v4941, %v4960
        %v4965 = vmul.f32 %v4943, %v4961
        %v4966 = vmul.f32 %v4945, %v4962
        %v4967 = vmul.f32 %v4947, %v4963
        %v4968 = vpack.c.bf16 %v4964, %v4964
        %v4969 = vpack.c.bf16 %v4965, %v4965
        %v4970 = vpack.c.bf16 %v4966, %v4966
        %v4971 = vpack.c.bf16 %v4967, %v4967
        %4972 = vrot.lane.b32.xlu0 %v3443, 32
        %v4973 = vpop.permute.xlu0 %4972
        %v4976 = vsel %vm3631, %v4968, 0
        %4978 = vmatprep.subr.bf16.mxu0 0
        %4979 = vmatpush1.bf16.msra.mxu0 %v4973
        %4980 = vmatprep.subr.bf16.mxu0 0
        %4981 = vmatpush1.bf16.msra.mxu0 0
        %4982 = vmatprep.subr.bf16.mxu0 0
        %4983 = vmatpush1.bf16.msra.mxu0 0
        %4984 = vmatprep.subr.bf16.mxu0 0
        %4985 = vmatpush1.bf16.msra.mxu0 0
        %4986 = vmatprep.subr.bf16.mxu0 0
        %4987 = vmatpush1.bf16.msra.mxu0 0
        %4988 = vmatprep.subr.bf16.mxu0 0
        %4989 = vmatpush1.bf16.msra.mxu0 0
        %4990 = vmatprep.subr.bf16.mxu0 0
        %4991 = vmatpush1.bf16.msra.mxu0 0
        %4992 = vmatprep.subr.bf16.mxu0 0
        %4993 = vmatpush1.bf16.msra.mxu0 0
        %4994 = vmatprep.subr.bf16.mxu0 0
        %4995 = vmatpush1.bf16.msra.mxu0 0
        %4996 = vmatprep.subr.bf16.mxu0 0
        %4997 = vmatpush1.bf16.msra.mxu0 0
        %4998 = vmatprep.subr.bf16.mxu0 0
        %4999 = vmatpush1.bf16.msra.mxu0 0
        %5000 = vmatprep.subr.bf16.mxu0 0
        %5001 = vmatpush1.bf16.msra.mxu0 0
        %5002 = vmatprep.subr.bf16.mxu0 0
        %5003 = vmatpush1.bf16.msra.mxu0 0
        %5004 = vmatprep.subr.bf16.mxu0 0
        %5005 = vmatpush1.bf16.msra.mxu0 0
        %5006 = vmatprep.subr.bf16.mxu0 0
        %5007 = vmatpush1.bf16.msra.mxu0 0
        %5008 = vmatprep.subr.bf16.mxu0 0
        %5009 = vmatpush1.bf16.msra.mxu0 0
        %5010 = vmatprep.mubr.bf16.mxu0 0
        %5011 = vmatmul.mubr.bf16.gmra.mrb[0].mxu0 %v4976
        %v5012 = vpop.f32.mrb[0].mxu0
        %v5013 = vadd.f32 0.0, %v5012
        %v5014 = vpop.f32.mrb[0].mxu0
        %v5015 = vpop.f32.mrb[0].mxu0
        %v5016 = vpop.f32.mrb[0].mxu0
        %5017 = vdwg.mxu0
        %5018 = vrot.lane.b32.xlu0 %v3444, 32
        %v5019 = vpop.permute.xlu0 %5018
        %v5022 = vsel %vm3631, %v4969, 0
        %5024 = vmatprep.subr.bf16.mxu0 0
        %5025 = vmatpush1.bf16.msra.mxu0 %v5019
        %5026 = vmatprep.subr.bf16.mxu0 0
        %5027 = vmatpush1.bf16.msra.mxu0 0
        %5028 = vmatprep.subr.bf16.mxu0 0
        %5029 = vmatpush1.bf16.msra.mxu0 0
        %5030 = vmatprep.subr.bf16.mxu0 0
        %5031 = vmatpush1.bf16.msra.mxu0 0
        %5032 = vmatprep.subr.bf16.mxu0 0
        %5033 = vmatpush1.bf16.msra.mxu0 0
        %5034 = vmatprep.subr.bf16.mxu0 0
        %5035 = vmatpush1.bf16.msra.mxu0 0
        %5036 = vmatprep.subr.bf16.mxu0 0
        %5037 = vmatpush1.bf16.msra.mxu0 0
        %5038 = vmatprep.subr.bf16.mxu0 0
        %5039 = vmatpush1.bf16.msra.mxu0 0
        %5040 = vmatprep.subr.bf16.mxu0 0
        %5041 = vmatpush1.bf16.msra.mxu0 0
        %5042 = vmatprep.subr.bf16.mxu0 0
        %5043 = vmatpush1.bf16.msra.mxu0 0
        %5044 = vmatprep.subr.bf16.mxu0 0
        %5045 = vmatpush1.bf16.msra.mxu0 0
        %5046 = vmatprep.subr.bf16.mxu0 0
        %5047 = vmatpush1.bf16.msra.mxu0 0
        %5048 = vmatprep.subr.bf16.mxu0 0
        %5049 = vmatpush1.bf16.msra.mxu0 0
        %5050 = vmatprep.subr.bf16.mxu0 0
        %5051 = vmatpush1.bf16.msra.mxu0 0
        %5052 = vmatprep.subr.bf16.mxu0 0
        %5053 = vmatpush1.bf16.msra.mxu0 0
        %5054 = vmatprep.subr.bf16.mxu0 0
        %5055 = vmatpush1.bf16.msra.mxu0 0
        %5056 = vmatprep.mubr.bf16.mxu0 0
        %5057 = vmatmul.mubr.bf16.gmra.mrb[0].mxu0 %v5022
        %v5058 = vpop.f32.mrb[0].mxu0
        %v5059 = vadd.f32 0.0, %v5058
        %v5060 = vpop.f32.mrb[0].mxu0
        %v5061 = vpop.f32.mrb[0].mxu0
        %v5062 = vpop.f32.mrb[0].mxu0
        %5063 = vdwg.mxu0
        %5064 = vrot.lane.b32.xlu0 %v3445, 32
        %v5065 = vpop.permute.xlu0 %5064
        %v5068 = vsel %vm3631, %v4970, 0
        %5070 = vmatprep.subr.bf16.mxu0 0
        %5071 = vmatpush1.bf16.msra.mxu0 %v5065
        %5072 = vmatprep.subr.bf16.mxu0 0
        %5073 = vmatpush1.bf16.msra.mxu0 0
        %5074 = vmatprep.subr.bf16.mxu0 0
        %5075 = vmatpush1.bf16.msra.mxu0 0
        %5076 = vmatprep.subr.bf16.mxu0 0
        %5077 = vmatpush1.bf16.msra.mxu0 0
        %5078 = vmatprep.subr.bf16.mxu0 0
        %5079 = vmatpush1.bf16.msra.mxu0 0
        %5080 = vmatprep.subr.bf16.mxu0 0
        %5081 = vmatpush1.bf16.msra.mxu0 0
        %5082 = vmatprep.subr.bf16.mxu0 0
        %5083 = vmatpush1.bf16.msra.mxu0 0
        %5084 = vmatprep.subr.bf16.mxu0 0
        %5085 = vmatpush1.bf16.msra.mxu0 0
        %5086 = vmatprep.subr.bf16.mxu0 0
        %5087 = vmatpush1.bf16.msra.mxu0 0
        %5088 = vmatprep.subr.bf16.mxu0 0
        %5089 = vmatpush1.bf16.msra.mxu0 0
        %5090 = vmatprep.subr.bf16.mxu0 0
        %5091 = vmatpush1.bf16.msra.mxu0 0
        %5092 = vmatprep.subr.bf16.mxu0 0
        %5093 = vmatpush1.bf16.msra.mxu0 0
        %5094 = vmatprep.subr.bf16.mxu0 0
        %5095 = vmatpush1.bf16.msra.mxu0 0
        %5096 = vmatprep.subr.bf16.mxu0 0
        %5097 = vmatpush1.bf16.msra.mxu0 0
        %5098 = vmatprep.subr.bf16.mxu0 0
        %5099 = vmatpush1.bf16.msra.mxu0 0
        %5100 = vmatprep.subr.bf16.mxu0 0
        %5101 = vmatpush1.bf16.msra.mxu0 0
        %5102 = vmatprep.mubr.bf16.mxu0 0
        %5103 = vmatmul.mubr.bf16.gmra.mrb[0].mxu0 %v5068
        %v5104 = vpop.f32.mrb[0].mxu0
        %v5105 = vadd.f32 0.0, %v5104
        %v5106 = vpop.f32.mrb[0].mxu0
        %v5107 = vpop.f32.mrb[0].mxu0
        %v5108 = vpop.f32.mrb[0].mxu0
        %5109 = vdwg.mxu0
        %5110 = vrot.lane.b32.xlu0 %v3446, 32
        %v5111 = vpop.permute.xlu0 %5110
        %v5114 = vsel %vm3631, %v4971, 0
        %5116 = vmatprep.subr.bf16.mxu0 0
        %5117 = vmatpush1.bf16.msra.mxu0 %v5111
        %5118 = vmatprep.subr.bf16.mxu0 0
        %5119 = vmatpush1.bf16.msra.mxu0 0
        %5120 = vmatprep.subr.bf16.mxu0 0
        %5121 = vmatpush1.bf16.msra.mxu0 0
        %5122 = vmatprep.subr.bf16.mxu0 0
        %5123 = vmatpush1.bf16.msra.mxu0 0
        %5124 = vmatprep.subr.bf16.mxu0 0
        %5125 = vmatpush1.bf16.msra.mxu0 0
        %5126 = vmatprep.subr.bf16.mxu0 0
        %5127 = vmatpush1.bf16.msra.mxu0 0
        %5128 = vmatprep.subr.bf16.mxu0 0
        %5129 = vmatpush1.bf16.msra.mxu0 0
        %5130 = vmatprep.subr.bf16.mxu0 0
        %5131 = vmatpush1.bf16.msra.mxu0 0
        %5132 = vmatprep.subr.bf16.mxu0 0
        %5133 = vmatpush1.bf16.msra.mxu0 0
        %5134 = vmatprep.subr.bf16.mxu0 0
        %5135 = vmatpush1.bf16.msra.mxu0 0
        %5136 = vmatprep.subr.bf16.mxu0 0
        %5137 = vmatpush1.bf16.msra.mxu0 0
        %5138 = vmatprep.subr.bf16.mxu0 0
        %5139 = vmatpush1.bf16.msra.mxu0 0
        %5140 = vmatprep.subr.bf16.mxu0 0
        %5141 = vmatpush1.bf16.msra.mxu0 0
        %5142 = vmatprep.subr.bf16.mxu0 0
        %5143 = vmatpush1.bf16.msra.mxu0 0
        %5144 = vmatprep.subr.bf16.mxu0 0
        %5145 = vmatpush1.bf16.msra.mxu0 0
        %5146 = vmatprep.subr.bf16.mxu0 0
        %5147 = vmatpush1.bf16.msra.mxu0 0
        %5148 = vmatprep.mubr.bf16.mxu0 0
        %5149 = vmatmul.mubr.bf16.gmra.mrb[0].mxu0 %v5114
        %v5150 = vpop.f32.mrb[0].mxu0
        %v5151 = vadd.f32 0.0, %v5150
        %v5152 = vpop.f32.mrb[0].mxu0
        %v5153 = vpop.f32.mrb[0].mxu0
        %v5154 = vpop.f32.mrb[0].mxu0
        %5155 = vdwg.mxu0
        %5160 = vrot.lane.b32.xlu0 %v4146, 32
        %v5161 = vpop.permute.xlu0 %5160
        %5162 = vrot.lane.b32.xlu0 %v4193, 32
        %v5163 = vpop.permute.xlu0 %5162
        %5164 = vrot.lane.b32.xlu0 %v4240, 32
        %v5165 = vpop.permute.xlu0 %5164
        %5166 = vrot.lane.b32.xlu0 %v4287, 32
        %v5167 = vpop.permute.xlu0 %5166
        %5176 = vrot.lane.b32.xlu0 %v4581, 64
        %v5177 = vpop.permute.xlu0 %5176
        %5178 = vrot.lane.b32.xlu0 %v4627, 64
        %v5179 = vpop.permute.xlu0 %5178
        %5180 = vrot.lane.b32.xlu0 %v4673, 64
        %v5181 = vpop.permute.xlu0 %5180
        %5182 = vrot.lane.b32.xlu0 %v4719, 64
        %v5183 = vpop.permute.xlu0 %5182
        %5192 = vrot.lane.b32.xlu0 %v5013, 96
        %v5193 = vpop.permute.xlu0 %5192
        %5194 = vrot.lane.b32.xlu0 %v5059, 96
        %v5195 = vpop.permute.xlu0 %5194
        %5196 = vrot.lane.b32.xlu0 %v5105, 96
        %v5197 = vpop.permute.xlu0 %5196
        %5198 = vrot.lane.b32.xlu0 %v5151, 96
        %v5199 = vpop.permute.xlu0 %5198
        %v5204 = vsel %vm1006, %v3718, %v5161
        %v5205 = vsel %vm1006, %v3761, %v5163
        %v5206 = vsel %vm1006, %v3804, %v5165
        %v5207 = vsel %vm1006, %v3847, %v5167
        %v5208 = vsel %vm2797, %v5204, %v5177
        %v5209 = vsel %vm2797, %v5205, %v5179
        %v5210 = vsel %vm2797, %v5206, %v5181
        %v5211 = vsel %vm2797, %v5207, %v5183
        %v5212 = vsel %vm2802, %v5208, %v5193
        %v5213 = vsel %vm2802, %v5209, %v5195
        %v5214 = vsel %vm2802, %v5210, %v5197
        %v5215 = vsel %vm2802, %v5211, %v5199
        %v5216 = vld [vmem:[#allocation14] sm:$0xf]
        %v5217 = vld [vmem:[#allocation14 + $0x4] sm:$0xf]
        %v5218 = vld [vmem:[#allocation14 + $0x8] sm:$0xf]
        %v5219 = vld [vmem:[#allocation14 + $0xc] sm:$0xf]
        %v5220 = vld [vmem:[#allocation14 + $0x10] sm:$0xf]
        %v5221 = vld [vmem:[#allocation14 + $0x14] sm:$0xf]
        %v5222 = vld [vmem:[#allocation14 + $0x18] sm:$0xf]
        %v5223 = vld [vmem:[#allocation14 + $0x1c] sm:$0xf]
        %v5224 = vld [vmem:[#allocation14 + $0x20] sm:$0xf]
        %v5225 = vld [vmem:[#allocation14 + $0x24] sm:$0xf]
        %v5226 = vld [vmem:[#allocation14 + $0x28] sm:$0xf]
        %v5227 = vld [vmem:[#allocation14 + $0x2c] sm:$0xf]
        %v5228 = vld [vmem:[#allocation14 + $0x30] sm:$0xf]
        %v5229 = vld [vmem:[#allocation14 + $0x34] sm:$0xf]
        %v5230 = vld [vmem:[#allocation14 + $0x38] sm:$0xf]
        %v5231 = vld [vmem:[#allocation14 + $0x3c] sm:$0xf]
        %v5232 = vpack.c.bf16 %v5213, %v5212
        %v5233 = vpack.c.bf16 %v5215, %v5214
        %v5234 = vlaneseq
        %v5235 = vshrl.u32 %v5234, 7
        %v5236 = vsub.s32 5, %v5235
        %v5237 = vrot.slane %v592, %v5236
        %v5254 = vunpack.c.l.b16 %v5216
        %v5255 = vunpack.c.l.b16 %v5217
        %v5256 = vunpack.c.l.b16 %v5218
        %v5257 = vunpack.c.l.b16 %v5219
        %v5258 = vunpack.c.l.b16 %v5220
        %v5259 = vunpack.c.l.b16 %v5221
        %v5260 = vunpack.c.l.b16 %v5222
        %v5261 = vunpack.c.l.b16 %v5223
        %v5262 = vunpack.c.l.b16 %v5224
        %v5263 = vunpack.c.l.b16 %v5225
        %v5264 = vunpack.c.l.b16 %v5226
        %v5265 = vunpack.c.l.b16 %v5227
        %v5266 = vunpack.c.l.b16 %v5228
        %v5267 = vunpack.c.l.b16 %v5229
        %v5268 = vunpack.c.l.b16 %v5230
        %v5269 = vunpack.c.l.b16 %v5231
        %v5270 = vpack.c.b16 %v5255, %v5254
        %v5271 = vpack.c.b16 %v5257, %v5256
        %v5272 = vpack.c.b16 %v5259, %v5258
        %v5273 = vpack.c.b16 %v5261, %v5260
        %v5274 = vpack.c.b16 %v5263, %v5262
        %v5275 = vpack.c.b16 %v5265, %v5264
        %v5276 = vpack.c.b16 %v5267, %v5266
        %v5277 = vpack.c.b16 %v5269, %v5268
        %5286 = vmatprep.subr.bf16.mxu0 0
        %5287 = vmatpush1.bf16.msra.mxu0 %v5270
        %5288 = vmatprep.subr.bf16.mxu0 0
        %5289 = vmatpush1.bf16.msra.mxu0 %v5271
        %5290 = vmatprep.subr.bf16.mxu0 0
        %5291 = vmatpush1.bf16.msra.mxu0 %v5272
        %5292 = vmatprep.subr.bf16.mxu0 0
        %5293 = vmatpush1.bf16.msra.mxu0 %v5273
        %5294 = vmatprep.subr.bf16.mxu0 0
        %5295 = vmatpush1.bf16.msra.mxu0 %v5274
        %5296 = vmatprep.subr.bf16.mxu0 0
        %5297 = vmatpush1.bf16.msra.mxu0 %v5275
        %5298 = vmatprep.subr.bf16.mxu0 0
        %5299 = vmatpush1.bf16.msra.mxu0 %v5276
        %5300 = vmatprep.subr.bf16.mxu0 0
        %5301 = vmatpush1.bf16.msra.mxu0 %v5277
        %5302 = vmatprep.subr.bf16.mxu0 0
        %5303 = vmatpush1.bf16.msra.mxu0 0
        %5304 = vmatprep.subr.bf16.mxu0 0
        %5305 = vmatpush1.bf16.msra.mxu0 0
        %5306 = vmatprep.subr.bf16.mxu0 0
        %5307 = vmatpush1.bf16.msra.mxu0 0
        %5308 = vmatprep.subr.bf16.mxu0 0
        %5309 = vmatpush1.bf16.msra.mxu0 0
        %5310 = vmatprep.subr.bf16.mxu0 0
        %5311 = vmatpush1.bf16.msra.mxu0 0
        %5312 = vmatprep.subr.bf16.mxu0 0
        %5313 = vmatpush1.bf16.msra.mxu0 0
        %5314 = vmatprep.subr.bf16.mxu0 0
        %5315 = vmatpush1.bf16.msra.mxu0 0
        %5316 = vmatprep.subr.bf16.mxu0 0
        %5317 = vmatpush1.bf16.msra.mxu0 0
        %5318 = vmatprep.mubr.bf16.mxu0 0
        %5319 = vmatmul.mubr.bf16.gmra.mrb[0].mxu0 %v5232
        %v5320 = vpop.f32.mrb[0].mxu0
        %v5321 = vadd.f32 %v5237, %v5320
        %v5322 = vpop.f32.mrb[0].mxu0
        %v5323 = vpop.f32.mrb[0].mxu0
        %v5324 = vadd.f32 %v5237, %v5323
        %v5325 = vpop.f32.mrb[0].mxu0
        %5326 = vmatprep.mubr.bf16.mxu0 0
        %5327 = vmatmul.mubr.bf16.gmra.mrb[0].mxu0 %v5233
        %v5328 = vpop.f32.mrb[0].mxu0
        %v5329 = vadd.f32 %v5237, %v5328
        %v5330 = vpop.f32.mrb[0].mxu0
        %v5331 = vpop.f32.mrb[0].mxu0
        %v5332 = vadd.f32 %v5237, %v5331
        %v5333 = vpop.f32.mrb[0].mxu0
        %5334 = vdwg.mxu0
        %v5335 = vadd.f32 %v2986, %v5321
        %v5336 = vadd.f32 %v2987, %v5324
        %v5337 = vadd.f32 %v2988, %v5329
        %v5338 = vadd.f32 %v2989, %v5332
        %5339 = vadd.xlane.f32.xlu0 %v5335
        %v5340 = vpop.xlane.xlu0 %5339
        %5341 = vadd.xlane.f32.xlu0 %v5336
        %v5342 = vpop.xlane.xlu0 %5341
        %5343 = vadd.xlane.f32.xlu0 %v5337
        %v5344 = vpop.xlane.xlu0 %5343
        %5345 = vadd.xlane.f32.xlu0 %v5338
        %v5346 = vpop.xlane.xlu0 %5345
        %v5347 = vmul.f32 %v5340, %v625
        %v5348 = vmul.f32 %v5342, %v625
        %v5349 = vmul.f32 %v5344, %v625
        %v5350 = vmul.f32 %v5346, %v625
        %v5351 = vsub.f32 %v5335, %v5347
        %v5352 = vsub.f32 %v5336, %v5348
        %v5353 = vsub.f32 %v5337, %v5349
        %v5354 = vsub.f32 %v5338, %v5350
        %v5355 = vmul.f32 %v5351, %v5351
        %v5356 = vmul.f32 %v5352, %v5352
        %v5357 = vmul.f32 %v5353, %v5353
        %v5358 = vmul.f32 %v5354, %v5354
        %5359 = vadd.xlane.f32.xlu0 %v5355
        %v5360 = vpop.xlane.xlu0 %5359
        %5361 = vadd.xlane.f32.xlu0 %v5356
        %v5362 = vpop.xlane.xlu0 %5361
        %5363 = vadd.xlane.f32.xlu0 %v5357
        %v5364 = vpop.xlane.xlu0 %5363
        %5365 = vadd.xlane.f32.xlu0 %v5358
        %v5366 = vpop.xlane.xlu0 %5365
        %v5367 = vmul.f32 %v5360, %v625
        %v5368 = vmul.f32 %v5362, %v625
        %v5369 = vmul.f32 %v5364, %v625
        %v5370 = vmul.f32 %v5366, %v625
        %v5371 = vadd.f32 %v5367, 1e-05
        %v5372 = vadd.f32 %v5368, 1e-05
        %v5373 = vadd.f32 %v5369, 1e-05
        %v5374 = vadd.f32 %v5370, 1e-05
        %v5375 = vrsqrt.pop %v5371
        %v5376 = vrsqrt.pop %v5372
        %v5377 = vrsqrt.pop %v5373
        %v5378 = vrsqrt.pop %v5374
        %v5379 = vmul.f32 %v5351, %v5375
        %v5380 = vmul.f32 %v5352, %v5376
        %v5381 = vmul.f32 %v5353, %v5377
        %v5382 = vmul.f32 %v5354, %v5378
        %v5383 = vlaneseq
        %v5384 = vshrl.u32 %v5383, 7
        %v5385 = vsub.s32 4, %v5384
        %v5386 = vrot.slane %v591, %v5385
        %v5387 = vmul.f32 %v5379, %v5386
        %v5388 = vmul.f32 %v5380, %v5386
        %v5389 = vmul.f32 %v5381, %v5386
        %v5390 = vmul.f32 %v5382, %v5386
        %v5391 = vlaneseq
        %v5392 = vshrl.u32 %v5391, 7
        %v5393 = vsub.s32 5, %v5392
        %v5394 = vrot.slane %v591, %v5393
        %v5395 = vadd.f32 %v5387, %v5394
        %v5396 = vadd.f32 %v5388, %v5394
        %v5397 = vadd.f32 %v5389, %v5394
        %v5398 = vadd.f32 %v5390, %v5394
        %v5399 = vld [vmem:[#allocation16] sm:$0xff]
        %v5400 = vld [vmem:[#allocation16 + $0x8] sm:$0xff]
        %v5401 = vld [vmem:[#allocation16 + $0x10] sm:$0xff]
        %v5402 = vld [vmem:[#allocation16 + $0x18] sm:$0xff]
        %v5403 = vld [vmem:[#allocation16 + $0x20] sm:$0xff]
        %v5404 = vld [vmem:[#allocation16 + $0x28] sm:$0xff]
        %v5405 = vld [vmem:[#allocation16 + $0x30] sm:$0xff]
        %v5406 = vld [vmem:[#allocation16 + $0x38] sm:$0xff]
        %v5407 = vld [vmem:[#allocation16 + $0x40] sm:$0xff]
        %v5408 = vld [vmem:[#allocation16 + $0x48] sm:$0xff]
        %v5409 = vld [vmem:[#allocation16 + $0x50] sm:$0xff]
        %v5410 = vld [vmem:[#allocation16 + $0x58] sm:$0xff]
        %v5411 = vld [vmem:[#allocation16 + $0x60] sm:$0xff]
        %v5412 = vld [vmem:[#allocation16 + $0x68] sm:$0xff]
        %v5413 = vld [vmem:[#allocation16 + $0x70] sm:$0xff]
        %v5414 = vld [vmem:[#allocation16 + $0x78] sm:$0xff]
        %v5415 = vpack.c.bf16 %v5396, %v5395
        %v5416 = vpack.c.bf16 %v5398, %v5397
        %v5417 = vld [vmem:[%s4] sm:$0x3]
        %v5419 = vlaneseq
        %v5420 = vshrl.u32 %v5419, 7
        %v5421 = vsub.s32 0, %v5420
        %v5422 = vrot.slane %v5417, %v5421
        %v5423 = vlaneseq
        %v5424 = vshrl.u32 %v5423, 7
        %v5425 = vsub.s32 1, %v5424
        %v5426 = vrot.slane %v5417, %v5425
        %v5445 = vunpack.c.l.b16 %v5399
        %v5446 = vunpack.c.h.b16 %v5399
        %v5447 = vunpack.c.l.b16 %v5400
        %v5448 = vunpack.c.h.b16 %v5400
        %v5449 = vunpack.c.l.b16 %v5401
        %v5450 = vunpack.c.h.b16 %v5401
        %v5451 = vunpack.c.l.b16 %v5402
        %v5452 = vunpack.c.h.b16 %v5402
        %v5453 = vunpack.c.l.b16 %v5403
        %v5454 = vunpack.c.h.b16 %v5403
        %v5455 = vunpack.c.l.b16 %v5404
        %v5456 = vunpack.c.h.b16 %v5404
        %v5457 = vunpack.c.l.b16 %v5405
        %v5458 = vunpack.c.h.b16 %v5405
        %v5459 = vunpack.c.l.b16 %v5406
        %v5460 = vunpack.c.h.b16 %v5406
        %v5461 = vunpack.c.l.b16 %v5407
        %v5462 = vunpack.c.h.b16 %v5407
        %v5463 = vunpack.c.l.b16 %v5408
        %v5464 = vunpack.c.h.b16 %v5408
        %v5465 = vunpack.c.l.b16 %v5409
        %v5466 = vunpack.c.h.b16 %v5409
        %v5467 = vunpack.c.l.b16 %v5410
        %v5468 = vunpack.c.h.b16 %v5410
        %v5469 = vunpack.c.l.b16 %v5411
        %v5470 = vunpack.c.h.b16 %v5411
        %v5471 = vunpack.c.l.b16 %v5412
        %v5472 = vunpack.c.h.b16 %v5412
        %v5473 = vunpack.c.l.b16 %v5413
        %v5474 = vunpack.c.h.b16 %v5413
        %v5475 = vunpack.c.l.b16 %v5414
        %v5476 = vunpack.c.h.b16 %v5414
        %v5477 = vpack.c.b16 %v5447, %v5445
        %v5478 = vpack.c.b16 %v5448, %v5446
        %v5479 = vpack.c.b16 %v5451, %v5449
        %v5480 = vpack.c.b16 %v5452, %v5450
        %v5481 = vpack.c.b16 %v5455, %v5453
        %v5482 = vpack.c.b16 %v5456, %v5454
        %v5483 = vpack.c.b16 %v5459, %v5457
        %v5484 = vpack.c.b16 %v5460, %v5458
        %v5485 = vpack.c.b16 %v5463, %v5461
        %v5486 = vpack.c.b16 %v5464, %v5462
        %v5487 = vpack.c.b16 %v5467, %v5465
        %v5488 = vpack.c.b16 %v5468, %v5466
        %v5489 = vpack.c.b16 %v5471, %v5469
        %v5490 = vpack.c.b16 %v5472, %v5470
        %v5491 = vpack.c.b16 %v5475, %v5473
        %v5492 = vpack.c.b16 %v5476, %v5474
        %5509 = vmatprep.subr.bf16.mxu0 %v5478
        %5510 = vmatpush1.bf16.msra.mxu0 %v5477
        %5511 = vmatprep.subr.bf16.mxu0 %v5480
        %5512 = vmatpush1.bf16.msra.mxu0 %v5479
        %5513 = vmatprep.subr.bf16.mxu0 %v5482
        %5514 = vmatpush1.bf16.msra.mxu0 %v5481
        %5515 = vmatprep.subr.bf16.mxu0 %v5484
        %5516 = vmatpush1.bf16.msra.mxu0 %v5483
        %5517 = vmatprep.subr.bf16.mxu0 %v5486
        %5518 = vmatpush1.bf16.msra.mxu0 %v5485
        %5519 = vmatprep.subr.bf16.mxu0 %v5488
        %5520 = vmatpush1.bf16.msra.mxu0 %v5487
        %5521 = vmatprep.subr.bf16.mxu0 %v5490
        %5522 = vmatpush1.bf16.msra.mxu0 %v5489
        %5523 = vmatprep.subr.bf16.mxu0 %v5492
        %5524 = vmatpush1.bf16.msra.mxu0 %v5491
        %5525 = vmatprep.subr.bf16.mxu0 0
        %5526 = vmatpush1.bf16.msra.mxu0 0
        %5527 = vmatprep.subr.bf16.mxu0 0
        %5528 = vmatpush1.bf16.msra.mxu0 0
        %5529 = vmatprep.subr.bf16.mxu0 0
        %5530 = vmatpush1.bf16.msra.mxu0 0
        %5531 = vmatprep.subr.bf16.mxu0 0
        %5532 = vmatpush1.bf16.msra.mxu0 0
        %5533 = vmatprep.subr.bf16.mxu0 0
        %5534 = vmatpush1.bf16.msra.mxu0 0
        %5535 = vmatprep.subr.bf16.mxu0 0
        %5536 = vmatpush1.bf16.msra.mxu0 0
        %5537 = vmatprep.subr.bf16.mxu0 0
        %5538 = vmatpush1.bf16.msra.mxu0 0
        %5539 = vmatprep.subr.bf16.mxu0 0
        %5540 = vmatpush1.bf16.msra.mxu0 0
        %5541 = vmatprep.mubr.bf16.mxu0 0
        %5542 = vmatmul.mubr.bf16.gmra.mrb[0].mxu0 %v5415
        %v5543 = vpop.f32.mrb[0].mxu0
        %v5544 = vadd.f32 %v5422, %v5543
        %v5545 = vpop.f32.mrb[0].mxu0
        %v5546 = vadd.f32 %v5426, %v5545
        %v5547 = vpop.f32.mrb[0].mxu0
        %v5548 = vadd.f32 %v5422, %v5547
        %v5549 = vpop.f32.mrb[0].mxu0
        %v5550 = vadd.f32 %v5426, %v5549
        %5551 = vmatprep.mubr.bf16.mxu0 0
        %5552 = vmatmul.mubr.bf16.gmra.mrb[0].mxu0 %v5416
        %v5553 = vpop.f32.mrb[0].mxu0
        %v5554 = vadd.f32 %v5422, %v5553
        %v5555 = vpop.f32.mrb[0].mxu0
        %v5556 = vadd.f32 %v5426, %v5555
        %v5557 = vpop.f32.mrb[0].mxu0
        %v5558 = vadd.f32 %v5422, %v5557
        %v5559 = vpop.f32.mrb[0].mxu0
        %v5560 = vadd.f32 %v5426, %v5559
        %5561 = vdwg.mxu0
        %v5562 = vmul.f32 %v5544, 0.5
        %v5563 = vmul.f32 %v5546, 0.5
        %v5564 = vmul.f32 %v5548, 0.5
        %v5565 = vmul.f32 %v5550, 0.5
        %v5566 = vmul.f32 %v5554, 0.5
        %v5567 = vmul.f32 %v5556, 0.5
        %v5568 = vmul.f32 %v5558, 0.5
        %v5569 = vmul.f32 %v5560, 0.5
        %v5570 = vmul.f32 %v5544, 0.044715
        %v5571 = vmul.f32 %v5546, 0.044715
        %v5572 = vmul.f32 %v5548, 0.044715
        %v5573 = vmul.f32 %v5550, 0.044715
        %v5574 = vmul.f32 %v5554, 0.044715
        %v5575 = vmul.f32 %v5556, 0.044715
        %v5576 = vmul.f32 %v5558, 0.044715
        %v5577 = vmul.f32 %v5560, 0.044715
        %v5578 = vmul.f32 %v5570, %v5544
        %v5579 = vmul.f32 %v5571, %v5546
        %v5580 = vmul.f32 %v5572, %v5548
        %v5581 = vmul.f32 %v5573, %v5550
        %v5582 = vmul.f32 %v5574, %v5554
        %v5583 = vmul.f32 %v5575, %v5556
        %v5584 = vmul.f32 %v5576, %v5558
        %v5585 = vmul.f32 %v5577, %v5560
        %v5586 = vmul.f32 %v5578, %v5544
        %v5587 = vmul.f32 %v5579, %v5546
        %v5588 = vmul.f32 %v5580, %v5548
        %v5589 = vmul.f32 %v5581, %v5550
        %v5590 = vmul.f32 %v5582, %v5554
        %v5591 = vmul.f32 %v5583, %v5556
        %v5592 = vmul.f32 %v5584, %v5558
        %v5593 = vmul.f32 %v5585, %v5560
        %v5594 = vadd.f32 %v5544, %v5586
        %v5595 = vadd.f32 %v5546, %v5587
        %v5596 = vadd.f32 %v5548, %v5588
        %v5597 = vadd.f32 %v5550, %v5589
        %v5598 = vadd.f32 %v5554, %v5590
        %v5599 = vadd.f32 %v5556, %v5591
        %v5600 = vadd.f32 %v5558, %v5592
        %v5601 = vadd.f32 %v5560, %v5593
        %v5602 = vmul.f32 %v5594, 0.7978846
        %v5603 = vmul.f32 %v5595, 0.7978846
        %v5604 = vmul.f32 %v5596, 0.7978846
        %v5605 = vmul.f32 %v5597, 0.7978846
        %v5606 = vmul.f32 %v5598, 0.7978846
        %v5607 = vmul.f32 %v5599, 0.7978846
        %v5608 = vmul.f32 %v5600, 0.7978846
        %v5609 = vmul.f32 %v5601, 0.7978846
        %v5610 = vtanh.pop %v5602
        %v5611 = vtanh.pop %v5603
        %v5612 = vtanh.pop %v5604
        %v5613 = vtanh.pop %v5605
        %v5614 = vtanh.pop %v5606
        %v5615 = vtanh.pop %v5607
        %v5616 = vtanh.pop %v5608
        %v5617 = vtanh.pop %v5609
        %v5618 = vadd.f32 %v5610, 1.0
        %v5619 = vadd.f32 %v5611, 1.0
        %v5620 = vadd.f32 %v5612, 1.0
        %v5621 = vadd.f32 %v5613, 1.0
        %v5622 = vadd.f32 %v5614, 1.0
        %v5623 = vadd.f32 %v5615, 1.0
        %v5624 = vadd.f32 %v5616, 1.0
        %v5625 = vadd.f32 %v5617, 1.0
        %v5626 = vmul.f32 %v5562, %v5618
        %v5627 = vmul.f32 %v5563, %v5619
        %v5628 = vmul.f32 %v5564, %v5620
        %v5629 = vmul.f32 %v5565, %v5621
        %v5630 = vmul.f32 %v5566, %v5622
        %v5631 = vmul.f32 %v5567, %v5623
        %v5632 = vmul.f32 %v5568, %v5624
        %v5633 = vmul.f32 %v5569, %v5625
        %v5634 = vld [vmem:[#allocation17] sm:$0xf]
        %v5635 = vld [vmem:[#allocation17 + $0x4] sm:$0xf]
        %v5636 = vld [vmem:[#allocation17 + $0x8] sm:$0xf]
        %v5637 = vld [vmem:[#allocation17 + $0xc] sm:$0xf]
        %v5638 = vld [vmem:[#allocation17 + $0x10] sm:$0xf]
        %v5639 = vld [vmem:[#allocation17 + $0x14] sm:$0xf]
        %v5640 = vld [vmem:[#allocation17 + $0x18] sm:$0xf]
        %v5641 = vld [vmem:[#allocation17 + $0x1c] sm:$0xf]
        %v5642 = vld [vmem:[#allocation17 + $0x20] sm:$0xf]
        %v5643 = vld [vmem:[#allocation17 + $0x24] sm:$0xf]
        %v5644 = vld [vmem:[#allocation17 + $0x28] sm:$0xf]
        %v5645 = vld [vmem:[#allocation17 + $0x2c] sm:$0xf]
        %v5646 = vld [vmem:[#allocation17 + $0x30] sm:$0xf]
        %v5647 = vld [vmem:[#allocation17 + $0x34] sm:$0xf]
        %v5648 = vld [vmem:[#allocation17 + $0x38] sm:$0xf]
        %v5649 = vld [vmem:[#allocation17 + $0x3c] sm:$0xf]
        %v5650 = vld [vmem:[#allocation17 + $0x40] sm:$0xf]
        %v5651 = vld [vmem:[#allocation17 + $0x44] sm:$0xf]
        %v5652 = vld [vmem:[#allocation17 + $0x48] sm:$0xf]
        %v5653 = vld [vmem:[#allocation17 + $0x4c] sm:$0xf]
        %v5654 = vld [vmem:[#allocation17 + $0x50] sm:$0xf]
        %v5655 = vld [vmem:[#allocation17 + $0x54] sm:$0xf]
        %v5656 = vld [vmem:[#allocation17 + $0x58] sm:$0xf]
        %v5657 = vld [vmem:[#allocation17 + $0x5c] sm:$0xf]
        %v5658 = vld [vmem:[#allocation17 + $0x60] sm:$0xf]
        %v5659 = vld [vmem:[#allocation17 + $0x64] sm:$0xf]
        %v5660 = vld [vmem:[#allocation17 + $0x68] sm:$0xf]
        %v5661 = vld [vmem:[#allocation17 + $0x6c] sm:$0xf]
        %v5662 = vld [vmem:[#allocation17 + $0x70] sm:$0xf]
        %v5663 = vld [vmem:[#allocation17 + $0x74] sm:$0xf]
        %v5664 = vld [vmem:[#allocation17 + $0x78] sm:$0xf]
        %v5665 = vld [vmem:[#allocation17 + $0x7c] sm:$0xf]
        %v5666 = vpack.c.bf16 %v5628, %v5626
        %v5667 = vpack.c.bf16 %v5629, %v5627
        %v5668 = vpack.c.bf16 %v5632, %v5630
        %v5669 = vpack.c.bf16 %v5633, %v5631
        %v5670 = vlaneseq
        %v5671 = vshrl.u32 %v5670, 7
        %v5672 = vsub.s32 6, %v5671
        %v5673 = vrot.slane %v592, %v5672
        %v5706 = vunpack.c.l.b16 %v5634
        %v5707 = vunpack.c.l.b16 %v5635
        %v5708 = vunpack.c.l.b16 %v5636
        %v5709 = vunpack.c.l.b16 %v5637
        %v5710 = vunpack.c.l.b16 %v5638
        %v5711 = vunpack.c.l.b16 %v5639
        %v5712 = vunpack.c.l.b16 %v5640
        %v5713 = vunpack.c.l.b16 %v5641
        %v5714 = vunpack.c.l.b16 %v5642
        %v5715 = vunpack.c.l.b16 %v5643
        %v5716 = vunpack.c.l.b16 %v5644
        %v5717 = vunpack.c.l.b16 %v5645
        %v5718 = vunpack.c.l.b16 %v5646
        %v5719 = vunpack.c.l.b16 %v5647
        %v5720 = vunpack.c.l.b16 %v5648
        %v5721 = vunpack.c.l.b16 %v5649
        %v5722 = vunpack.c.l.b16 %v5650
        %v5723 = vunpack.c.l.b16 %v5651
        %v5724 = vunpack.c.l.b16 %v5652
        %v5725 = vunpack.c.l.b16 %v5653
        %v5726 = vunpack.c.l.b16 %v5654
        %v5727 = vunpack.c.l.b16 %v5655
        %v5728 = vunpack.c.l.b16 %v5656
        %v5729 = vunpack.c.l.b16 %v5657
        %v5730 = vunpack.c.l.b16 %v5658
        %v5731 = vunpack.c.l.b16 %v5659
        %v5732 = vunpack.c.l.b16 %v5660
        %v5733 = vunpack.c.l.b16 %v5661
        %v5734 = vunpack.c.l.b16 %v5662
        %v5735 = vunpack.c.l.b16 %v5663
        %v5736 = vunpack.c.l.b16 %v5664
        %v5737 = vunpack.c.l.b16 %v5665
        %v5738 = vpack.c.b16 %v5707, %v5706
        %v5739 = vpack.c.b16 %v5709, %v5708
        %v5740 = vpack.c.b16 %v5711, %v5710
        %v5741 = vpack.c.b16 %v5713, %v5712
        %v5742 = vpack.c.b16 %v5715, %v5714
        %v5743 = vpack.c.b16 %v5717, %v5716
        %v5744 = vpack.c.b16 %v5719, %v5718
        %v5745 = vpack.c.b16 %v5721, %v5720
        %v5746 = vpack.c.b16 %v5723, %v5722
        %v5747 = vpack.c.b16 %v5725, %v5724
        %v5748 = vpack.c.b16 %v5727, %v5726
        %v5749 = vpack.c.b16 %v5729, %v5728
        %v5750 = vpack.c.b16 %v5731, %v5730
        %v5751 = vpack.c.b16 %v5733, %v5732
        %v5752 = vpack.c.b16 %v5735, %v5734
        %v5753 = vpack.c.b16 %v5737, %v5736
        %5770 = vmatprep.subr.bf16.mxu0 0
        %5771 = vmatpush1.bf16.msra.mxu0 %v5738
        %5772 = vmatprep.subr.bf16.mxu0 0
        %5773 = vmatpush1.bf16.msra.mxu0 %v5739
        %5774 = vmatprep.subr.bf16.mxu0 0
        %5775 = vmatpush1.bf16.msra.mxu0 %v5740
        %5776 = vmatprep.subr.bf16.mxu0 0
        %5777 = vmatpush1.bf16.msra.mxu0 %v5741
        %5778 = vmatprep.subr.bf16.mxu0 0
        %5779 = vmatpush1.bf16.msra.mxu0 %v5742
        %5780 = vmatprep.subr.bf16.mxu0 0
        %5781 = vmatpush1.bf16.msra.mxu0 %v5743
        %5782 = vmatprep.subr.bf16.mxu0 0
        %5783 = vmatpush1.bf16.msra.mxu0 %v5744
        %5784 = vmatprep.subr.bf16.mxu0 0
        %5785 = vmatpush1.bf16.msra.mxu0 %v5745
        %5786 = vmatprep.subr.bf16.mxu0 0
        %5787 = vmatpush1.bf16.msra.mxu0 %v5746
        %5788 = vmatprep.subr.bf16.mxu0 0
        %5789 = vmatpush1.bf16.msra.mxu0 %v5747
        %5790 = vmatprep.subr.bf16.mxu0 0
        %5791 = vmatpush1.bf16.msra.mxu0 %v5748
        %5792 = vmatprep.subr.bf16.mxu0 0
        %5793 = vmatpush1.bf16.msra.mxu0 %v5749
        %5794 = vmatprep.subr.bf16.mxu0 0
        %5795 = vmatpush1.bf16.msra.mxu0 %v5750
        %5796 = vmatprep.subr.bf16.mxu0 0
        %5797 = vmatpush1.bf16.msra.mxu0 %v5751
        %5798 = vmatprep.subr.bf16.mxu0 0
        %5799 = vmatpush1.bf16.msra.mxu0 %v5752
        %5800 = vmatprep.subr.bf16.mxu0 0
        %5801 = vmatpush1.bf16.msra.mxu0 %v5753
        %5802 = vmatprep.mubr.bf16.mxu0 %v5667
        %5803 = vmatmul.mubr.bf16.gmra.mrb[0].mxu0 %v5666
        %v5804 = vpop.f32.mrb[0].mxu0
        %v5805 = vadd.f32 %v5673, %v5804
        %v5806 = vpop.f32.mrb[0].mxu0
        %v5807 = vpop.f32.mrb[0].mxu0
        %v5808 = vadd.f32 %v5673, %v5807
        %v5809 = vpop.f32.mrb[0].mxu0
        %5810 = vmatprep.mubr.bf16.mxu0 %v5669
        %5811 = vmatmul.mubr.bf16.gmra.mrb[0].mxu0 %v5668
        %v5812 = vpop.f32.mrb[0].mxu0
        %v5813 = vadd.f32 %v5673, %v5812
        %v5814 = vpop.f32.mrb[0].mxu0
        %v5815 = vpop.f32.mrb[0].mxu0
        %v5816 = vadd.f32 %v5673, %v5815
        %v5817 = vpop.f32.mrb[0].mxu0
        %5818 = vdwg.mxu0
        %v5819 = vadd.f32 %v5395, %v5805
        %v5820 = vadd.f32 %v5396, %v5808
        %v5821 = vadd.f32 %v5397, %v5813
        %v5822 = vadd.f32 %v5398, %v5816
        %5823 = vst [vmem:[%s585] sm:$0xff] %v5819
        %5824 = vst [vmem:[%s585 + $0x8] sm:$0xff] %v5820
        %5825 = vst [vmem:[%s585 + $0x10] sm:$0xff] %v5821
        %5826 = vst [vmem:[%s585 + $0x18] sm:$0xff] %v5822
        %s5827 = sand.u32 %s289, 1
        %s5828 = scalar_lea.sflag [#allocation4], %s5827
        %s5829 = sand.u32 %s289, 1
        %s5830 = smul.addr %s5829, 32
        %s5831 = scalar_lea.vmem [#allocation19], %s5830
        // Predicated region
        $region105: #{tpu_custom_call.1} parent=63 // pred_check
          %p5832 = pneg %p299
        $region106: #{tpu_custom_call.1} parent=63 // pred_check_branch
          %5834 = sbr.rel (%p5832) target = $region108
        $region107: #{tpu_custom_call.1} parent=63 // pred_region
          %s5835 = smul.u32 4, %s35
          %s5837 = ssub.s32 512, 512
          %5838 = vsyncadd %s5828, %s5837
          %s5839 = smul.addr %s5835, 128
          %s5840 = scalar_lea.hbm %s11, %s5839
          %s5841 = sshll.u32 %s5831, 4
          %s5842 = int_to_ptr.vmem [resolvable:$true] %s5841
          %5847 = dma.vmem_to_hbm [thread:$0]  %s5842, 512, %s5840, %s5828, 128, 128, 8
        $region108: #{tpu_custom_call.1} parent=63 // pred_fallthru
          _
      $region64: #{tpu_custom_call.1} parent=5 // pred_fallthru
        _
      %p5848 = scmp.le.s32.totalorder 2, %s30
      // Predicated region
      $region109: #{tpu_custom_call.1} parent=5 // pred_check
        %p5849 = pneg %p5848
      $region110: #{tpu_custom_call.1} parent=5 // pred_check_branch
        %5851 = sbr.rel (%p5849) target = $region112
      $region111: #{tpu_custom_call.1} parent=5 // pred_region
        %s5852 = ssub.s32 %s30, 2
        // Predicated region
        $region113: #{tpu_custom_call.1} parent=111 // pred_check
          %p5853 = pneg %p305
        $region114: #{tpu_custom_call.1} parent=111 // pred_check_branch
          %5855 = sbr.rel (%p5853) target = $region116
        $region115: #{tpu_custom_call.1} parent=111 // pred_region
          %s5856 = sand.u32 %s290, 1
          %s5857 = scalar_lea.sflag [#allocation4], %s5856
          %s5858 = sand.u32 %s290, 1
          %s5859 = smul.addr %s5858, 32
          %s5860 = scalar_lea.vmem [#allocation19], %s5859
          %5861 = dma.done %s5857, 512
        $region116: #{tpu_custom_call.1} parent=111 // pred_fallthru
          _
      $region112: #{tpu_custom_call.1} parent=5 // pred_fallthru
        _
    $region6: #{tpu_custom_call.1} parent=1 // loop_footer
      %s34 = sadd.s32 1, %s30
    $region7: #{tpu_custom_call.1} parent=1 // loop_footer_branch
      %29 = sbr.rel target = $region3
    $region8: #{tpu_custom_call.1} parent=1 // loop_exit
      _
    %5862 = vsyncpa [#allocation3], 1
    %s5863 = scalar_lea.sflag [#allocation3], 1
    %5864 = vsyncpa %s5863, 1
    %5865 = vsyncpa [#allocation6], 1
    %s5866 = scalar_lea.sflag [#allocation6], 1
    %5867 = vsyncpa %s5866, 1
    %5868 = vsyncpa [#allocation9], 1
    %5869 = vsyncpa [#allocation12], 1
    %5870 = vsyncpa [#allocation15], 1
    %5871 = vsyncpa [#allocation18], 1
    %5872 = vsyncpa [#allocation4], 1
    %s5873 = scalar_lea.sflag [#allocation4], 1
    %5874 = vsyncpa %s5873, 1

</llo_original>
